<compile_context>
chip_gen: v7x
topology: tpu7x:2x2x1
jax: 0.10.0
libtpu: 0.0.40
codegen_flags: <defaults>
</compile_context>

<pallas_src>
import jax
import jax.numpy as jnp
from jax import lax
from jax.experimental import pallas as pl
from jax.experimental.pallas import tpu as pltpu

K_SIZE = 4
STRIDE = 2
PAD = 1
BN_EPS = 1e-5


def _round_up(x, m):
    return (x + m - 1) // m * m


def _vmem_limit_bytes():
    # Chip-aware scoped-VMEM budget: ~3/4 of physical per-core VMEM
    # (v5e/v6e: 128 MiB -> 96 MiB; v7x: 64 MiB -> 48 MiB).
    try:
        cap = int(pltpu.get_tpu_info().vmem_capacity_bytes)
    except Exception:
        cap = 64 * 1024 * 1024
    return max(32 * 1024 * 1024, min(cap * 3 // 4, 96 * 1024 * 1024))


# ---------------------------------------------------------------------------
# Pass 1: in-kernel patch gather + conv matmul + per-step BN partial stats
# ---------------------------------------------------------------------------
def _make_conv_stats_kernel(do_, ho_, wo_, kdim, cout_p):
    mb = do_ * ho_ * wo_
    inv_mb = 1.0 / mb

    def kernel(x_ref, w_ref, y_ref, stats_ref):
        # x_ref:     (Dq, Hq, Wq, 8*Cin) phase-split padded input, one sample.
        # w_ref:     (kdim, cout_p)      kdim = 64*Cin, ordered to match patches.
        # y_ref:     (cout_p, Mb)        conv output: Cout on sublanes, M on lanes.
        # stats_ref: (cout_p, 2)         BN partials: [:, 0]=mean_t, [:, 1]=M2_t.
        parts = []
        for qd in range(2):
            for qh in range(2):
                for qw in range(2):
                    parts.append(
                        x_ref[pl.ds(qd, do_), pl.ds(qh, ho_), pl.ds(qw, wo_), :])
        patches = jnp.concatenate(parts, axis=-1)          # (Do, Ho, Wo, kdim)
        rhs = patches.reshape(mb, kdim)                     # im2col tile, in VMEM only
        acc = jnp.dot(rhs, w_ref[...],
                      preferred_element_type=jnp.float32,
                      precision=lax.Precision.HIGHEST)      # (Mb, cout_p)
        y = jnp.transpose(acc)                              # (cout_p, Mb), lane-dense
        y_ref[...] = y
        # Chan-style per-step partials (stable variance): per-channel mean & M2.
        mean_t = jnp.sum(y, axis=1, keepdims=True) * inv_mb
        diff = y - mean_t
        m2_t = jnp.sum(diff * diff, axis=1, keepdims=True)
        stats_ref[...] = jnp.concatenate([mean_t, m2_t], axis=1)

    return kernel


# ---------------------------------------------------------------------------
# Pass 2: fused BatchNorm (folded scale/bias) + ReLU, in place over y
# ---------------------------------------------------------------------------
def _bn_relu_kernel(y_ref, scale_ref, bias_ref, o_ref):
    o_ref[...] = jnp.maximum(y_ref[...] * scale_ref[...] + bias_ref[...], 0.0)


def block2_forward(x, weight, gamma, beta):
    """x: (N, Cin, D, H, W) f32; weight: (Cout, Cin, 4, 4, 4); gamma/beta: (Cout,)."""
    n, cin, d, h, w = x.shape
    cout = weight.shape[0]
    assert d % 2 == 0 and h % 2 == 0 and w % 2 == 0, "even spatial dims expected"

    # Reflection padding of 1 on the three spatial dims (padding_mode='reflect').
    x_pad = jnp.pad(x.astype(jnp.float32),
                    ((0, 0), (0, 0), (PAD, PAD), (PAD, PAD), (PAD, PAD)),
                    mode="reflect")                              # (N, C, Dp, Hp, Wp)
    dp, hp, wp = d + 2 * PAD, h + 2 * PAD, w + 2 * PAD
    do = (dp - K_SIZE) // STRIDE + 1
    ho = (hp - K_SIZE) // STRIDE + 1
    wo = (wp - K_SIZE) // STRIDE + 1
    dq, hq, wq = dp // 2, hp // 2, wp // 2                        # = do+1, ho+1, wo+1
    mb = do * ho * wo                                             # output positions / sample
    pc = 8 * cin                                                  # phases x channels
    kdim = 64 * cin                                               # full contraction dim
    cout_p = _round_up(cout, 8)

    # 1x-sized phase split (space-to-depth for stride 2), phases+channels last:
    #   x_ph[n, dq, hq, wq, ((pd*2+ph)*2+pw)*C + c] = x_pad[n, c, 2dq+pd, 2hq+ph, 2wq+pw]
    x_ph = x_pad.reshape(n, cin, dq, 2, hq, 2, wq, 2)
    x_ph = jnp.transpose(x_ph, (0, 2, 4, 6, 3, 5, 7, 1))
    x_ph = x_ph.reshape(n, dq, hq, wq, pc)

    # Weight, reordered to match the in-kernel patch ordering:
    #   k = ((qd*2+qh)*2+qw)*8*Cin + ((pd*2+ph)*2+pw)*Cin + c, where k* = 2q*+p*.
    wr = weight.astype(jnp.float32).reshape(cout, cin, 2, 2, 2, 2, 2, 2)
    wr = jnp.transpose(wr, (2, 4, 6, 3, 5, 7, 1, 0))              # (qd,qh,qw,pd,ph,pw,c,o)
    w2d = wr.reshape(kdim, cout)
    w2d = jnp.pad(w2d, ((0, 0), (0, cout_p - cout)))

    gamma_p = jnp.pad(gamma.astype(jnp.float32), (0, cout_p - cout))
    beta_p = jnp.pad(beta.astype(jnp.float32), (0, cout_p - cout))

    cparams = pltpu.CompilerParams(
        dimension_semantics=("parallel",),
        vmem_limit_bytes=_vmem_limit_bytes(),
    )

    # ---- pass 1: in-kernel im2col + conv matmul + BN partials ---------------
    # TODO(synk): for large volumes / channel counts, tile the output depth with
    # a halo'd slab (manual DMA) instead of one whole per-sample phase slab,
    # single-buffer the constant weight (pl.Buffered(1)), and add a K-reduction
    # grid axis for large Cin.
    kern1 = _make_conv_stats_kernel(do, ho, wo, kdim, cout_p)
    y, stats = pl.pallas_call(
        kern1,
        grid=(n,),
        out_shape=(
            jax.ShapeDtypeStruct((n, cout_p, mb), jnp.float32),
            jax.ShapeDtypeStruct((n, cout_p, 2), jnp.float32),
        ),
        in_specs=[
            pl.BlockSpec((None, dq, hq, wq, pc), lambda i: (i, 0, 0, 0, 0)),
            pl.BlockSpec((kdim, cout_p), lambda i: (0, 0)),      # weights resident
        ],
        out_specs=(
            pl.BlockSpec((None, cout_p, mb), lambda i: (i, 0, 0)),
            pl.BlockSpec((None, cout_p, 2), lambda i: (i, 0, 0)),
        ),
        compiler_params=cparams,
        cost_estimate=pl.CostEstimate(
            flops=2 * n * mb * kdim * cout,
            transcendentals=0,
            bytes_accessed=4 * (x_ph.size + kdim * cout + n * cout * mb),
        ),
    )(x_ph, w2d)

    # Finalize BN stats: Chan-style combine of per-sample (mean, M2), all f32.
    mean_t = stats[:, :, 0]                                       # (N, cout_p)
    m2_t = stats[:, :, 1]
    total = n * mb
    mean = jnp.mean(mean_t, axis=0)
    m2 = jnp.sum(m2_t, axis=0) + mb * jnp.sum((mean_t - mean[None, :]) ** 2, axis=0)
    var = m2 / total                                              # biased (PyTorch train norm)
    inv = lax.rsqrt(var + BN_EPS)
    scale = (gamma_p * inv).reshape(cout_p, 1)
    bias = (beta_p - mean * gamma_p * inv).reshape(cout_p, 1)

    # ---- pass 2: normalize + ReLU, in place over y, lane-dense ---------------
    out = pl.pallas_call(
        _bn_relu_kernel,
        grid=(n,),
        out_shape=jax.ShapeDtypeStruct((n, cout_p, mb), jnp.float32),
        in_specs=[
            pl.BlockSpec((None, cout_p, mb), lambda i: (i, 0, 0)),
            pl.BlockSpec((cout_p, 1), lambda i: (0, 0)),
            pl.BlockSpec((cout_p, 1), lambda i: (0, 0)),
        ],
        out_specs=pl.BlockSpec((None, cout_p, mb), lambda i: (i, 0, 0)),
        input_output_aliases={0: 0},
        compiler_params=cparams,
        cost_estimate=pl.CostEstimate(
            flops=2 * n * cout * mb,
            transcendentals=0,
            bytes_accessed=4 * 2 * n * cout * mb,
        ),
    )(y, scale, bias)

    # (N, cout_p, Do*Ho*Wo) -> (N, Cout, Do, Ho, Wo): reshape only, no transpose.
    if cout_p != cout:
        out = out[:, :cout, :]
    return out.reshape(n, cout, do, ho, wo)


if __name__ == "__main__":
    # Small shapes consistent with the module: batch=2, in_channels=4,
    # out_channels=8, spatial 16^3 -> output spatial 8^3.
    N, CIN, COUT, S = 2, 4, 8, 16

    key = jax.random.PRNGKey(0)
    kx, kw = jax.random.split(key)

    x = jax.random.normal(kx, (N, CIN, S, S, S), dtype=jnp.float32)

    # Deterministic Kaiming-normal init (fan_in mode, relu gain = sqrt(2)).
    fan_in = CIN * K_SIZE * K_SIZE * K_SIZE
    std = (2.0 / fan_in) ** 0.5
    weight = std * jax.random.normal(
        kw, (COUT, CIN, K_SIZE, K_SIZE, K_SIZE), dtype=jnp.float32)

    # BatchNorm affine params at their PyTorch init values.
    gamma = jnp.ones((COUT,), dtype=jnp.float32)
    beta = jnp.zeros((COUT,), dtype=jnp.float32)

    out = jax.jit(block2_forward)(x, weight, gamma, beta)
    jax.block_until_ready(out)

    assert out.shape == (N, COUT, S // 2, S // 2, S // 2), out.shape
    assert bool(jnp.all(jnp.isfinite(out)))

    # Pure-JAX reference: reflect pad -> Conv3d(s=2, no bias) -> BN(train) -> ReLU.
    xp = jnp.pad(x, ((0, 0), (0, 0), (1, 1), (1, 1), (1, 1)), mode="reflect")
    conv = lax.conv_general_dilated(
        xp, weight, window_strides=(2, 2, 2), padding="VALID",
        dimension_numbers=("NCDHW", "OIDHW", "NCDHW"),
        precision=lax.Precision.HIGHEST)
    mu = jnp.mean(conv, axis=(0, 2, 3, 4), keepdims=True)
    vr = jnp.var(conv, axis=(0, 2, 3, 4), keepdims=True)
    ref = jnp.maximum(
        (conv - mu) * lax.rsqrt(vr + BN_EPS) * gamma.reshape(1, -1, 1, 1, 1)
        + beta.reshape(1, -1, 1, 1, 1), 0.0)
    err = float(jnp.max(jnp.abs(out - ref)))
    assert err < 1e-2, f"max abs error vs reference: {err}"

    print("KERNEL_OK")
</pallas_src>

<mosaic_0001>
module attributes {stable_mosaic.version = 11 : i64} {
  func.func @kernel(%arg0: i32, %arg1: memref<1x9x9x9x32xf32, #tpu.memory_space<vmem>>, %arg2: memref<256x8xf32, #tpu.memory_space<vmem>>, %arg3: memref<1x8x512xf32, #tpu.memory_space<vmem>>, %arg4: memref<1x8x2xf32, #tpu.memory_space<vmem>>) attributes {dimension_semantics = [#tpu.dimension_semantics<parallel>], iteration_bounds = array<i64: 2>, scalar_prefetch = 0 : i64, scratch_operands = 0 : i64, tpu.core_type = #tpu.core_type<tc>, window_params = [{transform_indices = @transform_0, window_bounds = array<i64: 1, 9, 9, 9, 32>}, {pipeline_mode = #tpu.pipeline_mode<synchronous>, transform_indices = @transform_1, window_bounds = array<i64: 256, 8>}, {transform_indices = @transform_2, window_bounds = array<i64: 1, 8, 512>}, {transform_indices = @transform_3, window_bounds = array<i64: 1, 8, 2>}]} {
    %c0 = arith.constant 0 : index
    %c0_0 = arith.constant 0 : index
    %c0_1 = arith.constant 0 : index
    %c0_2 = arith.constant 0 : index
    %c0_3 = arith.constant 0 : index
    %0 = vector.load %arg1[%c0, %c0_0, %c0_1, %c0_2, %c0_3] : memref<1x9x9x9x32xf32, #tpu.memory_space<vmem>>, vector<1x8x8x8x32xf32>
    %1 = vector.shape_cast %0 : vector<1x8x8x8x32xf32> to vector<8x8x8x32xf32>
    %c0_4 = arith.constant 0 : index
    %c0_5 = arith.constant 0 : index
    %c0_6 = arith.constant 0 : index
    %c1 = arith.constant 1 : index
    %c0_7 = arith.constant 0 : index
    %2 = vector.load %arg1[%c0_4, %c0_5, %c0_6, %c1, %c0_7] : memref<1x9x9x9x32xf32, #tpu.memory_space<vmem>>, vector<1x8x8x8x32xf32>
    %3 = vector.shape_cast %2 : vector<1x8x8x8x32xf32> to vector<8x8x8x32xf32>
    %c0_8 = arith.constant 0 : index
    %c0_9 = arith.constant 0 : index
    %c1_10 = arith.constant 1 : index
    %c0_11 = arith.constant 0 : index
    %c0_12 = arith.constant 0 : index
    %4 = vector.load %arg1[%c0_8, %c0_9, %c1_10, %c0_11, %c0_12] : memref<1x9x9x9x32xf32, #tpu.memory_space<vmem>>, vector<1x8x8x8x32xf32>
    %5 = vector.shape_cast %4 : vector<1x8x8x8x32xf32> to vector<8x8x8x32xf32>
    %c0_13 = arith.constant 0 : index
    %c0_14 = arith.constant 0 : index
    %c1_15 = arith.constant 1 : index
    %c1_16 = arith.constant 1 : index
    %c0_17 = arith.constant 0 : index
    %6 = vector.load %arg1[%c0_13, %c0_14, %c1_15, %c1_16, %c0_17] : memref<1x9x9x9x32xf32, #tpu.memory_space<vmem>>, vector<1x8x8x8x32xf32>
    %7 = vector.shape_cast %6 : vector<1x8x8x8x32xf32> to vector<8x8x8x32xf32>
    %c0_18 = arith.constant 0 : index
    %c1_19 = arith.constant 1 : index
    %c0_20 = arith.constant 0 : index
    %c0_21 = arith.constant 0 : index
    %c0_22 = arith.constant 0 : index
    %8 = vector.load %arg1[%c0_18, %c1_19, %c0_20, %c0_21, %c0_22] : memref<1x9x9x9x32xf32, #tpu.memory_space<vmem>>, vector<1x8x8x8x32xf32>
    %9 = vector.shape_cast %8 : vector<1x8x8x8x32xf32> to vector<8x8x8x32xf32>
    %c0_23 = arith.constant 0 : index
    %c1_24 = arith.constant 1 : index
    %c0_25 = arith.constant 0 : index
    %c1_26 = arith.constant 1 : index
    %c0_27 = arith.constant 0 : index
    %10 = vector.load %arg1[%c0_23, %c1_24, %c0_25, %c1_26, %c0_27] : memref<1x9x9x9x32xf32, #tpu.memory_space<vmem>>, vector<1x8x8x8x32xf32>
    %11 = vector.shape_cast %10 : vector<1x8x8x8x32xf32> to vector<8x8x8x32xf32>
    %c0_28 = arith.constant 0 : index
    %c1_29 = arith.constant 1 : index
    %c1_30 = arith.constant 1 : index
    %c0_31 = arith.constant 0 : index
    %c0_32 = arith.constant 0 : index
    %12 = vector.load %arg1[%c0_28, %c1_29, %c1_30, %c0_31, %c0_32] : memref<1x9x9x9x32xf32, #tpu.memory_space<vmem>>, vector<1x8x8x8x32xf32>
    %13 = vector.shape_cast %12 : vector<1x8x8x8x32xf32> to vector<8x8x8x32xf32>
    %c0_33 = arith.constant 0 : index
    %c1_34 = arith.constant 1 : index
    %c1_35 = arith.constant 1 : index
    %c1_36 = arith.constant 1 : index
    %c0_37 = arith.constant 0 : index
    %14 = vector.load %arg1[%c0_33, %c1_34, %c1_35, %c1_36, %c0_37] : memref<1x9x9x9x32xf32, #tpu.memory_space<vmem>>, vector<1x8x8x8x32xf32>
    %15 = vector.shape_cast %14 : vector<1x8x8x8x32xf32> to vector<8x8x8x32xf32>
    %16 = tpu.concatenate %1, %3, %5, %7, %9, %11, %13, %15 in 3 : vector<8x8x8x32xf32>, vector<8x8x8x32xf32>, vector<8x8x8x32xf32>, vector<8x8x8x32xf32>, vector<8x8x8x32xf32>, vector<8x8x8x32xf32>, vector<8x8x8x32xf32>, vector<8x8x8x32xf32> -> vector<8x8x8x256xf32>
    %17 = vector.shape_cast %16 : vector<8x8x8x256xf32> to vector<512x256xf32>
    %c0_38 = arith.constant 0 : index
    %c0_39 = arith.constant 0 : index
    %18 = vector.load %arg2[%c0_38, %c0_39] : memref<256x8xf32, #tpu.memory_space<vmem>>, vector<256x8xf32>
    %cst = arith.constant dense<0.000000e+00> : vector<512x8xf32>
    %19 = tpu.matmul %17, %18, %cst {dimension_numbers = #tpu.dot_dimension_numbers<[1], [0], [0], [1], [0, 0, 1, 1], [], []>, precision = #tpu.contract_precision<fp32>} : vector<512x256xf32>, vector<256x8xf32>, vector<512x8xf32> -> vector<512x8xf32>
    %20 = tpu.transpose %19, [1, 0] : vector<512x8xf32> -> vector<8x512xf32>
    %c0_40 = arith.constant 0 : index
    %c0_41 = arith.constant 0 : index
    %c0_42 = arith.constant 0 : index
    %21 = vector.load %arg3[%c0_40, %c0_41, %c0_42] : memref<1x8x512xf32, #tpu.memory_space<vmem>>, vector<1x8x512xf32>
    %22 = vector.shape_cast %21 : vector<1x8x512xf32> to vector<8x512xf32>
    %23 = vector.shape_cast %20 : vector<8x512xf32> to vector<1x8x512xf32>
    tpu.vector_store %arg3[%c0_40, %c0_41, %c0_42], %23 {strides = array<i32>} : memref<1x8x512xf32, #tpu.memory_space<vmem>>, vector<1x8x512xf32>,
    %cst_43 = arith.constant dense<0.000000e+00> : vector<8xf32>
    %24 = vector.multi_reduction <add>, %20, %cst_43 [1] : vector<8x512xf32> to vector<8xf32>
    %25 = vector.shape_cast %24 : vector<8xf32> to vector<8x1xf32>
    %cst_44 = arith.constant 0.001953125 : f32
    %26 = vector.broadcast %cst_44 : f32 to vector<8x1xf32>
    %27 = arith.mulf %25, %26 : vector<8x1xf32>
    %28 = vector.broadcast %27 : vector<8x1xf32> to vector<8x512xf32>
    %29 = arith.subf %20, %28 : vector<8x512xf32>
    %30 = arith.mulf %29, %29 : vector<8x512xf32>
    %cst_45 = arith.constant dense<0.000000e+00> : vector<8xf32>
    %31 = vector.multi_reduction <add>, %30, %cst_45 [1] : vector<8x512xf32> to vector<8xf32>
    %32 = vector.shape_cast %31 : vector<8xf32> to vector<8x1xf32>
    %33 = tpu.concatenate %27, %32 in 1 : vector<8x1xf32>, vector<8x1xf32> -> vector<8x2xf32>
    %c0_46 = arith.constant 0 : index
    %c0_47 = arith.constant 0 : index
    %c0_48 = arith.constant 0 : index
    %34 = vector.load %arg4[%c0_46, %c0_47, %c0_48] : memref<1x8x2xf32, #tpu.memory_space<vmem>>, vector<1x8x2xf32>
    %35 = vector.shape_cast %34 : vector<1x8x2xf32> to vector<8x2xf32>
    %36 = vector.shape_cast %33 : vector<8x2xf32> to vector<1x8x2xf32>
    tpu.vector_store %arg4[%c0_46, %c0_47, %c0_48], %36 {strides = array<i32>} : memref<1x8x2xf32, #tpu.memory_space<vmem>>, vector<1x8x2xf32>,
    return
  }
  func.func @transform_0(%arg0: i32) -> (i32, i32, i32, i32, i32) {
    %c0_i32 = arith.constant 0 : i32
    %c0_i32_0 = arith.constant 0 : i32
    %c0_i32_1 = arith.constant 0 : i32
    %c0_i32_2 = arith.constant 0 : i32
    %c0_i32_3 = arith.constant 0 : i32
    return %arg0, %c0_i32, %c0_i32_0, %c0_i32_1, %c0_i32_2 : i32, i32, i32, i32, i32
  }
  func.func @transform_1(%arg0: i32) -> (i32, i32) {
    %c0_i32 = arith.constant 0 : i32
    %c0_i32_0 = arith.constant 0 : i32
    %c0_i32_1 = arith.constant 0 : i32
    return %c0_i32, %c0_i32_0 : i32, i32
  }
  func.func @transform_2(%arg0: i32) -> (i32, i32, i32) {
    %c0_i32 = arith.constant 0 : i32
    %c0_i32_0 = arith.constant 0 : i32
    %c0_i32_1 = arith.constant 0 : i32
    return %arg0, %c0_i32, %c0_i32_0 : i32, i32, i32
  }
  func.func @transform_3(%arg0: i32) -> (i32, i32, i32) {
    %c0_i32 = arith.constant 0 : i32
    %c0_i32_0 = arith.constant 0 : i32
    %c0_i32_1 = arith.constant 0 : i32
    return %arg0, %c0_i32, %c0_i32_0 : i32, i32, i32
  }
}

module attributes {stable_mosaic.version = 11 : i64} {
  func.func @_bn_relu_kernel(%arg0: i32, %arg1: memref<1x8x512xf32, #tpu.memory_space<vmem>>, %arg2: memref<8x1xf32, #tpu.memory_space<vmem>>, %arg3: memref<8x1xf32, #tpu.memory_space<vmem>>, %arg4: memref<1x8x512xf32, #tpu.memory_space<vmem>>) attributes {dimension_semantics = [#tpu.dimension_semantics<parallel>], iteration_bounds = array<i64: 2>, scalar_prefetch = 0 : i64, scratch_operands = 0 : i64, tpu.core_type = #tpu.core_type<tc>, window_params = [{transform_indices = @transform_0, window_bounds = array<i64: 1, 8, 512>}, {pipeline_mode = #tpu.pipeline_mode<synchronous>, transform_indices = @transform_1, window_bounds = array<i64: 8, 1>}, {pipeline_mode = #tpu.pipeline_mode<synchronous>, transform_indices = @transform_2, window_bounds = array<i64: 8, 1>}, {transform_indices = @transform_3, window_bounds = array<i64: 1, 8, 512>}]} {
    %c0 = arith.constant 0 : index
    %c0_0 = arith.constant 0 : index
    %c0_1 = arith.constant 0 : index
    %0 = vector.load %arg1[%c0, %c0_0, %c0_1] : memref<1x8x512xf32, #tpu.memory_space<vmem>>, vector<1x8x512xf32>
    %1 = vector.shape_cast %0 : vector<1x8x512xf32> to vector<8x512xf32>
    %c0_2 = arith.constant 0 : index
    %c0_3 = arith.constant 0 : index
    %2 = vector.load %arg2[%c0_2, %c0_3] : memref<8x1xf32, #tpu.memory_space<vmem>>, vector<8x1xf32>
    %3 = vector.broadcast %2 : vector<8x1xf32> to vector<8x512xf32>
    %4 = arith.mulf %1, %3 : vector<8x512xf32>
    %c0_4 = arith.constant 0 : index
    %c0_5 = arith.constant 0 : index
    %5 = vector.load %arg3[%c0_4, %c0_5] : memref<8x1xf32, #tpu.memory_space<vmem>>, vector<8x1xf32>
    %6 = vector.broadcast %5 : vector<8x1xf32> to vector<8x512xf32>
    %7 = arith.addf %4, %6 : vector<8x512xf32>
    %cst = arith.constant 0.000000e+00 : f32
    %8 = vector.broadcast %cst : f32 to vector<8x512xf32>
    %9 = arith.maximumf %7, %8 : vector<8x512xf32>
    %c0_6 = arith.constant 0 : index
    %c0_7 = arith.constant 0 : index
    %c0_8 = arith.constant 0 : index
    %10 = vector.load %arg4[%c0_6, %c0_7, %c0_8] : memref<1x8x512xf32, #tpu.memory_space<vmem>>, vector<1x8x512xf32>
    %11 = vector.shape_cast %10 : vector<1x8x512xf32> to vector<8x512xf32>
    %12 = vector.shape_cast %9 : vector<8x512xf32> to vector<1x8x512xf32>
    tpu.vector_store %arg4[%c0_6, %c0_7, %c0_8], %12 {strides = array<i32>} : memref<1x8x512xf32, #tpu.memory_space<vmem>>, vector<1x8x512xf32>,
    return
  }
  func.func @transform_0(%arg0: i32) -> (i32, i32, i32) {
    %c0_i32 = arith.constant 0 : i32
    %c0_i32_0 = arith.constant 0 : i32
    %c0_i32_1 = arith.constant 0 : i32
    return %arg0, %c0_i32, %c0_i32_0 : i32, i32, i32
  }
  func.func @transform_1(%arg0: i32) -> (i32, i32) {
    %c0_i32 = arith.constant 0 : i32
    %c0_i32_0 = arith.constant 0 : i32
    %c0_i32_1 = arith.constant 0 : i32
    return %c0_i32, %c0_i32_0 : i32, i32
  }
  func.func @transform_2(%arg0: i32) -> (i32, i32) {
    %c0_i32 = arith.constant 0 : i32
    %c0_i32_0 = arith.constant 0 : i32
    %c0_i32_1 = arith.constant 0 : i32
    return %c0_i32, %c0_i32_0 : i32, i32
  }
  func.func @transform_3(%arg0: i32) -> (i32, i32, i32) {
    %c0_i32 = arith.constant 0 : i32
    %c0_i32_0 = arith.constant 0 : i32
    %c0_i32_1 = arith.constant 0 : i32
    return %arg0, %c0_i32, %c0_i32_0 : i32, i32, i32
  }
}

</mosaic_0001>

<llo_original>
// kernel: block2_forward.3
$region0: #{block2_forward.3}
  #allocation0 [shape = 'u32[]', space=smem, size = 0x4, offset = 0x4, fixed_abs, tag = 'smem constant byte address 0x4 - core index']
  #allocation1 [shape = 'u32[144,128]{1,0:T(1,128)}', space=vmem, size = 0x12000, scoped, tag = 'internal scratch']
  %s0 = inlined_call_operand.vmem [shape: f32[2,8,512], index: 0, kind: input, shape index: {}, may-alias: {0,3}]
  %s1 = inlined_call_operand.vmem [shape: f32[8,1], index: 1, kind: input, shape index: {}]
  %s2 = inlined_call_operand.vmem [shape: f32[8,1], index: 2, kind: input, shape index: {}]
  %s3 = inlined_call_operand.vmem [shape: f32[2,8,512], index: 3, kind: output, shape index: {}, may-alias: {0,3}]
  %s4 = sld [smem:[#allocation0]]
  $region45: #{block2_forward.3} parent=0
    _
  %s6 = ssub.s32 1, %s4
  %s7 = scalar_select 0, %s6, %s4
  loop: start=0, step=1, limit=4
  $region2: #{block2_forward.3} parent=0 // loop_pre_header
    _
  $region3: #{block2_forward.3} parent=0 // loop_header
    %s9 = sphi 0, %s13
    %p10 = scmp.ge.s32.totalorder %s9, 4
    %s19 = sphi 0, %s21
    %s22 = sphi 0, %s19
    %s23 = sphi 0, %s22
    %s39 = sphi 0, %s23
    %s43 = sphi 0, %s43
    %s45 = sphi 0, %s43
    %s46 = sphi 0, %s45
    %s60 = sphi 0, %s46
    %s64 = sphi 0, %s64
    %s66 = sphi 0, %s64
    %s67 = sphi 0, %s66
    %s81 = sphi 0, %s67
    %s87 = sphi 0, %s89
    %s90 = sphi 0, %s87
    %s91 = sphi 0, %s90
    %s107 = sphi 0, %s91
  $region4: #{block2_forward.3} parent=0 // loop_header_branch
    %12 = sbr.rel (%p10) target = $region8
  $region5: #{block2_forward.3} parent=0 // loop_body
    %s14 = ssub.s32 %s9, 1
    %s15 = ssub.s32 %s9, 2
    %s16 = sadd.s32 %s9, 1
    %s17 = ssub.s32 %s9, %s16
    %p18 = scmp.eq.s32.totalorder %s17, 0
    %s20 = sadd.s32 %s19, 1
    %s21 = scalar_select %p18, %s19, %s20
    %p24 = pneg %p18
    %p25 = scmp.eq.s32.totalorder %s9, 1
    %p26 = por %p24, %p25
    %p27 = scmp.ne.s32.totalorder %s19, %s22
    %p28 = scmp.eq.s32.totalorder %s9, 0
    %p29 = por %p27, %p28
    %p30 = scmp.ne.s32.totalorder %s19, %s22
    %p31 = scmp.eq.s32.totalorder %s14, 1
    %p32 = por %p30, %p31
    %p33 = scmp.ne.s32.totalorder %s22, %s23
    %p34 = scmp.eq.s32.totalorder %s14, 0
    %p35 = por %p33, %p34
    %p36 = scmp.ne.s32.totalorder %s22, %s23
    %p37 = scmp.eq.s32.totalorder %s15, 1
    %p38 = por %p36, %p37
    %p40 = scmp.ne.s32.totalorder %s23, %s39
    %p41 = scmp.eq.s32.totalorder %s15, 0
    %p42 = por %p40, %p41
    %s44 = sadd.s32 %s43, 1
    %p47 = scmp.eq.s32.totalorder %s9, 1
    %p48 = scmp.ne.s32.totalorder %s43, %s45
    %p49 = scmp.eq.s32.totalorder %s9, 0
    %p50 = por %p48, %p49
    %p51 = scmp.ne.s32.totalorder %s43, %s45
    %p52 = scmp.eq.s32.totalorder %s14, 1
    %p53 = por %p51, %p52
    %p54 = scmp.ne.s32.totalorder %s45, %s46
    %p55 = scmp.eq.s32.totalorder %s14, 0
    %p56 = por %p54, %p55
    %p57 = scmp.ne.s32.totalorder %s45, %s46
    %p58 = scmp.eq.s32.totalorder %s15, 1
    %p59 = por %p57, %p58
    %p61 = scmp.ne.s32.totalorder %s46, %s60
    %p62 = scmp.eq.s32.totalorder %s15, 0
    %p63 = por %p61, %p62
    %s65 = sadd.s32 %s64, 1
    %p68 = scmp.eq.s32.totalorder %s9, 1
    %p69 = scmp.ne.s32.totalorder %s64, %s66
    %p70 = scmp.eq.s32.totalorder %s9, 0
    %p71 = por %p69, %p70
    %p72 = scmp.ne.s32.totalorder %s64, %s66
    %p73 = scmp.eq.s32.totalorder %s14, 1
    %p74 = por %p72, %p73
    %p75 = scmp.ne.s32.totalorder %s66, %s67
    %p76 = scmp.eq.s32.totalorder %s14, 0
    %p77 = por %p75, %p76
    %p78 = scmp.ne.s32.totalorder %s66, %s67
    %p79 = scmp.eq.s32.totalorder %s15, 1
    %p80 = por %p78, %p79
    %p82 = scmp.ne.s32.totalorder %s67, %s81
    %p83 = scmp.eq.s32.totalorder %s15, 0
    %p84 = por %p82, %p83
    %s85 = ssub.s32 %s9, %s16
    %p86 = scmp.eq.s32.totalorder %s85, 0
    %s88 = sadd.s32 %s87, 1
    %s89 = scalar_select %p86, %s87, %s88
    %p92 = pneg %p86
    %p93 = scmp.eq.s32.totalorder %s9, 1
    %p94 = por %p92, %p93
    %p95 = scmp.ne.s32.totalorder %s87, %s90
    %p96 = scmp.eq.s32.totalorder %s9, 0
    %p97 = por %p95, %p96
    %p98 = scmp.ne.s32.totalorder %s87, %s90
    %p99 = scmp.eq.s32.totalorder %s14, 1
    %p100 = por %p98, %p99
    %p101 = scmp.ne.s32.totalorder %s90, %s91
    %p102 = scmp.eq.s32.totalorder %s14, 0
    %p103 = por %p101, %p102
    %p104 = scmp.ne.s32.totalorder %s90, %s91
    %p105 = scmp.eq.s32.totalorder %s15, 1
    %p106 = por %p104, %p105
    %p108 = scmp.ne.s32.totalorder %s91, %s107
    %p109 = scmp.eq.s32.totalorder %s15, 0
    %p110 = por %p108, %p109
    %p111 = scmp.le.s32.totalorder 1, %s9
    %p112 = scmp.lt.s32.totalorder %s9, 3
    %p113 = pnand %p111, %p112
    %p114 = pneg %p113
    // Predicated region
    $region9: #{block2_forward.3} parent=5 // pred_check
      _
    $region10: #{block2_forward.3} parent=5 // pred_check_branch
      %116 = sbr.rel (%p113) target = $region12
    $region11: #{block2_forward.3} parent=5 // pred_region
      %s117 = ssub.s32 %s9, 1
      // Predicated region
      $region13: #{block2_forward.3} parent=11 // pred_check
        %p118 = pneg %p56
      $region14: #{block2_forward.3} parent=11 // pred_check_branch
        %120 = sbr.rel (%p118) target = $region16
      $region15: #{block2_forward.3} parent=11 // pred_region
        _
      $region16: #{block2_forward.3} parent=11 // pred_fallthru
        _
      // Predicated region
      $region17: #{block2_forward.3} parent=11 // pred_check
        %p121 = pneg %p77
      $region18: #{block2_forward.3} parent=11 // pred_check_branch
        %123 = sbr.rel (%p121) target = $region20
      $region19: #{block2_forward.3} parent=11 // pred_region
        _
      $region20: #{block2_forward.3} parent=11 // pred_fallthru
        _
    $region12: #{block2_forward.3} parent=5 // pred_fallthru
      _
    %p124 = scmp.lt.s32.totalorder %s9, 2
    // Predicated region
    $region21: #{block2_forward.3} parent=5 // pred_check
      %p125 = pneg %p124
    $region22: #{block2_forward.3} parent=5 // pred_check_branch
      %127 = sbr.rel (%p125) target = $region24
    $region23: #{block2_forward.3} parent=5 // pred_region
      // Predicated region
      $region25: #{block2_forward.3} parent=23 // pred_check
        %p128 = pneg %p29
      $region26: #{block2_forward.3} parent=23 // pred_check_branch
        %130 = sbr.rel (%p128) target = $region28
      $region27: #{block2_forward.3} parent=23 // pred_region
        %p131 = scmp.lt.s32.totalorder %s9, 1
        %s132 = scalar_select %p131, %s9, 1
        %s133 = smul.addr %s132, 4
        %s134 = smul.addr %s133, 8
        %s135 = scalar_lea.vmem %s0, %s134
      $region28: #{block2_forward.3} parent=23 // pred_fallthru
        _
    $region24: #{block2_forward.3} parent=5 // pred_fallthru
      _
    %p136 = scmp.le.s32.totalorder 1, %s9
    %p137 = scmp.lt.s32.totalorder %s9, 3
    %p138 = pnand %p136, %p137
    %p139 = pneg %p138
    // Predicated region
    $region29: #{block2_forward.3} parent=5 // pred_check
      _
    $region30: #{block2_forward.3} parent=5 // pred_check_branch
      %141 = sbr.rel (%p138) target = $region32
    $region31: #{block2_forward.3} parent=5 // pred_region
      %s142 = ssub.s32 %s9, 1
      %p143 = scmp.lt.s32.totalorder %s14, 1
      %s144 = scalar_select %p143, %s14, 1
      %s145 = smul.addr %s144, 4
      %s146 = smul.addr %s145, 8
      %s147 = scalar_lea.vmem %s0, %s146
      %p148 = pneg %p35
      %p149 = pneg %p32
      %p150 = pneg %p56
      %p151 = pneg %p53
      %p152 = pneg %p77
      %p153 = pneg %p74
      %p154 = pneg %p103
      %p155 = pneg %p100
      %p156 = scmp.lt.s32.totalorder %s14, 1
      %s157 = scalar_select %p156, %s14, 1
      %s158 = smul.addr %s157, 4
      %s159 = smul.addr %s158, 8
      %s160 = scalar_lea.vmem %s3, %s159
      %p161 = scmp.lt.s32.totalorder %s14, 1
      %s162 = scalar_select %p161, %s14, 1
      %s163 = smul.addr %s162, 4
      %s164 = smul.addr %s163, 8
      %s165 = scalar_lea.vmem %s0, %s164
      %p166 = scmp.lt.s32.totalorder %s14, 1
      %s167 = scalar_select %p166, %s14, 1
      %s168 = smul.addr %s167, 4
      %s169 = smul.addr %s168, 8
      %s170 = scalar_lea.vmem %s3, %s169
      %v171 = vld [vmem:[%s165] sm:$0xff]
      %v172 = vld [vmem:[%s165 + $0x8] sm:$0xff]
      %v173 = vld [vmem:[%s165 + $0x10] sm:$0xff]
      %v174 = vld [vmem:[%s165 + $0x18] sm:$0xff]
      %v175 = vld [vmem:[%s1] sm:$0xff]
      %177 = vset.pattern.permute.xlu0 0
      %178 = vperm.xlu0 %177, %v175
      %v179 = vpop.permute.xlu0 %178
      %v181 = vmul.f32 %v171, %v179
      %v182 = vmul.f32 %v172, %v179
      %v183 = vmul.f32 %v173, %v179
      %v184 = vmul.f32 %v174, %v179
      %v185 = vld [vmem:[%s2] sm:$0xff]
      %187 = vset.pattern.permute.xlu0 0
      %188 = vperm.xlu0 %187, %v185
      %v189 = vpop.permute.xlu0 %188
      %v191 = vadd.f32 %v181, %v189
      %v192 = vadd.f32 %v182, %v189
      %v193 = vadd.f32 %v183, %v189
      %v194 = vadd.f32 %v184, %v189
      %v195 = vmax.f32 %v191, 0.0
      %v196 = vmax.f32 %v192, 0.0
      %v197 = vmax.f32 %v193, 0.0
      %v198 = vmax.f32 %v194, 0.0
      %199 = vst [vmem:[%s170] sm:$0xff] %v195
      %200 = vst [vmem:[%s170 + $0x8] sm:$0xff] %v196
      %201 = vst [vmem:[%s170 + $0x10] sm:$0xff] %v197
      %202 = vst [vmem:[%s170 + $0x18] sm:$0xff] %v198
      %p203 = scmp.lt.s32.totalorder %s14, 1
      %s204 = scalar_select %p203, %s14, 1
      %s205 = smul.addr %s204, 4
      %s206 = smul.addr %s205, 8
      %s207 = scalar_lea.vmem %s3, %s206
      // Predicated region
      $region33: #{block2_forward.3} parent=31 // pred_check
        %p208 = pneg %p100
      $region34: #{block2_forward.3} parent=31 // pred_check_branch
        %210 = sbr.rel (%p208) target = $region36
      $region35: #{block2_forward.3} parent=31 // pred_region
        _
      $region36: #{block2_forward.3} parent=31 // pred_fallthru
        _
    $region32: #{block2_forward.3} parent=5 // pred_fallthru
      _
    %p211 = scmp.le.s32.totalorder 2, %s9
    // Predicated region
    $region37: #{block2_forward.3} parent=5 // pred_check
      %p212 = pneg %p211
    $region38: #{block2_forward.3} parent=5 // pred_check_branch
      %214 = sbr.rel (%p212) target = $region40
    $region39: #{block2_forward.3} parent=5 // pred_region
      %s215 = ssub.s32 %s9, 2
      // Predicated region
      $region41: #{block2_forward.3} parent=39 // pred_check
        %p216 = pneg %p106
      $region42: #{block2_forward.3} parent=39 // pred_check_branch
        %218 = sbr.rel (%p216) target = $region44
      $region43: #{block2_forward.3} parent=39 // pred_region
        %p219 = scmp.lt.s32.totalorder %s15, 1
        %s220 = scalar_select %p219, %s15, 1
        %s221 = smul.addr %s220, 4
        %s222 = smul.addr %s221, 8
        %s223 = scalar_lea.vmem %s3, %s222
      $region44: #{block2_forward.3} parent=39 // pred_fallthru
        _
    $region40: #{block2_forward.3} parent=5 // pred_fallthru
      _
  $region6: #{block2_forward.3} parent=0 // loop_footer
    %s13 = sadd.s32 1, %s9
  $region7: #{block2_forward.3} parent=0 // loop_footer_branch
    %8 = sbr.rel target = $region3
  $region8: #{block2_forward.3} parent=0 // loop_exit
    _

// kernel: block2_forward.2
$region0: #{block2_forward.2}
  #allocation0 [shape = 'u32[]', space=smem, size = 0x4, offset = 0x4, fixed_abs, tag = 'smem constant byte address 0x4 - core index']
  #allocation1 [shape = 'u32[144,128]{1,0:T(1,128)}', space=vmem, size = 0x12000, scoped, tag = 'internal scratch']
  %s0 = inlined_call_operand.vmem [shape: f32[2,9,9,9,32], index: 0, kind: input, shape index: {}]
  %s1 = inlined_call_operand.vmem [shape: f32[256,8], index: 1, kind: input, shape index: {}]
  %s2 = inlined_call_operand.vmem [shape: f32[2,8,512], index: 2, kind: output, shape index: {0}]
  %s3 = inlined_call_operand.vmem [shape: f32[2,8,2], index: 3, kind: output, shape index: {1}]
  %4 = xla_tuple %s2, %s3
  %s5 = sld [smem:[#allocation0]]
  $region49: #{block2_forward.2} parent=0
    _
  %s7 = ssub.s32 1, %s5
  %s8 = scalar_select 0, %s7, %s5
  loop: start=0, step=1, limit=4
  $region2: #{block2_forward.2} parent=0 // loop_pre_header
    _
  $region3: #{block2_forward.2} parent=0 // loop_header
    %s10 = sphi 0, %s14
    %p11 = scmp.ge.s32.totalorder %s10, 4
    %s20 = sphi 0, %s22
    %s23 = sphi 0, %s20
    %s24 = sphi 0, %s23
    %s40 = sphi 0, %s24
    %s44 = sphi 0, %s44
    %s46 = sphi 0, %s44
    %s47 = sphi 0, %s46
    %s61 = sphi 0, %s47
    %s67 = sphi 0, %s69
    %s70 = sphi 0, %s67
    %s71 = sphi 0, %s70
    %s87 = sphi 0, %s71
    %s93 = sphi 0, %s95
    %s96 = sphi 0, %s93
    %s97 = sphi 0, %s96
    %s113 = sphi 0, %s97
  $region4: #{block2_forward.2} parent=0 // loop_header_branch
    %13 = sbr.rel (%p11) target = $region8
  $region5: #{block2_forward.2} parent=0 // loop_body
    %s15 = ssub.s32 %s10, 1
    %s16 = ssub.s32 %s10, 2
    %s17 = sadd.s32 %s10, 1
    %s18 = ssub.s32 %s10, %s17
    %p19 = scmp.eq.s32.totalorder %s18, 0
    %s21 = sadd.s32 %s20, 1
    %s22 = scalar_select %p19, %s20, %s21
    %p25 = pneg %p19
    %p26 = scmp.eq.s32.totalorder %s10, 1
    %p27 = por %p25, %p26
    %p28 = scmp.ne.s32.totalorder %s20, %s23
    %p29 = scmp.eq.s32.totalorder %s10, 0
    %p30 = por %p28, %p29
    %p31 = scmp.ne.s32.totalorder %s20, %s23
    %p32 = scmp.eq.s32.totalorder %s15, 1
    %p33 = por %p31, %p32
    %p34 = scmp.ne.s32.totalorder %s23, %s24
    %p35 = scmp.eq.s32.totalorder %s15, 0
    %p36 = por %p34, %p35
    %p37 = scmp.ne.s32.totalorder %s23, %s24
    %p38 = scmp.eq.s32.totalorder %s16, 1
    %p39 = por %p37, %p38
    %p41 = scmp.ne.s32.totalorder %s24, %s40
    %p42 = scmp.eq.s32.totalorder %s16, 0
    %p43 = por %p41, %p42
    %s45 = sadd.s32 %s44, 1
    %p48 = scmp.eq.s32.totalorder %s10, 1
    %p49 = scmp.ne.s32.totalorder %s44, %s46
    %p50 = scmp.eq.s32.totalorder %s10, 0
    %p51 = por %p49, %p50
    %p52 = scmp.ne.s32.totalorder %s44, %s46
    %p53 = scmp.eq.s32.totalorder %s15, 1
    %p54 = por %p52, %p53
    %p55 = scmp.ne.s32.totalorder %s46, %s47
    %p56 = scmp.eq.s32.totalorder %s15, 0
    %p57 = por %p55, %p56
    %p58 = scmp.ne.s32.totalorder %s46, %s47
    %p59 = scmp.eq.s32.totalorder %s16, 1
    %p60 = por %p58, %p59
    %p62 = scmp.ne.s32.totalorder %s47, %s61
    %p63 = scmp.eq.s32.totalorder %s16, 0
    %p64 = por %p62, %p63
    %s65 = ssub.s32 %s10, %s17
    %p66 = scmp.eq.s32.totalorder %s65, 0
    %s68 = sadd.s32 %s67, 1
    %s69 = scalar_select %p66, %s67, %s68
    %p72 = pneg %p66
    %p73 = scmp.eq.s32.totalorder %s10, 1
    %p74 = por %p72, %p73
    %p75 = scmp.ne.s32.totalorder %s67, %s70
    %p76 = scmp.eq.s32.totalorder %s10, 0
    %p77 = por %p75, %p76
    %p78 = scmp.ne.s32.totalorder %s67, %s70
    %p79 = scmp.eq.s32.totalorder %s15, 1
    %p80 = por %p78, %p79
    %p81 = scmp.ne.s32.totalorder %s70, %s71
    %p82 = scmp.eq.s32.totalorder %s15, 0
    %p83 = por %p81, %p82
    %p84 = scmp.ne.s32.totalorder %s70, %s71
    %p85 = scmp.eq.s32.totalorder %s16, 1
    %p86 = por %p84, %p85
    %p88 = scmp.ne.s32.totalorder %s71, %s87
    %p89 = scmp.eq.s32.totalorder %s16, 0
    %p90 = por %p88, %p89
    %s91 = ssub.s32 %s10, %s17
    %p92 = scmp.eq.s32.totalorder %s91, 0
    %s94 = sadd.s32 %s93, 1
    %s95 = scalar_select %p92, %s93, %s94
    %p98 = pneg %p92
    %p99 = scmp.eq.s32.totalorder %s10, 1
    %p100 = por %p98, %p99
    %p101 = scmp.ne.s32.totalorder %s93, %s96
    %p102 = scmp.eq.s32.totalorder %s10, 0
    %p103 = por %p101, %p102
    %p104 = scmp.ne.s32.totalorder %s93, %s96
    %p105 = scmp.eq.s32.totalorder %s15, 1
    %p106 = por %p104, %p105
    %p107 = scmp.ne.s32.totalorder %s96, %s97
    %p108 = scmp.eq.s32.totalorder %s15, 0
    %p109 = por %p107, %p108
    %p110 = scmp.ne.s32.totalorder %s96, %s97
    %p111 = scmp.eq.s32.totalorder %s16, 1
    %p112 = por %p110, %p111
    %p114 = scmp.ne.s32.totalorder %s97, %s113
    %p115 = scmp.eq.s32.totalorder %s16, 0
    %p116 = por %p114, %p115
    %p117 = scmp.le.s32.totalorder 1, %s10
    %p118 = scmp.lt.s32.totalorder %s10, 3
    %p119 = pnand %p117, %p118
    %p120 = pneg %p119
    // Predicated region
    $region9: #{block2_forward.2} parent=5 // pred_check
      _
    $region10: #{block2_forward.2} parent=5 // pred_check_branch
      %122 = sbr.rel (%p119) target = $region12
    $region11: #{block2_forward.2} parent=5 // pred_region
      %s123 = ssub.s32 %s10, 1
      // Predicated region
      $region13: #{block2_forward.2} parent=11 // pred_check
        %p124 = pneg %p57
      $region14: #{block2_forward.2} parent=11 // pred_check_branch
        %126 = sbr.rel (%p124) target = $region16
      $region15: #{block2_forward.2} parent=11 // pred_region
        _
      $region16: #{block2_forward.2} parent=11 // pred_fallthru
        _
    $region12: #{block2_forward.2} parent=5 // pred_fallthru
      _
    %p127 = scmp.lt.s32.totalorder %s10, 2
    // Predicated region
    $region17: #{block2_forward.2} parent=5 // pred_check
      %p128 = pneg %p127
    $region18: #{block2_forward.2} parent=5 // pred_check_branch
      %130 = sbr.rel (%p128) target = $region20
    $region19: #{block2_forward.2} parent=5 // pred_region
      // Predicated region
      $region21: #{block2_forward.2} parent=19 // pred_check
        %p131 = pneg %p30
      $region22: #{block2_forward.2} parent=19 // pred_check_branch
        %133 = sbr.rel (%p131) target = $region24
      $region23: #{block2_forward.2} parent=19 // pred_region
        %p134 = scmp.lt.s32.totalorder %s10, 1
        %s135 = scalar_select %p134, %s10, 1
        %s136 = smul.addr %s135, 162
        %s137 = smul.addr %s136, 8
        %s138 = scalar_lea.vmem %s0, %s137
      $region24: #{block2_forward.2} parent=19 // pred_fallthru
        _
    $region20: #{block2_forward.2} parent=5 // pred_fallthru
      _
    %p139 = scmp.le.s32.totalorder 1, %s10
    %p140 = scmp.lt.s32.totalorder %s10, 3
    %p141 = pnand %p139, %p140
    %p142 = pneg %p141
    // Predicated region
    $region25: #{block2_forward.2} parent=5 // pred_check
      _
    $region26: #{block2_forward.2} parent=5 // pred_check_branch
      %144 = sbr.rel (%p141) target = $region28
    $region27: #{block2_forward.2} parent=5 // pred_region
      %s145 = ssub.s32 %s10, 1
      %p146 = scmp.lt.s32.totalorder %s15, 1
      %s147 = scalar_select %p146, %s15, 1
      %s148 = smul.addr %s147, 162
      %s149 = smul.addr %s148, 8
      %s150 = scalar_lea.vmem %s0, %s149
      %p151 = pneg %p36
      %p152 = pneg %p33
      %p153 = pneg %p57
      %p154 = pneg %p54
      %p155 = pneg %p83
      %p156 = pneg %p80
      %p157 = scmp.lt.s32.totalorder %s15, 1
      %s158 = scalar_select %p157, %s15, 1
      %s159 = smul.addr %s158, 4
      %s160 = smul.addr %s159, 8
      %s161 = scalar_lea.vmem %s2, %s160
      %p162 = pneg %p109
      %p163 = pneg %p106
      %p164 = scmp.lt.s32.totalorder %s15, 1
      %s165 = scalar_select %p164, %s15, 1
      %s166 = smul.addr %s165, 8
      %s167 = scalar_lea.vmem %s3, %s166
      %p168 = scmp.lt.s32.totalorder %s15, 1
      %s169 = scalar_select %p168, %s15, 1
      %s170 = smul.addr %s169, 162
      %s171 = smul.addr %s170, 8
      %s172 = scalar_lea.vmem %s0, %s171
      %p173 = scmp.lt.s32.totalorder %s15, 1
      %s174 = scalar_select %p173, %s15, 1
      %s175 = smul.addr %s174, 4
      %s176 = smul.addr %s175, 8
      %s177 = scalar_lea.vmem %s2, %s176
      %p178 = scmp.lt.s32.totalorder %s15, 1
      %s179 = scalar_select %p178, %s15, 1
      %s180 = smul.addr %s179, 8
      %s181 = scalar_lea.vmem %s3, %s180
      %v182 = vld [vmem:[%s172] sm:$0xff]
      %v183 = vld [vmem:[%s172 + $0x10] sm:$0xff]
      %v184 = vld [vmem:[%s172 + $0x20] sm:$0xff]
      %v185 = vld [vmem:[%s172 + $0x30] sm:$0xff]
      %v186 = vld [vmem:[%s172 + $0x40] sm:$0xff]
      %v187 = vld [vmem:[%s172 + $0x50] sm:$0xff]
      %v188 = vld [vmem:[%s172 + $0x60] sm:$0xff]
      %v189 = vld [vmem:[%s172 + $0x70] sm:$0xff]
      %v190 = vld [vmem:[%s172 + $0x90] sm:$0xff]
      %v191 = vld [vmem:[%s172 + $0xa0] sm:$0xff]
      %v192 = vld [vmem:[%s172 + $0xb0] sm:$0xff]
      %v193 = vld [vmem:[%s172 + $0xc0] sm:$0xff]
      %v194 = vld [vmem:[%s172 + $0xd0] sm:$0xff]
      %v195 = vld [vmem:[%s172 + $0xe0] sm:$0xff]
      %v196 = vld [vmem:[%s172 + $0xf0] sm:$0xff]
      %v197 = vld [vmem:[%s172 + $0x100] sm:$0xff]
      %v198 = vld [vmem:[%s172 + $0x120] sm:$0xff]
      %v199 = vld [vmem:[%s172 + $0x130] sm:$0xff]
      %v200 = vld [vmem:[%s172 + $0x140] sm:$0xff]
      %v201 = vld [vmem:[%s172 + $0x150] sm:$0xff]
      %v202 = vld [vmem:[%s172 + $0x160] sm:$0xff]
      %v203 = vld [vmem:[%s172 + $0x170] sm:$0xff]
      %v204 = vld [vmem:[%s172 + $0x180] sm:$0xff]
      %v205 = vld [vmem:[%s172 + $0x190] sm:$0xff]
      %v206 = vld [vmem:[%s172 + $0x1b0] sm:$0xff]
      %v207 = vld [vmem:[%s172 + $0x1c0] sm:$0xff]
      %v208 = vld [vmem:[%s172 + $0x1d0] sm:$0xff]
      %v209 = vld [vmem:[%s172 + $0x1e0] sm:$0xff]
      %v210 = vld [vmem:[%s172 + $0x1f0] sm:$0xff]
      %v211 = vld [vmem:[%s172 + $0x200] sm:$0xff]
      %v212 = vld [vmem:[%s172 + $0x210] sm:$0xff]
      %v213 = vld [vmem:[%s172 + $0x220] sm:$0xff]
      %v214 = vld [vmem:[%s172 + $0x240] sm:$0xff]
      %v215 = vld [vmem:[%s172 + $0x250] sm:$0xff]
      %v216 = vld [vmem:[%s172 + $0x260] sm:$0xff]
      %v217 = vld [vmem:[%s172 + $0x270] sm:$0xff]
      %v218 = vld [vmem:[%s172 + $0x280] sm:$0xff]
      %v219 = vld [vmem:[%s172 + $0x290] sm:$0xff]
      %v220 = vld [vmem:[%s172 + $0x2a0] sm:$0xff]
      %v221 = vld [vmem:[%s172 + $0x2b0] sm:$0xff]
      %v222 = vld [vmem:[%s172 + $0x2d0] sm:$0xff]
      %v223 = vld [vmem:[%s172 + $0x2e0] sm:$0xff]
      %v224 = vld [vmem:[%s172 + $0x2f0] sm:$0xff]
      %v225 = vld [vmem:[%s172 + $0x300] sm:$0xff]
      %v226 = vld [vmem:[%s172 + $0x310] sm:$0xff]
      %v227 = vld [vmem:[%s172 + $0x320] sm:$0xff]
      %v228 = vld [vmem:[%s172 + $0x330] sm:$0xff]
      %v229 = vld [vmem:[%s172 + $0x340] sm:$0xff]
      %v230 = vld [vmem:[%s172 + $0x360] sm:$0xff]
      %v231 = vld [vmem:[%s172 + $0x370] sm:$0xff]
      %v232 = vld [vmem:[%s172 + $0x380] sm:$0xff]
      %v233 = vld [vmem:[%s172 + $0x390] sm:$0xff]
      %v234 = vld [vmem:[%s172 + $0x3a0] sm:$0xff]
      %v235 = vld [vmem:[%s172 + $0x3b0] sm:$0xff]
      %v236 = vld [vmem:[%s172 + $0x3c0] sm:$0xff]
      %v237 = vld [vmem:[%s172 + $0x3d0] sm:$0xff]
      %v238 = vld [vmem:[%s172 + $0x3f0] sm:$0xff]
      %v239 = vld [vmem:[%s172 + $0x400] sm:$0xff]
      %v240 = vld [vmem:[%s172 + $0x410] sm:$0xff]
      %v241 = vld [vmem:[%s172 + $0x420] sm:$0xff]
      %v242 = vld [vmem:[%s172 + $0x430] sm:$0xff]
      %v243 = vld [vmem:[%s172 + $0x440] sm:$0xff]
      %v244 = vld [vmem:[%s172 + $0x450] sm:$0xff]
      %v245 = vld [vmem:[%s172 + $0x460] sm:$0xff]
      %v246 = vld [vmem:[%s172 + $0x1] sm:$0xff]
      %v247 = vld [vmem:[%s172 + $0x11] sm:$0xff]
      %v248 = vld [vmem:[%s172 + $0x21] sm:$0xff]
      %v249 = vld [vmem:[%s172 + $0x31] sm:$0xff]
      %v250 = vld [vmem:[%s172 + $0x41] sm:$0xff]
      %v251 = vld [vmem:[%s172 + $0x51] sm:$0xff]
      %v252 = vld [vmem:[%s172 + $0x61] sm:$0xff]
      %v253 = vld [vmem:[%s172 + $0x71] sm:$0xff]
      %v254 = vld [vmem:[%s172 + $0x91] sm:$0xff]
      %v255 = vld [vmem:[%s172 + $0xa1] sm:$0xff]
      %v256 = vld [vmem:[%s172 + $0xb1] sm:$0xff]
      %v257 = vld [vmem:[%s172 + $0xc1] sm:$0xff]
      %v258 = vld [vmem:[%s172 + $0xd1] sm:$0xff]
      %v259 = vld [vmem:[%s172 + $0xe1] sm:$0xff]
      %v260 = vld [vmem:[%s172 + $0xf1] sm:$0xff]
      %v261 = vld [vmem:[%s172 + $0x101] sm:$0xff]
      %v262 = vld [vmem:[%s172 + $0x121] sm:$0xff]
      %v263 = vld [vmem:[%s172 + $0x131] sm:$0xff]
      %v264 = vld [vmem:[%s172 + $0x141] sm:$0xff]
      %v265 = vld [vmem:[%s172 + $0x151] sm:$0xff]
      %v266 = vld [vmem:[%s172 + $0x161] sm:$0xff]
      %v267 = vld [vmem:[%s172 + $0x171] sm:$0xff]
      %v268 = vld [vmem:[%s172 + $0x181] sm:$0xff]
      %v269 = vld [vmem:[%s172 + $0x191] sm:$0xff]
      %v270 = vld [vmem:[%s172 + $0x1b1] sm:$0xff]
      %v271 = vld [vmem:[%s172 + $0x1c1] sm:$0xff]
      %v272 = vld [vmem:[%s172 + $0x1d1] sm:$0xff]
      %v273 = vld [vmem:[%s172 + $0x1e1] sm:$0xff]
      %v274 = vld [vmem:[%s172 + $0x1f1] sm:$0xff]
      %v275 = vld [vmem:[%s172 + $0x201] sm:$0xff]
      %v276 = vld [vmem:[%s172 + $0x211] sm:$0xff]
      %v277 = vld [vmem:[%s172 + $0x221] sm:$0xff]
      %v278 = vld [vmem:[%s172 + $0x241] sm:$0xff]
      %v279 = vld [vmem:[%s172 + $0x251] sm:$0xff]
      %v280 = vld [vmem:[%s172 + $0x261] sm:$0xff]
      %v281 = vld [vmem:[%s172 + $0x271] sm:$0xff]
      %v282 = vld [vmem:[%s172 + $0x281] sm:$0xff]
      %v283 = vld [vmem:[%s172 + $0x291] sm:$0xff]
      %v284 = vld [vmem:[%s172 + $0x2a1] sm:$0xff]
      %v285 = vld [vmem:[%s172 + $0x2b1] sm:$0xff]
      %v286 = vld [vmem:[%s172 + $0x2d1] sm:$0xff]
      %v287 = vld [vmem:[%s172 + $0x2e1] sm:$0xff]
      %v288 = vld [vmem:[%s172 + $0x2f1] sm:$0xff]
      %v289 = vld [vmem:[%s172 + $0x301] sm:$0xff]
      %v290 = vld [vmem:[%s172 + $0x311] sm:$0xff]
      %v291 = vld [vmem:[%s172 + $0x321] sm:$0xff]
      %v292 = vld [vmem:[%s172 + $0x331] sm:$0xff]
      %v293 = vld [vmem:[%s172 + $0x341] sm:$0xff]
      %v294 = vld [vmem:[%s172 + $0x361] sm:$0xff]
      %v295 = vld [vmem:[%s172 + $0x371] sm:$0xff]
      %v296 = vld [vmem:[%s172 + $0x381] sm:$0xff]
      %v297 = vld [vmem:[%s172 + $0x391] sm:$0xff]
      %v298 = vld [vmem:[%s172 + $0x3a1] sm:$0xff]
      %v299 = vld [vmem:[%s172 + $0x3b1] sm:$0xff]
      %v300 = vld [vmem:[%s172 + $0x3c1] sm:$0xff]
      %v301 = vld [vmem:[%s172 + $0x3d1] sm:$0xff]
      %v302 = vld [vmem:[%s172 + $0x3f1] sm:$0xff]
      %v303 = vld [vmem:[%s172 + $0x401] sm:$0xff]
      %v304 = vld [vmem:[%s172 + $0x411] sm:$0xff]
      %v305 = vld [vmem:[%s172 + $0x421] sm:$0xff]
      %v306 = vld [vmem:[%s172 + $0x431] sm:$0xff]
      %v307 = vld [vmem:[%s172 + $0x441] sm:$0xff]
      %v308 = vld [vmem:[%s172 + $0x451] sm:$0xff]
      %v309 = vld [vmem:[%s172 + $0x461] sm:$0xff]
      %s310 = scalar_lea.vmem %s172, 16
      %v311 = vld [vmem:[%s310] sm:$0xff]
      %v312 = vld [vmem:[%s310 + $0x10] sm:$0xff]
      %v313 = vld [vmem:[%s310 + $0x20] sm:$0xff]
      %v314 = vld [vmem:[%s310 + $0x30] sm:$0xff]
      %v315 = vld [vmem:[%s310 + $0x40] sm:$0xff]
      %v316 = vld [vmem:[%s310 + $0x50] sm:$0xff]
      %v317 = vld [vmem:[%s310 + $0x60] sm:$0xff]
      %v318 = vld [vmem:[%s310 + $0x70] sm:$0xff]
      %v319 = vld [vmem:[%s310 + $0x90] sm:$0xff]
      %v320 = vld [vmem:[%s310 + $0xa0] sm:$0xff]
      %v321 = vld [vmem:[%s310 + $0xb0] sm:$0xff]
      %v322 = vld [vmem:[%s310 + $0xc0] sm:$0xff]
      %v323 = vld [vmem:[%s310 + $0xd0] sm:$0xff]
      %v324 = vld [vmem:[%s310 + $0xe0] sm:$0xff]
      %v325 = vld [vmem:[%s310 + $0xf0] sm:$0xff]
      %v326 = vld [vmem:[%s310 + $0x100] sm:$0xff]
      %v327 = vld [vmem:[%s310 + $0x120] sm:$0xff]
      %v328 = vld [vmem:[%s310 + $0x130] sm:$0xff]
      %v329 = vld [vmem:[%s310 + $0x140] sm:$0xff]
      %v330 = vld [vmem:[%s310 + $0x150] sm:$0xff]
      %v331 = vld [vmem:[%s310 + $0x160] sm:$0xff]
      %v332 = vld [vmem:[%s310 + $0x170] sm:$0xff]
      %v333 = vld [vmem:[%s310 + $0x180] sm:$0xff]
      %v334 = vld [vmem:[%s310 + $0x190] sm:$0xff]
      %v335 = vld [vmem:[%s310 + $0x1b0] sm:$0xff]
      %v336 = vld [vmem:[%s310 + $0x1c0] sm:$0xff]
      %v337 = vld [vmem:[%s310 + $0x1d0] sm:$0xff]
      %v338 = vld [vmem:[%s310 + $0x1e0] sm:$0xff]
      %v339 = vld [vmem:[%s310 + $0x1f0] sm:$0xff]
      %v340 = vld [vmem:[%s310 + $0x200] sm:$0xff]
      %v341 = vld [vmem:[%s310 + $0x210] sm:$0xff]
      %v342 = vld [vmem:[%s310 + $0x220] sm:$0xff]
      %v343 = vld [vmem:[%s310 + $0x240] sm:$0xff]
      %v344 = vld [vmem:[%s310 + $0x250] sm:$0xff]
      %v345 = vld [vmem:[%s310 + $0x260] sm:$0xff]
      %v346 = vld [vmem:[%s310 + $0x270] sm:$0xff]
      %v347 = vld [vmem:[%s310 + $0x280] sm:$0xff]
      %v348 = vld [vmem:[%s310 + $0x290] sm:$0xff]
      %v349 = vld [vmem:[%s310 + $0x2a0] sm:$0xff]
      %v350 = vld [vmem:[%s310 + $0x2b0] sm:$0xff]
      %v351 = vld [vmem:[%s310 + $0x2d0] sm:$0xff]
      %v352 = vld [vmem:[%s310 + $0x2e0] sm:$0xff]
      %v353 = vld [vmem:[%s310 + $0x2f0] sm:$0xff]
      %v354 = vld [vmem:[%s310 + $0x300] sm:$0xff]
      %v355 = vld [vmem:[%s310 + $0x310] sm:$0xff]
      %v356 = vld [vmem:[%s310 + $0x320] sm:$0xff]
      %v357 = vld [vmem:[%s310 + $0x330] sm:$0xff]
      %v358 = vld [vmem:[%s310 + $0x340] sm:$0xff]
      %v359 = vld [vmem:[%s310 + $0x360] sm:$0xff]
      %v360 = vld [vmem:[%s310 + $0x370] sm:$0xff]
      %v361 = vld [vmem:[%s310 + $0x380] sm:$0xff]
      %v362 = vld [vmem:[%s310 + $0x390] sm:$0xff]
      %v363 = vld [vmem:[%s310 + $0x3a0] sm:$0xff]
      %v364 = vld [vmem:[%s310 + $0x3b0] sm:$0xff]
      %v365 = vld [vmem:[%s310 + $0x3c0] sm:$0xff]
      %v366 = vld [vmem:[%s310 + $0x3d0] sm:$0xff]
      %v367 = vld [vmem:[%s310 + $0x3f0] sm:$0xff]
      %v368 = vld [vmem:[%s310 + $0x400] sm:$0xff]
      %v369 = vld [vmem:[%s310 + $0x410] sm:$0xff]
      %v370 = vld [vmem:[%s310 + $0x420] sm:$0xff]
      %v371 = vld [vmem:[%s310 + $0x430] sm:$0xff]
      %v372 = vld [vmem:[%s310 + $0x440] sm:$0xff]
      %v373 = vld [vmem:[%s310 + $0x450] sm:$0xff]
      %v374 = vld [vmem:[%s310 + $0x460] sm:$0xff]
      %v375 = vld [vmem:[%s310 + $0x1] sm:$0xff]
      %v376 = vld [vmem:[%s310 + $0x11] sm:$0xff]
      %v377 = vld [vmem:[%s310 + $0x21] sm:$0xff]
      %v378 = vld [vmem:[%s310 + $0x31] sm:$0xff]
      %v379 = vld [vmem:[%s310 + $0x41] sm:$0xff]
      %v380 = vld [vmem:[%s310 + $0x51] sm:$0xff]
      %v381 = vld [vmem:[%s310 + $0x61] sm:$0xff]
      %v382 = vld [vmem:[%s310 + $0x71] sm:$0xff]
      %v383 = vld [vmem:[%s310 + $0x91] sm:$0xff]
      %v384 = vld [vmem:[%s310 + $0xa1] sm:$0xff]
      %v385 = vld [vmem:[%s310 + $0xb1] sm:$0xff]
      %v386 = vld [vmem:[%s310 + $0xc1] sm:$0xff]
      %v387 = vld [vmem:[%s310 + $0xd1] sm:$0xff]
      %v388 = vld [vmem:[%s310 + $0xe1] sm:$0xff]
      %v389 = vld [vmem:[%s310 + $0xf1] sm:$0xff]
      %v390 = vld [vmem:[%s310 + $0x101] sm:$0xff]
      %v391 = vld [vmem:[%s310 + $0x121] sm:$0xff]
      %v392 = vld [vmem:[%s310 + $0x131] sm:$0xff]
      %v393 = vld [vmem:[%s310 + $0x141] sm:$0xff]
      %v394 = vld [vmem:[%s310 + $0x151] sm:$0xff]
      %v395 = vld [vmem:[%s310 + $0x161] sm:$0xff]
      %v396 = vld [vmem:[%s310 + $0x171] sm:$0xff]
      %v397 = vld [vmem:[%s310 + $0x181] sm:$0xff]
      %v398 = vld [vmem:[%s310 + $0x191] sm:$0xff]
      %v399 = vld [vmem:[%s310 + $0x1b1] sm:$0xff]
      %v400 = vld [vmem:[%s310 + $0x1c1] sm:$0xff]
      %v401 = vld [vmem:[%s310 + $0x1d1] sm:$0xff]
      %v402 = vld [vmem:[%s310 + $0x1e1] sm:$0xff]
      %v403 = vld [vmem:[%s310 + $0x1f1] sm:$0xff]
      %v404 = vld [vmem:[%s310 + $0x201] sm:$0xff]
      %v405 = vld [vmem:[%s310 + $0x211] sm:$0xff]
      %v406 = vld [vmem:[%s310 + $0x221] sm:$0xff]
      %v407 = vld [vmem:[%s310 + $0x241] sm:$0xff]
      %v408 = vld [vmem:[%s310 + $0x251] sm:$0xff]
      %v409 = vld [vmem:[%s310 + $0x261] sm:$0xff]
      %v410 = vld [vmem:[%s310 + $0x271] sm:$0xff]
      %v411 = vld [vmem:[%s310 + $0x281] sm:$0xff]
      %v412 = vld [vmem:[%s310 + $0x291] sm:$0xff]
      %v413 = vld [vmem:[%s310 + $0x2a1] sm:$0xff]
      %v414 = vld [vmem:[%s310 + $0x2b1] sm:$0xff]
      %v415 = vld [vmem:[%s310 + $0x2d1] sm:$0xff]
      %v416 = vld [vmem:[%s310 + $0x2e1] sm:$0xff]
      %v417 = vld [vmem:[%s310 + $0x2f1] sm:$0xff]
      %v418 = vld [vmem:[%s310 + $0x301] sm:$0xff]
      %v419 = vld [vmem:[%s310 + $0x311] sm:$0xff]
      %v420 = vld [vmem:[%s310 + $0x321] sm:$0xff]
      %v421 = vld [vmem:[%s310 + $0x331] sm:$0xff]
      %v422 = vld [vmem:[%s310 + $0x341] sm:$0xff]
      %v423 = vld [vmem:[%s310 + $0x361] sm:$0xff]
      %v424 = vld [vmem:[%s310 + $0x371] sm:$0xff]
      %v425 = vld [vmem:[%s310 + $0x381] sm:$0xff]
      %v426 = vld [vmem:[%s310 + $0x391] sm:$0xff]
      %v427 = vld [vmem:[%s310 + $0x3a1] sm:$0xff]
      %v428 = vld [vmem:[%s310 + $0x3b1] sm:$0xff]
      %v429 = vld [vmem:[%s310 + $0x3c1] sm:$0xff]
      %v430 = vld [vmem:[%s310 + $0x3d1] sm:$0xff]
      %v431 = vld [vmem:[%s310 + $0x3f1] sm:$0xff]
      %v432 = vld [vmem:[%s310 + $0x401] sm:$0xff]
      %v433 = vld [vmem:[%s310 + $0x411] sm:$0xff]
      %v434 = vld [vmem:[%s310 + $0x421] sm:$0xff]
      %v435 = vld [vmem:[%s310 + $0x431] sm:$0xff]
      %v436 = vld [vmem:[%s310 + $0x441] sm:$0xff]
      %v437 = vld [vmem:[%s310 + $0x451] sm:$0xff]
      %v438 = vld [vmem:[%s310 + $0x461] sm:$0xff]
      %s439 = scalar_lea.vmem %s172, 144
      %v440 = vld [vmem:[%s439] sm:$0xff]
      %v441 = vld [vmem:[%s439 + $0x10] sm:$0xff]
      %v442 = vld [vmem:[%s439 + $0x20] sm:$0xff]
      %v443 = vld [vmem:[%s439 + $0x30] sm:$0xff]
      %v444 = vld [vmem:[%s439 + $0x40] sm:$0xff]
      %v445 = vld [vmem:[%s439 + $0x50] sm:$0xff]
      %v446 = vld [vmem:[%s439 + $0x60] sm:$0xff]
      %v447 = vld [vmem:[%s439 + $0x70] sm:$0xff]
      %v448 = vld [vmem:[%s439 + $0x90] sm:$0xff]
      %v449 = vld [vmem:[%s439 + $0xa0] sm:$0xff]
      %v450 = vld [vmem:[%s439 + $0xb0] sm:$0xff]
      %v451 = vld [vmem:[%s439 + $0xc0] sm:$0xff]
      %v452 = vld [vmem:[%s439 + $0xd0] sm:$0xff]
      %v453 = vld [vmem:[%s439 + $0xe0] sm:$0xff]
      %v454 = vld [vmem:[%s439 + $0xf0] sm:$0xff]
      %v455 = vld [vmem:[%s439 + $0x100] sm:$0xff]
      %v456 = vld [vmem:[%s439 + $0x120] sm:$0xff]
      %v457 = vld [vmem:[%s439 + $0x130] sm:$0xff]
      %v458 = vld [vmem:[%s439 + $0x140] sm:$0xff]
      %v459 = vld [vmem:[%s439 + $0x150] sm:$0xff]
      %v460 = vld [vmem:[%s439 + $0x160] sm:$0xff]
      %v461 = vld [vmem:[%s439 + $0x170] sm:$0xff]
      %v462 = vld [vmem:[%s439 + $0x180] sm:$0xff]
      %v463 = vld [vmem:[%s439 + $0x190] sm:$0xff]
      %v464 = vld [vmem:[%s439 + $0x1b0] sm:$0xff]
      %v465 = vld [vmem:[%s439 + $0x1c0] sm:$0xff]
      %v466 = vld [vmem:[%s439 + $0x1d0] sm:$0xff]
      %v467 = vld [vmem:[%s439 + $0x1e0] sm:$0xff]
      %v468 = vld [vmem:[%s439 + $0x1f0] sm:$0xff]
      %v469 = vld [vmem:[%s439 + $0x200] sm:$0xff]
      %v470 = vld [vmem:[%s439 + $0x210] sm:$0xff]
      %v471 = vld [vmem:[%s439 + $0x220] sm:$0xff]
      %v472 = vld [vmem:[%s439 + $0x240] sm:$0xff]
      %v473 = vld [vmem:[%s439 + $0x250] sm:$0xff]
      %v474 = vld [vmem:[%s439 + $0x260] sm:$0xff]
      %v475 = vld [vmem:[%s439 + $0x270] sm:$0xff]
      %v476 = vld [vmem:[%s439 + $0x280] sm:$0xff]
      %v477 = vld [vmem:[%s439 + $0x290] sm:$0xff]
      %v478 = vld [vmem:[%s439 + $0x2a0] sm:$0xff]
      %v479 = vld [vmem:[%s439 + $0x2b0] sm:$0xff]
      %v480 = vld [vmem:[%s439 + $0x2d0] sm:$0xff]
      %v481 = vld [vmem:[%s439 + $0x2e0] sm:$0xff]
      %v482 = vld [vmem:[%s439 + $0x2f0] sm:$0xff]
      %v483 = vld [vmem:[%s439 + $0x300] sm:$0xff]
      %v484 = vld [vmem:[%s439 + $0x310] sm:$0xff]
      %v485 = vld [vmem:[%s439 + $0x320] sm:$0xff]
      %v486 = vld [vmem:[%s439 + $0x330] sm:$0xff]
      %v487 = vld [vmem:[%s439 + $0x340] sm:$0xff]
      %v488 = vld [vmem:[%s439 + $0x360] sm:$0xff]
      %v489 = vld [vmem:[%s439 + $0x370] sm:$0xff]
      %v490 = vld [vmem:[%s439 + $0x380] sm:$0xff]
      %v491 = vld [vmem:[%s439 + $0x390] sm:$0xff]
      %v492 = vld [vmem:[%s439 + $0x3a0] sm:$0xff]
      %v493 = vld [vmem:[%s439 + $0x3b0] sm:$0xff]
      %v494 = vld [vmem:[%s439 + $0x3c0] sm:$0xff]
      %v495 = vld [vmem:[%s439 + $0x3d0] sm:$0xff]
      %v496 = vld [vmem:[%s439 + $0x3f0] sm:$0xff]
      %v497 = vld [vmem:[%s439 + $0x400] sm:$0xff]
      %v498 = vld [vmem:[%s439 + $0x410] sm:$0xff]
      %v499 = vld [vmem:[%s439 + $0x420] sm:$0xff]
      %v500 = vld [vmem:[%s439 + $0x430] sm:$0xff]
      %v501 = vld [vmem:[%s439 + $0x440] sm:$0xff]
      %v502 = vld [vmem:[%s439 + $0x450] sm:$0xff]
      %v503 = vld [vmem:[%s439 + $0x460] sm:$0xff]
      %v504 = vld [vmem:[%s439 + $0x1] sm:$0xff]
      %v505 = vld [vmem:[%s439 + $0x11] sm:$0xff]
      %v506 = vld [vmem:[%s439 + $0x21] sm:$0xff]
      %v507 = vld [vmem:[%s439 + $0x31] sm:$0xff]
      %v508 = vld [vmem:[%s439 + $0x41] sm:$0xff]
      %v509 = vld [vmem:[%s439 + $0x51] sm:$0xff]
      %v510 = vld [vmem:[%s439 + $0x61] sm:$0xff]
      %v511 = vld [vmem:[%s439 + $0x71] sm:$0xff]
      %v512 = vld [vmem:[%s439 + $0x91] sm:$0xff]
      %v513 = vld [vmem:[%s439 + $0xa1] sm:$0xff]
      %v514 = vld [vmem:[%s439 + $0xb1] sm:$0xff]
      %v515 = vld [vmem:[%s439 + $0xc1] sm:$0xff]
      %v516 = vld [vmem:[%s439 + $0xd1] sm:$0xff]
      %v517 = vld [vmem:[%s439 + $0xe1] sm:$0xff]
      %v518 = vld [vmem:[%s439 + $0xf1] sm:$0xff]
      %v519 = vld [vmem:[%s439 + $0x101] sm:$0xff]
      %v520 = vld [vmem:[%s439 + $0x121] sm:$0xff]
      %v521 = vld [vmem:[%s439 + $0x131] sm:$0xff]
      %v522 = vld [vmem:[%s439 + $0x141] sm:$0xff]
      %v523 = vld [vmem:[%s439 + $0x151] sm:$0xff]
      %v524 = vld [vmem:[%s439 + $0x161] sm:$0xff]
      %v525 = vld [vmem:[%s439 + $0x171] sm:$0xff]
      %v526 = vld [vmem:[%s439 + $0x181] sm:$0xff]
      %v527 = vld [vmem:[%s439 + $0x191] sm:$0xff]
      %v528 = vld [vmem:[%s439 + $0x1b1] sm:$0xff]
      %v529 = vld [vmem:[%s439 + $0x1c1] sm:$0xff]
      %v530 = vld [vmem:[%s439 + $0x1d1] sm:$0xff]
      %v531 = vld [vmem:[%s439 + $0x1e1] sm:$0xff]
      %v532 = vld [vmem:[%s439 + $0x1f1] sm:$0xff]
      %v533 = vld [vmem:[%s439 + $0x201] sm:$0xff]
      %v534 = vld [vmem:[%s439 + $0x211] sm:$0xff]
      %v535 = vld [vmem:[%s439 + $0x221] sm:$0xff]
      %v536 = vld [vmem:[%s439 + $0x241] sm:$0xff]
      %v537 = vld [vmem:[%s439 + $0x251] sm:$0xff]
      %v538 = vld [vmem:[%s439 + $0x261] sm:$0xff]
      %v539 = vld [vmem:[%s439 + $0x271] sm:$0xff]
      %v540 = vld [vmem:[%s439 + $0x281] sm:$0xff]
      %v541 = vld [vmem:[%s439 + $0x291] sm:$0xff]
      %v542 = vld [vmem:[%s439 + $0x2a1] sm:$0xff]
      %v543 = vld [vmem:[%s439 + $0x2b1] sm:$0xff]
      %v544 = vld [vmem:[%s439 + $0x2d1] sm:$0xff]
      %v545 = vld [vmem:[%s439 + $0x2e1] sm:$0xff]
      %v546 = vld [vmem:[%s439 + $0x2f1] sm:$0xff]
      %v547 = vld [vmem:[%s439 + $0x301] sm:$0xff]
      %v548 = vld [vmem:[%s439 + $0x311] sm:$0xff]
      %v549 = vld [vmem:[%s439 + $0x321] sm:$0xff]
      %v550 = vld [vmem:[%s439 + $0x331] sm:$0xff]
      %v551 = vld [vmem:[%s439 + $0x341] sm:$0xff]
      %v552 = vld [vmem:[%s439 + $0x361] sm:$0xff]
      %v553 = vld [vmem:[%s439 + $0x371] sm:$0xff]
      %v554 = vld [vmem:[%s439 + $0x381] sm:$0xff]
      %v555 = vld [vmem:[%s439 + $0x391] sm:$0xff]
      %v556 = vld [vmem:[%s439 + $0x3a1] sm:$0xff]
      %v557 = vld [vmem:[%s439 + $0x3b1] sm:$0xff]
      %v558 = vld [vmem:[%s439 + $0x3c1] sm:$0xff]
      %v559 = vld [vmem:[%s439 + $0x3d1] sm:$0xff]
      %v560 = vld [vmem:[%s439 + $0x3f1] sm:$0xff]
      %v561 = vld [vmem:[%s439 + $0x401] sm:$0xff]
      %v562 = vld [vmem:[%s439 + $0x411] sm:$0xff]
      %v563 = vld [vmem:[%s439 + $0x421] sm:$0xff]
      %v564 = vld [vmem:[%s439 + $0x431] sm:$0xff]
      %v565 = vld [vmem:[%s439 + $0x441] sm:$0xff]
      %v566 = vld [vmem:[%s439 + $0x451] sm:$0xff]
      %v567 = vld [vmem:[%s439 + $0x461] sm:$0xff]
      %s568 = scalar_lea.vmem %s172, 160
      %v569 = vld [vmem:[%s568] sm:$0xff]
      %v570 = vld [vmem:[%s568 + $0x10] sm:$0xff]
      %v571 = vld [vmem:[%s568 + $0x20] sm:$0xff]
      %v572 = vld [vmem:[%s568 + $0x30] sm:$0xff]
      %v573 = vld [vmem:[%s568 + $0x40] sm:$0xff]
      %v574 = vld [vmem:[%s568 + $0x50] sm:$0xff]
      %v575 = vld [vmem:[%s568 + $0x60] sm:$0xff]
      %v576 = vld [vmem:[%s568 + $0x70] sm:$0xff]
      %v577 = vld [vmem:[%s568 + $0x90] sm:$0xff]
      %v578 = vld [vmem:[%s568 + $0xa0] sm:$0xff]
      %v579 = vld [vmem:[%s568 + $0xb0] sm:$0xff]
      %v580 = vld [vmem:[%s568 + $0xc0] sm:$0xff]
      %v581 = vld [vmem:[%s568 + $0xd0] sm:$0xff]
      %v582 = vld [vmem:[%s568 + $0xe0] sm:$0xff]
      %v583 = vld [vmem:[%s568 + $0xf0] sm:$0xff]
      %v584 = vld [vmem:[%s568 + $0x100] sm:$0xff]
      %v585 = vld [vmem:[%s568 + $0x120] sm:$0xff]
      %v586 = vld [vmem:[%s568 + $0x130] sm:$0xff]
      %v587 = vld [vmem:[%s568 + $0x140] sm:$0xff]
      %v588 = vld [vmem:[%s568 + $0x150] sm:$0xff]
      %v589 = vld [vmem:[%s568 + $0x160] sm:$0xff]
      %v590 = vld [vmem:[%s568 + $0x170] sm:$0xff]
      %v591 = vld [vmem:[%s568 + $0x180] sm:$0xff]
      %v592 = vld [vmem:[%s568 + $0x190] sm:$0xff]
      %v593 = vld [vmem:[%s568 + $0x1b0] sm:$0xff]
      %v594 = vld [vmem:[%s568 + $0x1c0] sm:$0xff]
      %v595 = vld [vmem:[%s568 + $0x1d0] sm:$0xff]
      %v596 = vld [vmem:[%s568 + $0x1e0] sm:$0xff]
      %v597 = vld [vmem:[%s568 + $0x1f0] sm:$0xff]
      %v598 = vld [vmem:[%s568 + $0x200] sm:$0xff]
      %v599 = vld [vmem:[%s568 + $0x210] sm:$0xff]
      %v600 = vld [vmem:[%s568 + $0x220] sm:$0xff]
      %v601 = vld [vmem:[%s568 + $0x240] sm:$0xff]
      %v602 = vld [vmem:[%s568 + $0x250] sm:$0xff]
      %v603 = vld [vmem:[%s568 + $0x260] sm:$0xff]
      %v604 = vld [vmem:[%s568 + $0x270] sm:$0xff]
      %v605 = vld [vmem:[%s568 + $0x280] sm:$0xff]
      %v606 = vld [vmem:[%s568 + $0x290] sm:$0xff]
      %v607 = vld [vmem:[%s568 + $0x2a0] sm:$0xff]
      %v608 = vld [vmem:[%s568 + $0x2b0] sm:$0xff]
      %v609 = vld [vmem:[%s568 + $0x2d0] sm:$0xff]
      %v610 = vld [vmem:[%s568 + $0x2e0] sm:$0xff]
      %v611 = vld [vmem:[%s568 + $0x2f0] sm:$0xff]
      %v612 = vld [vmem:[%s568 + $0x300] sm:$0xff]
      %v613 = vld [vmem:[%s568 + $0x310] sm:$0xff]
      %v614 = vld [vmem:[%s568 + $0x320] sm:$0xff]
      %v615 = vld [vmem:[%s568 + $0x330] sm:$0xff]
      %v616 = vld [vmem:[%s568 + $0x340] sm:$0xff]
      %v617 = vld [vmem:[%s568 + $0x360] sm:$0xff]
      %v618 = vld [vmem:[%s568 + $0x370] sm:$0xff]
      %v619 = vld [vmem:[%s568 + $0x380] sm:$0xff]
      %v620 = vld [vmem:[%s568 + $0x390] sm:$0xff]
      %v621 = vld [vmem:[%s568 + $0x3a0] sm:$0xff]
      %v622 = vld [vmem:[%s568 + $0x3b0] sm:$0xff]
      %v623 = vld [vmem:[%s568 + $0x3c0] sm:$0xff]
      %v624 = vld [vmem:[%s568 + $0x3d0] sm:$0xff]
      %v625 = vld [vmem:[%s568 + $0x3f0] sm:$0xff]
      %v626 = vld [vmem:[%s568 + $0x400] sm:$0xff]
      %v627 = vld [vmem:[%s568 + $0x410] sm:$0xff]
      %v628 = vld [vmem:[%s568 + $0x420] sm:$0xff]
      %v629 = vld [vmem:[%s568 + $0x430] sm:$0xff]
      %v630 = vld [vmem:[%s568 + $0x440] sm:$0xff]
      %v631 = vld [vmem:[%s568 + $0x450] sm:$0xff]
      %v632 = vld [vmem:[%s568 + $0x460] sm:$0xff]
      %v633 = vld [vmem:[%s568 + $0x1] sm:$0xff]
      %v634 = vld [vmem:[%s568 + $0x11] sm:$0xff]
      %v635 = vld [vmem:[%s568 + $0x21] sm:$0xff]
      %v636 = vld [vmem:[%s568 + $0x31] sm:$0xff]
      %v637 = vld [vmem:[%s568 + $0x41] sm:$0xff]
      %v638 = vld [vmem:[%s568 + $0x51] sm:$0xff]
      %v639 = vld [vmem:[%s568 + $0x61] sm:$0xff]
      %v640 = vld [vmem:[%s568 + $0x71] sm:$0xff]
      %v641 = vld [vmem:[%s568 + $0x91] sm:$0xff]
      %v642 = vld [vmem:[%s568 + $0xa1] sm:$0xff]
      %v643 = vld [vmem:[%s568 + $0xb1] sm:$0xff]
      %v644 = vld [vmem:[%s568 + $0xc1] sm:$0xff]
      %v645 = vld [vmem:[%s568 + $0xd1] sm:$0xff]
      %v646 = vld [vmem:[%s568 + $0xe1] sm:$0xff]
      %v647 = vld [vmem:[%s568 + $0xf1] sm:$0xff]
      %v648 = vld [vmem:[%s568 + $0x101] sm:$0xff]
      %v649 = vld [vmem:[%s568 + $0x121] sm:$0xff]
      %v650 = vld [vmem:[%s568 + $0x131] sm:$0xff]
      %v651 = vld [vmem:[%s568 + $0x141] sm:$0xff]
      %v652 = vld [vmem:[%s568 + $0x151] sm:$0xff]
      %v653 = vld [vmem:[%s568 + $0x161] sm:$0xff]
      %v654 = vld [vmem:[%s568 + $0x171] sm:$0xff]
      %v655 = vld [vmem:[%s568 + $0x181] sm:$0xff]
      %v656 = vld [vmem:[%s568 + $0x191] sm:$0xff]
      %v657 = vld [vmem:[%s568 + $0x1b1] sm:$0xff]
      %v658 = vld [vmem:[%s568 + $0x1c1] sm:$0xff]
      %v659 = vld [vmem:[%s568 + $0x1d1] sm:$0xff]
      %v660 = vld [vmem:[%s568 + $0x1e1] sm:$0xff]
      %v661 = vld [vmem:[%s568 + $0x1f1] sm:$0xff]
      %v662 = vld [vmem:[%s568 + $0x201] sm:$0xff]
      %v663 = vld [vmem:[%s568 + $0x211] sm:$0xff]
      %v664 = vld [vmem:[%s568 + $0x221] sm:$0xff]
      %v665 = vld [vmem:[%s568 + $0x241] sm:$0xff]
      %v666 = vld [vmem:[%s568 + $0x251] sm:$0xff]
      %v667 = vld [vmem:[%s568 + $0x261] sm:$0xff]
      %v668 = vld [vmem:[%s568 + $0x271] sm:$0xff]
      %v669 = vld [vmem:[%s568 + $0x281] sm:$0xff]
      %v670 = vld [vmem:[%s568 + $0x291] sm:$0xff]
      %v671 = vld [vmem:[%s568 + $0x2a1] sm:$0xff]
      %v672 = vld [vmem:[%s568 + $0x2b1] sm:$0xff]
      %v673 = vld [vmem:[%s568 + $0x2d1] sm:$0xff]
      %v674 = vld [vmem:[%s568 + $0x2e1] sm:$0xff]
      %v675 = vld [vmem:[%s568 + $0x2f1] sm:$0xff]
      %v676 = vld [vmem:[%s568 + $0x301] sm:$0xff]
      %v677 = vld [vmem:[%s568 + $0x311] sm:$0xff]
      %v678 = vld [vmem:[%s568 + $0x321] sm:$0xff]
      %v679 = vld [vmem:[%s568 + $0x331] sm:$0xff]
      %v680 = vld [vmem:[%s568 + $0x341] sm:$0xff]
      %v681 = vld [vmem:[%s568 + $0x361] sm:$0xff]
      %v682 = vld [vmem:[%s568 + $0x371] sm:$0xff]
      %v683 = vld [vmem:[%s568 + $0x381] sm:$0xff]
      %v684 = vld [vmem:[%s568 + $0x391] sm:$0xff]
      %v685 = vld [vmem:[%s568 + $0x3a1] sm:$0xff]
      %v686 = vld [vmem:[%s568 + $0x3b1] sm:$0xff]
      %v687 = vld [vmem:[%s568 + $0x3c1] sm:$0xff]
      %v688 = vld [vmem:[%s568 + $0x3d1] sm:$0xff]
      %v689 = vld [vmem:[%s568 + $0x3f1] sm:$0xff]
      %v690 = vld [vmem:[%s568 + $0x401] sm:$0xff]
      %v691 = vld [vmem:[%s568 + $0x411] sm:$0xff]
      %v692 = vld [vmem:[%s568 + $0x421] sm:$0xff]
      %v693 = vld [vmem:[%s568 + $0x431] sm:$0xff]
      %v694 = vld [vmem:[%s568 + $0x441] sm:$0xff]
      %v695 = vld [vmem:[%s568 + $0x451] sm:$0xff]
      %v696 = vld [vmem:[%s568 + $0x461] sm:$0xff]
      %761 = vrot.lane.b32.xlu0 %v246, 32
      %v762 = vpop.permute.xlu0 %761
      %763 = vrot.lane.b32.xlu0 %v247, 32
      %v764 = vpop.permute.xlu0 %763
      %765 = vrot.lane.b32.xlu0 %v248, 32
      %v766 = vpop.permute.xlu0 %765
      %767 = vrot.lane.b32.xlu0 %v249, 32
      %v768 = vpop.permute.xlu0 %767
      %769 = vrot.lane.b32.xlu0 %v250, 32
      %v770 = vpop.permute.xlu0 %769
      %771 = vrot.lane.b32.xlu0 %v251, 32
      %v772 = vpop.permute.xlu0 %771
      %773 = vrot.lane.b32.xlu0 %v252, 32
      %v774 = vpop.permute.xlu0 %773
      %775 = vrot.lane.b32.xlu0 %v253, 32
      %v776 = vpop.permute.xlu0 %775
      %777 = vrot.lane.b32.xlu0 %v254, 32
      %v778 = vpop.permute.xlu0 %777
      %779 = vrot.lane.b32.xlu0 %v255, 32
      %v780 = vpop.permute.xlu0 %779
      %781 = vrot.lane.b32.xlu0 %v256, 32
      %v782 = vpop.permute.xlu0 %781
      %783 = vrot.lane.b32.xlu0 %v257, 32
      %v784 = vpop.permute.xlu0 %783
      %785 = vrot.lane.b32.xlu0 %v258, 32
      %v786 = vpop.permute.xlu0 %785
      %787 = vrot.lane.b32.xlu0 %v259, 32
      %v788 = vpop.permute.xlu0 %787
      %789 = vrot.lane.b32.xlu0 %v260, 32
      %v790 = vpop.permute.xlu0 %789
      %791 = vrot.lane.b32.xlu0 %v261, 32
      %v792 = vpop.permute.xlu0 %791
      %793 = vrot.lane.b32.xlu0 %v262, 32
      %v794 = vpop.permute.xlu0 %793
      %795 = vrot.lane.b32.xlu0 %v263, 32
      %v796 = vpop.permute.xlu0 %795
      %797 = vrot.lane.b32.xlu0 %v264, 32
      %v798 = vpop.permute.xlu0 %797
      %799 = vrot.lane.b32.xlu0 %v265, 32
      %v800 = vpop.permute.xlu0 %799
      %801 = vrot.lane.b32.xlu0 %v266, 32
      %v802 = vpop.permute.xlu0 %801
      %803 = vrot.lane.b32.xlu0 %v267, 32
      %v804 = vpop.permute.xlu0 %803
      %805 = vrot.lane.b32.xlu0 %v268, 32
      %v806 = vpop.permute.xlu0 %805
      %807 = vrot.lane.b32.xlu0 %v269, 32
      %v808 = vpop.permute.xlu0 %807
      %809 = vrot.lane.b32.xlu0 %v270, 32
      %v810 = vpop.permute.xlu0 %809
      %811 = vrot.lane.b32.xlu0 %v271, 32
      %v812 = vpop.permute.xlu0 %811
      %813 = vrot.lane.b32.xlu0 %v272, 32
      %v814 = vpop.permute.xlu0 %813
      %815 = vrot.lane.b32.xlu0 %v273, 32
      %v816 = vpop.permute.xlu0 %815
      %817 = vrot.lane.b32.xlu0 %v274, 32
      %v818 = vpop.permute.xlu0 %817
      %819 = vrot.lane.b32.xlu0 %v275, 32
      %v820 = vpop.permute.xlu0 %819
      %821 = vrot.lane.b32.xlu0 %v276, 32
      %v822 = vpop.permute.xlu0 %821
      %823 = vrot.lane.b32.xlu0 %v277, 32
      %v824 = vpop.permute.xlu0 %823
      %825 = vrot.lane.b32.xlu0 %v278, 32
      %v826 = vpop.permute.xlu0 %825
      %827 = vrot.lane.b32.xlu0 %v279, 32
      %v828 = vpop.permute.xlu0 %827
      %829 = vrot.lane.b32.xlu0 %v280, 32
      %v830 = vpop.permute.xlu0 %829
      %831 = vrot.lane.b32.xlu0 %v281, 32
      %v832 = vpop.permute.xlu0 %831
      %833 = vrot.lane.b32.xlu0 %v282, 32
      %v834 = vpop.permute.xlu0 %833
      %835 = vrot.lane.b32.xlu0 %v283, 32
      %v836 = vpop.permute.xlu0 %835
      %837 = vrot.lane.b32.xlu0 %v284, 32
      %v838 = vpop.permute.xlu0 %837
      %839 = vrot.lane.b32.xlu0 %v285, 32
      %v840 = vpop.permute.xlu0 %839
      %841 = vrot.lane.b32.xlu0 %v286, 32
      %v842 = vpop.permute.xlu0 %841
      %843 = vrot.lane.b32.xlu0 %v287, 32
      %v844 = vpop.permute.xlu0 %843
      %845 = vrot.lane.b32.xlu0 %v288, 32
      %v846 = vpop.permute.xlu0 %845
      %847 = vrot.lane.b32.xlu0 %v289, 32
      %v848 = vpop.permute.xlu0 %847
      %849 = vrot.lane.b32.xlu0 %v290, 32
      %v850 = vpop.permute.xlu0 %849
      %851 = vrot.lane.b32.xlu0 %v291, 32
      %v852 = vpop.permute.xlu0 %851
      %853 = vrot.lane.b32.xlu0 %v292, 32
      %v854 = vpop.permute.xlu0 %853
      %855 = vrot.lane.b32.xlu0 %v293, 32
      %v856 = vpop.permute.xlu0 %855
      %857 = vrot.lane.b32.xlu0 %v294, 32
      %v858 = vpop.permute.xlu0 %857
      %859 = vrot.lane.b32.xlu0 %v295, 32
      %v860 = vpop.permute.xlu0 %859
      %861 = vrot.lane.b32.xlu0 %v296, 32
      %v862 = vpop.permute.xlu0 %861
      %863 = vrot.lane.b32.xlu0 %v297, 32
      %v864 = vpop.permute.xlu0 %863
      %865 = vrot.lane.b32.xlu0 %v298, 32
      %v866 = vpop.permute.xlu0 %865
      %867 = vrot.lane.b32.xlu0 %v299, 32
      %v868 = vpop.permute.xlu0 %867
      %869 = vrot.lane.b32.xlu0 %v300, 32
      %v870 = vpop.permute.xlu0 %869
      %871 = vrot.lane.b32.xlu0 %v301, 32
      %v872 = vpop.permute.xlu0 %871
      %873 = vrot.lane.b32.xlu0 %v302, 32
      %v874 = vpop.permute.xlu0 %873
      %875 = vrot.lane.b32.xlu0 %v303, 32
      %v876 = vpop.permute.xlu0 %875
      %877 = vrot.lane.b32.xlu0 %v304, 32
      %v878 = vpop.permute.xlu0 %877
      %879 = vrot.lane.b32.xlu0 %v305, 32
      %v880 = vpop.permute.xlu0 %879
      %881 = vrot.lane.b32.xlu0 %v306, 32
      %v882 = vpop.permute.xlu0 %881
      %883 = vrot.lane.b32.xlu0 %v307, 32
      %v884 = vpop.permute.xlu0 %883
      %885 = vrot.lane.b32.xlu0 %v308, 32
      %v886 = vpop.permute.xlu0 %885
      %887 = vrot.lane.b32.xlu0 %v309, 32
      %v888 = vpop.permute.xlu0 %887
      %1017 = vrot.lane.b32.xlu0 %v311, 64
      %v1018 = vpop.permute.xlu0 %1017
      %1019 = vrot.lane.b32.xlu0 %v312, 64
      %v1020 = vpop.permute.xlu0 %1019
      %1021 = vrot.lane.b32.xlu0 %v313, 64
      %v1022 = vpop.permute.xlu0 %1021
      %1023 = vrot.lane.b32.xlu0 %v314, 64
      %v1024 = vpop.permute.xlu0 %1023
      %1025 = vrot.lane.b32.xlu0 %v315, 64
      %v1026 = vpop.permute.xlu0 %1025
      %1027 = vrot.lane.b32.xlu0 %v316, 64
      %v1028 = vpop.permute.xlu0 %1027
      %1029 = vrot.lane.b32.xlu0 %v317, 64
      %v1030 = vpop.permute.xlu0 %1029
      %1031 = vrot.lane.b32.xlu0 %v318, 64
      %v1032 = vpop.permute.xlu0 %1031
      %1033 = vrot.lane.b32.xlu0 %v319, 64
      %v1034 = vpop.permute.xlu0 %1033
      %1035 = vrot.lane.b32.xlu0 %v320, 64
      %v1036 = vpop.permute.xlu0 %1035
      %1037 = vrot.lane.b32.xlu0 %v321, 64
      %v1038 = vpop.permute.xlu0 %1037
      %1039 = vrot.lane.b32.xlu0 %v322, 64
      %v1040 = vpop.permute.xlu0 %1039
      %1041 = vrot.lane.b32.xlu0 %v323, 64
      %v1042 = vpop.permute.xlu0 %1041
      %1043 = vrot.lane.b32.xlu0 %v324, 64
      %v1044 = vpop.permute.xlu0 %1043
      %1045 = vrot.lane.b32.xlu0 %v325, 64
      %v1046 = vpop.permute.xlu0 %1045
      %1047 = vrot.lane.b32.xlu0 %v326, 64
      %v1048 = vpop.permute.xlu0 %1047
      %1049 = vrot.lane.b32.xlu0 %v327, 64
      %v1050 = vpop.permute.xlu0 %1049
      %1051 = vrot.lane.b32.xlu0 %v328, 64
      %v1052 = vpop.permute.xlu0 %1051
      %1053 = vrot.lane.b32.xlu0 %v329, 64
      %v1054 = vpop.permute.xlu0 %1053
      %1055 = vrot.lane.b32.xlu0 %v330, 64
      %v1056 = vpop.permute.xlu0 %1055
      %1057 = vrot.lane.b32.xlu0 %v331, 64
      %v1058 = vpop.permute.xlu0 %1057
      %1059 = vrot.lane.b32.xlu0 %v332, 64
      %v1060 = vpop.permute.xlu0 %1059
      %1061 = vrot.lane.b32.xlu0 %v333, 64
      %v1062 = vpop.permute.xlu0 %1061
      %1063 = vrot.lane.b32.xlu0 %v334, 64
      %v1064 = vpop.permute.xlu0 %1063
      %1065 = vrot.lane.b32.xlu0 %v335, 64
      %v1066 = vpop.permute.xlu0 %1065
      %1067 = vrot.lane.b32.xlu0 %v336, 64
      %v1068 = vpop.permute.xlu0 %1067
      %1069 = vrot.lane.b32.xlu0 %v337, 64
      %v1070 = vpop.permute.xlu0 %1069
      %1071 = vrot.lane.b32.xlu0 %v338, 64
      %v1072 = vpop.permute.xlu0 %1071
      %1073 = vrot.lane.b32.xlu0 %v339, 64
      %v1074 = vpop.permute.xlu0 %1073
      %1075 = vrot.lane.b32.xlu0 %v340, 64
      %v1076 = vpop.permute.xlu0 %1075
      %1077 = vrot.lane.b32.xlu0 %v341, 64
      %v1078 = vpop.permute.xlu0 %1077
      %1079 = vrot.lane.b32.xlu0 %v342, 64
      %v1080 = vpop.permute.xlu0 %1079
      %1081 = vrot.lane.b32.xlu0 %v343, 64
      %v1082 = vpop.permute.xlu0 %1081
      %1083 = vrot.lane.b32.xlu0 %v344, 64
      %v1084 = vpop.permute.xlu0 %1083
      %1085 = vrot.lane.b32.xlu0 %v345, 64
      %v1086 = vpop.permute.xlu0 %1085
      %1087 = vrot.lane.b32.xlu0 %v346, 64
      %v1088 = vpop.permute.xlu0 %1087
      %1089 = vrot.lane.b32.xlu0 %v347, 64
      %v1090 = vpop.permute.xlu0 %1089
      %1091 = vrot.lane.b32.xlu0 %v348, 64
      %v1092 = vpop.permute.xlu0 %1091
      %1093 = vrot.lane.b32.xlu0 %v349, 64
      %v1094 = vpop.permute.xlu0 %1093
      %1095 = vrot.lane.b32.xlu0 %v350, 64
      %v1096 = vpop.permute.xlu0 %1095
      %1097 = vrot.lane.b32.xlu0 %v351, 64
      %v1098 = vpop.permute.xlu0 %1097
      %1099 = vrot.lane.b32.xlu0 %v352, 64
      %v1100 = vpop.permute.xlu0 %1099
      %1101 = vrot.lane.b32.xlu0 %v353, 64
      %v1102 = vpop.permute.xlu0 %1101
      %1103 = vrot.lane.b32.xlu0 %v354, 64
      %v1104 = vpop.permute.xlu0 %1103
      %1105 = vrot.lane.b32.xlu0 %v355, 64
      %v1106 = vpop.permute.xlu0 %1105
      %1107 = vrot.lane.b32.xlu0 %v356, 64
      %v1108 = vpop.permute.xlu0 %1107
      %1109 = vrot.lane.b32.xlu0 %v357, 64
      %v1110 = vpop.permute.xlu0 %1109
      %1111 = vrot.lane.b32.xlu0 %v358, 64
      %v1112 = vpop.permute.xlu0 %1111
      %1113 = vrot.lane.b32.xlu0 %v359, 64
      %v1114 = vpop.permute.xlu0 %1113
      %1115 = vrot.lane.b32.xlu0 %v360, 64
      %v1116 = vpop.permute.xlu0 %1115
      %1117 = vrot.lane.b32.xlu0 %v361, 64
      %v1118 = vpop.permute.xlu0 %1117
      %1119 = vrot.lane.b32.xlu0 %v362, 64
      %v1120 = vpop.permute.xlu0 %1119
      %1121 = vrot.lane.b32.xlu0 %v363, 64
      %v1122 = vpop.permute.xlu0 %1121
      %1123 = vrot.lane.b32.xlu0 %v364, 64
      %v1124 = vpop.permute.xlu0 %1123
      %1125 = vrot.lane.b32.xlu0 %v365, 64
      %v1126 = vpop.permute.xlu0 %1125
      %1127 = vrot.lane.b32.xlu0 %v366, 64
      %v1128 = vpop.permute.xlu0 %1127
      %1129 = vrot.lane.b32.xlu0 %v367, 64
      %v1130 = vpop.permute.xlu0 %1129
      %1131 = vrot.lane.b32.xlu0 %v368, 64
      %v1132 = vpop.permute.xlu0 %1131
      %1133 = vrot.lane.b32.xlu0 %v369, 64
      %v1134 = vpop.permute.xlu0 %1133
      %1135 = vrot.lane.b32.xlu0 %v370, 64
      %v1136 = vpop.permute.xlu0 %1135
      %1137 = vrot.lane.b32.xlu0 %v371, 64
      %v1138 = vpop.permute.xlu0 %1137
      %1139 = vrot.lane.b32.xlu0 %v372, 64
      %v1140 = vpop.permute.xlu0 %1139
      %1141 = vrot.lane.b32.xlu0 %v373, 64
      %v1142 = vpop.permute.xlu0 %1141
      %1143 = vrot.lane.b32.xlu0 %v374, 64
      %v1144 = vpop.permute.xlu0 %1143
      %1273 = vrot.lane.b32.xlu0 %v375, 96
      %v1274 = vpop.permute.xlu0 %1273
      %1275 = vrot.lane.b32.xlu0 %v376, 96
      %v1276 = vpop.permute.xlu0 %1275
      %1277 = vrot.lane.b32.xlu0 %v377, 96
      %v1278 = vpop.permute.xlu0 %1277
      %1279 = vrot.lane.b32.xlu0 %v378, 96
      %v1280 = vpop.permute.xlu0 %1279
      %1281 = vrot.lane.b32.xlu0 %v379, 96
      %v1282 = vpop.permute.xlu0 %1281
      %1283 = vrot.lane.b32.xlu0 %v380, 96
      %v1284 = vpop.permute.xlu0 %1283
      %1285 = vrot.lane.b32.xlu0 %v381, 96
      %v1286 = vpop.permute.xlu0 %1285
      %1287 = vrot.lane.b32.xlu0 %v382, 96
      %v1288 = vpop.permute.xlu0 %1287
      %1289 = vrot.lane.b32.xlu0 %v383, 96
      %v1290 = vpop.permute.xlu0 %1289
      %1291 = vrot.lane.b32.xlu0 %v384, 96
      %v1292 = vpop.permute.xlu0 %1291
      %1293 = vrot.lane.b32.xlu0 %v385, 96
      %v1294 = vpop.permute.xlu0 %1293
      %1295 = vrot.lane.b32.xlu0 %v386, 96
      %v1296 = vpop.permute.xlu0 %1295
      %1297 = vrot.lane.b32.xlu0 %v387, 96
      %v1298 = vpop.permute.xlu0 %1297
      %1299 = vrot.lane.b32.xlu0 %v388, 96
      %v1300 = vpop.permute.xlu0 %1299
      %1301 = vrot.lane.b32.xlu0 %v389, 96
      %v1302 = vpop.permute.xlu0 %1301
      %1303 = vrot.lane.b32.xlu0 %v390, 96
      %v1304 = vpop.permute.xlu0 %1303
      %1305 = vrot.lane.b32.xlu0 %v391, 96
      %v1306 = vpop.permute.xlu0 %1305
      %1307 = vrot.lane.b32.xlu0 %v392, 96
      %v1308 = vpop.permute.xlu0 %1307
      %1309 = vrot.lane.b32.xlu0 %v393, 96
      %v1310 = vpop.permute.xlu0 %1309
      %1311 = vrot.lane.b32.xlu0 %v394, 96
      %v1312 = vpop.permute.xlu0 %1311
      %1313 = vrot.lane.b32.xlu0 %v395, 96
      %v1314 = vpop.permute.xlu0 %1313
      %1315 = vrot.lane.b32.xlu0 %v396, 96
      %v1316 = vpop.permute.xlu0 %1315
      %1317 = vrot.lane.b32.xlu0 %v397, 96
      %v1318 = vpop.permute.xlu0 %1317
      %1319 = vrot.lane.b32.xlu0 %v398, 96
      %v1320 = vpop.permute.xlu0 %1319
      %1321 = vrot.lane.b32.xlu0 %v399, 96
      %v1322 = vpop.permute.xlu0 %1321
      %1323 = vrot.lane.b32.xlu0 %v400, 96
      %v1324 = vpop.permute.xlu0 %1323
      %1325 = vrot.lane.b32.xlu0 %v401, 96
      %v1326 = vpop.permute.xlu0 %1325
      %1327 = vrot.lane.b32.xlu0 %v402, 96
      %v1328 = vpop.permute.xlu0 %1327
      %1329 = vrot.lane.b32.xlu0 %v403, 96
      %v1330 = vpop.permute.xlu0 %1329
      %1331 = vrot.lane.b32.xlu0 %v404, 96
      %v1332 = vpop.permute.xlu0 %1331
      %1333 = vrot.lane.b32.xlu0 %v405, 96
      %v1334 = vpop.permute.xlu0 %1333
      %1335 = vrot.lane.b32.xlu0 %v406, 96
      %v1336 = vpop.permute.xlu0 %1335
      %1337 = vrot.lane.b32.xlu0 %v407, 96
      %v1338 = vpop.permute.xlu0 %1337
      %1339 = vrot.lane.b32.xlu0 %v408, 96
      %v1340 = vpop.permute.xlu0 %1339
      %1341 = vrot.lane.b32.xlu0 %v409, 96
      %v1342 = vpop.permute.xlu0 %1341
      %1343 = vrot.lane.b32.xlu0 %v410, 96
      %v1344 = vpop.permute.xlu0 %1343
      %1345 = vrot.lane.b32.xlu0 %v411, 96
      %v1346 = vpop.permute.xlu0 %1345
      %1347 = vrot.lane.b32.xlu0 %v412, 96
      %v1348 = vpop.permute.xlu0 %1347
      %1349 = vrot.lane.b32.xlu0 %v413, 96
      %v1350 = vpop.permute.xlu0 %1349
      %1351 = vrot.lane.b32.xlu0 %v414, 96
      %v1352 = vpop.permute.xlu0 %1351
      %1353 = vrot.lane.b32.xlu0 %v415, 96
      %v1354 = vpop.permute.xlu0 %1353
      %1355 = vrot.lane.b32.xlu0 %v416, 96
      %v1356 = vpop.permute.xlu0 %1355
      %1357 = vrot.lane.b32.xlu0 %v417, 96
      %v1358 = vpop.permute.xlu0 %1357
      %1359 = vrot.lane.b32.xlu0 %v418, 96
      %v1360 = vpop.permute.xlu0 %1359
      %1361 = vrot.lane.b32.xlu0 %v419, 96
      %v1362 = vpop.permute.xlu0 %1361
      %1363 = vrot.lane.b32.xlu0 %v420, 96
      %v1364 = vpop.permute.xlu0 %1363
      %1365 = vrot.lane.b32.xlu0 %v421, 96
      %v1366 = vpop.permute.xlu0 %1365
      %1367 = vrot.lane.b32.xlu0 %v422, 96
      %v1368 = vpop.permute.xlu0 %1367
      %1369 = vrot.lane.b32.xlu0 %v423, 96
      %v1370 = vpop.permute.xlu0 %1369
      %1371 = vrot.lane.b32.xlu0 %v424, 96
      %v1372 = vpop.permute.xlu0 %1371
      %1373 = vrot.lane.b32.xlu0 %v425, 96
      %v1374 = vpop.permute.xlu0 %1373
      %1375 = vrot.lane.b32.xlu0 %v426, 96
      %v1376 = vpop.permute.xlu0 %1375
      %1377 = vrot.lane.b32.xlu0 %v427, 96
      %v1378 = vpop.permute.xlu0 %1377
      %1379 = vrot.lane.b32.xlu0 %v428, 96
      %v1380 = vpop.permute.xlu0 %1379
      %1381 = vrot.lane.b32.xlu0 %v429, 96
      %v1382 = vpop.permute.xlu0 %1381
      %1383 = vrot.lane.b32.xlu0 %v430, 96
      %v1384 = vpop.permute.xlu0 %1383
      %1385 = vrot.lane.b32.xlu0 %v431, 96
      %v1386 = vpop.permute.xlu0 %1385
      %1387 = vrot.lane.b32.xlu0 %v432, 96
      %v1388 = vpop.permute.xlu0 %1387
      %1389 = vrot.lane.b32.xlu0 %v433, 96
      %v1390 = vpop.permute.xlu0 %1389
      %1391 = vrot.lane.b32.xlu0 %v434, 96
      %v1392 = vpop.permute.xlu0 %1391
      %1393 = vrot.lane.b32.xlu0 %v435, 96
      %v1394 = vpop.permute.xlu0 %1393
      %1395 = vrot.lane.b32.xlu0 %v436, 96
      %v1396 = vpop.permute.xlu0 %1395
      %1397 = vrot.lane.b32.xlu0 %v437, 96
      %v1398 = vpop.permute.xlu0 %1397
      %1399 = vrot.lane.b32.xlu0 %v438, 96
      %v1400 = vpop.permute.xlu0 %1399
      %1529 = vrot.lane.b32.xlu0 %v504, 32
      %v1530 = vpop.permute.xlu0 %1529
      %1531 = vrot.lane.b32.xlu0 %v505, 32
      %v1532 = vpop.permute.xlu0 %1531
      %1533 = vrot.lane.b32.xlu0 %v506, 32
      %v1534 = vpop.permute.xlu0 %1533
      %1535 = vrot.lane.b32.xlu0 %v507, 32
      %v1536 = vpop.permute.xlu0 %1535
      %1537 = vrot.lane.b32.xlu0 %v508, 32
      %v1538 = vpop.permute.xlu0 %1537
      %1539 = vrot.lane.b32.xlu0 %v509, 32
      %v1540 = vpop.permute.xlu0 %1539
      %1541 = vrot.lane.b32.xlu0 %v510, 32
      %v1542 = vpop.permute.xlu0 %1541
      %1543 = vrot.lane.b32.xlu0 %v511, 32
      %v1544 = vpop.permute.xlu0 %1543
      %1545 = vrot.lane.b32.xlu0 %v512, 32
      %v1546 = vpop.permute.xlu0 %1545
      %1547 = vrot.lane.b32.xlu0 %v513, 32
      %v1548 = vpop.permute.xlu0 %1547
      %1549 = vrot.lane.b32.xlu0 %v514, 32
      %v1550 = vpop.permute.xlu0 %1549
      %1551 = vrot.lane.b32.xlu0 %v515, 32
      %v1552 = vpop.permute.xlu0 %1551
      %1553 = vrot.lane.b32.xlu0 %v516, 32
      %v1554 = vpop.permute.xlu0 %1553
      %1555 = vrot.lane.b32.xlu0 %v517, 32
      %v1556 = vpop.permute.xlu0 %1555
      %1557 = vrot.lane.b32.xlu0 %v518, 32
      %v1558 = vpop.permute.xlu0 %1557
      %1559 = vrot.lane.b32.xlu0 %v519, 32
      %v1560 = vpop.permute.xlu0 %1559
      %1561 = vrot.lane.b32.xlu0 %v520, 32
      %v1562 = vpop.permute.xlu0 %1561
      %1563 = vrot.lane.b32.xlu0 %v521, 32
      %v1564 = vpop.permute.xlu0 %1563
      %1565 = vrot.lane.b32.xlu0 %v522, 32
      %v1566 = vpop.permute.xlu0 %1565
      %1567 = vrot.lane.b32.xlu0 %v523, 32
      %v1568 = vpop.permute.xlu0 %1567
      %1569 = vrot.lane.b32.xlu0 %v524, 32
      %v1570 = vpop.permute.xlu0 %1569
      %1571 = vrot.lane.b32.xlu0 %v525, 32
      %v1572 = vpop.permute.xlu0 %1571
      %1573 = vrot.lane.b32.xlu0 %v526, 32
      %v1574 = vpop.permute.xlu0 %1573
      %1575 = vrot.lane.b32.xlu0 %v527, 32
      %v1576 = vpop.permute.xlu0 %1575
      %1577 = vrot.lane.b32.xlu0 %v528, 32
      %v1578 = vpop.permute.xlu0 %1577
      %1579 = vrot.lane.b32.xlu0 %v529, 32
      %v1580 = vpop.permute.xlu0 %1579
      %1581 = vrot.lane.b32.xlu0 %v530, 32
      %v1582 = vpop.permute.xlu0 %1581
      %1583 = vrot.lane.b32.xlu0 %v531, 32
      %v1584 = vpop.permute.xlu0 %1583
      %1585 = vrot.lane.b32.xlu0 %v532, 32
      %v1586 = vpop.permute.xlu0 %1585
      %1587 = vrot.lane.b32.xlu0 %v533, 32
      %v1588 = vpop.permute.xlu0 %1587
      %1589 = vrot.lane.b32.xlu0 %v534, 32
      %v1590 = vpop.permute.xlu0 %1589
      %1591 = vrot.lane.b32.xlu0 %v535, 32
      %v1592 = vpop.permute.xlu0 %1591
      %1593 = vrot.lane.b32.xlu0 %v536, 32
      %v1594 = vpop.permute.xlu0 %1593
      %1595 = vrot.lane.b32.xlu0 %v537, 32
      %v1596 = vpop.permute.xlu0 %1595
      %1597 = vrot.lane.b32.xlu0 %v538, 32
      %v1598 = vpop.permute.xlu0 %1597
      %1599 = vrot.lane.b32.xlu0 %v539, 32
      %v1600 = vpop.permute.xlu0 %1599
      %1601 = vrot.lane.b32.xlu0 %v540, 32
      %v1602 = vpop.permute.xlu0 %1601
      %1603 = vrot.lane.b32.xlu0 %v541, 32
      %v1604 = vpop.permute.xlu0 %1603
      %1605 = vrot.lane.b32.xlu0 %v542, 32
      %v1606 = vpop.permute.xlu0 %1605
      %1607 = vrot.lane.b32.xlu0 %v543, 32
      %v1608 = vpop.permute.xlu0 %1607
      %1609 = vrot.lane.b32.xlu0 %v544, 32
      %v1610 = vpop.permute.xlu0 %1609
      %1611 = vrot.lane.b32.xlu0 %v545, 32
      %v1612 = vpop.permute.xlu0 %1611
      %1613 = vrot.lane.b32.xlu0 %v546, 32
      %v1614 = vpop.permute.xlu0 %1613
      %1615 = vrot.lane.b32.xlu0 %v547, 32
      %v1616 = vpop.permute.xlu0 %1615
      %1617 = vrot.lane.b32.xlu0 %v548, 32
      %v1618 = vpop.permute.xlu0 %1617
      %1619 = vrot.lane.b32.xlu0 %v549, 32
      %v1620 = vpop.permute.xlu0 %1619
      %1621 = vrot.lane.b32.xlu0 %v550, 32
      %v1622 = vpop.permute.xlu0 %1621
      %1623 = vrot.lane.b32.xlu0 %v551, 32
      %v1624 = vpop.permute.xlu0 %1623
      %1625 = vrot.lane.b32.xlu0 %v552, 32
      %v1626 = vpop.permute.xlu0 %1625
      %1627 = vrot.lane.b32.xlu0 %v553, 32
      %v1628 = vpop.permute.xlu0 %1627
      %1629 = vrot.lane.b32.xlu0 %v554, 32
      %v1630 = vpop.permute.xlu0 %1629
      %1631 = vrot.lane.b32.xlu0 %v555, 32
      %v1632 = vpop.permute.xlu0 %1631
      %1633 = vrot.lane.b32.xlu0 %v556, 32
      %v1634 = vpop.permute.xlu0 %1633
      %1635 = vrot.lane.b32.xlu0 %v557, 32
      %v1636 = vpop.permute.xlu0 %1635
      %1637 = vrot.lane.b32.xlu0 %v558, 32
      %v1638 = vpop.permute.xlu0 %1637
      %1639 = vrot.lane.b32.xlu0 %v559, 32
      %v1640 = vpop.permute.xlu0 %1639
      %1641 = vrot.lane.b32.xlu0 %v560, 32
      %v1642 = vpop.permute.xlu0 %1641
      %1643 = vrot.lane.b32.xlu0 %v561, 32
      %v1644 = vpop.permute.xlu0 %1643
      %1645 = vrot.lane.b32.xlu0 %v562, 32
      %v1646 = vpop.permute.xlu0 %1645
      %1647 = vrot.lane.b32.xlu0 %v563, 32
      %v1648 = vpop.permute.xlu0 %1647
      %1649 = vrot.lane.b32.xlu0 %v564, 32
      %v1650 = vpop.permute.xlu0 %1649
      %1651 = vrot.lane.b32.xlu0 %v565, 32
      %v1652 = vpop.permute.xlu0 %1651
      %1653 = vrot.lane.b32.xlu0 %v566, 32
      %v1654 = vpop.permute.xlu0 %1653
      %1655 = vrot.lane.b32.xlu0 %v567, 32
      %v1656 = vpop.permute.xlu0 %1655
      %1785 = vrot.lane.b32.xlu0 %v569, 64
      %v1786 = vpop.permute.xlu0 %1785
      %1787 = vrot.lane.b32.xlu0 %v570, 64
      %v1788 = vpop.permute.xlu0 %1787
      %1789 = vrot.lane.b32.xlu0 %v571, 64
      %v1790 = vpop.permute.xlu0 %1789
      %1791 = vrot.lane.b32.xlu0 %v572, 64
      %v1792 = vpop.permute.xlu0 %1791
      %1793 = vrot.lane.b32.xlu0 %v573, 64
      %v1794 = vpop.permute.xlu0 %1793
      %1795 = vrot.lane.b32.xlu0 %v574, 64
      %v1796 = vpop.permute.xlu0 %1795
      %1797 = vrot.lane.b32.xlu0 %v575, 64
      %v1798 = vpop.permute.xlu0 %1797
      %1799 = vrot.lane.b32.xlu0 %v576, 64
      %v1800 = vpop.permute.xlu0 %1799
      %1801 = vrot.lane.b32.xlu0 %v577, 64
      %v1802 = vpop.permute.xlu0 %1801
      %1803 = vrot.lane.b32.xlu0 %v578, 64
      %v1804 = vpop.permute.xlu0 %1803
      %1805 = vrot.lane.b32.xlu0 %v579, 64
      %v1806 = vpop.permute.xlu0 %1805
      %1807 = vrot.lane.b32.xlu0 %v580, 64
      %v1808 = vpop.permute.xlu0 %1807
      %1809 = vrot.lane.b32.xlu0 %v581, 64
      %v1810 = vpop.permute.xlu0 %1809
      %1811 = vrot.lane.b32.xlu0 %v582, 64
      %v1812 = vpop.permute.xlu0 %1811
      %1813 = vrot.lane.b32.xlu0 %v583, 64
      %v1814 = vpop.permute.xlu0 %1813
      %1815 = vrot.lane.b32.xlu0 %v584, 64
      %v1816 = vpop.permute.xlu0 %1815
      %1817 = vrot.lane.b32.xlu0 %v585, 64
      %v1818 = vpop.permute.xlu0 %1817
      %1819 = vrot.lane.b32.xlu0 %v586, 64
      %v1820 = vpop.permute.xlu0 %1819
      %1821 = vrot.lane.b32.xlu0 %v587, 64
      %v1822 = vpop.permute.xlu0 %1821
      %1823 = vrot.lane.b32.xlu0 %v588, 64
      %v1824 = vpop.permute.xlu0 %1823
      %1825 = vrot.lane.b32.xlu0 %v589, 64
      %v1826 = vpop.permute.xlu0 %1825
      %1827 = vrot.lane.b32.xlu0 %v590, 64
      %v1828 = vpop.permute.xlu0 %1827
      %1829 = vrot.lane.b32.xlu0 %v591, 64
      %v1830 = vpop.permute.xlu0 %1829
      %1831 = vrot.lane.b32.xlu0 %v592, 64
      %v1832 = vpop.permute.xlu0 %1831
      %1833 = vrot.lane.b32.xlu0 %v593, 64
      %v1834 = vpop.permute.xlu0 %1833
      %1835 = vrot.lane.b32.xlu0 %v594, 64
      %v1836 = vpop.permute.xlu0 %1835
      %1837 = vrot.lane.b32.xlu0 %v595, 64
      %v1838 = vpop.permute.xlu0 %1837
      %1839 = vrot.lane.b32.xlu0 %v596, 64
      %v1840 = vpop.permute.xlu0 %1839
      %1841 = vrot.lane.b32.xlu0 %v597, 64
      %v1842 = vpop.permute.xlu0 %1841
      %1843 = vrot.lane.b32.xlu0 %v598, 64
      %v1844 = vpop.permute.xlu0 %1843
      %1845 = vrot.lane.b32.xlu0 %v599, 64
      %v1846 = vpop.permute.xlu0 %1845
      %1847 = vrot.lane.b32.xlu0 %v600, 64
      %v1848 = vpop.permute.xlu0 %1847
      %1849 = vrot.lane.b32.xlu0 %v601, 64
      %v1850 = vpop.permute.xlu0 %1849
      %1851 = vrot.lane.b32.xlu0 %v602, 64
      %v1852 = vpop.permute.xlu0 %1851
      %1853 = vrot.lane.b32.xlu0 %v603, 64
      %v1854 = vpop.permute.xlu0 %1853
      %1855 = vrot.lane.b32.xlu0 %v604, 64
      %v1856 = vpop.permute.xlu0 %1855
      %1857 = vrot.lane.b32.xlu0 %v605, 64
      %v1858 = vpop.permute.xlu0 %1857
      %1859 = vrot.lane.b32.xlu0 %v606, 64
      %v1860 = vpop.permute.xlu0 %1859
      %1861 = vrot.lane.b32.xlu0 %v607, 64
      %v1862 = vpop.permute.xlu0 %1861
      %1863 = vrot.lane.b32.xlu0 %v608, 64
      %v1864 = vpop.permute.xlu0 %1863
      %1865 = vrot.lane.b32.xlu0 %v609, 64
      %v1866 = vpop.permute.xlu0 %1865
      %1867 = vrot.lane.b32.xlu0 %v610, 64
      %v1868 = vpop.permute.xlu0 %1867
      %1869 = vrot.lane.b32.xlu0 %v611, 64
      %v1870 = vpop.permute.xlu0 %1869
      %1871 = vrot.lane.b32.xlu0 %v612, 64
      %v1872 = vpop.permute.xlu0 %1871
      %1873 = vrot.lane.b32.xlu0 %v613, 64
      %v1874 = vpop.permute.xlu0 %1873
      %1875 = vrot.lane.b32.xlu0 %v614, 64
      %v1876 = vpop.permute.xlu0 %1875
      %1877 = vrot.lane.b32.xlu0 %v615, 64
      %v1878 = vpop.permute.xlu0 %1877
      %1879 = vrot.lane.b32.xlu0 %v616, 64
      %v1880 = vpop.permute.xlu0 %1879
      %1881 = vrot.lane.b32.xlu0 %v617, 64
      %v1882 = vpop.permute.xlu0 %1881
      %1883 = vrot.lane.b32.xlu0 %v618, 64
      %v1884 = vpop.permute.xlu0 %1883
      %1885 = vrot.lane.b32.xlu0 %v619, 64
      %v1886 = vpop.permute.xlu0 %1885
      %1887 = vrot.lane.b32.xlu0 %v620, 64
      %v1888 = vpop.permute.xlu0 %1887
      %1889 = vrot.lane.b32.xlu0 %v621, 64
      %v1890 = vpop.permute.xlu0 %1889
      %1891 = vrot.lane.b32.xlu0 %v622, 64
      %v1892 = vpop.permute.xlu0 %1891
      %1893 = vrot.lane.b32.xlu0 %v623, 64
      %v1894 = vpop.permute.xlu0 %1893
      %1895 = vrot.lane.b32.xlu0 %v624, 64
      %v1896 = vpop.permute.xlu0 %1895
      %1897 = vrot.lane.b32.xlu0 %v625, 64
      %v1898 = vpop.permute.xlu0 %1897
      %1899 = vrot.lane.b32.xlu0 %v626, 64
      %v1900 = vpop.permute.xlu0 %1899
      %1901 = vrot.lane.b32.xlu0 %v627, 64
      %v1902 = vpop.permute.xlu0 %1901
      %1903 = vrot.lane.b32.xlu0 %v628, 64
      %v1904 = vpop.permute.xlu0 %1903
      %1905 = vrot.lane.b32.xlu0 %v629, 64
      %v1906 = vpop.permute.xlu0 %1905
      %1907 = vrot.lane.b32.xlu0 %v630, 64
      %v1908 = vpop.permute.xlu0 %1907
      %1909 = vrot.lane.b32.xlu0 %v631, 64
      %v1910 = vpop.permute.xlu0 %1909
      %1911 = vrot.lane.b32.xlu0 %v632, 64
      %v1912 = vpop.permute.xlu0 %1911
      %2041 = vrot.lane.b32.xlu0 %v633, 96
      %v2042 = vpop.permute.xlu0 %2041
      %2043 = vrot.lane.b32.xlu0 %v634, 96
      %v2044 = vpop.permute.xlu0 %2043
      %2045 = vrot.lane.b32.xlu0 %v635, 96
      %v2046 = vpop.permute.xlu0 %2045
      %2047 = vrot.lane.b32.xlu0 %v636, 96
      %v2048 = vpop.permute.xlu0 %2047
      %2049 = vrot.lane.b32.xlu0 %v637, 96
      %v2050 = vpop.permute.xlu0 %2049
      %2051 = vrot.lane.b32.xlu0 %v638, 96
      %v2052 = vpop.permute.xlu0 %2051
      %2053 = vrot.lane.b32.xlu0 %v639, 96
      %v2054 = vpop.permute.xlu0 %2053
      %2055 = vrot.lane.b32.xlu0 %v640, 96
      %v2056 = vpop.permute.xlu0 %2055
      %2057 = vrot.lane.b32.xlu0 %v641, 96
      %v2058 = vpop.permute.xlu0 %2057
      %2059 = vrot.lane.b32.xlu0 %v642, 96
      %v2060 = vpop.permute.xlu0 %2059
      %2061 = vrot.lane.b32.xlu0 %v643, 96
      %v2062 = vpop.permute.xlu0 %2061
      %2063 = vrot.lane.b32.xlu0 %v644, 96
      %v2064 = vpop.permute.xlu0 %2063
      %2065 = vrot.lane.b32.xlu0 %v645, 96
      %v2066 = vpop.permute.xlu0 %2065
      %2067 = vrot.lane.b32.xlu0 %v646, 96
      %v2068 = vpop.permute.xlu0 %2067
      %2069 = vrot.lane.b32.xlu0 %v647, 96
      %v2070 = vpop.permute.xlu0 %2069
      %2071 = vrot.lane.b32.xlu0 %v648, 96
      %v2072 = vpop.permute.xlu0 %2071
      %2073 = vrot.lane.b32.xlu0 %v649, 96
      %v2074 = vpop.permute.xlu0 %2073
      %2075 = vrot.lane.b32.xlu0 %v650, 96
      %v2076 = vpop.permute.xlu0 %2075
      %2077 = vrot.lane.b32.xlu0 %v651, 96
      %v2078 = vpop.permute.xlu0 %2077
      %2079 = vrot.lane.b32.xlu0 %v652, 96
      %v2080 = vpop.permute.xlu0 %2079
      %2081 = vrot.lane.b32.xlu0 %v653, 96
      %v2082 = vpop.permute.xlu0 %2081
      %2083 = vrot.lane.b32.xlu0 %v654, 96
      %v2084 = vpop.permute.xlu0 %2083
      %2085 = vrot.lane.b32.xlu0 %v655, 96
      %v2086 = vpop.permute.xlu0 %2085
      %2087 = vrot.lane.b32.xlu0 %v656, 96
      %v2088 = vpop.permute.xlu0 %2087
      %2089 = vrot.lane.b32.xlu0 %v657, 96
      %v2090 = vpop.permute.xlu0 %2089
      %2091 = vrot.lane.b32.xlu0 %v658, 96
      %v2092 = vpop.permute.xlu0 %2091
      %2093 = vrot.lane.b32.xlu0 %v659, 96
      %v2094 = vpop.permute.xlu0 %2093
      %2095 = vrot.lane.b32.xlu0 %v660, 96
      %v2096 = vpop.permute.xlu0 %2095
      %2097 = vrot.lane.b32.xlu0 %v661, 96
      %v2098 = vpop.permute.xlu0 %2097
      %2099 = vrot.lane.b32.xlu0 %v662, 96
      %v2100 = vpop.permute.xlu0 %2099
      %2101 = vrot.lane.b32.xlu0 %v663, 96
      %v2102 = vpop.permute.xlu0 %2101
      %2103 = vrot.lane.b32.xlu0 %v664, 96
      %v2104 = vpop.permute.xlu0 %2103
      %2105 = vrot.lane.b32.xlu0 %v665, 96
      %v2106 = vpop.permute.xlu0 %2105
      %2107 = vrot.lane.b32.xlu0 %v666, 96
      %v2108 = vpop.permute.xlu0 %2107
      %2109 = vrot.lane.b32.xlu0 %v667, 96
      %v2110 = vpop.permute.xlu0 %2109
      %2111 = vrot.lane.b32.xlu0 %v668, 96
      %v2112 = vpop.permute.xlu0 %2111
      %2113 = vrot.lane.b32.xlu0 %v669, 96
      %v2114 = vpop.permute.xlu0 %2113
      %2115 = vrot.lane.b32.xlu0 %v670, 96
      %v2116 = vpop.permute.xlu0 %2115
      %2117 = vrot.lane.b32.xlu0 %v671, 96
      %v2118 = vpop.permute.xlu0 %2117
      %2119 = vrot.lane.b32.xlu0 %v672, 96
      %v2120 = vpop.permute.xlu0 %2119
      %2121 = vrot.lane.b32.xlu0 %v673, 96
      %v2122 = vpop.permute.xlu0 %2121
      %2123 = vrot.lane.b32.xlu0 %v674, 96
      %v2124 = vpop.permute.xlu0 %2123
      %2125 = vrot.lane.b32.xlu0 %v675, 96
      %v2126 = vpop.permute.xlu0 %2125
      %2127 = vrot.lane.b32.xlu0 %v676, 96
      %v2128 = vpop.permute.xlu0 %2127
      %2129 = vrot.lane.b32.xlu0 %v677, 96
      %v2130 = vpop.permute.xlu0 %2129
      %2131 = vrot.lane.b32.xlu0 %v678, 96
      %v2132 = vpop.permute.xlu0 %2131
      %2133 = vrot.lane.b32.xlu0 %v679, 96
      %v2134 = vpop.permute.xlu0 %2133
      %2135 = vrot.lane.b32.xlu0 %v680, 96
      %v2136 = vpop.permute.xlu0 %2135
      %2137 = vrot.lane.b32.xlu0 %v681, 96
      %v2138 = vpop.permute.xlu0 %2137
      %2139 = vrot.lane.b32.xlu0 %v682, 96
      %v2140 = vpop.permute.xlu0 %2139
      %2141 = vrot.lane.b32.xlu0 %v683, 96
      %v2142 = vpop.permute.xlu0 %2141
      %2143 = vrot.lane.b32.xlu0 %v684, 96
      %v2144 = vpop.permute.xlu0 %2143
      %2145 = vrot.lane.b32.xlu0 %v685, 96
      %v2146 = vpop.permute.xlu0 %2145
      %2147 = vrot.lane.b32.xlu0 %v686, 96
      %v2148 = vpop.permute.xlu0 %2147
      %2149 = vrot.lane.b32.xlu0 %v687, 96
      %v2150 = vpop.permute.xlu0 %2149
      %2151 = vrot.lane.b32.xlu0 %v688, 96
      %v2152 = vpop.permute.xlu0 %2151
      %2153 = vrot.lane.b32.xlu0 %v689, 96
      %v2154 = vpop.permute.xlu0 %2153
      %2155 = vrot.lane.b32.xlu0 %v690, 96
      %v2156 = vpop.permute.xlu0 %2155
      %2157 = vrot.lane.b32.xlu0 %v691, 96
      %v2158 = vpop.permute.xlu0 %2157
      %2159 = vrot.lane.b32.xlu0 %v692, 96
      %v2160 = vpop.permute.xlu0 %2159
      %2161 = vrot.lane.b32.xlu0 %v693, 96
      %v2162 = vpop.permute.xlu0 %2161
      %2163 = vrot.lane.b32.xlu0 %v694, 96
      %v2164 = vpop.permute.xlu0 %2163
      %2165 = vrot.lane.b32.xlu0 %v695, 96
      %v2166 = vpop.permute.xlu0 %2165
      %2167 = vrot.lane.b32.xlu0 %v696, 96
      %v2168 = vpop.permute.xlu0 %2167
      %vm2233 = vcmask 261120
      %v2234 = vsel %vm2233, %v182, %v762
      %v2235 = vsel %vm2233, %v183, %v764
      %v2236 = vsel %vm2233, %v184, %v766
      %v2237 = vsel %vm2233, %v185, %v768
      %v2238 = vsel %vm2233, %v186, %v770
      %v2239 = vsel %vm2233, %v187, %v772
      %v2240 = vsel %vm2233, %v188, %v774
      %v2241 = vsel %vm2233, %v189, %v776
      %v2242 = vsel %vm2233, %v190, %v778
      %v2243 = vsel %vm2233, %v191, %v780
      %v2244 = vsel %vm2233, %v192, %v782
      %v2245 = vsel %vm2233, %v193, %v784
      %v2246 = vsel %vm2233, %v194, %v786
      %v2247 = vsel %vm2233, %v195, %v788
      %v2248 = vsel %vm2233, %v196, %v790
      %v2249 = vsel %vm2233, %v197, %v792
      %v2250 = vsel %vm2233, %v198, %v794
      %v2251 = vsel %vm2233, %v199, %v796
      %v2252 = vsel %vm2233, %v200, %v798
      %v2253 = vsel %vm2233, %v201, %v800
      %v2254 = vsel %vm2233, %v202, %v802
      %v2255 = vsel %vm2233, %v203, %v804
      %v2256 = vsel %vm2233, %v204, %v806
      %v2257 = vsel %vm2233, %v205, %v808
      %v2258 = vsel %vm2233, %v206, %v810
      %v2259 = vsel %vm2233, %v207, %v812
      %v2260 = vsel %vm2233, %v208, %v814
      %v2261 = vsel %vm2233, %v209, %v816
      %v2262 = vsel %vm2233, %v210, %v818
      %v2263 = vsel %vm2233, %v211, %v820
      %v2264 = vsel %vm2233, %v212, %v822
      %v2265 = vsel %vm2233, %v213, %v824
      %v2266 = vsel %vm2233, %v214, %v826
      %v2267 = vsel %vm2233, %v215, %v828
      %v2268 = vsel %vm2233, %v216, %v830
      %v2269 = vsel %vm2233, %v217, %v832
      %v2270 = vsel %vm2233, %v218, %v834
      %v2271 = vsel %vm2233, %v219, %v836
      %v2272 = vsel %vm2233, %v220, %v838
      %v2273 = vsel %vm2233, %v221, %v840
      %v2274 = vsel %vm2233, %v222, %v842
      %v2275 = vsel %vm2233, %v223, %v844
      %v2276 = vsel %vm2233, %v224, %v846
      %v2277 = vsel %vm2233, %v225, %v848
      %v2278 = vsel %vm2233, %v226, %v850
      %v2279 = vsel %vm2233, %v227, %v852
      %v2280 = vsel %vm2233, %v228, %v854
      %v2281 = vsel %vm2233, %v229, %v856
      %v2282 = vsel %vm2233, %v230, %v858
      %v2283 = vsel %vm2233, %v231, %v860
      %v2284 = vsel %vm2233, %v232, %v862
      %v2285 = vsel %vm2233, %v233, %v864
      %v2286 = vsel %vm2233, %v234, %v866
      %v2287 = vsel %vm2233, %v235, %v868
      %v2288 = vsel %vm2233, %v236, %v870
      %v2289 = vsel %vm2233, %v237, %v872
      %v2290 = vsel %vm2233, %v238, %v874
      %v2291 = vsel %vm2233, %v239, %v876
      %v2292 = vsel %vm2233, %v240, %v878
      %v2293 = vsel %vm2233, %v241, %v880
      %v2294 = vsel %vm2233, %v242, %v882
      %v2295 = vsel %vm2233, %v243, %v884
      %v2296 = vsel %vm2233, %v244, %v886
      %v2297 = vsel %vm2233, %v245, %v888
      %vm2298 = vcmask 523264
      %v2299 = vsel %vm2298, %v2234, %v1018
      %v2300 = vsel %vm2298, %v2235, %v1020
      %v2301 = vsel %vm2298, %v2236, %v1022
      %v2302 = vsel %vm2298, %v2237, %v1024
      %v2303 = vsel %vm2298, %v2238, %v1026
      %v2304 = vsel %vm2298, %v2239, %v1028
      %v2305 = vsel %vm2298, %v2240, %v1030
      %v2306 = vsel %vm2298, %v2241, %v1032
      %v2307 = vsel %vm2298, %v2242, %v1034
      %v2308 = vsel %vm2298, %v2243, %v1036
      %v2309 = vsel %vm2298, %v2244, %v1038
      %v2310 = vsel %vm2298, %v2245, %v1040
      %v2311 = vsel %vm2298, %v2246, %v1042
      %v2312 = vsel %vm2298, %v2247, %v1044
      %v2313 = vsel %vm2298, %v2248, %v1046
      %v2314 = vsel %vm2298, %v2249, %v1048
      %v2315 = vsel %vm2298, %v2250, %v1050
      %v2316 = vsel %vm2298, %v2251, %v1052
      %v2317 = vsel %vm2298, %v2252, %v1054
      %v2318 = vsel %vm2298, %v2253, %v1056
      %v2319 = vsel %vm2298, %v2254, %v1058
      %v2320 = vsel %vm2298, %v2255, %v1060
      %v2321 = vsel %vm2298, %v2256, %v1062
      %v2322 = vsel %vm2298, %v2257, %v1064
      %v2323 = vsel %vm2298, %v2258, %v1066
      %v2324 = vsel %vm2298, %v2259, %v1068
      %v2325 = vsel %vm2298, %v2260, %v1070
      %v2326 = vsel %vm2298, %v2261, %v1072
      %v2327 = vsel %vm2298, %v2262, %v1074
      %v2328 = vsel %vm2298, %v2263, %v1076
      %v2329 = vsel %vm2298, %v2264, %v1078
      %v2330 = vsel %vm2298, %v2265, %v1080
      %v2331 = vsel %vm2298, %v2266, %v1082
      %v2332 = vsel %vm2298, %v2267, %v1084
      %v2333 = vsel %vm2298, %v2268, %v1086
      %v2334 = vsel %vm2298, %v2269, %v1088
      %v2335 = vsel %vm2298, %v2270, %v1090
      %v2336 = vsel %vm2298, %v2271, %v1092
      %v2337 = vsel %vm2298, %v2272, %v1094
      %v2338 = vsel %vm2298, %v2273, %v1096
      %v2339 = vsel %vm2298, %v2274, %v1098
      %v2340 = vsel %vm2298, %v2275, %v1100
      %v2341 = vsel %vm2298, %v2276, %v1102
      %v2342 = vsel %vm2298, %v2277, %v1104
      %v2343 = vsel %vm2298, %v2278, %v1106
      %v2344 = vsel %vm2298, %v2279, %v1108
      %v2345 = vsel %vm2298, %v2280, %v1110
      %v2346 = vsel %vm2298, %v2281, %v1112
      %v2347 = vsel %vm2298, %v2282, %v1114
      %v2348 = vsel %vm2298, %v2283, %v1116
      %v2349 = vsel %vm2298, %v2284, %v1118
      %v2350 = vsel %vm2298, %v2285, %v1120
      %v2351 = vsel %vm2298, %v2286, %v1122
      %v2352 = vsel %vm2298, %v2287, %v1124
      %v2353 = vsel %vm2298, %v2288, %v1126
      %v2354 = vsel %vm2298, %v2289, %v1128
      %v2355 = vsel %vm2298, %v2290, %v1130
      %v2356 = vsel %vm2298, %v2291, %v1132
      %v2357 = vsel %vm2298, %v2292, %v1134
      %v2358 = vsel %vm2298, %v2293, %v1136
      %v2359 = vsel %vm2298, %v2294, %v1138
      %v2360 = vsel %vm2298, %v2295, %v1140
      %v2361 = vsel %vm2298, %v2296, %v1142
      %v2362 = vsel %vm2298, %v2297, %v1144
      %vm2363 = vcmask 785408
      %v2364 = vsel %vm2363, %v2299, %v1274
      %v2365 = vsel %vm2363, %v2300, %v1276
      %v2366 = vsel %vm2363, %v2301, %v1278
      %v2367 = vsel %vm2363, %v2302, %v1280
      %v2368 = vsel %vm2363, %v2303, %v1282
      %v2369 = vsel %vm2363, %v2304, %v1284
      %v2370 = vsel %vm2363, %v2305, %v1286
      %v2371 = vsel %vm2363, %v2306, %v1288
      %v2372 = vsel %vm2363, %v2307, %v1290
      %v2373 = vsel %vm2363, %v2308, %v1292
      %v2374 = vsel %vm2363, %v2309, %v1294
      %v2375 = vsel %vm2363, %v2310, %v1296
      %v2376 = vsel %vm2363, %v2311, %v1298
      %v2377 = vsel %vm2363, %v2312, %v1300
      %v2378 = vsel %vm2363, %v2313, %v1302
      %v2379 = vsel %vm2363, %v2314, %v1304
      %v2380 = vsel %vm2363, %v2315, %v1306
      %v2381 = vsel %vm2363, %v2316, %v1308
      %v2382 = vsel %vm2363, %v2317, %v1310
      %v2383 = vsel %vm2363, %v2318, %v1312
      %v2384 = vsel %vm2363, %v2319, %v1314
      %v2385 = vsel %vm2363, %v2320, %v1316
      %v2386 = vsel %vm2363, %v2321, %v1318
      %v2387 = vsel %vm2363, %v2322, %v1320
      %v2388 = vsel %vm2363, %v2323, %v1322
      %v2389 = vsel %vm2363, %v2324, %v1324
      %v2390 = vsel %vm2363, %v2325, %v1326
      %v2391 = vsel %vm2363, %v2326, %v1328
      %v2392 = vsel %vm2363, %v2327, %v1330
      %v2393 = vsel %vm2363, %v2328, %v1332
      %v2394 = vsel %vm2363, %v2329, %v1334
      %v2395 = vsel %vm2363, %v2330, %v1336
      %v2396 = vsel %vm2363, %v2331, %v1338
      %v2397 = vsel %vm2363, %v2332, %v1340
      %v2398 = vsel %vm2363, %v2333, %v1342
      %v2399 = vsel %vm2363, %v2334, %v1344
      %v2400 = vsel %vm2363, %v2335, %v1346
      %v2401 = vsel %vm2363, %v2336, %v1348
      %v2402 = vsel %vm2363, %v2337, %v1350
      %v2403 = vsel %vm2363, %v2338, %v1352
      %v2404 = vsel %vm2363, %v2339, %v1354
      %v2405 = vsel %vm2363, %v2340, %v1356
      %v2406 = vsel %vm2363, %v2341, %v1358
      %v2407 = vsel %vm2363, %v2342, %v1360
      %v2408 = vsel %vm2363, %v2343, %v1362
      %v2409 = vsel %vm2363, %v2344, %v1364
      %v2410 = vsel %vm2363, %v2345, %v1366
      %v2411 = vsel %vm2363, %v2346, %v1368
      %v2412 = vsel %vm2363, %v2347, %v1370
      %v2413 = vsel %vm2363, %v2348, %v1372
      %v2414 = vsel %vm2363, %v2349, %v1374
      %v2415 = vsel %vm2363, %v2350, %v1376
      %v2416 = vsel %vm2363, %v2351, %v1378
      %v2417 = vsel %vm2363, %v2352, %v1380
      %v2418 = vsel %vm2363, %v2353, %v1382
      %v2419 = vsel %vm2363, %v2354, %v1384
      %v2420 = vsel %vm2363, %v2355, %v1386
      %v2421 = vsel %vm2363, %v2356, %v1388
      %v2422 = vsel %vm2363, %v2357, %v1390
      %v2423 = vsel %vm2363, %v2358, %v1392
      %v2424 = vsel %vm2363, %v2359, %v1394
      %v2425 = vsel %vm2363, %v2360, %v1396
      %v2426 = vsel %vm2363, %v2361, %v1398
      %v2427 = vsel %vm2363, %v2362, %v1400
      %v2428 = vsel %vm2233, %v440, %v1530
      %v2429 = vsel %vm2233, %v441, %v1532
      %v2430 = vsel %vm2233, %v442, %v1534
      %v2431 = vsel %vm2233, %v443, %v1536
      %v2432 = vsel %vm2233, %v444, %v1538
      %v2433 = vsel %vm2233, %v445, %v1540
      %v2434 = vsel %vm2233, %v446, %v1542
      %v2435 = vsel %vm2233, %v447, %v1544
      %v2436 = vsel %vm2233, %v448, %v1546
      %v2437 = vsel %vm2233, %v449, %v1548
      %v2438 = vsel %vm2233, %v450, %v1550
      %v2439 = vsel %vm2233, %v451, %v1552
      %v2440 = vsel %vm2233, %v452, %v1554
      %v2441 = vsel %vm2233, %v453, %v1556
      %v2442 = vsel %vm2233, %v454, %v1558
      %v2443 = vsel %vm2233, %v455, %v1560
      %v2444 = vsel %vm2233, %v456, %v1562
      %v2445 = vsel %vm2233, %v457, %v1564
      %v2446 = vsel %vm2233, %v458, %v1566
      %v2447 = vsel %vm2233, %v459, %v1568
      %v2448 = vsel %vm2233, %v460, %v1570
      %v2449 = vsel %vm2233, %v461, %v1572
      %v2450 = vsel %vm2233, %v462, %v1574
      %v2451 = vsel %vm2233, %v463, %v1576
      %v2452 = vsel %vm2233, %v464, %v1578
      %v2453 = vsel %vm2233, %v465, %v1580
      %v2454 = vsel %vm2233, %v466, %v1582
      %v2455 = vsel %vm2233, %v467, %v1584
      %v2456 = vsel %vm2233, %v468, %v1586
      %v2457 = vsel %vm2233, %v469, %v1588
      %v2458 = vsel %vm2233, %v470, %v1590
      %v2459 = vsel %vm2233, %v471, %v1592
      %v2460 = vsel %vm2233, %v472, %v1594
      %v2461 = vsel %vm2233, %v473, %v1596
      %v2462 = vsel %vm2233, %v474, %v1598
      %v2463 = vsel %vm2233, %v475, %v1600
      %v2464 = vsel %vm2233, %v476, %v1602
      %v2465 = vsel %vm2233, %v477, %v1604
      %v2466 = vsel %vm2233, %v478, %v1606
      %v2467 = vsel %vm2233, %v479, %v1608
      %v2468 = vsel %vm2233, %v480, %v1610
      %v2469 = vsel %vm2233, %v481, %v1612
      %v2470 = vsel %vm2233, %v482, %v1614
      %v2471 = vsel %vm2233, %v483, %v1616
      %v2472 = vsel %vm2233, %v484, %v1618
      %v2473 = vsel %vm2233, %v485, %v1620
      %v2474 = vsel %vm2233, %v486, %v1622
      %v2475 = vsel %vm2233, %v487, %v1624
      %v2476 = vsel %vm2233, %v488, %v1626
      %v2477 = vsel %vm2233, %v489, %v1628
      %v2478 = vsel %vm2233, %v490, %v1630
      %v2479 = vsel %vm2233, %v491, %v1632
      %v2480 = vsel %vm2233, %v492, %v1634
      %v2481 = vsel %vm2233, %v493, %v1636
      %v2482 = vsel %vm2233, %v494, %v1638
      %v2483 = vsel %vm2233, %v495, %v1640
      %v2484 = vsel %vm2233, %v496, %v1642
      %v2485 = vsel %vm2233, %v497, %v1644
      %v2486 = vsel %vm2233, %v498, %v1646
      %v2487 = vsel %vm2233, %v499, %v1648
      %v2488 = vsel %vm2233, %v500, %v1650
      %v2489 = vsel %vm2233, %v501, %v1652
      %v2490 = vsel %vm2233, %v502, %v1654
      %v2491 = vsel %vm2233, %v503, %v1656
      %v2492 = vsel %vm2298, %v2428, %v1786
      %v2493 = vsel %vm2298, %v2429, %v1788
      %v2494 = vsel %vm2298, %v2430, %v1790
      %v2495 = vsel %vm2298, %v2431, %v1792
      %v2496 = vsel %vm2298, %v2432, %v1794
      %v2497 = vsel %vm2298, %v2433, %v1796
      %v2498 = vsel %vm2298, %v2434, %v1798
      %v2499 = vsel %vm2298, %v2435, %v1800
      %v2500 = vsel %vm2298, %v2436, %v1802
      %v2501 = vsel %vm2298, %v2437, %v1804
      %v2502 = vsel %vm2298, %v2438, %v1806
      %v2503 = vsel %vm2298, %v2439, %v1808
      %v2504 = vsel %vm2298, %v2440, %v1810
      %v2505 = vsel %vm2298, %v2441, %v1812
      %v2506 = vsel %vm2298, %v2442, %v1814
      %v2507 = vsel %vm2298, %v2443, %v1816
      %v2508 = vsel %vm2298, %v2444, %v1818
      %v2509 = vsel %vm2298, %v2445, %v1820
      %v2510 = vsel %vm2298, %v2446, %v1822
      %v2511 = vsel %vm2298, %v2447, %v1824
      %v2512 = vsel %vm2298, %v2448, %v1826
      %v2513 = vsel %vm2298, %v2449, %v1828
      %v2514 = vsel %vm2298, %v2450, %v1830
      %v2515 = vsel %vm2298, %v2451, %v1832
      %v2516 = vsel %vm2298, %v2452, %v1834
      %v2517 = vsel %vm2298, %v2453, %v1836
      %v2518 = vsel %vm2298, %v2454, %v1838
      %v2519 = vsel %vm2298, %v2455, %v1840
      %v2520 = vsel %vm2298, %v2456, %v1842
      %v2521 = vsel %vm2298, %v2457, %v1844
      %v2522 = vsel %vm2298, %v2458, %v1846
      %v2523 = vsel %vm2298, %v2459, %v1848
      %v2524 = vsel %vm2298, %v2460, %v1850
      %v2525 = vsel %vm2298, %v2461, %v1852
      %v2526 = vsel %vm2298, %v2462, %v1854
      %v2527 = vsel %vm2298, %v2463, %v1856
      %v2528 = vsel %vm2298, %v2464, %v1858
      %v2529 = vsel %vm2298, %v2465, %v1860
      %v2530 = vsel %vm2298, %v2466, %v1862
      %v2531 = vsel %vm2298, %v2467, %v1864
      %v2532 = vsel %vm2298, %v2468, %v1866
      %v2533 = vsel %vm2298, %v2469, %v1868
      %v2534 = vsel %vm2298, %v2470, %v1870
      %v2535 = vsel %vm2298, %v2471, %v1872
      %v2536 = vsel %vm2298, %v2472, %v1874
      %v2537 = vsel %vm2298, %v2473, %v1876
      %v2538 = vsel %vm2298, %v2474, %v1878
      %v2539 = vsel %vm2298, %v2475, %v1880
      %v2540 = vsel %vm2298, %v2476, %v1882
      %v2541 = vsel %vm2298, %v2477, %v1884
      %v2542 = vsel %vm2298, %v2478, %v1886
      %v2543 = vsel %vm2298, %v2479, %v1888
      %v2544 = vsel %vm2298, %v2480, %v1890
      %v2545 = vsel %vm2298, %v2481, %v1892
      %v2546 = vsel %vm2298, %v2482, %v1894
      %v2547 = vsel %vm2298, %v2483, %v1896
      %v2548 = vsel %vm2298, %v2484, %v1898
      %v2549 = vsel %vm2298, %v2485, %v1900
      %v2550 = vsel %vm2298, %v2486, %v1902
      %v2551 = vsel %vm2298, %v2487, %v1904
      %v2552 = vsel %vm2298, %v2488, %v1906
      %v2553 = vsel %vm2298, %v2489, %v1908
      %v2554 = vsel %vm2298, %v2490, %v1910
      %v2555 = vsel %vm2298, %v2491, %v1912
      %v2556 = vsel %vm2363, %v2492, %v2042
      %v2557 = vsel %vm2363, %v2493, %v2044
      %v2558 = vsel %vm2363, %v2494, %v2046
      %v2559 = vsel %vm2363, %v2495, %v2048
      %v2560 = vsel %vm2363, %v2496, %v2050
      %v2561 = vsel %vm2363, %v2497, %v2052
      %v2562 = vsel %vm2363, %v2498, %v2054
      %v2563 = vsel %vm2363, %v2499, %v2056
      %v2564 = vsel %vm2363, %v2500, %v2058
      %v2565 = vsel %vm2363, %v2501, %v2060
      %v2566 = vsel %vm2363, %v2502, %v2062
      %v2567 = vsel %vm2363, %v2503, %v2064
      %v2568 = vsel %vm2363, %v2504, %v2066
      %v2569 = vsel %vm2363, %v2505, %v2068
      %v2570 = vsel %vm2363, %v2506, %v2070
      %v2571 = vsel %vm2363, %v2507, %v2072
      %v2572 = vsel %vm2363, %v2508, %v2074
      %v2573 = vsel %vm2363, %v2509, %v2076
      %v2574 = vsel %vm2363, %v2510, %v2078
      %v2575 = vsel %vm2363, %v2511, %v2080
      %v2576 = vsel %vm2363, %v2512, %v2082
      %v2577 = vsel %vm2363, %v2513, %v2084
      %v2578 = vsel %vm2363, %v2514, %v2086
      %v2579 = vsel %vm2363, %v2515, %v2088
      %v2580 = vsel %vm2363, %v2516, %v2090
      %v2581 = vsel %vm2363, %v2517, %v2092
      %v2582 = vsel %vm2363, %v2518, %v2094
      %v2583 = vsel %vm2363, %v2519, %v2096
      %v2584 = vsel %vm2363, %v2520, %v2098
      %v2585 = vsel %vm2363, %v2521, %v2100
      %v2586 = vsel %vm2363, %v2522, %v2102
      %v2587 = vsel %vm2363, %v2523, %v2104
      %v2588 = vsel %vm2363, %v2524, %v2106
      %v2589 = vsel %vm2363, %v2525, %v2108
      %v2590 = vsel %vm2363, %v2526, %v2110
      %v2591 = vsel %vm2363, %v2527, %v2112
      %v2592 = vsel %vm2363, %v2528, %v2114
      %v2593 = vsel %vm2363, %v2529, %v2116
      %v2594 = vsel %vm2363, %v2530, %v2118
      %v2595 = vsel %vm2363, %v2531, %v2120
      %v2596 = vsel %vm2363, %v2532, %v2122
      %v2597 = vsel %vm2363, %v2533, %v2124
      %v2598 = vsel %vm2363, %v2534, %v2126
      %v2599 = vsel %vm2363, %v2535, %v2128
      %v2600 = vsel %vm2363, %v2536, %v2130
      %v2601 = vsel %vm2363, %v2537, %v2132
      %v2602 = vsel %vm2363, %v2538, %v2134
      %v2603 = vsel %vm2363, %v2539, %v2136
      %v2604 = vsel %vm2363, %v2540, %v2138
      %v2605 = vsel %vm2363, %v2541, %v2140
      %v2606 = vsel %vm2363, %v2542, %v2142
      %v2607 = vsel %vm2363, %v2543, %v2144
      %v2608 = vsel %vm2363, %v2544, %v2146
      %v2609 = vsel %vm2363, %v2545, %v2148
      %v2610 = vsel %vm2363, %v2546, %v2150
      %v2611 = vsel %vm2363, %v2547, %v2152
      %v2612 = vsel %vm2363, %v2548, %v2154
      %v2613 = vsel %vm2363, %v2549, %v2156
      %v2614 = vsel %vm2363, %v2550, %v2158
      %v2615 = vsel %vm2363, %v2551, %v2160
      %v2616 = vsel %vm2363, %v2552, %v2162
      %v2617 = vsel %vm2363, %v2553, %v2164
      %v2618 = vsel %vm2363, %v2554, %v2166
      %v2619 = vsel %vm2363, %v2555, %v2168
      %v2620 = vld [vmem:[%s1] sm:$0xff]
      %v2621 = vld [vmem:[%s1 + $0x8] sm:$0xff]
      %v2622 = vld [vmem:[%s1 + $0x10] sm:$0xff]
      %v2623 = vld [vmem:[%s1 + $0x18] sm:$0xff]
      %v2624 = vld [vmem:[%s1 + $0x20] sm:$0xff]
      %v2625 = vld [vmem:[%s1 + $0x28] sm:$0xff]
      %v2626 = vld [vmem:[%s1 + $0x30] sm:$0xff]
      %v2627 = vld [vmem:[%s1 + $0x38] sm:$0xff]
      %v2628 = vld [vmem:[%s1 + $0x40] sm:$0xff]
      %v2629 = vld [vmem:[%s1 + $0x48] sm:$0xff]
      %v2630 = vld [vmem:[%s1 + $0x50] sm:$0xff]
      %v2631 = vld [vmem:[%s1 + $0x58] sm:$0xff]
      %v2632 = vld [vmem:[%s1 + $0x60] sm:$0xff]
      %v2633 = vld [vmem:[%s1 + $0x68] sm:$0xff]
      %v2634 = vld [vmem:[%s1 + $0x70] sm:$0xff]
      %v2635 = vld [vmem:[%s1 + $0x78] sm:$0xff]
      %v2636 = vld [vmem:[%s1 + $0x80] sm:$0xff]
      %v2637 = vld [vmem:[%s1 + $0x88] sm:$0xff]
      %v2638 = vld [vmem:[%s1 + $0x90] sm:$0xff]
      %v2639 = vld [vmem:[%s1 + $0x98] sm:$0xff]
      %v2640 = vld [vmem:[%s1 + $0xa0] sm:$0xff]
      %v2641 = vld [vmem:[%s1 + $0xa8] sm:$0xff]
      %v2642 = vld [vmem:[%s1 + $0xb0] sm:$0xff]
      %v2643 = vld [vmem:[%s1 + $0xb8] sm:$0xff]
      %v2644 = vld [vmem:[%s1 + $0xc0] sm:$0xff]
      %v2645 = vld [vmem:[%s1 + $0xc8] sm:$0xff]
      %v2646 = vld [vmem:[%s1 + $0xd0] sm:$0xff]
      %v2647 = vld [vmem:[%s1 + $0xd8] sm:$0xff]
      %v2648 = vld [vmem:[%s1 + $0xe0] sm:$0xff]
      %v2649 = vld [vmem:[%s1 + $0xe8] sm:$0xff]
      %v2650 = vld [vmem:[%s1 + $0xf0] sm:$0xff]
      %v2651 = vld [vmem:[%s1 + $0xf8] sm:$0xff]
      %2652 = vmatprep.subr.mxu0 0.0
      %v2653 = vand.u32 %v2620, 4294901760
      %2654 = vmatpush1.msra.mxu0 %v2653
      %2655 = vmatprep.subr.mxu0 0.0
      %v2656 = vand.u32 %v2621, 4294901760
      %2657 = vmatpush1.msra.mxu0 %v2656
      %2658 = vmatprep.subr.mxu0 0.0
      %v2659 = vand.u32 %v2622, 4294901760
      %2660 = vmatpush1.msra.mxu0 %v2659
      %2661 = vmatprep.subr.mxu0 0.0
      %v2662 = vand.u32 %v2623, 4294901760
      %2663 = vmatpush1.msra.mxu0 %v2662
      %2664 = vmatprep.subr.mxu0 0.0
      %v2665 = vand.u32 %v2624, 4294901760
      %2666 = vmatpush1.msra.mxu0 %v2665
      %2667 = vmatprep.subr.mxu0 0.0
      %v2668 = vand.u32 %v2625, 4294901760
      %2669 = vmatpush1.msra.mxu0 %v2668
      %2670 = vmatprep.subr.mxu0 0.0
      %v2671 = vand.u32 %v2626, 4294901760
      %2672 = vmatpush1.msra.mxu0 %v2671
      %2673 = vmatprep.subr.mxu0 0.0
      %v2674 = vand.u32 %v2627, 4294901760
      %2675 = vmatpush1.msra.mxu0 %v2674
      %2676 = vmatprep.subr.mxu0 0.0
      %v2677 = vand.u32 %v2628, 4294901760
      %2678 = vmatpush1.msra.mxu0 %v2677
      %2679 = vmatprep.subr.mxu0 0.0
      %v2680 = vand.u32 %v2629, 4294901760
      %2681 = vmatpush1.msra.mxu0 %v2680
      %2682 = vmatprep.subr.mxu0 0.0
      %v2683 = vand.u32 %v2630, 4294901760
      %2684 = vmatpush1.msra.mxu0 %v2683
      %2685 = vmatprep.subr.mxu0 0.0
      %v2686 = vand.u32 %v2631, 4294901760
      %2687 = vmatpush1.msra.mxu0 %v2686
      %2688 = vmatprep.subr.mxu0 0.0
      %v2689 = vand.u32 %v2632, 4294901760
      %2690 = vmatpush1.msra.mxu0 %v2689
      %2691 = vmatprep.subr.mxu0 0.0
      %v2692 = vand.u32 %v2633, 4294901760
      %2693 = vmatpush1.msra.mxu0 %v2692
      %2694 = vmatprep.subr.mxu0 0.0
      %v2695 = vand.u32 %v2634, 4294901760
      %2696 = vmatpush1.msra.mxu0 %v2695
      %2697 = vmatprep.subr.mxu0 0.0
      %v2698 = vand.u32 %v2635, 4294901760
      %2699 = vmatpush1.msra.mxu0 %v2698
      %2700 = vmatprep.subr.mxu0 0.0
      %v2701 = vand.u32 %v2636, 4294901760
      %2702 = vmatpush1.msra.mxu0 %v2701
      %2703 = vmatprep.subr.mxu0 0.0
      %v2704 = vand.u32 %v2637, 4294901760
      %2705 = vmatpush1.msra.mxu0 %v2704
      %2706 = vmatprep.subr.mxu0 0.0
      %v2707 = vand.u32 %v2638, 4294901760
      %2708 = vmatpush1.msra.mxu0 %v2707
      %2709 = vmatprep.subr.mxu0 0.0
      %v2710 = vand.u32 %v2639, 4294901760
      %2711 = vmatpush1.msra.mxu0 %v2710
      %2712 = vmatprep.subr.mxu0 0.0
      %v2713 = vand.u32 %v2640, 4294901760
      %2714 = vmatpush1.msra.mxu0 %v2713
      %2715 = vmatprep.subr.mxu0 0.0
      %v2716 = vand.u32 %v2641, 4294901760
      %2717 = vmatpush1.msra.mxu0 %v2716
      %2718 = vmatprep.subr.mxu0 0.0
      %v2719 = vand.u32 %v2642, 4294901760
      %2720 = vmatpush1.msra.mxu0 %v2719
      %2721 = vmatprep.subr.mxu0 0.0
      %v2722 = vand.u32 %v2643, 4294901760
      %2723 = vmatpush1.msra.mxu0 %v2722
      %2724 = vmatprep.subr.mxu0 0.0
      %v2725 = vand.u32 %v2644, 4294901760
      %2726 = vmatpush1.msra.mxu0 %v2725
      %2727 = vmatprep.subr.mxu0 0.0
      %v2728 = vand.u32 %v2645, 4294901760
      %2729 = vmatpush1.msra.mxu0 %v2728
      %2730 = vmatprep.subr.mxu0 0.0
      %v2731 = vand.u32 %v2646, 4294901760
      %2732 = vmatpush1.msra.mxu0 %v2731
      %2733 = vmatprep.subr.mxu0 0.0
      %v2734 = vand.u32 %v2647, 4294901760
      %2735 = vmatpush1.msra.mxu0 %v2734
      %2736 = vmatprep.subr.mxu0 0.0
      %v2737 = vand.u32 %v2648, 4294901760
      %2738 = vmatpush1.msra.mxu0 %v2737
      %2739 = vmatprep.subr.mxu0 0.0
      %v2740 = vand.u32 %v2649, 4294901760
      %2741 = vmatpush1.msra.mxu0 %v2740
      %2742 = vmatprep.subr.mxu0 0.0
      %v2743 = vand.u32 %v2650, 4294901760
      %2744 = vmatpush1.msra.mxu0 %v2743
      %2745 = vmatprep.subr.mxu0 0.0
      %v2746 = vand.u32 %v2651, 4294901760
      %2747 = vmatpush1.msra.mxu0 %v2746
      %v2748 = vand.u32 %v2556, 4294901760
      %v2749 = vsub.f32 %v2556, %v2748
      %v2750 = vand.u32 %v2749, 4294901760
      %v2751 = vsub.f32 %v2749, %v2750
      %v2752 = vand.u32 %v2751, 4294901760
      %2753 = vmatprep.mubr.f32.mxu0 %v2752
      %v2754 = vand.u32 %v2364, 4294901760
      %v2755 = vsub.f32 %v2364, %v2754
      %v2756 = vand.u32 %v2755, 4294901760
      %v2757 = vsub.f32 %v2755, %v2756
      %v2758 = vand.u32 %v2757, 4294901760
      %2759 = vmatmul.mubr.f32.gmra.mrb[0].mxu0 %v2758
      %v2760 = vpop.f32.mrb[0].mxu0
      %v2761 = vadd.f32 0.0, %v2760
      %v2762 = vpop.f32.mrb[0].mxu0
      %v2763 = vand.u32 %v2557, 4294901760
      %v2764 = vsub.f32 %v2557, %v2763
      %v2765 = vand.u32 %v2764, 4294901760
      %v2766 = vsub.f32 %v2764, %v2765
      %v2767 = vand.u32 %v2766, 4294901760
      %2768 = vmatprep.mubr.f32.mxu0 %v2767
      %v2769 = vand.u32 %v2365, 4294901760
      %v2770 = vsub.f32 %v2365, %v2769
      %v2771 = vand.u32 %v2770, 4294901760
      %v2772 = vsub.f32 %v2770, %v2771
      %v2773 = vand.u32 %v2772, 4294901760
      %2774 = vmatmul.mubr.f32.gmra.mrb[0].mxu0 %v2773
      %v2775 = vpop.f32.mrb[0].mxu0
      %v2776 = vadd.f32 0.0, %v2775
      %v2777 = vpop.f32.mrb[0].mxu0
      %v2778 = vand.u32 %v2558, 4294901760
      %v2779 = vsub.f32 %v2558, %v2778
      %v2780 = vand.u32 %v2779, 4294901760
      %v2781 = vsub.f32 %v2779, %v2780
      %v2782 = vand.u32 %v2781, 4294901760
      %2783 = vmatprep.mubr.f32.mxu0 %v2782
      %v2784 = vand.u32 %v2366, 4294901760
      %v2785 = vsub.f32 %v2366, %v2784
      %v2786 = vand.u32 %v2785, 4294901760
      %v2787 = vsub.f32 %v2785, %v2786
      %v2788 = vand.u32 %v2787, 4294901760
      %2789 = vmatmul.mubr.f32.gmra.mrb[0].mxu0 %v2788
      %v2790 = vpop.f32.mrb[0].mxu0
      %v2791 = vadd.f32 0.0, %v2790
      %v2792 = vpop.f32.mrb[0].mxu0
      %v2793 = vand.u32 %v2559, 4294901760
      %v2794 = vsub.f32 %v2559, %v2793
      %v2795 = vand.u32 %v2794, 4294901760
      %v2796 = vsub.f32 %v2794, %v2795
      %v2797 = vand.u32 %v2796, 4294901760
      %2798 = vmatprep.mubr.f32.mxu0 %v2797
      %v2799 = vand.u32 %v2367, 4294901760
      %v2800 = vsub.f32 %v2367, %v2799
      %v2801 = vand.u32 %v2800, 4294901760
      %v2802 = vsub.f32 %v2800, %v2801
      %v2803 = vand.u32 %v2802, 4294901760
      %2804 = vmatmul.mubr.f32.gmra.mrb[0].mxu0 %v2803
      %v2805 = vpop.f32.mrb[0].mxu0
      %v2806 = vadd.f32 0.0, %v2805
      %v2807 = vpop.f32.mrb[0].mxu0
      %v2808 = vand.u32 %v2560, 4294901760
      %v2809 = vsub.f32 %v2560, %v2808
      %v2810 = vand.u32 %v2809, 4294901760
      %v2811 = vsub.f32 %v2809, %v2810
      %v2812 = vand.u32 %v2811, 4294901760
      %2813 = vmatprep.mubr.f32.mxu0 %v2812
      %v2814 = vand.u32 %v2368, 4294901760
      %v2815 = vsub.f32 %v2368, %v2814
      %v2816 = vand.u32 %v2815, 4294901760
      %v2817 = vsub.f32 %v2815, %v2816
      %v2818 = vand.u32 %v2817, 4294901760
      %2819 = vmatmul.mubr.f32.gmra.mrb[0].mxu0 %v2818
      %v2820 = vpop.f32.mrb[0].mxu0
      %v2821 = vadd.f32 0.0, %v2820
      %v2822 = vpop.f32.mrb[0].mxu0
      %v2823 = vand.u32 %v2561, 4294901760
      %v2824 = vsub.f32 %v2561, %v2823
      %v2825 = vand.u32 %v2824, 4294901760
      %v2826 = vsub.f32 %v2824, %v2825
      %v2827 = vand.u32 %v2826, 4294901760
      %2828 = vmatprep.mubr.f32.mxu0 %v2827
      %v2829 = vand.u32 %v2369, 4294901760
      %v2830 = vsub.f32 %v2369, %v2829
      %v2831 = vand.u32 %v2830, 4294901760
      %v2832 = vsub.f32 %v2830, %v2831
      %v2833 = vand.u32 %v2832, 4294901760
      %2834 = vmatmul.mubr.f32.gmra.mrb[0].mxu0 %v2833
      %v2835 = vpop.f32.mrb[0].mxu0
      %v2836 = vadd.f32 0.0, %v2835
      %v2837 = vpop.f32.mrb[0].mxu0
      %v2838 = vand.u32 %v2562, 4294901760
      %v2839 = vsub.f32 %v2562, %v2838
      %v2840 = vand.u32 %v2839, 4294901760
      %v2841 = vsub.f32 %v2839, %v2840
      %v2842 = vand.u32 %v2841, 4294901760
      %2843 = vmatprep.mubr.f32.mxu0 %v2842
      %v2844 = vand.u32 %v2370, 4294901760
      %v2845 = vsub.f32 %v2370, %v2844
      %v2846 = vand.u32 %v2845, 4294901760
      %v2847 = vsub.f32 %v2845, %v2846
      %v2848 = vand.u32 %v2847, 4294901760
      %2849 = vmatmul.mubr.f32.gmra.mrb[0].mxu0 %v2848
      %v2850 = vpop.f32.mrb[0].mxu0
      %v2851 = vadd.f32 0.0, %v2850
      %v2852 = vpop.f32.mrb[0].mxu0
      %v2853 = vand.u32 %v2563, 4294901760
      %v2854 = vsub.f32 %v2563, %v2853
      %v2855 = vand.u32 %v2854, 4294901760
      %v2856 = vsub.f32 %v2854, %v2855
      %v2857 = vand.u32 %v2856, 4294901760
      %2858 = vmatprep.mubr.f32.mxu0 %v2857
      %v2859 = vand.u32 %v2371, 4294901760
      %v2860 = vsub.f32 %v2371, %v2859
      %v2861 = vand.u32 %v2860, 4294901760
      %v2862 = vsub.f32 %v2860, %v2861
      %v2863 = vand.u32 %v2862, 4294901760
      %2864 = vmatmul.mubr.f32.gmra.mrb[0].mxu0 %v2863
      %v2865 = vpop.f32.mrb[0].mxu0
      %v2866 = vadd.f32 0.0, %v2865
      %v2867 = vpop.f32.mrb[0].mxu0
      %v2868 = vand.u32 %v2564, 4294901760
      %v2869 = vsub.f32 %v2564, %v2868
      %v2870 = vand.u32 %v2869, 4294901760
      %v2871 = vsub.f32 %v2869, %v2870
      %v2872 = vand.u32 %v2871, 4294901760
      %2873 = vmatprep.mubr.f32.mxu0 %v2872
      %v2874 = vand.u32 %v2372, 4294901760
      %v2875 = vsub.f32 %v2372, %v2874
      %v2876 = vand.u32 %v2875, 4294901760
      %v2877 = vsub.f32 %v2875, %v2876
      %v2878 = vand.u32 %v2877, 4294901760
      %2879 = vmatmul.mubr.f32.gmra.mrb[0].mxu0 %v2878
      %v2880 = vpop.f32.mrb[0].mxu0
      %v2881 = vadd.f32 0.0, %v2880
      %v2882 = vpop.f32.mrb[0].mxu0
      %v2883 = vand.u32 %v2565, 4294901760
      %v2884 = vsub.f32 %v2565, %v2883
      %v2885 = vand.u32 %v2884, 4294901760
      %v2886 = vsub.f32 %v2884, %v2885
      %v2887 = vand.u32 %v2886, 4294901760
      %2888 = vmatprep.mubr.f32.mxu0 %v2887
      %v2889 = vand.u32 %v2373, 4294901760
      %v2890 = vsub.f32 %v2373, %v2889
      %v2891 = vand.u32 %v2890, 4294901760
      %v2892 = vsub.f32 %v2890, %v2891
      %v2893 = vand.u32 %v2892, 4294901760
      %2894 = vmatmul.mubr.f32.gmra.mrb[0].mxu0 %v2893
      %v2895 = vpop.f32.mrb[0].mxu0
      %v2896 = vadd.f32 0.0, %v2895
      %v2897 = vpop.f32.mrb[0].mxu0
      %v2898 = vand.u32 %v2566, 4294901760
      %v2899 = vsub.f32 %v2566, %v2898
      %v2900 = vand.u32 %v2899, 4294901760
      %v2901 = vsub.f32 %v2899, %v2900
      %v2902 = vand.u32 %v2901, 4294901760
      %2903 = vmatprep.mubr.f32.mxu0 %v2902
      %v2904 = vand.u32 %v2374, 4294901760
      %v2905 = vsub.f32 %v2374, %v2904
      %v2906 = vand.u32 %v2905, 4294901760
      %v2907 = vsub.f32 %v2905, %v2906
      %v2908 = vand.u32 %v2907, 4294901760
      %2909 = vmatmul.mubr.f32.gmra.mrb[0].mxu0 %v2908
      %v2910 = vpop.f32.mrb[0].mxu0
      %v2911 = vadd.f32 0.0, %v2910
      %v2912 = vpop.f32.mrb[0].mxu0
      %v2913 = vand.u32 %v2567, 4294901760
      %v2914 = vsub.f32 %v2567, %v2913
      %v2915 = vand.u32 %v2914, 4294901760
      %v2916 = vsub.f32 %v2914, %v2915
      %v2917 = vand.u32 %v2916, 4294901760
      %2918 = vmatprep.mubr.f32.mxu0 %v2917
      %v2919 = vand.u32 %v2375, 4294901760
      %v2920 = vsub.f32 %v2375, %v2919
      %v2921 = vand.u32 %v2920, 4294901760
      %v2922 = vsub.f32 %v2920, %v2921
      %v2923 = vand.u32 %v2922, 4294901760
      %2924 = vmatmul.mubr.f32.gmra.mrb[0].mxu0 %v2923
      %v2925 = vpop.f32.mrb[0].mxu0
      %v2926 = vadd.f32 0.0, %v2925
      %v2927 = vpop.f32.mrb[0].mxu0
      %v2928 = vand.u32 %v2568, 4294901760
      %v2929 = vsub.f32 %v2568, %v2928
      %v2930 = vand.u32 %v2929, 4294901760
      %v2931 = vsub.f32 %v2929, %v2930
      %v2932 = vand.u32 %v2931, 4294901760
      %2933 = vmatprep.mubr.f32.mxu0 %v2932
      %v2934 = vand.u32 %v2376, 4294901760
      %v2935 = vsub.f32 %v2376, %v2934
      %v2936 = vand.u32 %v2935, 4294901760
      %v2937 = vsub.f32 %v2935, %v2936
      %v2938 = vand.u32 %v2937, 4294901760
      %2939 = vmatmul.mubr.f32.gmra.mrb[0].mxu0 %v2938
      %v2940 = vpop.f32.mrb[0].mxu0
      %v2941 = vadd.f32 0.0, %v2940
      %v2942 = vpop.f32.mrb[0].mxu0
      %v2943 = vand.u32 %v2569, 4294901760
      %v2944 = vsub.f32 %v2569, %v2943
      %v2945 = vand.u32 %v2944, 4294901760
      %v2946 = vsub.f32 %v2944, %v2945
      %v2947 = vand.u32 %v2946, 4294901760
      %2948 = vmatprep.mubr.f32.mxu0 %v2947
      %v2949 = vand.u32 %v2377, 4294901760
      %v2950 = vsub.f32 %v2377, %v2949
      %v2951 = vand.u32 %v2950, 4294901760
      %v2952 = vsub.f32 %v2950, %v2951
      %v2953 = vand.u32 %v2952, 4294901760
      %2954 = vmatmul.mubr.f32.gmra.mrb[0].mxu0 %v2953
      %v2955 = vpop.f32.mrb[0].mxu0
      %v2956 = vadd.f32 0.0, %v2955
      %v2957 = vpop.f32.mrb[0].mxu0
      %v2958 = vand.u32 %v2570, 4294901760
      %v2959 = vsub.f32 %v2570, %v2958
      %v2960 = vand.u32 %v2959, 4294901760
      %v2961 = vsub.f32 %v2959, %v2960
      %v2962 = vand.u32 %v2961, 4294901760
      %2963 = vmatprep.mubr.f32.mxu0 %v2962
      %v2964 = vand.u32 %v2378, 4294901760
      %v2965 = vsub.f32 %v2378, %v2964
      %v2966 = vand.u32 %v2965, 4294901760
      %v2967 = vsub.f32 %v2965, %v2966
      %v2968 = vand.u32 %v2967, 4294901760
      %2969 = vmatmul.mubr.f32.gmra.mrb[0].mxu0 %v2968
      %v2970 = vpop.f32.mrb[0].mxu0
      %v2971 = vadd.f32 0.0, %v2970
      %v2972 = vpop.f32.mrb[0].mxu0
      %v2973 = vand.u32 %v2571, 4294901760
      %v2974 = vsub.f32 %v2571, %v2973
      %v2975 = vand.u32 %v2974, 4294901760
      %v2976 = vsub.f32 %v2974, %v2975
      %v2977 = vand.u32 %v2976, 4294901760
      %2978 = vmatprep.mubr.f32.mxu0 %v2977
      %v2979 = vand.u32 %v2379, 4294901760
      %v2980 = vsub.f32 %v2379, %v2979
      %v2981 = vand.u32 %v2980, 4294901760
      %v2982 = vsub.f32 %v2980, %v2981
      %v2983 = vand.u32 %v2982, 4294901760
      %2984 = vmatmul.mubr.f32.gmra.mrb[0].mxu0 %v2983
      %v2985 = vpop.f32.mrb[0].mxu0
      %v2986 = vadd.f32 0.0, %v2985
      %v2987 = vpop.f32.mrb[0].mxu0
      %v2988 = vand.u32 %v2572, 4294901760
      %v2989 = vsub.f32 %v2572, %v2988
      %v2990 = vand.u32 %v2989, 4294901760
      %v2991 = vsub.f32 %v2989, %v2990
      %v2992 = vand.u32 %v2991, 4294901760
      %2993 = vmatprep.mubr.f32.mxu0 %v2992
      %v2994 = vand.u32 %v2380, 4294901760
      %v2995 = vsub.f32 %v2380, %v2994
      %v2996 = vand.u32 %v2995, 4294901760
      %v2997 = vsub.f32 %v2995, %v2996
      %v2998 = vand.u32 %v2997, 4294901760
      %2999 = vmatmul.mubr.f32.gmra.mrb[0].mxu0 %v2998
      %v3000 = vpop.f32.mrb[0].mxu0
      %v3001 = vadd.f32 0.0, %v3000
      %v3002 = vpop.f32.mrb[0].mxu0
      %v3003 = vand.u32 %v2573, 4294901760
      %v3004 = vsub.f32 %v2573, %v3003
      %v3005 = vand.u32 %v3004, 4294901760
      %v3006 = vsub.f32 %v3004, %v3005
      %v3007 = vand.u32 %v3006, 4294901760
      %3008 = vmatprep.mubr.f32.mxu0 %v3007
      %v3009 = vand.u32 %v2381, 4294901760
      %v3010 = vsub.f32 %v2381, %v3009
      %v3011 = vand.u32 %v3010, 4294901760
      %v3012 = vsub.f32 %v3010, %v3011
      %v3013 = vand.u32 %v3012, 4294901760
      %3014 = vmatmul.mubr.f32.gmra.mrb[0].mxu0 %v3013
      %v3015 = vpop.f32.mrb[0].mxu0
      %v3016 = vadd.f32 0.0, %v3015
      %v3017 = vpop.f32.mrb[0].mxu0
      %v3018 = vand.u32 %v2574, 4294901760
      %v3019 = vsub.f32 %v2574, %v3018
      %v3020 = vand.u32 %v3019, 4294901760
      %v3021 = vsub.f32 %v3019, %v3020
      %v3022 = vand.u32 %v3021, 4294901760
      %3023 = vmatprep.mubr.f32.mxu0 %v3022
      %v3024 = vand.u32 %v2382, 4294901760
      %v3025 = vsub.f32 %v2382, %v3024
      %v3026 = vand.u32 %v3025, 4294901760
      %v3027 = vsub.f32 %v3025, %v3026
      %v3028 = vand.u32 %v3027, 4294901760
      %3029 = vmatmul.mubr.f32.gmra.mrb[0].mxu0 %v3028
      %v3030 = vpop.f32.mrb[0].mxu0
      %v3031 = vadd.f32 0.0, %v3030
      %v3032 = vpop.f32.mrb[0].mxu0
      %v3033 = vand.u32 %v2575, 4294901760
      %v3034 = vsub.f32 %v2575, %v3033
      %v3035 = vand.u32 %v3034, 4294901760
      %v3036 = vsub.f32 %v3034, %v3035
      %v3037 = vand.u32 %v3036, 4294901760
      %3038 = vmatprep.mubr.f32.mxu0 %v3037
      %v3039 = vand.u32 %v2383, 4294901760
      %v3040 = vsub.f32 %v2383, %v3039
      %v3041 = vand.u32 %v3040, 4294901760
      %v3042 = vsub.f32 %v3040, %v3041
      %v3043 = vand.u32 %v3042, 4294901760
      %3044 = vmatmul.mubr.f32.gmra.mrb[0].mxu0 %v3043
      %v3045 = vpop.f32.mrb[0].mxu0
      %v3046 = vadd.f32 0.0, %v3045
      %v3047 = vpop.f32.mrb[0].mxu0
      %v3048 = vand.u32 %v2576, 4294901760
      %v3049 = vsub.f32 %v2576, %v3048
      %v3050 = vand.u32 %v3049, 4294901760
      %v3051 = vsub.f32 %v3049, %v3050
      %v3052 = vand.u32 %v3051, 4294901760
      %3053 = vmatprep.mubr.f32.mxu0 %v3052
      %v3054 = vand.u32 %v2384, 4294901760
      %v3055 = vsub.f32 %v2384, %v3054
      %v3056 = vand.u32 %v3055, 4294901760
      %v3057 = vsub.f32 %v3055, %v3056
      %v3058 = vand.u32 %v3057, 4294901760
      %3059 = vmatmul.mubr.f32.gmra.mrb[0].mxu0 %v3058
      %v3060 = vpop.f32.mrb[0].mxu0
      %v3061 = vadd.f32 0.0, %v3060
      %v3062 = vpop.f32.mrb[0].mxu0
      %v3063 = vand.u32 %v2577, 4294901760
      %v3064 = vsub.f32 %v2577, %v3063
      %v3065 = vand.u32 %v3064, 4294901760
      %v3066 = vsub.f32 %v3064, %v3065
      %v3067 = vand.u32 %v3066, 4294901760
      %3068 = vmatprep.mubr.f32.mxu0 %v3067
      %v3069 = vand.u32 %v2385, 4294901760
      %v3070 = vsub.f32 %v2385, %v3069
      %v3071 = vand.u32 %v3070, 4294901760
      %v3072 = vsub.f32 %v3070, %v3071
      %v3073 = vand.u32 %v3072, 4294901760
      %3074 = vmatmul.mubr.f32.gmra.mrb[0].mxu0 %v3073
      %v3075 = vpop.f32.mrb[0].mxu0
      %v3076 = vadd.f32 0.0, %v3075
      %v3077 = vpop.f32.mrb[0].mxu0
      %v3078 = vand.u32 %v2578, 4294901760
      %v3079 = vsub.f32 %v2578, %v3078
      %v3080 = vand.u32 %v3079, 4294901760
      %v3081 = vsub.f32 %v3079, %v3080
      %v3082 = vand.u32 %v3081, 4294901760
      %3083 = vmatprep.mubr.f32.mxu0 %v3082
      %v3084 = vand.u32 %v2386, 4294901760
      %v3085 = vsub.f32 %v2386, %v3084
      %v3086 = vand.u32 %v3085, 4294901760
      %v3087 = vsub.f32 %v3085, %v3086
      %v3088 = vand.u32 %v3087, 4294901760
      %3089 = vmatmul.mubr.f32.gmra.mrb[0].mxu0 %v3088
      %v3090 = vpop.f32.mrb[0].mxu0
      %v3091 = vadd.f32 0.0, %v3090
      %v3092 = vpop.f32.mrb[0].mxu0
      %v3093 = vand.u32 %v2579, 4294901760
      %v3094 = vsub.f32 %v2579, %v3093
      %v3095 = vand.u32 %v3094, 4294901760
      %v3096 = vsub.f32 %v3094, %v3095
      %v3097 = vand.u32 %v3096, 4294901760
      %3098 = vmatprep.mubr.f32.mxu0 %v3097
      %v3099 = vand.u32 %v2387, 4294901760
      %v3100 = vsub.f32 %v2387, %v3099
      %v3101 = vand.u32 %v3100, 4294901760
      %v3102 = vsub.f32 %v3100, %v3101
      %v3103 = vand.u32 %v3102, 4294901760
      %3104 = vmatmul.mubr.f32.gmra.mrb[0].mxu0 %v3103
      %v3105 = vpop.f32.mrb[0].mxu0
      %v3106 = vadd.f32 0.0, %v3105
      %v3107 = vpop.f32.mrb[0].mxu0
      %v3108 = vand.u32 %v2580, 4294901760
      %v3109 = vsub.f32 %v2580, %v3108
      %v3110 = vand.u32 %v3109, 4294901760
      %v3111 = vsub.f32 %v3109, %v3110
      %v3112 = vand.u32 %v3111, 4294901760
      %3113 = vmatprep.mubr.f32.mxu0 %v3112
      %v3114 = vand.u32 %v2388, 4294901760
      %v3115 = vsub.f32 %v2388, %v3114
      %v3116 = vand.u32 %v3115, 4294901760
      %v3117 = vsub.f32 %v3115, %v3116
      %v3118 = vand.u32 %v3117, 4294901760
      %3119 = vmatmul.mubr.f32.gmra.mrb[0].mxu0 %v3118
      %v3120 = vpop.f32.mrb[0].mxu0
      %v3121 = vadd.f32 0.0, %v3120
      %v3122 = vpop.f32.mrb[0].mxu0
      %v3123 = vand.u32 %v2581, 4294901760
      %v3124 = vsub.f32 %v2581, %v3123
      %v3125 = vand.u32 %v3124, 4294901760
      %v3126 = vsub.f32 %v3124, %v3125
      %v3127 = vand.u32 %v3126, 4294901760
      %3128 = vmatprep.mubr.f32.mxu0 %v3127
      %v3129 = vand.u32 %v2389, 4294901760
      %v3130 = vsub.f32 %v2389, %v3129
      %v3131 = vand.u32 %v3130, 4294901760
      %v3132 = vsub.f32 %v3130, %v3131
      %v3133 = vand.u32 %v3132, 4294901760
      %3134 = vmatmul.mubr.f32.gmra.mrb[0].mxu0 %v3133
      %v3135 = vpop.f32.mrb[0].mxu0
      %v3136 = vadd.f32 0.0, %v3135
      %v3137 = vpop.f32.mrb[0].mxu0
      %v3138 = vand.u32 %v2582, 4294901760
      %v3139 = vsub.f32 %v2582, %v3138
      %v3140 = vand.u32 %v3139, 4294901760
      %v3141 = vsub.f32 %v3139, %v3140
      %v3142 = vand.u32 %v3141, 4294901760
      %3143 = vmatprep.mubr.f32.mxu0 %v3142
      %v3144 = vand.u32 %v2390, 4294901760
      %v3145 = vsub.f32 %v2390, %v3144
      %v3146 = vand.u32 %v3145, 4294901760
      %v3147 = vsub.f32 %v3145, %v3146
      %v3148 = vand.u32 %v3147, 4294901760
      %3149 = vmatmul.mubr.f32.gmra.mrb[0].mxu0 %v3148
      %v3150 = vpop.f32.mrb[0].mxu0
      %v3151 = vadd.f32 0.0, %v3150
      %v3152 = vpop.f32.mrb[0].mxu0
      %v3153 = vand.u32 %v2583, 4294901760
      %v3154 = vsub.f32 %v2583, %v3153
      %v3155 = vand.u32 %v3154, 4294901760
      %v3156 = vsub.f32 %v3154, %v3155
      %v3157 = vand.u32 %v3156, 4294901760
      %3158 = vmatprep.mubr.f32.mxu0 %v3157
      %v3159 = vand.u32 %v2391, 4294901760
      %v3160 = vsub.f32 %v2391, %v3159
      %v3161 = vand.u32 %v3160, 4294901760
      %v3162 = vsub.f32 %v3160, %v3161
      %v3163 = vand.u32 %v3162, 4294901760
      %3164 = vmatmul.mubr.f32.gmra.mrb[0].mxu0 %v3163
      %v3165 = vpop.f32.mrb[0].mxu0
      %v3166 = vadd.f32 0.0, %v3165
      %v3167 = vpop.f32.mrb[0].mxu0
      %v3168 = vand.u32 %v2584, 4294901760
      %v3169 = vsub.f32 %v2584, %v3168
      %v3170 = vand.u32 %v3169, 4294901760
      %v3171 = vsub.f32 %v3169, %v3170
      %v3172 = vand.u32 %v3171, 4294901760
      %3173 = vmatprep.mubr.f32.mxu0 %v3172
      %v3174 = vand.u32 %v2392, 4294901760
      %v3175 = vsub.f32 %v2392, %v3174
      %v3176 = vand.u32 %v3175, 4294901760
      %v3177 = vsub.f32 %v3175, %v3176
      %v3178 = vand.u32 %v3177, 4294901760
      %3179 = vmatmul.mubr.f32.gmra.mrb[0].mxu0 %v3178
      %v3180 = vpop.f32.mrb[0].mxu0
      %v3181 = vadd.f32 0.0, %v3180
      %v3182 = vpop.f32.mrb[0].mxu0
      %v3183 = vand.u32 %v2585, 4294901760
      %v3184 = vsub.f32 %v2585, %v3183
      %v3185 = vand.u32 %v3184, 4294901760
      %v3186 = vsub.f32 %v3184, %v3185
      %v3187 = vand.u32 %v3186, 4294901760
      %3188 = vmatprep.mubr.f32.mxu0 %v3187
      %v3189 = vand.u32 %v2393, 4294901760
      %v3190 = vsub.f32 %v2393, %v3189
      %v3191 = vand.u32 %v3190, 4294901760
      %v3192 = vsub.f32 %v3190, %v3191
      %v3193 = vand.u32 %v3192, 4294901760
      %3194 = vmatmul.mubr.f32.gmra.mrb[0].mxu0 %v3193
      %v3195 = vpop.f32.mrb[0].mxu0
      %v3196 = vadd.f32 0.0, %v3195
      %v3197 = vpop.f32.mrb[0].mxu0
      %v3198 = vand.u32 %v2586, 4294901760
      %v3199 = vsub.f32 %v2586, %v3198
      %v3200 = vand.u32 %v3199, 4294901760
      %v3201 = vsub.f32 %v3199, %v3200
      %v3202 = vand.u32 %v3201, 4294901760
      %3203 = vmatprep.mubr.f32.mxu0 %v3202
      %v3204 = vand.u32 %v2394, 4294901760
      %v3205 = vsub.f32 %v2394, %v3204
      %v3206 = vand.u32 %v3205, 4294901760
      %v3207 = vsub.f32 %v3205, %v3206
      %v3208 = vand.u32 %v3207, 4294901760
      %3209 = vmatmul.mubr.f32.gmra.mrb[0].mxu0 %v3208
      %v3210 = vpop.f32.mrb[0].mxu0
      %v3211 = vadd.f32 0.0, %v3210
      %v3212 = vpop.f32.mrb[0].mxu0
      %v3213 = vand.u32 %v2587, 4294901760
      %v3214 = vsub.f32 %v2587, %v3213
      %v3215 = vand.u32 %v3214, 4294901760
      %v3216 = vsub.f32 %v3214, %v3215
      %v3217 = vand.u32 %v3216, 4294901760
      %3218 = vmatprep.mubr.f32.mxu0 %v3217
      %v3219 = vand.u32 %v2395, 4294901760
      %v3220 = vsub.f32 %v2395, %v3219
      %v3221 = vand.u32 %v3220, 4294901760
      %v3222 = vsub.f32 %v3220, %v3221
      %v3223 = vand.u32 %v3222, 4294901760
      %3224 = vmatmul.mubr.f32.gmra.mrb[0].mxu0 %v3223
      %v3225 = vpop.f32.mrb[0].mxu0
      %v3226 = vadd.f32 0.0, %v3225
      %v3227 = vpop.f32.mrb[0].mxu0
      %v3228 = vand.u32 %v2588, 4294901760
      %v3229 = vsub.f32 %v2588, %v3228
      %v3230 = vand.u32 %v3229, 4294901760
      %v3231 = vsub.f32 %v3229, %v3230
      %v3232 = vand.u32 %v3231, 4294901760
      %3233 = vmatprep.mubr.f32.mxu0 %v3232
      %v3234 = vand.u32 %v2396, 4294901760
      %v3235 = vsub.f32 %v2396, %v3234
      %v3236 = vand.u32 %v3235, 4294901760
      %v3237 = vsub.f32 %v3235, %v3236
      %v3238 = vand.u32 %v3237, 4294901760
      %3239 = vmatmul.mubr.f32.gmra.mrb[0].mxu0 %v3238
      %v3240 = vpop.f32.mrb[0].mxu0
      %v3241 = vadd.f32 0.0, %v3240
      %v3242 = vpop.f32.mrb[0].mxu0
      %v3243 = vand.u32 %v2589, 4294901760
      %v3244 = vsub.f32 %v2589, %v3243
      %v3245 = vand.u32 %v3244, 4294901760
      %v3246 = vsub.f32 %v3244, %v3245
      %v3247 = vand.u32 %v3246, 4294901760
      %3248 = vmatprep.mubr.f32.mxu0 %v3247
      %v3249 = vand.u32 %v2397, 4294901760
      %v3250 = vsub.f32 %v2397, %v3249
      %v3251 = vand.u32 %v3250, 4294901760
      %v3252 = vsub.f32 %v3250, %v3251
      %v3253 = vand.u32 %v3252, 4294901760
      %3254 = vmatmul.mubr.f32.gmra.mrb[0].mxu0 %v3253
      %v3255 = vpop.f32.mrb[0].mxu0
      %v3256 = vadd.f32 0.0, %v3255
      %v3257 = vpop.f32.mrb[0].mxu0
      %v3258 = vand.u32 %v2590, 4294901760
      %v3259 = vsub.f32 %v2590, %v3258
      %v3260 = vand.u32 %v3259, 4294901760
      %v3261 = vsub.f32 %v3259, %v3260
      %v3262 = vand.u32 %v3261, 4294901760
      %3263 = vmatprep.mubr.f32.mxu0 %v3262
      %v3264 = vand.u32 %v2398, 4294901760
      %v3265 = vsub.f32 %v2398, %v3264
      %v3266 = vand.u32 %v3265, 4294901760
      %v3267 = vsub.f32 %v3265, %v3266
      %v3268 = vand.u32 %v3267, 4294901760
      %3269 = vmatmul.mubr.f32.gmra.mrb[0].mxu0 %v3268
      %v3270 = vpop.f32.mrb[0].mxu0
      %v3271 = vadd.f32 0.0, %v3270
      %v3272 = vpop.f32.mrb[0].mxu0
      %v3273 = vand.u32 %v2591, 4294901760
      %v3274 = vsub.f32 %v2591, %v3273
      %v3275 = vand.u32 %v3274, 4294901760
      %v3276 = vsub.f32 %v3274, %v3275
      %v3277 = vand.u32 %v3276, 4294901760
      %3278 = vmatprep.mubr.f32.mxu0 %v3277
      %v3279 = vand.u32 %v2399, 4294901760
      %v3280 = vsub.f32 %v2399, %v3279
      %v3281 = vand.u32 %v3280, 4294901760
      %v3282 = vsub.f32 %v3280, %v3281
      %v3283 = vand.u32 %v3282, 4294901760
      %3284 = vmatmul.mubr.f32.gmra.mrb[0].mxu0 %v3283
      %v3285 = vpop.f32.mrb[0].mxu0
      %v3286 = vadd.f32 0.0, %v3285
      %v3287 = vpop.f32.mrb[0].mxu0
      %v3288 = vand.u32 %v2592, 4294901760
      %v3289 = vsub.f32 %v2592, %v3288
      %v3290 = vand.u32 %v3289, 4294901760
      %v3291 = vsub.f32 %v3289, %v3290
      %v3292 = vand.u32 %v3291, 4294901760
      %3293 = vmatprep.mubr.f32.mxu0 %v3292
      %v3294 = vand.u32 %v2400, 4294901760
      %v3295 = vsub.f32 %v2400, %v3294
      %v3296 = vand.u32 %v3295, 4294901760
      %v3297 = vsub.f32 %v3295, %v3296
      %v3298 = vand.u32 %v3297, 4294901760
      %3299 = vmatmul.mubr.f32.gmra.mrb[0].mxu0 %v3298
      %v3300 = vpop.f32.mrb[0].mxu0
      %v3301 = vadd.f32 0.0, %v3300
      %v3302 = vpop.f32.mrb[0].mxu0
      %v3303 = vand.u32 %v2593, 4294901760
      %v3304 = vsub.f32 %v2593, %v3303
      %v3305 = vand.u32 %v3304, 4294901760
      %v3306 = vsub.f32 %v3304, %v3305
      %v3307 = vand.u32 %v3306, 4294901760
      %3308 = vmatprep.mubr.f32.mxu0 %v3307
      %v3309 = vand.u32 %v2401, 4294901760
      %v3310 = vsub.f32 %v2401, %v3309
      %v3311 = vand.u32 %v3310, 4294901760
      %v3312 = vsub.f32 %v3310, %v3311
      %v3313 = vand.u32 %v3312, 4294901760
      %3314 = vmatmul.mubr.f32.gmra.mrb[0].mxu0 %v3313
      %v3315 = vpop.f32.mrb[0].mxu0
      %v3316 = vadd.f32 0.0, %v3315
      %v3317 = vpop.f32.mrb[0].mxu0
      %v3318 = vand.u32 %v2594, 4294901760
      %v3319 = vsub.f32 %v2594, %v3318
      %v3320 = vand.u32 %v3319, 4294901760
      %v3321 = vsub.f32 %v3319, %v3320
      %v3322 = vand.u32 %v3321, 4294901760
      %3323 = vmatprep.mubr.f32.mxu0 %v3322
      %v3324 = vand.u32 %v2402, 4294901760
      %v3325 = vsub.f32 %v2402, %v3324
      %v3326 = vand.u32 %v3325, 4294901760
      %v3327 = vsub.f32 %v3325, %v3326
      %v3328 = vand.u32 %v3327, 4294901760
      %3329 = vmatmul.mubr.f32.gmra.mrb[0].mxu0 %v3328
      %v3330 = vpop.f32.mrb[0].mxu0
      %v3331 = vadd.f32 0.0, %v3330
      %v3332 = vpop.f32.mrb[0].mxu0
      %v3333 = vand.u32 %v2595, 4294901760
      %v3334 = vsub.f32 %v2595, %v3333
      %v3335 = vand.u32 %v3334, 4294901760
      %v3336 = vsub.f32 %v3334, %v3335
      %v3337 = vand.u32 %v3336, 4294901760
      %3338 = vmatprep.mubr.f32.mxu0 %v3337
      %v3339 = vand.u32 %v2403, 4294901760
      %v3340 = vsub.f32 %v2403, %v3339
      %v3341 = vand.u32 %v3340, 4294901760
      %v3342 = vsub.f32 %v3340, %v3341
      %v3343 = vand.u32 %v3342, 4294901760
      %3344 = vmatmul.mubr.f32.gmra.mrb[0].mxu0 %v3343
      %v3345 = vpop.f32.mrb[0].mxu0
      %v3346 = vadd.f32 0.0, %v3345
      %v3347 = vpop.f32.mrb[0].mxu0
      %v3348 = vand.u32 %v2596, 4294901760
      %v3349 = vsub.f32 %v2596, %v3348
      %v3350 = vand.u32 %v3349, 4294901760
      %v3351 = vsub.f32 %v3349, %v3350
      %v3352 = vand.u32 %v3351, 4294901760
      %3353 = vmatprep.mubr.f32.mxu0 %v3352
      %v3354 = vand.u32 %v2404, 4294901760
      %v3355 = vsub.f32 %v2404, %v3354
      %v3356 = vand.u32 %v3355, 4294901760
      %v3357 = vsub.f32 %v3355, %v3356
      %v3358 = vand.u32 %v3357, 4294901760
      %3359 = vmatmul.mubr.f32.gmra.mrb[0].mxu0 %v3358
      %v3360 = vpop.f32.mrb[0].mxu0
      %v3361 = vadd.f32 0.0, %v3360
      %v3362 = vpop.f32.mrb[0].mxu0
      %v3363 = vand.u32 %v2597, 4294901760
      %v3364 = vsub.f32 %v2597, %v3363
      %v3365 = vand.u32 %v3364, 4294901760
      %v3366 = vsub.f32 %v3364, %v3365
      %v3367 = vand.u32 %v3366, 4294901760
      %3368 = vmatprep.mubr.f32.mxu0 %v3367
      %v3369 = vand.u32 %v2405, 4294901760
      %v3370 = vsub.f32 %v2405, %v3369
      %v3371 = vand.u32 %v3370, 4294901760
      %v3372 = vsub.f32 %v3370, %v3371
      %v3373 = vand.u32 %v3372, 4294901760
      %3374 = vmatmul.mubr.f32.gmra.mrb[0].mxu0 %v3373
      %v3375 = vpop.f32.mrb[0].mxu0
      %v3376 = vadd.f32 0.0, %v3375
      %v3377 = vpop.f32.mrb[0].mxu0
      %v3378 = vand.u32 %v2598, 4294901760
      %v3379 = vsub.f32 %v2598, %v3378
      %v3380 = vand.u32 %v3379, 4294901760
      %v3381 = vsub.f32 %v3379, %v3380
      %v3382 = vand.u32 %v3381, 4294901760
      %3383 = vmatprep.mubr.f32.mxu0 %v3382
      %v3384 = vand.u32 %v2406, 4294901760
      %v3385 = vsub.f32 %v2406, %v3384
      %v3386 = vand.u32 %v3385, 4294901760
      %v3387 = vsub.f32 %v3385, %v3386
      %v3388 = vand.u32 %v3387, 4294901760
      %3389 = vmatmul.mubr.f32.gmra.mrb[0].mxu0 %v3388
      %v3390 = vpop.f32.mrb[0].mxu0
      %v3391 = vadd.f32 0.0, %v3390
      %v3392 = vpop.f32.mrb[0].mxu0
      %v3393 = vand.u32 %v2599, 4294901760
      %v3394 = vsub.f32 %v2599, %v3393
      %v3395 = vand.u32 %v3394, 4294901760
      %v3396 = vsub.f32 %v3394, %v3395
      %v3397 = vand.u32 %v3396, 4294901760
      %3398 = vmatprep.mubr.f32.mxu0 %v3397
      %v3399 = vand.u32 %v2407, 4294901760
      %v3400 = vsub.f32 %v2407, %v3399
      %v3401 = vand.u32 %v3400, 4294901760
      %v3402 = vsub.f32 %v3400, %v3401
      %v3403 = vand.u32 %v3402, 4294901760
      %3404 = vmatmul.mubr.f32.gmra.mrb[0].mxu0 %v3403
      %v3405 = vpop.f32.mrb[0].mxu0
      %v3406 = vadd.f32 0.0, %v3405
      %v3407 = vpop.f32.mrb[0].mxu0
      %v3408 = vand.u32 %v2600, 4294901760
      %v3409 = vsub.f32 %v2600, %v3408
      %v3410 = vand.u32 %v3409, 4294901760
      %v3411 = vsub.f32 %v3409, %v3410
      %v3412 = vand.u32 %v3411, 4294901760
      %3413 = vmatprep.mubr.f32.mxu0 %v3412
      %v3414 = vand.u32 %v2408, 4294901760
      %v3415 = vsub.f32 %v2408, %v3414
      %v3416 = vand.u32 %v3415, 4294901760
      %v3417 = vsub.f32 %v3415, %v3416
      %v3418 = vand.u32 %v3417, 4294901760
      %3419 = vmatmul.mubr.f32.gmra.mrb[0].mxu0 %v3418
      %v3420 = vpop.f32.mrb[0].mxu0
      %v3421 = vadd.f32 0.0, %v3420
      %v3422 = vpop.f32.mrb[0].mxu0
      %v3423 = vand.u32 %v2601, 4294901760
      %v3424 = vsub.f32 %v2601, %v3423
      %v3425 = vand.u32 %v3424, 4294901760
      %v3426 = vsub.f32 %v3424, %v3425
      %v3427 = vand.u32 %v3426, 4294901760
      %3428 = vmatprep.mubr.f32.mxu0 %v3427
      %v3429 = vand.u32 %v2409, 4294901760
      %v3430 = vsub.f32 %v2409, %v3429
      %v3431 = vand.u32 %v3430, 4294901760
      %v3432 = vsub.f32 %v3430, %v3431
      %v3433 = vand.u32 %v3432, 4294901760
      %3434 = vmatmul.mubr.f32.gmra.mrb[0].mxu0 %v3433
      %v3435 = vpop.f32.mrb[0].mxu0
      %v3436 = vadd.f32 0.0, %v3435
      %v3437 = vpop.f32.mrb[0].mxu0
      %v3438 = vand.u32 %v2602, 4294901760
      %v3439 = vsub.f32 %v2602, %v3438
      %v3440 = vand.u32 %v3439, 4294901760
      %v3441 = vsub.f32 %v3439, %v3440
      %v3442 = vand.u32 %v3441, 4294901760
      %3443 = vmatprep.mubr.f32.mxu0 %v3442
      %v3444 = vand.u32 %v2410, 4294901760
      %v3445 = vsub.f32 %v2410, %v3444
      %v3446 = vand.u32 %v3445, 4294901760
      %v3447 = vsub.f32 %v3445, %v3446
      %v3448 = vand.u32 %v3447, 4294901760
      %3449 = vmatmul.mubr.f32.gmra.mrb[0].mxu0 %v3448
      %v3450 = vpop.f32.mrb[0].mxu0
      %v3451 = vadd.f32 0.0, %v3450
      %v3452 = vpop.f32.mrb[0].mxu0
      %v3453 = vand.u32 %v2603, 4294901760
      %v3454 = vsub.f32 %v2603, %v3453
      %v3455 = vand.u32 %v3454, 4294901760
      %v3456 = vsub.f32 %v3454, %v3455
      %v3457 = vand.u32 %v3456, 4294901760
      %3458 = vmatprep.mubr.f32.mxu0 %v3457
      %v3459 = vand.u32 %v2411, 4294901760
      %v3460 = vsub.f32 %v2411, %v3459
      %v3461 = vand.u32 %v3460, 4294901760
      %v3462 = vsub.f32 %v3460, %v3461
      %v3463 = vand.u32 %v3462, 4294901760
      %3464 = vmatmul.mubr.f32.gmra.mrb[0].mxu0 %v3463
      %v3465 = vpop.f32.mrb[0].mxu0
      %v3466 = vadd.f32 0.0, %v3465
      %v3467 = vpop.f32.mrb[0].mxu0
      %v3468 = vand.u32 %v2604, 4294901760
      %v3469 = vsub.f32 %v2604, %v3468
      %v3470 = vand.u32 %v3469, 4294901760
      %v3471 = vsub.f32 %v3469, %v3470
      %v3472 = vand.u32 %v3471, 4294901760
      %3473 = vmatprep.mubr.f32.mxu0 %v3472
      %v3474 = vand.u32 %v2412, 4294901760
      %v3475 = vsub.f32 %v2412, %v3474
      %v3476 = vand.u32 %v3475, 4294901760
      %v3477 = vsub.f32 %v3475, %v3476
      %v3478 = vand.u32 %v3477, 4294901760
      %3479 = vmatmul.mubr.f32.gmra.mrb[0].mxu0 %v3478
      %v3480 = vpop.f32.mrb[0].mxu0
      %v3481 = vadd.f32 0.0, %v3480
      %v3482 = vpop.f32.mrb[0].mxu0
      %v3483 = vand.u32 %v2605, 4294901760
      %v3484 = vsub.f32 %v2605, %v3483
      %v3485 = vand.u32 %v3484, 4294901760
      %v3486 = vsub.f32 %v3484, %v3485
      %v3487 = vand.u32 %v3486, 4294901760
      %3488 = vmatprep.mubr.f32.mxu0 %v3487
      %v3489 = vand.u32 %v2413, 4294901760
      %v3490 = vsub.f32 %v2413, %v3489
      %v3491 = vand.u32 %v3490, 4294901760
      %v3492 = vsub.f32 %v3490, %v3491
      %v3493 = vand.u32 %v3492, 4294901760
      %3494 = vmatmul.mubr.f32.gmra.mrb[0].mxu0 %v3493
      %v3495 = vpop.f32.mrb[0].mxu0
      %v3496 = vadd.f32 0.0, %v3495
      %v3497 = vpop.f32.mrb[0].mxu0
      %v3498 = vand.u32 %v2606, 4294901760
      %v3499 = vsub.f32 %v2606, %v3498
      %v3500 = vand.u32 %v3499, 4294901760
      %v3501 = vsub.f32 %v3499, %v3500
      %v3502 = vand.u32 %v3501, 4294901760
      %3503 = vmatprep.mubr.f32.mxu0 %v3502
      %v3504 = vand.u32 %v2414, 4294901760
      %v3505 = vsub.f32 %v2414, %v3504
      %v3506 = vand.u32 %v3505, 4294901760
      %v3507 = vsub.f32 %v3505, %v3506
      %v3508 = vand.u32 %v3507, 4294901760
      %3509 = vmatmul.mubr.f32.gmra.mrb[0].mxu0 %v3508
      %v3510 = vpop.f32.mrb[0].mxu0
      %v3511 = vadd.f32 0.0, %v3510
      %v3512 = vpop.f32.mrb[0].mxu0
      %v3513 = vand.u32 %v2607, 4294901760
      %v3514 = vsub.f32 %v2607, %v3513
      %v3515 = vand.u32 %v3514, 4294901760
      %v3516 = vsub.f32 %v3514, %v3515
      %v3517 = vand.u32 %v3516, 4294901760
      %3518 = vmatprep.mubr.f32.mxu0 %v3517
      %v3519 = vand.u32 %v2415, 4294901760
      %v3520 = vsub.f32 %v2415, %v3519
      %v3521 = vand.u32 %v3520, 4294901760
      %v3522 = vsub.f32 %v3520, %v3521
      %v3523 = vand.u32 %v3522, 4294901760
      %3524 = vmatmul.mubr.f32.gmra.mrb[0].mxu0 %v3523
      %v3525 = vpop.f32.mrb[0].mxu0
      %v3526 = vadd.f32 0.0, %v3525
      %v3527 = vpop.f32.mrb[0].mxu0
      %v3528 = vand.u32 %v2608, 4294901760
      %v3529 = vsub.f32 %v2608, %v3528
      %v3530 = vand.u32 %v3529, 4294901760
      %v3531 = vsub.f32 %v3529, %v3530
      %v3532 = vand.u32 %v3531, 4294901760
      %3533 = vmatprep.mubr.f32.mxu0 %v3532
      %v3534 = vand.u32 %v2416, 4294901760
      %v3535 = vsub.f32 %v2416, %v3534
      %v3536 = vand.u32 %v3535, 4294901760
      %v3537 = vsub.f32 %v3535, %v3536
      %v3538 = vand.u32 %v3537, 4294901760
      %3539 = vmatmul.mubr.f32.gmra.mrb[0].mxu0 %v3538
      %v3540 = vpop.f32.mrb[0].mxu0
      %v3541 = vadd.f32 0.0, %v3540
      %v3542 = vpop.f32.mrb[0].mxu0
      %v3543 = vand.u32 %v2609, 4294901760
      %v3544 = vsub.f32 %v2609, %v3543
      %v3545 = vand.u32 %v3544, 4294901760
      %v3546 = vsub.f32 %v3544, %v3545
      %v3547 = vand.u32 %v3546, 4294901760
      %3548 = vmatprep.mubr.f32.mxu0 %v3547
      %v3549 = vand.u32 %v2417, 4294901760
      %v3550 = vsub.f32 %v2417, %v3549
      %v3551 = vand.u32 %v3550, 4294901760
      %v3552 = vsub.f32 %v3550, %v3551
      %v3553 = vand.u32 %v3552, 4294901760
      %3554 = vmatmul.mubr.f32.gmra.mrb[0].mxu0 %v3553
      %v3555 = vpop.f32.mrb[0].mxu0
      %v3556 = vadd.f32 0.0, %v3555
      %v3557 = vpop.f32.mrb[0].mxu0
      %v3558 = vand.u32 %v2610, 4294901760
      %v3559 = vsub.f32 %v2610, %v3558
      %v3560 = vand.u32 %v3559, 4294901760
      %v3561 = vsub.f32 %v3559, %v3560
      %v3562 = vand.u32 %v3561, 4294901760
      %3563 = vmatprep.mubr.f32.mxu0 %v3562
      %v3564 = vand.u32 %v2418, 4294901760
      %v3565 = vsub.f32 %v2418, %v3564
      %v3566 = vand.u32 %v3565, 4294901760
      %v3567 = vsub.f32 %v3565, %v3566
      %v3568 = vand.u32 %v3567, 4294901760
      %3569 = vmatmul.mubr.f32.gmra.mrb[0].mxu0 %v3568
      %v3570 = vpop.f32.mrb[0].mxu0
      %v3571 = vadd.f32 0.0, %v3570
      %v3572 = vpop.f32.mrb[0].mxu0
      %v3573 = vand.u32 %v2611, 4294901760
      %v3574 = vsub.f32 %v2611, %v3573
      %v3575 = vand.u32 %v3574, 4294901760
      %v3576 = vsub.f32 %v3574, %v3575
      %v3577 = vand.u32 %v3576, 4294901760
      %3578 = vmatprep.mubr.f32.mxu0 %v3577
      %v3579 = vand.u32 %v2419, 4294901760
      %v3580 = vsub.f32 %v2419, %v3579
      %v3581 = vand.u32 %v3580, 4294901760
      %v3582 = vsub.f32 %v3580, %v3581
      %v3583 = vand.u32 %v3582, 4294901760
      %3584 = vmatmul.mubr.f32.gmra.mrb[0].mxu0 %v3583
      %v3585 = vpop.f32.mrb[0].mxu0
      %v3586 = vadd.f32 0.0, %v3585
      %v3587 = vpop.f32.mrb[0].mxu0
      %v3588 = vand.u32 %v2612, 4294901760
      %v3589 = vsub.f32 %v2612, %v3588
      %v3590 = vand.u32 %v3589, 4294901760
      %v3591 = vsub.f32 %v3589, %v3590
      %v3592 = vand.u32 %v3591, 4294901760
      %3593 = vmatprep.mubr.f32.mxu0 %v3592
      %v3594 = vand.u32 %v2420, 4294901760
      %v3595 = vsub.f32 %v2420, %v3594
      %v3596 = vand.u32 %v3595, 4294901760
      %v3597 = vsub.f32 %v3595, %v3596
      %v3598 = vand.u32 %v3597, 4294901760
      %3599 = vmatmul.mubr.f32.gmra.mrb[0].mxu0 %v3598
      %v3600 = vpop.f32.mrb[0].mxu0
      %v3601 = vadd.f32 0.0, %v3600
      %v3602 = vpop.f32.mrb[0].mxu0
      %v3603 = vand.u32 %v2613, 4294901760
      %v3604 = vsub.f32 %v2613, %v3603
      %v3605 = vand.u32 %v3604, 4294901760
      %v3606 = vsub.f32 %v3604, %v3605
      %v3607 = vand.u32 %v3606, 4294901760
      %3608 = vmatprep.mubr.f32.mxu0 %v3607
      %v3609 = vand.u32 %v2421, 4294901760
      %v3610 = vsub.f32 %v2421, %v3609
      %v3611 = vand.u32 %v3610, 4294901760
      %v3612 = vsub.f32 %v3610, %v3611
      %v3613 = vand.u32 %v3612, 4294901760
      %3614 = vmatmul.mubr.f32.gmra.mrb[0].mxu0 %v3613
      %v3615 = vpop.f32.mrb[0].mxu0
      %v3616 = vadd.f32 0.0, %v3615
      %v3617 = vpop.f32.mrb[0].mxu0
      %v3618 = vand.u32 %v2614, 4294901760
      %v3619 = vsub.f32 %v2614, %v3618
      %v3620 = vand.u32 %v3619, 4294901760
      %v3621 = vsub.f32 %v3619, %v3620
      %v3622 = vand.u32 %v3621, 4294901760
      %3623 = vmatprep.mubr.f32.mxu0 %v3622
      %v3624 = vand.u32 %v2422, 4294901760
      %v3625 = vsub.f32 %v2422, %v3624
      %v3626 = vand.u32 %v3625, 4294901760
      %v3627 = vsub.f32 %v3625, %v3626
      %v3628 = vand.u32 %v3627, 4294901760
      %3629 = vmatmul.mubr.f32.gmra.mrb[0].mxu0 %v3628
      %v3630 = vpop.f32.mrb[0].mxu0
      %v3631 = vadd.f32 0.0, %v3630
      %v3632 = vpop.f32.mrb[0].mxu0
      %v3633 = vand.u32 %v2615, 4294901760
      %v3634 = vsub.f32 %v2615, %v3633
      %v3635 = vand.u32 %v3634, 4294901760
      %v3636 = vsub.f32 %v3634, %v3635
      %v3637 = vand.u32 %v3636, 4294901760
      %3638 = vmatprep.mubr.f32.mxu0 %v3637
      %v3639 = vand.u32 %v2423, 4294901760
      %v3640 = vsub.f32 %v2423, %v3639
      %v3641 = vand.u32 %v3640, 4294901760
      %v3642 = vsub.f32 %v3640, %v3641
      %v3643 = vand.u32 %v3642, 4294901760
      %3644 = vmatmul.mubr.f32.gmra.mrb[0].mxu0 %v3643
      %v3645 = vpop.f32.mrb[0].mxu0
      %v3646 = vadd.f32 0.0, %v3645
      %v3647 = vpop.f32.mrb[0].mxu0
      %v3648 = vand.u32 %v2616, 4294901760
      %v3649 = vsub.f32 %v2616, %v3648
      %v3650 = vand.u32 %v3649, 4294901760
      %v3651 = vsub.f32 %v3649, %v3650
      %v3652 = vand.u32 %v3651, 4294901760
      %3653 = vmatprep.mubr.f32.mxu0 %v3652
      %v3654 = vand.u32 %v2424, 4294901760
      %v3655 = vsub.f32 %v2424, %v3654
      %v3656 = vand.u32 %v3655, 4294901760
      %v3657 = vsub.f32 %v3655, %v3656
      %v3658 = vand.u32 %v3657, 4294901760
      %3659 = vmatmul.mubr.f32.gmra.mrb[0].mxu0 %v3658
      %v3660 = vpop.f32.mrb[0].mxu0
      %v3661 = vadd.f32 0.0, %v3660
      %v3662 = vpop.f32.mrb[0].mxu0
      %v3663 = vand.u32 %v2617, 4294901760
      %v3664 = vsub.f32 %v2617, %v3663
      %v3665 = vand.u32 %v3664, 4294901760
      %v3666 = vsub.f32 %v3664, %v3665
      %v3667 = vand.u32 %v3666, 4294901760
      %3668 = vmatprep.mubr.f32.mxu0 %v3667
      %v3669 = vand.u32 %v2425, 4294901760
      %v3670 = vsub.f32 %v2425, %v3669
      %v3671 = vand.u32 %v3670, 4294901760
      %v3672 = vsub.f32 %v3670, %v3671
      %v3673 = vand.u32 %v3672, 4294901760
      %3674 = vmatmul.mubr.f32.gmra.mrb[0].mxu0 %v3673
      %v3675 = vpop.f32.mrb[0].mxu0
      %v3676 = vadd.f32 0.0, %v3675
      %v3677 = vpop.f32.mrb[0].mxu0
      %v3678 = vand.u32 %v2618, 4294901760
      %v3679 = vsub.f32 %v2618, %v3678
      %v3680 = vand.u32 %v3679, 4294901760
      %v3681 = vsub.f32 %v3679, %v3680
      %v3682 = vand.u32 %v3681, 4294901760
      %3683 = vmatprep.mubr.f32.mxu0 %v3682
      %v3684 = vand.u32 %v2426, 4294901760
      %v3685 = vsub.f32 %v2426, %v3684
      %v3686 = vand.u32 %v3685, 4294901760
      %v3687 = vsub.f32 %v3685, %v3686
      %v3688 = vand.u32 %v3687, 4294901760
      %3689 = vmatmul.mubr.f32.gmra.mrb[0].mxu0 %v3688
      %v3690 = vpop.f32.mrb[0].mxu0
      %v3691 = vadd.f32 0.0, %v3690
      %v3692 = vpop.f32.mrb[0].mxu0
      %v3693 = vand.u32 %v2619, 4294901760
      %v3694 = vsub.f32 %v2619, %v3693
      %v3695 = vand.u32 %v3694, 4294901760
      %v3696 = vsub.f32 %v3694, %v3695
      %v3697 = vand.u32 %v3696, 4294901760
      %3698 = vmatprep.mubr.f32.mxu0 %v3697
      %v3699 = vand.u32 %v2427, 4294901760
      %v3700 = vsub.f32 %v2427, %v3699
      %v3701 = vand.u32 %v3700, 4294901760
      %v3702 = vsub.f32 %v3700, %v3701
      %v3703 = vand.u32 %v3702, 4294901760
      %3704 = vmatmul.mubr.f32.gmra.mrb[0].mxu0 %v3703
      %v3705 = vpop.f32.mrb[0].mxu0
      %v3706 = vadd.f32 0.0, %v3705
      %v3707 = vpop.f32.mrb[0].mxu0
      %3708 = vdwg.mxu0
      %3709 = vmatprep.subr.mxu0 0.0
      %v3710 = vand.u32 %v2620, 4294901760
      %v3711 = vsub.f32 %v2620, %v3710
      %v3712 = vand.u32 %v3711, 4294901760
      %v3713 = vsub.f32 %v3711, %v3712
      %v3714 = vand.u32 %v3713, 4294901760
      %3715 = vmatpush1.msra.mxu0 %v3714
      %3716 = vmatprep.subr.mxu0 0.0
      %v3717 = vand.u32 %v2621, 4294901760
      %v3718 = vsub.f32 %v2621, %v3717
      %v3719 = vand.u32 %v3718, 4294901760
      %v3720 = vsub.f32 %v3718, %v3719
      %v3721 = vand.u32 %v3720, 4294901760
      %3722 = vmatpush1.msra.mxu0 %v3721
      %3723 = vmatprep.subr.mxu0 0.0
      %v3724 = vand.u32 %v2622, 4294901760
      %v3725 = vsub.f32 %v2622, %v3724
      %v3726 = vand.u32 %v3725, 4294901760
      %v3727 = vsub.f32 %v3725, %v3726
      %v3728 = vand.u32 %v3727, 4294901760
      %3729 = vmatpush1.msra.mxu0 %v3728
      %3730 = vmatprep.subr.mxu0 0.0
      %v3731 = vand.u32 %v2623, 4294901760
      %v3732 = vsub.f32 %v2623, %v3731
      %v3733 = vand.u32 %v3732, 4294901760
      %v3734 = vsub.f32 %v3732, %v3733
      %v3735 = vand.u32 %v3734, 4294901760
      %3736 = vmatpush1.msra.mxu0 %v3735
      %3737 = vmatprep.subr.mxu0 0.0
      %v3738 = vand.u32 %v2624, 4294901760
      %v3739 = vsub.f32 %v2624, %v3738
      %v3740 = vand.u32 %v3739, 4294901760
      %v3741 = vsub.f32 %v3739, %v3740
      %v3742 = vand.u32 %v3741, 4294901760
      %3743 = vmatpush1.msra.mxu0 %v3742
      %3744 = vmatprep.subr.mxu0 0.0
      %v3745 = vand.u32 %v2625, 4294901760
      %v3746 = vsub.f32 %v2625, %v3745
      %v3747 = vand.u32 %v3746, 4294901760
      %v3748 = vsub.f32 %v3746, %v3747
      %v3749 = vand.u32 %v3748, 4294901760
      %3750 = vmatpush1.msra.mxu0 %v3749
      %3751 = vmatprep.subr.mxu0 0.0
      %v3752 = vand.u32 %v2626, 4294901760
      %v3753 = vsub.f32 %v2626, %v3752
      %v3754 = vand.u32 %v3753, 4294901760
      %v3755 = vsub.f32 %v3753, %v3754
      %v3756 = vand.u32 %v3755, 4294901760
      %3757 = vmatpush1.msra.mxu0 %v3756
      %3758 = vmatprep.subr.mxu0 0.0
      %v3759 = vand.u32 %v2627, 4294901760
      %v3760 = vsub.f32 %v2627, %v3759
      %v3761 = vand.u32 %v3760, 4294901760
      %v3762 = vsub.f32 %v3760, %v3761
      %v3763 = vand.u32 %v3762, 4294901760
      %3764 = vmatpush1.msra.mxu0 %v3763
      %3765 = vmatprep.subr.mxu0 0.0
      %v3766 = vand.u32 %v2628, 4294901760
      %v3767 = vsub.f32 %v2628, %v3766
      %v3768 = vand.u32 %v3767, 4294901760
      %v3769 = vsub.f32 %v3767, %v3768
      %v3770 = vand.u32 %v3769, 4294901760
      %3771 = vmatpush1.msra.mxu0 %v3770
      %3772 = vmatprep.subr.mxu0 0.0
      %v3773 = vand.u32 %v2629, 4294901760
      %v3774 = vsub.f32 %v2629, %v3773
      %v3775 = vand.u32 %v3774, 4294901760
      %v3776 = vsub.f32 %v3774, %v3775
      %v3777 = vand.u32 %v3776, 4294901760
      %3778 = vmatpush1.msra.mxu0 %v3777
      %3779 = vmatprep.subr.mxu0 0.0
      %v3780 = vand.u32 %v2630, 4294901760
      %v3781 = vsub.f32 %v2630, %v3780
      %v3782 = vand.u32 %v3781, 4294901760
      %v3783 = vsub.f32 %v3781, %v3782
      %v3784 = vand.u32 %v3783, 4294901760
      %3785 = vmatpush1.msra.mxu0 %v3784
      %3786 = vmatprep.subr.mxu0 0.0
      %v3787 = vand.u32 %v2631, 4294901760
      %v3788 = vsub.f32 %v2631, %v3787
      %v3789 = vand.u32 %v3788, 4294901760
      %v3790 = vsub.f32 %v3788, %v3789
      %v3791 = vand.u32 %v3790, 4294901760
      %3792 = vmatpush1.msra.mxu0 %v3791
      %3793 = vmatprep.subr.mxu0 0.0
      %v3794 = vand.u32 %v2632, 4294901760
      %v3795 = vsub.f32 %v2632, %v3794
      %v3796 = vand.u32 %v3795, 4294901760
      %v3797 = vsub.f32 %v3795, %v3796
      %v3798 = vand.u32 %v3797, 4294901760
      %3799 = vmatpush1.msra.mxu0 %v3798
      %3800 = vmatprep.subr.mxu0 0.0
      %v3801 = vand.u32 %v2633, 4294901760
      %v3802 = vsub.f32 %v2633, %v3801
      %v3803 = vand.u32 %v3802, 4294901760
      %v3804 = vsub.f32 %v3802, %v3803
      %v3805 = vand.u32 %v3804, 4294901760
      %3806 = vmatpush1.msra.mxu0 %v3805
      %3807 = vmatprep.subr.mxu0 0.0
      %v3808 = vand.u32 %v2634, 4294901760
      %v3809 = vsub.f32 %v2634, %v3808
      %v3810 = vand.u32 %v3809, 4294901760
      %v3811 = vsub.f32 %v3809, %v3810
      %v3812 = vand.u32 %v3811, 4294901760
      %3813 = vmatpush1.msra.mxu0 %v3812
      %3814 = vmatprep.subr.mxu0 0.0
      %v3815 = vand.u32 %v2635, 4294901760
      %v3816 = vsub.f32 %v2635, %v3815
      %v3817 = vand.u32 %v3816, 4294901760
      %v3818 = vsub.f32 %v3816, %v3817
      %v3819 = vand.u32 %v3818, 4294901760
      %3820 = vmatpush1.msra.mxu0 %v3819
      %3821 = vmatprep.subr.mxu0 0.0
      %v3822 = vand.u32 %v2636, 4294901760
      %v3823 = vsub.f32 %v2636, %v3822
      %v3824 = vand.u32 %v3823, 4294901760
      %v3825 = vsub.f32 %v3823, %v3824
      %v3826 = vand.u32 %v3825, 4294901760
      %3827 = vmatpush1.msra.mxu0 %v3826
      %3828 = vmatprep.subr.mxu0 0.0
      %v3829 = vand.u32 %v2637, 4294901760
      %v3830 = vsub.f32 %v2637, %v3829
      %v3831 = vand.u32 %v3830, 4294901760
      %v3832 = vsub.f32 %v3830, %v3831
      %v3833 = vand.u32 %v3832, 4294901760
      %3834 = vmatpush1.msra.mxu0 %v3833
      %3835 = vmatprep.subr.mxu0 0.0
      %v3836 = vand.u32 %v2638, 4294901760
      %v3837 = vsub.f32 %v2638, %v3836
      %v3838 = vand.u32 %v3837, 4294901760
      %v3839 = vsub.f32 %v3837, %v3838
      %v3840 = vand.u32 %v3839, 4294901760
      %3841 = vmatpush1.msra.mxu0 %v3840
      %3842 = vmatprep.subr.mxu0 0.0
      %v3843 = vand.u32 %v2639, 4294901760
      %v3844 = vsub.f32 %v2639, %v3843
      %v3845 = vand.u32 %v3844, 4294901760
      %v3846 = vsub.f32 %v3844, %v3845
      %v3847 = vand.u32 %v3846, 4294901760
      %3848 = vmatpush1.msra.mxu0 %v3847
      %3849 = vmatprep.subr.mxu0 0.0
      %v3850 = vand.u32 %v2640, 4294901760
      %v3851 = vsub.f32 %v2640, %v3850
      %v3852 = vand.u32 %v3851, 4294901760
      %v3853 = vsub.f32 %v3851, %v3852
      %v3854 = vand.u32 %v3853, 4294901760
      %3855 = vmatpush1.msra.mxu0 %v3854
      %3856 = vmatprep.subr.mxu0 0.0
      %v3857 = vand.u32 %v2641, 4294901760
      %v3858 = vsub.f32 %v2641, %v3857
      %v3859 = vand.u32 %v3858, 4294901760
      %v3860 = vsub.f32 %v3858, %v3859
      %v3861 = vand.u32 %v3860, 4294901760
      %3862 = vmatpush1.msra.mxu0 %v3861
      %3863 = vmatprep.subr.mxu0 0.0
      %v3864 = vand.u32 %v2642, 4294901760
      %v3865 = vsub.f32 %v2642, %v3864
      %v3866 = vand.u32 %v3865, 4294901760
      %v3867 = vsub.f32 %v3865, %v3866
      %v3868 = vand.u32 %v3867, 4294901760
      %3869 = vmatpush1.msra.mxu0 %v3868
      %3870 = vmatprep.subr.mxu0 0.0
      %v3871 = vand.u32 %v2643, 4294901760
      %v3872 = vsub.f32 %v2643, %v3871
      %v3873 = vand.u32 %v3872, 4294901760
      %v3874 = vsub.f32 %v3872, %v3873
      %v3875 = vand.u32 %v3874, 4294901760
      %3876 = vmatpush1.msra.mxu0 %v3875
      %3877 = vmatprep.subr.mxu0 0.0
      %v3878 = vand.u32 %v2644, 4294901760
      %v3879 = vsub.f32 %v2644, %v3878
      %v3880 = vand.u32 %v3879, 4294901760
      %v3881 = vsub.f32 %v3879, %v3880
      %v3882 = vand.u32 %v3881, 4294901760
      %3883 = vmatpush1.msra.mxu0 %v3882
      %3884 = vmatprep.subr.mxu0 0.0
      %v3885 = vand.u32 %v2645, 4294901760
      %v3886 = vsub.f32 %v2645, %v3885
      %v3887 = vand.u32 %v3886, 4294901760
      %v3888 = vsub.f32 %v3886, %v3887
      %v3889 = vand.u32 %v3888, 4294901760
      %3890 = vmatpush1.msra.mxu0 %v3889
      %3891 = vmatprep.subr.mxu0 0.0
      %v3892 = vand.u32 %v2646, 4294901760
      %v3893 = vsub.f32 %v2646, %v3892
      %v3894 = vand.u32 %v3893, 4294901760
      %v3895 = vsub.f32 %v3893, %v3894
      %v3896 = vand.u32 %v3895, 4294901760
      %3897 = vmatpush1.msra.mxu0 %v3896
      %3898 = vmatprep.subr.mxu0 0.0
      %v3899 = vand.u32 %v2647, 4294901760
      %v3900 = vsub.f32 %v2647, %v3899
      %v3901 = vand.u32 %v3900, 4294901760
      %v3902 = vsub.f32 %v3900, %v3901
      %v3903 = vand.u32 %v3902, 4294901760
      %3904 = vmatpush1.msra.mxu0 %v3903
      %3905 = vmatprep.subr.mxu0 0.0
      %v3906 = vand.u32 %v2648, 4294901760
      %v3907 = vsub.f32 %v2648, %v3906
      %v3908 = vand.u32 %v3907, 4294901760
      %v3909 = vsub.f32 %v3907, %v3908
      %v3910 = vand.u32 %v3909, 4294901760
      %3911 = vmatpush1.msra.mxu0 %v3910
      %3912 = vmatprep.subr.mxu0 0.0
      %v3913 = vand.u32 %v2649, 4294901760
      %v3914 = vsub.f32 %v2649, %v3913
      %v3915 = vand.u32 %v3914, 4294901760
      %v3916 = vsub.f32 %v3914, %v3915
      %v3917 = vand.u32 %v3916, 4294901760
      %3918 = vmatpush1.msra.mxu0 %v3917
      %3919 = vmatprep.subr.mxu0 0.0
      %v3920 = vand.u32 %v2650, 4294901760
      %v3921 = vsub.f32 %v2650, %v3920
      %v3922 = vand.u32 %v3921, 4294901760
      %v3923 = vsub.f32 %v3921, %v3922
      %v3924 = vand.u32 %v3923, 4294901760
      %3925 = vmatpush1.msra.mxu0 %v3924
      %3926 = vmatprep.subr.mxu0 0.0
      %v3927 = vand.u32 %v2651, 4294901760
      %v3928 = vsub.f32 %v2651, %v3927
      %v3929 = vand.u32 %v3928, 4294901760
      %v3930 = vsub.f32 %v3928, %v3929
      %v3931 = vand.u32 %v3930, 4294901760
      %3932 = vmatpush1.msra.mxu0 %v3931
      %v3933 = vand.u32 %v2556, 4294901760
      %3934 = vmatprep.mubr.f32.mxu0 %v3933
      %v3935 = vand.u32 %v2364, 4294901760
      %3936 = vmatmul.mubr.f32.gmra.mrb[0].mxu0 %v3935
      %v3937 = vpop.f32.mrb[0].mxu0
      %v3938 = vadd.f32 %v2761, %v3937
      %v3939 = vpop.f32.mrb[0].mxu0
      %v3940 = vand.u32 %v2557, 4294901760
      %3941 = vmatprep.mubr.f32.mxu0 %v3940
      %v3942 = vand.u32 %v2365, 4294901760
      %3943 = vmatmul.mubr.f32.gmra.mrb[0].mxu0 %v3942
      %v3944 = vpop.f32.mrb[0].mxu0
      %v3945 = vadd.f32 %v2776, %v3944
      %v3946 = vpop.f32.mrb[0].mxu0
      %v3947 = vand.u32 %v2558, 4294901760
      %3948 = vmatprep.mubr.f32.mxu0 %v3947
      %v3949 = vand.u32 %v2366, 4294901760
      %3950 = vmatmul.mubr.f32.gmra.mrb[0].mxu0 %v3949
      %v3951 = vpop.f32.mrb[0].mxu0
      %v3952 = vadd.f32 %v2791, %v3951
      %v3953 = vpop.f32.mrb[0].mxu0
      %v3954 = vand.u32 %v2559, 4294901760
      %3955 = vmatprep.mubr.f32.mxu0 %v3954
      %v3956 = vand.u32 %v2367, 4294901760
      %3957 = vmatmul.mubr.f32.gmra.mrb[0].mxu0 %v3956
      %v3958 = vpop.f32.mrb[0].mxu0
      %v3959 = vadd.f32 %v2806, %v3958
      %v3960 = vpop.f32.mrb[0].mxu0
      %v3961 = vand.u32 %v2560, 4294901760
      %3962 = vmatprep.mubr.f32.mxu0 %v3961
      %v3963 = vand.u32 %v2368, 4294901760
      %3964 = vmatmul.mubr.f32.gmra.mrb[0].mxu0 %v3963
      %v3965 = vpop.f32.mrb[0].mxu0
      %v3966 = vadd.f32 %v2821, %v3965
      %v3967 = vpop.f32.mrb[0].mxu0
      %v3968 = vand.u32 %v2561, 4294901760
      %3969 = vmatprep.mubr.f32.mxu0 %v3968
      %v3970 = vand.u32 %v2369, 4294901760
      %3971 = vmatmul.mubr.f32.gmra.mrb[0].mxu0 %v3970
      %v3972 = vpop.f32.mrb[0].mxu0
      %v3973 = vadd.f32 %v2836, %v3972
      %v3974 = vpop.f32.mrb[0].mxu0
      %v3975 = vand.u32 %v2562, 4294901760
      %3976 = vmatprep.mubr.f32.mxu0 %v3975
      %v3977 = vand.u32 %v2370, 4294901760
      %3978 = vmatmul.mubr.f32.gmra.mrb[0].mxu0 %v3977
      %v3979 = vpop.f32.mrb[0].mxu0
      %v3980 = vadd.f32 %v2851, %v3979
      %v3981 = vpop.f32.mrb[0].mxu0
      %v3982 = vand.u32 %v2563, 4294901760
      %3983 = vmatprep.mubr.f32.mxu0 %v3982
      %v3984 = vand.u32 %v2371, 4294901760
      %3985 = vmatmul.mubr.f32.gmra.mrb[0].mxu0 %v3984
      %v3986 = vpop.f32.mrb[0].mxu0
      %v3987 = vadd.f32 %v2866, %v3986
      %v3988 = vpop.f32.mrb[0].mxu0
      %v3989 = vand.u32 %v2564, 4294901760
      %3990 = vmatprep.mubr.f32.mxu0 %v3989
      %v3991 = vand.u32 %v2372, 4294901760
      %3992 = vmatmul.mubr.f32.gmra.mrb[0].mxu0 %v3991
      %v3993 = vpop.f32.mrb[0].mxu0
      %v3994 = vadd.f32 %v2881, %v3993
      %v3995 = vpop.f32.mrb[0].mxu0
      %v3996 = vand.u32 %v2565, 4294901760
      %3997 = vmatprep.mubr.f32.mxu0 %v3996
      %v3998 = vand.u32 %v2373, 4294901760
      %3999 = vmatmul.mubr.f32.gmra.mrb[0].mxu0 %v3998
      %v4000 = vpop.f32.mrb[0].mxu0
      %v4001 = vadd.f32 %v2896, %v4000
      %v4002 = vpop.f32.mrb[0].mxu0
      %v4003 = vand.u32 %v2566, 4294901760
      %4004 = vmatprep.mubr.f32.mxu0 %v4003
      %v4005 = vand.u32 %v2374, 4294901760
      %4006 = vmatmul.mubr.f32.gmra.mrb[0].mxu0 %v4005
      %v4007 = vpop.f32.mrb[0].mxu0
      %v4008 = vadd.f32 %v2911, %v4007
      %v4009 = vpop.f32.mrb[0].mxu0
      %v4010 = vand.u32 %v2567, 4294901760
      %4011 = vmatprep.mubr.f32.mxu0 %v4010
      %v4012 = vand.u32 %v2375, 4294901760
      %4013 = vmatmul.mubr.f32.gmra.mrb[0].mxu0 %v4012
      %v4014 = vpop.f32.mrb[0].mxu0
      %v4015 = vadd.f32 %v2926, %v4014
      %v4016 = vpop.f32.mrb[0].mxu0
      %v4017 = vand.u32 %v2568, 4294901760
      %4018 = vmatprep.mubr.f32.mxu0 %v4017
      %v4019 = vand.u32 %v2376, 4294901760
      %4020 = vmatmul.mubr.f32.gmra.mrb[0].mxu0 %v4019
      %v4021 = vpop.f32.mrb[0].mxu0
      %v4022 = vadd.f32 %v2941, %v4021
      %v4023 = vpop.f32.mrb[0].mxu0
      %v4024 = vand.u32 %v2569, 4294901760
      %4025 = vmatprep.mubr.f32.mxu0 %v4024
      %v4026 = vand.u32 %v2377, 4294901760
      %4027 = vmatmul.mubr.f32.gmra.mrb[0].mxu0 %v4026
      %v4028 = vpop.f32.mrb[0].mxu0
      %v4029 = vadd.f32 %v2956, %v4028
      %v4030 = vpop.f32.mrb[0].mxu0
      %v4031 = vand.u32 %v2570, 4294901760
      %4032 = vmatprep.mubr.f32.mxu0 %v4031
      %v4033 = vand.u32 %v2378, 4294901760
      %4034 = vmatmul.mubr.f32.gmra.mrb[0].mxu0 %v4033
      %v4035 = vpop.f32.mrb[0].mxu0
      %v4036 = vadd.f32 %v2971, %v4035
      %v4037 = vpop.f32.mrb[0].mxu0
      %v4038 = vand.u32 %v2571, 4294901760
      %4039 = vmatprep.mubr.f32.mxu0 %v4038
      %v4040 = vand.u32 %v2379, 4294901760
      %4041 = vmatmul.mubr.f32.gmra.mrb[0].mxu0 %v4040
      %v4042 = vpop.f32.mrb[0].mxu0
      %v4043 = vadd.f32 %v2986, %v4042
      %v4044 = vpop.f32.mrb[0].mxu0
      %v4045 = vand.u32 %v2572, 4294901760
      %4046 = vmatprep.mubr.f32.mxu0 %v4045
      %v4047 = vand.u32 %v2380, 4294901760
      %4048 = vmatmul.mubr.f32.gmra.mrb[0].mxu0 %v4047
      %v4049 = vpop.f32.mrb[0].mxu0
      %v4050 = vadd.f32 %v3001, %v4049
      %v4051 = vpop.f32.mrb[0].mxu0
      %v4052 = vand.u32 %v2573, 4294901760
      %4053 = vmatprep.mubr.f32.mxu0 %v4052
      %v4054 = vand.u32 %v2381, 4294901760
      %4055 = vmatmul.mubr.f32.gmra.mrb[0].mxu0 %v4054
      %v4056 = vpop.f32.mrb[0].mxu0
      %v4057 = vadd.f32 %v3016, %v4056
      %v4058 = vpop.f32.mrb[0].mxu0
      %v4059 = vand.u32 %v2574, 4294901760
      %4060 = vmatprep.mubr.f32.mxu0 %v4059
      %v4061 = vand.u32 %v2382, 4294901760
      %4062 = vmatmul.mubr.f32.gmra.mrb[0].mxu0 %v4061
      %v4063 = vpop.f32.mrb[0].mxu0
      %v4064 = vadd.f32 %v3031, %v4063
      %v4065 = vpop.f32.mrb[0].mxu0
      %v4066 = vand.u32 %v2575, 4294901760
      %4067 = vmatprep.mubr.f32.mxu0 %v4066
      %v4068 = vand.u32 %v2383, 4294901760
      %4069 = vmatmul.mubr.f32.gmra.mrb[0].mxu0 %v4068
      %v4070 = vpop.f32.mrb[0].mxu0
      %v4071 = vadd.f32 %v3046, %v4070
      %v4072 = vpop.f32.mrb[0].mxu0
      %v4073 = vand.u32 %v2576, 4294901760
      %4074 = vmatprep.mubr.f32.mxu0 %v4073
      %v4075 = vand.u32 %v2384, 4294901760
      %4076 = vmatmul.mubr.f32.gmra.mrb[0].mxu0 %v4075
      %v4077 = vpop.f32.mrb[0].mxu0
      %v4078 = vadd.f32 %v3061, %v4077
      %v4079 = vpop.f32.mrb[0].mxu0
      %v4080 = vand.u32 %v2577, 4294901760
      %4081 = vmatprep.mubr.f32.mxu0 %v4080
      %v4082 = vand.u32 %v2385, 4294901760
      %4083 = vmatmul.mubr.f32.gmra.mrb[0].mxu0 %v4082
      %v4084 = vpop.f32.mrb[0].mxu0
      %v4085 = vadd.f32 %v3076, %v4084
      %v4086 = vpop.f32.mrb[0].mxu0
      %v4087 = vand.u32 %v2578, 4294901760
      %4088 = vmatprep.mubr.f32.mxu0 %v4087
      %v4089 = vand.u32 %v2386, 4294901760
      %4090 = vmatmul.mubr.f32.gmra.mrb[0].mxu0 %v4089
      %v4091 = vpop.f32.mrb[0].mxu0
      %v4092 = vadd.f32 %v3091, %v4091
      %v4093 = vpop.f32.mrb[0].mxu0
      %v4094 = vand.u32 %v2579, 4294901760
      %4095 = vmatprep.mubr.f32.mxu0 %v4094
      %v4096 = vand.u32 %v2387, 4294901760
      %4097 = vmatmul.mubr.f32.gmra.mrb[0].mxu0 %v4096
      %v4098 = vpop.f32.mrb[0].mxu0
      %v4099 = vadd.f32 %v3106, %v4098
      %v4100 = vpop.f32.mrb[0].mxu0
      %v4101 = vand.u32 %v2580, 4294901760
      %4102 = vmatprep.mubr.f32.mxu0 %v4101
      %v4103 = vand.u32 %v2388, 4294901760
      %4104 = vmatmul.mubr.f32.gmra.mrb[0].mxu0 %v4103
      %v4105 = vpop.f32.mrb[0].mxu0
      %v4106 = vadd.f32 %v3121, %v4105
      %v4107 = vpop.f32.mrb[0].mxu0
      %v4108 = vand.u32 %v2581, 4294901760
      %4109 = vmatprep.mubr.f32.mxu0 %v4108
      %v4110 = vand.u32 %v2389, 4294901760
      %4111 = vmatmul.mubr.f32.gmra.mrb[0].mxu0 %v4110
      %v4112 = vpop.f32.mrb[0].mxu0
      %v4113 = vadd.f32 %v3136, %v4112
      %v4114 = vpop.f32.mrb[0].mxu0
      %v4115 = vand.u32 %v2582, 4294901760
      %4116 = vmatprep.mubr.f32.mxu0 %v4115
      %v4117 = vand.u32 %v2390, 4294901760
      %4118 = vmatmul.mubr.f32.gmra.mrb[0].mxu0 %v4117
      %v4119 = vpop.f32.mrb[0].mxu0
      %v4120 = vadd.f32 %v3151, %v4119
      %v4121 = vpop.f32.mrb[0].mxu0
      %v4122 = vand.u32 %v2583, 4294901760
      %4123 = vmatprep.mubr.f32.mxu0 %v4122
      %v4124 = vand.u32 %v2391, 4294901760
      %4125 = vmatmul.mubr.f32.gmra.mrb[0].mxu0 %v4124
      %v4126 = vpop.f32.mrb[0].mxu0
      %v4127 = vadd.f32 %v3166, %v4126
      %v4128 = vpop.f32.mrb[0].mxu0
      %v4129 = vand.u32 %v2584, 4294901760
      %4130 = vmatprep.mubr.f32.mxu0 %v4129
      %v4131 = vand.u32 %v2392, 4294901760
      %4132 = vmatmul.mubr.f32.gmra.mrb[0].mxu0 %v4131
      %v4133 = vpop.f32.mrb[0].mxu0
      %v4134 = vadd.f32 %v3181, %v4133
      %v4135 = vpop.f32.mrb[0].mxu0
      %v4136 = vand.u32 %v2585, 4294901760
      %4137 = vmatprep.mubr.f32.mxu0 %v4136
      %v4138 = vand.u32 %v2393, 4294901760
      %4139 = vmatmul.mubr.f32.gmra.mrb[0].mxu0 %v4138
      %v4140 = vpop.f32.mrb[0].mxu0
      %v4141 = vadd.f32 %v3196, %v4140
      %v4142 = vpop.f32.mrb[0].mxu0
      %v4143 = vand.u32 %v2586, 4294901760
      %4144 = vmatprep.mubr.f32.mxu0 %v4143
      %v4145 = vand.u32 %v2394, 4294901760
      %4146 = vmatmul.mubr.f32.gmra.mrb[0].mxu0 %v4145
      %v4147 = vpop.f32.mrb[0].mxu0
      %v4148 = vadd.f32 %v3211, %v4147
      %v4149 = vpop.f32.mrb[0].mxu0
      %v4150 = vand.u32 %v2587, 4294901760
      %4151 = vmatprep.mubr.f32.mxu0 %v4150
      %v4152 = vand.u32 %v2395, 4294901760
      %4153 = vmatmul.mubr.f32.gmra.mrb[0].mxu0 %v4152
      %v4154 = vpop.f32.mrb[0].mxu0
      %v4155 = vadd.f32 %v3226, %v4154
      %v4156 = vpop.f32.mrb[0].mxu0
      %v4157 = vand.u32 %v2588, 4294901760
      %4158 = vmatprep.mubr.f32.mxu0 %v4157
      %v4159 = vand.u32 %v2396, 4294901760
      %4160 = vmatmul.mubr.f32.gmra.mrb[0].mxu0 %v4159
      %v4161 = vpop.f32.mrb[0].mxu0
      %v4162 = vadd.f32 %v3241, %v4161
      %v4163 = vpop.f32.mrb[0].mxu0
      %v4164 = vand.u32 %v2589, 4294901760
      %4165 = vmatprep.mubr.f32.mxu0 %v4164
      %v4166 = vand.u32 %v2397, 4294901760
      %4167 = vmatmul.mubr.f32.gmra.mrb[0].mxu0 %v4166
      %v4168 = vpop.f32.mrb[0].mxu0
      %v4169 = vadd.f32 %v3256, %v4168
      %v4170 = vpop.f32.mrb[0].mxu0
      %v4171 = vand.u32 %v2590, 4294901760
      %4172 = vmatprep.mubr.f32.mxu0 %v4171
      %v4173 = vand.u32 %v2398, 4294901760
      %4174 = vmatmul.mubr.f32.gmra.mrb[0].mxu0 %v4173
      %v4175 = vpop.f32.mrb[0].mxu0
      %v4176 = vadd.f32 %v3271, %v4175
      %v4177 = vpop.f32.mrb[0].mxu0
      %v4178 = vand.u32 %v2591, 4294901760
      %4179 = vmatprep.mubr.f32.mxu0 %v4178
      %v4180 = vand.u32 %v2399, 4294901760
      %4181 = vmatmul.mubr.f32.gmra.mrb[0].mxu0 %v4180
      %v4182 = vpop.f32.mrb[0].mxu0
      %v4183 = vadd.f32 %v3286, %v4182
      %v4184 = vpop.f32.mrb[0].mxu0
      %v4185 = vand.u32 %v2592, 4294901760
      %4186 = vmatprep.mubr.f32.mxu0 %v4185
      %v4187 = vand.u32 %v2400, 4294901760
      %4188 = vmatmul.mubr.f32.gmra.mrb[0].mxu0 %v4187
      %v4189 = vpop.f32.mrb[0].mxu0
      %v4190 = vadd.f32 %v3301, %v4189
      %v4191 = vpop.f32.mrb[0].mxu0
      %v4192 = vand.u32 %v2593, 4294901760
      %4193 = vmatprep.mubr.f32.mxu0 %v4192
      %v4194 = vand.u32 %v2401, 4294901760
      %4195 = vmatmul.mubr.f32.gmra.mrb[0].mxu0 %v4194
      %v4196 = vpop.f32.mrb[0].mxu0
      %v4197 = vadd.f32 %v3316, %v4196
      %v4198 = vpop.f32.mrb[0].mxu0
      %v4199 = vand.u32 %v2594, 4294901760
      %4200 = vmatprep.mubr.f32.mxu0 %v4199
      %v4201 = vand.u32 %v2402, 4294901760
      %4202 = vmatmul.mubr.f32.gmra.mrb[0].mxu0 %v4201
      %v4203 = vpop.f32.mrb[0].mxu0
      %v4204 = vadd.f32 %v3331, %v4203
      %v4205 = vpop.f32.mrb[0].mxu0
      %v4206 = vand.u32 %v2595, 4294901760
      %4207 = vmatprep.mubr.f32.mxu0 %v4206
      %v4208 = vand.u32 %v2403, 4294901760
      %4209 = vmatmul.mubr.f32.gmra.mrb[0].mxu0 %v4208
      %v4210 = vpop.f32.mrb[0].mxu0
      %v4211 = vadd.f32 %v3346, %v4210
      %v4212 = vpop.f32.mrb[0].mxu0
      %v4213 = vand.u32 %v2596, 4294901760
      %4214 = vmatprep.mubr.f32.mxu0 %v4213
      %v4215 = vand.u32 %v2404, 4294901760
      %4216 = vmatmul.mubr.f32.gmra.mrb[0].mxu0 %v4215
      %v4217 = vpop.f32.mrb[0].mxu0
      %v4218 = vadd.f32 %v3361, %v4217
      %v4219 = vpop.f32.mrb[0].mxu0
      %v4220 = vand.u32 %v2597, 4294901760
      %4221 = vmatprep.mubr.f32.mxu0 %v4220
      %v4222 = vand.u32 %v2405, 4294901760
      %4223 = vmatmul.mubr.f32.gmra.mrb[0].mxu0 %v4222
      %v4224 = vpop.f32.mrb[0].mxu0
      %v4225 = vadd.f32 %v3376, %v4224
      %v4226 = vpop.f32.mrb[0].mxu0
      %v4227 = vand.u32 %v2598, 4294901760
      %4228 = vmatprep.mubr.f32.mxu0 %v4227
      %v4229 = vand.u32 %v2406, 4294901760
      %4230 = vmatmul.mubr.f32.gmra.mrb[0].mxu0 %v4229
      %v4231 = vpop.f32.mrb[0].mxu0
      %v4232 = vadd.f32 %v3391, %v4231
      %v4233 = vpop.f32.mrb[0].mxu0
      %v4234 = vand.u32 %v2599, 4294901760
      %4235 = vmatprep.mubr.f32.mxu0 %v4234
      %v4236 = vand.u32 %v2407, 4294901760
      %4237 = vmatmul.mubr.f32.gmra.mrb[0].mxu0 %v4236
      %v4238 = vpop.f32.mrb[0].mxu0
      %v4239 = vadd.f32 %v3406, %v4238
      %v4240 = vpop.f32.mrb[0].mxu0
      %v4241 = vand.u32 %v2600, 4294901760
      %4242 = vmatprep.mubr.f32.mxu0 %v4241
      %v4243 = vand.u32 %v2408, 4294901760
      %4244 = vmatmul.mubr.f32.gmra.mrb[0].mxu0 %v4243
      %v4245 = vpop.f32.mrb[0].mxu0
      %v4246 = vadd.f32 %v3421, %v4245
      %v4247 = vpop.f32.mrb[0].mxu0
      %v4248 = vand.u32 %v2601, 4294901760
      %4249 = vmatprep.mubr.f32.mxu0 %v4248
      %v4250 = vand.u32 %v2409, 4294901760
      %4251 = vmatmul.mubr.f32.gmra.mrb[0].mxu0 %v4250
      %v4252 = vpop.f32.mrb[0].mxu0
      %v4253 = vadd.f32 %v3436, %v4252
      %v4254 = vpop.f32.mrb[0].mxu0
      %v4255 = vand.u32 %v2602, 4294901760
      %4256 = vmatprep.mubr.f32.mxu0 %v4255
      %v4257 = vand.u32 %v2410, 4294901760
      %4258 = vmatmul.mubr.f32.gmra.mrb[0].mxu0 %v4257
      %v4259 = vpop.f32.mrb[0].mxu0
      %v4260 = vadd.f32 %v3451, %v4259
      %v4261 = vpop.f32.mrb[0].mxu0
      %v4262 = vand.u32 %v2603, 4294901760
      %4263 = vmatprep.mubr.f32.mxu0 %v4262
      %v4264 = vand.u32 %v2411, 4294901760
      %4265 = vmatmul.mubr.f32.gmra.mrb[0].mxu0 %v4264
      %v4266 = vpop.f32.mrb[0].mxu0
      %v4267 = vadd.f32 %v3466, %v4266
      %v4268 = vpop.f32.mrb[0].mxu0
      %v4269 = vand.u32 %v2604, 4294901760
      %4270 = vmatprep.mubr.f32.mxu0 %v4269
      %v4271 = vand.u32 %v2412, 4294901760
      %4272 = vmatmul.mubr.f32.gmra.mrb[0].mxu0 %v4271
      %v4273 = vpop.f32.mrb[0].mxu0
      %v4274 = vadd.f32 %v3481, %v4273
      %v4275 = vpop.f32.mrb[0].mxu0
      %v4276 = vand.u32 %v2605, 4294901760
      %4277 = vmatprep.mubr.f32.mxu0 %v4276
      %v4278 = vand.u32 %v2413, 4294901760
      %4279 = vmatmul.mubr.f32.gmra.mrb[0].mxu0 %v4278
      %v4280 = vpop.f32.mrb[0].mxu0
      %v4281 = vadd.f32 %v3496, %v4280
      %v4282 = vpop.f32.mrb[0].mxu0
      %v4283 = vand.u32 %v2606, 4294901760
      %4284 = vmatprep.mubr.f32.mxu0 %v4283
      %v4285 = vand.u32 %v2414, 4294901760
      %4286 = vmatmul.mubr.f32.gmra.mrb[0].mxu0 %v4285
      %v4287 = vpop.f32.mrb[0].mxu0
      %v4288 = vadd.f32 %v3511, %v4287
      %v4289 = vpop.f32.mrb[0].mxu0
      %v4290 = vand.u32 %v2607, 4294901760
      %4291 = vmatprep.mubr.f32.mxu0 %v4290
      %v4292 = vand.u32 %v2415, 4294901760
      %4293 = vmatmul.mubr.f32.gmra.mrb[0].mxu0 %v4292
      %v4294 = vpop.f32.mrb[0].mxu0
      %v4295 = vadd.f32 %v3526, %v4294
      %v4296 = vpop.f32.mrb[0].mxu0
      %v4297 = vand.u32 %v2608, 4294901760
      %4298 = vmatprep.mubr.f32.mxu0 %v4297
      %v4299 = vand.u32 %v2416, 4294901760
      %4300 = vmatmul.mubr.f32.gmra.mrb[0].mxu0 %v4299
      %v4301 = vpop.f32.mrb[0].mxu0
      %v4302 = vadd.f32 %v3541, %v4301
      %v4303 = vpop.f32.mrb[0].mxu0
      %v4304 = vand.u32 %v2609, 4294901760
      %4305 = vmatprep.mubr.f32.mxu0 %v4304
      %v4306 = vand.u32 %v2417, 4294901760
      %4307 = vmatmul.mubr.f32.gmra.mrb[0].mxu0 %v4306
      %v4308 = vpop.f32.mrb[0].mxu0
      %v4309 = vadd.f32 %v3556, %v4308
      %v4310 = vpop.f32.mrb[0].mxu0
      %v4311 = vand.u32 %v2610, 4294901760
      %4312 = vmatprep.mubr.f32.mxu0 %v4311
      %v4313 = vand.u32 %v2418, 4294901760
      %4314 = vmatmul.mubr.f32.gmra.mrb[0].mxu0 %v4313
      %v4315 = vpop.f32.mrb[0].mxu0
      %v4316 = vadd.f32 %v3571, %v4315
      %v4317 = vpop.f32.mrb[0].mxu0
      %v4318 = vand.u32 %v2611, 4294901760
      %4319 = vmatprep.mubr.f32.mxu0 %v4318
      %v4320 = vand.u32 %v2419, 4294901760
      %4321 = vmatmul.mubr.f32.gmra.mrb[0].mxu0 %v4320
      %v4322 = vpop.f32.mrb[0].mxu0
      %v4323 = vadd.f32 %v3586, %v4322
      %v4324 = vpop.f32.mrb[0].mxu0
      %v4325 = vand.u32 %v2612, 4294901760
      %4326 = vmatprep.mubr.f32.mxu0 %v4325
      %v4327 = vand.u32 %v2420, 4294901760
      %4328 = vmatmul.mubr.f32.gmra.mrb[0].mxu0 %v4327
      %v4329 = vpop.f32.mrb[0].mxu0
      %v4330 = vadd.f32 %v3601, %v4329
      %v4331 = vpop.f32.mrb[0].mxu0
      %v4332 = vand.u32 %v2613, 4294901760
      %4333 = vmatprep.mubr.f32.mxu0 %v4332
      %v4334 = vand.u32 %v2421, 4294901760
      %4335 = vmatmul.mubr.f32.gmra.mrb[0].mxu0 %v4334
      %v4336 = vpop.f32.mrb[0].mxu0
      %v4337 = vadd.f32 %v3616, %v4336
      %v4338 = vpop.f32.mrb[0].mxu0
      %v4339 = vand.u32 %v2614, 4294901760
      %4340 = vmatprep.mubr.f32.mxu0 %v4339
      %v4341 = vand.u32 %v2422, 4294901760
      %4342 = vmatmul.mubr.f32.gmra.mrb[0].mxu0 %v4341
      %v4343 = vpop.f32.mrb[0].mxu0
      %v4344 = vadd.f32 %v3631, %v4343
      %v4345 = vpop.f32.mrb[0].mxu0
      %v4346 = vand.u32 %v2615, 4294901760
      %4347 = vmatprep.mubr.f32.mxu0 %v4346
      %v4348 = vand.u32 %v2423, 4294901760
      %4349 = vmatmul.mubr.f32.gmra.mrb[0].mxu0 %v4348
      %v4350 = vpop.f32.mrb[0].mxu0
      %v4351 = vadd.f32 %v3646, %v4350
      %v4352 = vpop.f32.mrb[0].mxu0
      %v4353 = vand.u32 %v2616, 4294901760
      %4354 = vmatprep.mubr.f32.mxu0 %v4353
      %v4355 = vand.u32 %v2424, 4294901760
      %4356 = vmatmul.mubr.f32.gmra.mrb[0].mxu0 %v4355
      %v4357 = vpop.f32.mrb[0].mxu0
      %v4358 = vadd.f32 %v3661, %v4357
      %v4359 = vpop.f32.mrb[0].mxu0
      %v4360 = vand.u32 %v2617, 4294901760
      %4361 = vmatprep.mubr.f32.mxu0 %v4360
      %v4362 = vand.u32 %v2425, 4294901760
      %4363 = vmatmul.mubr.f32.gmra.mrb[0].mxu0 %v4362
      %v4364 = vpop.f32.mrb[0].mxu0
      %v4365 = vadd.f32 %v3676, %v4364
      %v4366 = vpop.f32.mrb[0].mxu0
      %v4367 = vand.u32 %v2618, 4294901760
      %4368 = vmatprep.mubr.f32.mxu0 %v4367
      %v4369 = vand.u32 %v2426, 4294901760
      %4370 = vmatmul.mubr.f32.gmra.mrb[0].mxu0 %v4369
      %v4371 = vpop.f32.mrb[0].mxu0
      %v4372 = vadd.f32 %v3691, %v4371
      %v4373 = vpop.f32.mrb[0].mxu0
      %v4374 = vand.u32 %v2619, 4294901760
      %4375 = vmatprep.mubr.f32.mxu0 %v4374
      %v4376 = vand.u32 %v2427, 4294901760
      %4377 = vmatmul.mubr.f32.gmra.mrb[0].mxu0 %v4376
      %v4378 = vpop.f32.mrb[0].mxu0
      %v4379 = vadd.f32 %v3706, %v4378
      %v4380 = vpop.f32.mrb[0].mxu0
      %4381 = vdwg.mxu0
      %4382 = vmatprep.subr.mxu0 0.0
      %v4383 = vand.u32 %v2620, 4294901760
      %v4384 = vsub.f32 %v2620, %v4383
      %4385 = vmatpush1.msra.mxu0 %v4384
      %4386 = vmatprep.subr.mxu0 0.0
      %v4387 = vand.u32 %v2621, 4294901760
      %v4388 = vsub.f32 %v2621, %v4387
      %4389 = vmatpush1.msra.mxu0 %v4388
      %4390 = vmatprep.subr.mxu0 0.0
      %v4391 = vand.u32 %v2622, 4294901760
      %v4392 = vsub.f32 %v2622, %v4391
      %4393 = vmatpush1.msra.mxu0 %v4392
      %4394 = vmatprep.subr.mxu0 0.0
      %v4395 = vand.u32 %v2623, 4294901760
      %v4396 = vsub.f32 %v2623, %v4395
      %4397 = vmatpush1.msra.mxu0 %v4396
      %4398 = vmatprep.subr.mxu0 0.0
      %v4399 = vand.u32 %v2624, 4294901760
      %v4400 = vsub.f32 %v2624, %v4399
      %4401 = vmatpush1.msra.mxu0 %v4400
      %4402 = vmatprep.subr.mxu0 0.0
      %v4403 = vand.u32 %v2625, 4294901760
      %v4404 = vsub.f32 %v2625, %v4403
      %4405 = vmatpush1.msra.mxu0 %v4404
      %4406 = vmatprep.subr.mxu0 0.0
      %v4407 = vand.u32 %v2626, 4294901760
      %v4408 = vsub.f32 %v2626, %v4407
      %4409 = vmatpush1.msra.mxu0 %v4408
      %4410 = vmatprep.subr.mxu0 0.0
      %v4411 = vand.u32 %v2627, 4294901760
      %v4412 = vsub.f32 %v2627, %v4411
      %4413 = vmatpush1.msra.mxu0 %v4412
      %4414 = vmatprep.subr.mxu0 0.0
      %v4415 = vand.u32 %v2628, 4294901760
      %v4416 = vsub.f32 %v2628, %v4415
      %4417 = vmatpush1.msra.mxu0 %v4416
      %4418 = vmatprep.subr.mxu0 0.0
      %v4419 = vand.u32 %v2629, 4294901760
      %v4420 = vsub.f32 %v2629, %v4419
      %4421 = vmatpush1.msra.mxu0 %v4420
      %4422 = vmatprep.subr.mxu0 0.0
      %v4423 = vand.u32 %v2630, 4294901760
      %v4424 = vsub.f32 %v2630, %v4423
      %4425 = vmatpush1.msra.mxu0 %v4424
      %4426 = vmatprep.subr.mxu0 0.0
      %v4427 = vand.u32 %v2631, 4294901760
      %v4428 = vsub.f32 %v2631, %v4427
      %4429 = vmatpush1.msra.mxu0 %v4428
      %4430 = vmatprep.subr.mxu0 0.0
      %v4431 = vand.u32 %v2632, 4294901760
      %v4432 = vsub.f32 %v2632, %v4431
      %4433 = vmatpush1.msra.mxu0 %v4432
      %4434 = vmatprep.subr.mxu0 0.0
      %v4435 = vand.u32 %v2633, 4294901760
      %v4436 = vsub.f32 %v2633, %v4435
      %4437 = vmatpush1.msra.mxu0 %v4436
      %4438 = vmatprep.subr.mxu0 0.0
      %v4439 = vand.u32 %v2634, 4294901760
      %v4440 = vsub.f32 %v2634, %v4439
      %4441 = vmatpush1.msra.mxu0 %v4440
      %4442 = vmatprep.subr.mxu0 0.0
      %v4443 = vand.u32 %v2635, 4294901760
      %v4444 = vsub.f32 %v2635, %v4443
      %4445 = vmatpush1.msra.mxu0 %v4444
      %4446 = vmatprep.subr.mxu0 0.0
      %v4447 = vand.u32 %v2636, 4294901760
      %v4448 = vsub.f32 %v2636, %v4447
      %4449 = vmatpush1.msra.mxu0 %v4448
      %4450 = vmatprep.subr.mxu0 0.0
      %v4451 = vand.u32 %v2637, 4294901760
      %v4452 = vsub.f32 %v2637, %v4451
      %4453 = vmatpush1.msra.mxu0 %v4452
      %4454 = vmatprep.subr.mxu0 0.0
      %v4455 = vand.u32 %v2638, 4294901760
      %v4456 = vsub.f32 %v2638, %v4455
      %4457 = vmatpush1.msra.mxu0 %v4456
      %4458 = vmatprep.subr.mxu0 0.0
      %v4459 = vand.u32 %v2639, 4294901760
      %v4460 = vsub.f32 %v2639, %v4459
      %4461 = vmatpush1.msra.mxu0 %v4460
      %4462 = vmatprep.subr.mxu0 0.0
      %v4463 = vand.u32 %v2640, 4294901760
      %v4464 = vsub.f32 %v2640, %v4463
      %4465 = vmatpush1.msra.mxu0 %v4464
      %4466 = vmatprep.subr.mxu0 0.0
      %v4467 = vand.u32 %v2641, 4294901760
      %v4468 = vsub.f32 %v2641, %v4467
      %4469 = vmatpush1.msra.mxu0 %v4468
      %4470 = vmatprep.subr.mxu0 0.0
      %v4471 = vand.u32 %v2642, 4294901760
      %v4472 = vsub.f32 %v2642, %v4471
      %4473 = vmatpush1.msra.mxu0 %v4472
      %4474 = vmatprep.subr.mxu0 0.0
      %v4475 = vand.u32 %v2643, 4294901760
      %v4476 = vsub.f32 %v2643, %v4475
      %4477 = vmatpush1.msra.mxu0 %v4476
      %4478 = vmatprep.subr.mxu0 0.0
      %v4479 = vand.u32 %v2644, 4294901760
      %v4480 = vsub.f32 %v2644, %v4479
      %4481 = vmatpush1.msra.mxu0 %v4480
      %4482 = vmatprep.subr.mxu0 0.0
      %v4483 = vand.u32 %v2645, 4294901760
      %v4484 = vsub.f32 %v2645, %v4483
      %4485 = vmatpush1.msra.mxu0 %v4484
      %4486 = vmatprep.subr.mxu0 0.0
      %v4487 = vand.u32 %v2646, 4294901760
      %v4488 = vsub.f32 %v2646, %v4487
      %4489 = vmatpush1.msra.mxu0 %v4488
      %4490 = vmatprep.subr.mxu0 0.0
      %v4491 = vand.u32 %v2647, 4294901760
      %v4492 = vsub.f32 %v2647, %v4491
      %4493 = vmatpush1.msra.mxu0 %v4492
      %4494 = vmatprep.subr.mxu0 0.0
      %v4495 = vand.u32 %v2648, 4294901760
      %v4496 = vsub.f32 %v2648, %v4495
      %4497 = vmatpush1.msra.mxu0 %v4496
      %4498 = vmatprep.subr.mxu0 0.0
      %v4499 = vand.u32 %v2649, 4294901760
      %v4500 = vsub.f32 %v2649, %v4499
      %4501 = vmatpush1.msra.mxu0 %v4500
      %4502 = vmatprep.subr.mxu0 0.0
      %v4503 = vand.u32 %v2650, 4294901760
      %v4504 = vsub.f32 %v2650, %v4503
      %4505 = vmatpush1.msra.mxu0 %v4504
      %4506 = vmatprep.subr.mxu0 0.0
      %v4507 = vand.u32 %v2651, 4294901760
      %v4508 = vsub.f32 %v2651, %v4507
      %4509 = vmatpush1.msra.mxu0 %v4508
      %v4510 = vand.u32 %v2556, 4294901760
      %v4511 = vsub.f32 %v2556, %v4510
      %4512 = vmatprep.mubr.f32.mxu0 %v4511
      %v4513 = vand.u32 %v2364, 4294901760
      %v4514 = vsub.f32 %v2364, %v4513
      %4515 = vmatmul.mubr.f32.gmra.mrb[0].mxu0 %v4514
      %v4516 = vpop.f32.mrb[0].mxu0
      %v4517 = vadd.f32 %v3938, %v4516
      %v4518 = vpop.f32.mrb[0].mxu0
      %v4519 = vand.u32 %v2557, 4294901760
      %v4520 = vsub.f32 %v2557, %v4519
      %4521 = vmatprep.mubr.f32.mxu0 %v4520
      %v4522 = vand.u32 %v2365, 4294901760
      %v4523 = vsub.f32 %v2365, %v4522
      %4524 = vmatmul.mubr.f32.gmra.mrb[0].mxu0 %v4523
      %v4525 = vpop.f32.mrb[0].mxu0
      %v4526 = vadd.f32 %v3945, %v4525
      %v4527 = vpop.f32.mrb[0].mxu0
      %v4528 = vand.u32 %v2558, 4294901760
      %v4529 = vsub.f32 %v2558, %v4528
      %4530 = vmatprep.mubr.f32.mxu0 %v4529
      %v4531 = vand.u32 %v2366, 4294901760
      %v4532 = vsub.f32 %v2366, %v4531
      %4533 = vmatmul.mubr.f32.gmra.mrb[0].mxu0 %v4532
      %v4534 = vpop.f32.mrb[0].mxu0
      %v4535 = vadd.f32 %v3952, %v4534
      %v4536 = vpop.f32.mrb[0].mxu0
      %v4537 = vand.u32 %v2559, 4294901760
      %v4538 = vsub.f32 %v2559, %v4537
      %4539 = vmatprep.mubr.f32.mxu0 %v4538
      %v4540 = vand.u32 %v2367, 4294901760
      %v4541 = vsub.f32 %v2367, %v4540
      %4542 = vmatmul.mubr.f32.gmra.mrb[0].mxu0 %v4541
      %v4543 = vpop.f32.mrb[0].mxu0
      %v4544 = vadd.f32 %v3959, %v4543
      %v4545 = vpop.f32.mrb[0].mxu0
      %v4546 = vand.u32 %v2560, 4294901760
      %v4547 = vsub.f32 %v2560, %v4546
      %4548 = vmatprep.mubr.f32.mxu0 %v4547
      %v4549 = vand.u32 %v2368, 4294901760
      %v4550 = vsub.f32 %v2368, %v4549
      %4551 = vmatmul.mubr.f32.gmra.mrb[0].mxu0 %v4550
      %v4552 = vpop.f32.mrb[0].mxu0
      %v4553 = vadd.f32 %v3966, %v4552
      %v4554 = vpop.f32.mrb[0].mxu0
      %v4555 = vand.u32 %v2561, 4294901760
      %v4556 = vsub.f32 %v2561, %v4555
      %4557 = vmatprep.mubr.f32.mxu0 %v4556
      %v4558 = vand.u32 %v2369, 4294901760
      %v4559 = vsub.f32 %v2369, %v4558
      %4560 = vmatmul.mubr.f32.gmra.mrb[0].mxu0 %v4559
      %v4561 = vpop.f32.mrb[0].mxu0
      %v4562 = vadd.f32 %v3973, %v4561
      %v4563 = vpop.f32.mrb[0].mxu0
      %v4564 = vand.u32 %v2562, 4294901760
      %v4565 = vsub.f32 %v2562, %v4564
      %4566 = vmatprep.mubr.f32.mxu0 %v4565
      %v4567 = vand.u32 %v2370, 4294901760
      %v4568 = vsub.f32 %v2370, %v4567
      %4569 = vmatmul.mubr.f32.gmra.mrb[0].mxu0 %v4568
      %v4570 = vpop.f32.mrb[0].mxu0
      %v4571 = vadd.f32 %v3980, %v4570
      %v4572 = vpop.f32.mrb[0].mxu0
      %v4573 = vand.u32 %v2563, 4294901760
      %v4574 = vsub.f32 %v2563, %v4573
      %4575 = vmatprep.mubr.f32.mxu0 %v4574
      %v4576 = vand.u32 %v2371, 4294901760
      %v4577 = vsub.f32 %v2371, %v4576
      %4578 = vmatmul.mubr.f32.gmra.mrb[0].mxu0 %v4577
      %v4579 = vpop.f32.mrb[0].mxu0
      %v4580 = vadd.f32 %v3987, %v4579
      %v4581 = vpop.f32.mrb[0].mxu0
      %v4582 = vand.u32 %v2564, 4294901760
      %v4583 = vsub.f32 %v2564, %v4582
      %4584 = vmatprep.mubr.f32.mxu0 %v4583
      %v4585 = vand.u32 %v2372, 4294901760
      %v4586 = vsub.f32 %v2372, %v4585
      %4587 = vmatmul.mubr.f32.gmra.mrb[0].mxu0 %v4586
      %v4588 = vpop.f32.mrb[0].mxu0
      %v4589 = vadd.f32 %v3994, %v4588
      %v4590 = vpop.f32.mrb[0].mxu0
      %v4591 = vand.u32 %v2565, 4294901760
      %v4592 = vsub.f32 %v2565, %v4591
      %4593 = vmatprep.mubr.f32.mxu0 %v4592
      %v4594 = vand.u32 %v2373, 4294901760
      %v4595 = vsub.f32 %v2373, %v4594
      %4596 = vmatmul.mubr.f32.gmra.mrb[0].mxu0 %v4595
      %v4597 = vpop.f32.mrb[0].mxu0
      %v4598 = vadd.f32 %v4001, %v4597
      %v4599 = vpop.f32.mrb[0].mxu0
      %v4600 = vand.u32 %v2566, 4294901760
      %v4601 = vsub.f32 %v2566, %v4600
      %4602 = vmatprep.mubr.f32.mxu0 %v4601
      %v4603 = vand.u32 %v2374, 4294901760
      %v4604 = vsub.f32 %v2374, %v4603
      %4605 = vmatmul.mubr.f32.gmra.mrb[0].mxu0 %v4604
      %v4606 = vpop.f32.mrb[0].mxu0
      %v4607 = vadd.f32 %v4008, %v4606
      %v4608 = vpop.f32.mrb[0].mxu0
      %v4609 = vand.u32 %v2567, 4294901760
      %v4610 = vsub.f32 %v2567, %v4609
      %4611 = vmatprep.mubr.f32.mxu0 %v4610
      %v4612 = vand.u32 %v2375, 4294901760
      %v4613 = vsub.f32 %v2375, %v4612
      %4614 = vmatmul.mubr.f32.gmra.mrb[0].mxu0 %v4613
      %v4615 = vpop.f32.mrb[0].mxu0
      %v4616 = vadd.f32 %v4015, %v4615
      %v4617 = vpop.f32.mrb[0].mxu0
      %v4618 = vand.u32 %v2568, 4294901760
      %v4619 = vsub.f32 %v2568, %v4618
      %4620 = vmatprep.mubr.f32.mxu0 %v4619
      %v4621 = vand.u32 %v2376, 4294901760
      %v4622 = vsub.f32 %v2376, %v4621
      %4623 = vmatmul.mubr.f32.gmra.mrb[0].mxu0 %v4622
      %v4624 = vpop.f32.mrb[0].mxu0
      %v4625 = vadd.f32 %v4022, %v4624
      %v4626 = vpop.f32.mrb[0].mxu0
      %v4627 = vand.u32 %v2569, 4294901760
      %v4628 = vsub.f32 %v2569, %v4627
      %4629 = vmatprep.mubr.f32.mxu0 %v4628
      %v4630 = vand.u32 %v2377, 4294901760
      %v4631 = vsub.f32 %v2377, %v4630
      %4632 = vmatmul.mubr.f32.gmra.mrb[0].mxu0 %v4631
      %v4633 = vpop.f32.mrb[0].mxu0
      %v4634 = vadd.f32 %v4029, %v4633
      %v4635 = vpop.f32.mrb[0].mxu0
      %v4636 = vand.u32 %v2570, 4294901760
      %v4637 = vsub.f32 %v2570, %v4636
      %4638 = vmatprep.mubr.f32.mxu0 %v4637
      %v4639 = vand.u32 %v2378, 4294901760
      %v4640 = vsub.f32 %v2378, %v4639
      %4641 = vmatmul.mubr.f32.gmra.mrb[0].mxu0 %v4640
      %v4642 = vpop.f32.mrb[0].mxu0
      %v4643 = vadd.f32 %v4036, %v4642
      %v4644 = vpop.f32.mrb[0].mxu0
      %v4645 = vand.u32 %v2571, 4294901760
      %v4646 = vsub.f32 %v2571, %v4645
      %4647 = vmatprep.mubr.f32.mxu0 %v4646
      %v4648 = vand.u32 %v2379, 4294901760
      %v4649 = vsub.f32 %v2379, %v4648
      %4650 = vmatmul.mubr.f32.gmra.mrb[0].mxu0 %v4649
      %v4651 = vpop.f32.mrb[0].mxu0
      %v4652 = vadd.f32 %v4043, %v4651
      %v4653 = vpop.f32.mrb[0].mxu0
      %v4654 = vand.u32 %v2572, 4294901760
      %v4655 = vsub.f32 %v2572, %v4654
      %4656 = vmatprep.mubr.f32.mxu0 %v4655
      %v4657 = vand.u32 %v2380, 4294901760
      %v4658 = vsub.f32 %v2380, %v4657
      %4659 = vmatmul.mubr.f32.gmra.mrb[0].mxu0 %v4658
      %v4660 = vpop.f32.mrb[0].mxu0
      %v4661 = vadd.f32 %v4050, %v4660
      %v4662 = vpop.f32.mrb[0].mxu0
      %v4663 = vand.u32 %v2573, 4294901760
      %v4664 = vsub.f32 %v2573, %v4663
      %4665 = vmatprep.mubr.f32.mxu0 %v4664
      %v4666 = vand.u32 %v2381, 4294901760
      %v4667 = vsub.f32 %v2381, %v4666
      %4668 = vmatmul.mubr.f32.gmra.mrb[0].mxu0 %v4667
      %v4669 = vpop.f32.mrb[0].mxu0
      %v4670 = vadd.f32 %v4057, %v4669
      %v4671 = vpop.f32.mrb[0].mxu0
      %v4672 = vand.u32 %v2574, 4294901760
      %v4673 = vsub.f32 %v2574, %v4672
      %4674 = vmatprep.mubr.f32.mxu0 %v4673
      %v4675 = vand.u32 %v2382, 4294901760
      %v4676 = vsub.f32 %v2382, %v4675
      %4677 = vmatmul.mubr.f32.gmra.mrb[0].mxu0 %v4676
      %v4678 = vpop.f32.mrb[0].mxu0
      %v4679 = vadd.f32 %v4064, %v4678
      %v4680 = vpop.f32.mrb[0].mxu0
      %v4681 = vand.u32 %v2575, 4294901760
      %v4682 = vsub.f32 %v2575, %v4681
      %4683 = vmatprep.mubr.f32.mxu0 %v4682
      %v4684 = vand.u32 %v2383, 4294901760
      %v4685 = vsub.f32 %v2383, %v4684
      %4686 = vmatmul.mubr.f32.gmra.mrb[0].mxu0 %v4685
      %v4687 = vpop.f32.mrb[0].mxu0
      %v4688 = vadd.f32 %v4071, %v4687
      %v4689 = vpop.f32.mrb[0].mxu0
      %v4690 = vand.u32 %v2576, 4294901760
      %v4691 = vsub.f32 %v2576, %v4690
      %4692 = vmatprep.mubr.f32.mxu0 %v4691
      %v4693 = vand.u32 %v2384, 4294901760
      %v4694 = vsub.f32 %v2384, %v4693
      %4695 = vmatmul.mubr.f32.gmra.mrb[0].mxu0 %v4694
      %v4696 = vpop.f32.mrb[0].mxu0
      %v4697 = vadd.f32 %v4078, %v4696
      %v4698 = vpop.f32.mrb[0].mxu0
      %v4699 = vand.u32 %v2577, 4294901760
      %v4700 = vsub.f32 %v2577, %v4699
      %4701 = vmatprep.mubr.f32.mxu0 %v4700
      %v4702 = vand.u32 %v2385, 4294901760
      %v4703 = vsub.f32 %v2385, %v4702
      %4704 = vmatmul.mubr.f32.gmra.mrb[0].mxu0 %v4703
      %v4705 = vpop.f32.mrb[0].mxu0
      %v4706 = vadd.f32 %v4085, %v4705
      %v4707 = vpop.f32.mrb[0].mxu0
      %v4708 = vand.u32 %v2578, 4294901760
      %v4709 = vsub.f32 %v2578, %v4708
      %4710 = vmatprep.mubr.f32.mxu0 %v4709
      %v4711 = vand.u32 %v2386, 4294901760
      %v4712 = vsub.f32 %v2386, %v4711
      %4713 = vmatmul.mubr.f32.gmra.mrb[0].mxu0 %v4712
      %v4714 = vpop.f32.mrb[0].mxu0
      %v4715 = vadd.f32 %v4092, %v4714
      %v4716 = vpop.f32.mrb[0].mxu0
      %v4717 = vand.u32 %v2579, 4294901760
      %v4718 = vsub.f32 %v2579, %v4717
      %4719 = vmatprep.mubr.f32.mxu0 %v4718
      %v4720 = vand.u32 %v2387, 4294901760
      %v4721 = vsub.f32 %v2387, %v4720
      %4722 = vmatmul.mubr.f32.gmra.mrb[0].mxu0 %v4721
      %v4723 = vpop.f32.mrb[0].mxu0
      %v4724 = vadd.f32 %v4099, %v4723
      %v4725 = vpop.f32.mrb[0].mxu0
      %v4726 = vand.u32 %v2580, 4294901760
      %v4727 = vsub.f32 %v2580, %v4726
      %4728 = vmatprep.mubr.f32.mxu0 %v4727
      %v4729 = vand.u32 %v2388, 4294901760
      %v4730 = vsub.f32 %v2388, %v4729
      %4731 = vmatmul.mubr.f32.gmra.mrb[0].mxu0 %v4730
      %v4732 = vpop.f32.mrb[0].mxu0
      %v4733 = vadd.f32 %v4106, %v4732
      %v4734 = vpop.f32.mrb[0].mxu0
      %v4735 = vand.u32 %v2581, 4294901760
      %v4736 = vsub.f32 %v2581, %v4735
      %4737 = vmatprep.mubr.f32.mxu0 %v4736
      %v4738 = vand.u32 %v2389, 4294901760
      %v4739 = vsub.f32 %v2389, %v4738
      %4740 = vmatmul.mubr.f32.gmra.mrb[0].mxu0 %v4739
      %v4741 = vpop.f32.mrb[0].mxu0
      %v4742 = vadd.f32 %v4113, %v4741
      %v4743 = vpop.f32.mrb[0].mxu0
      %v4744 = vand.u32 %v2582, 4294901760
      %v4745 = vsub.f32 %v2582, %v4744
      %4746 = vmatprep.mubr.f32.mxu0 %v4745
      %v4747 = vand.u32 %v2390, 4294901760
      %v4748 = vsub.f32 %v2390, %v4747
      %4749 = vmatmul.mubr.f32.gmra.mrb[0].mxu0 %v4748
      %v4750 = vpop.f32.mrb[0].mxu0
      %v4751 = vadd.f32 %v4120, %v4750
      %v4752 = vpop.f32.mrb[0].mxu0
      %v4753 = vand.u32 %v2583, 4294901760
      %v4754 = vsub.f32 %v2583, %v4753
      %4755 = vmatprep.mubr.f32.mxu0 %v4754
      %v4756 = vand.u32 %v2391, 4294901760
      %v4757 = vsub.f32 %v2391, %v4756
      %4758 = vmatmul.mubr.f32.gmra.mrb[0].mxu0 %v4757
      %v4759 = vpop.f32.mrb[0].mxu0
      %v4760 = vadd.f32 %v4127, %v4759
      %v4761 = vpop.f32.mrb[0].mxu0
      %v4762 = vand.u32 %v2584, 4294901760
      %v4763 = vsub.f32 %v2584, %v4762
      %4764 = vmatprep.mubr.f32.mxu0 %v4763
      %v4765 = vand.u32 %v2392, 4294901760
      %v4766 = vsub.f32 %v2392, %v4765
      %4767 = vmatmul.mubr.f32.gmra.mrb[0].mxu0 %v4766
      %v4768 = vpop.f32.mrb[0].mxu0
      %v4769 = vadd.f32 %v4134, %v4768
      %v4770 = vpop.f32.mrb[0].mxu0
      %v4771 = vand.u32 %v2585, 4294901760
      %v4772 = vsub.f32 %v2585, %v4771
      %4773 = vmatprep.mubr.f32.mxu0 %v4772
      %v4774 = vand.u32 %v2393, 4294901760
      %v4775 = vsub.f32 %v2393, %v4774
      %4776 = vmatmul.mubr.f32.gmra.mrb[0].mxu0 %v4775
      %v4777 = vpop.f32.mrb[0].mxu0
      %v4778 = vadd.f32 %v4141, %v4777
      %v4779 = vpop.f32.mrb[0].mxu0
      %v4780 = vand.u32 %v2586, 4294901760
      %v4781 = vsub.f32 %v2586, %v4780
      %4782 = vmatprep.mubr.f32.mxu0 %v4781
      %v4783 = vand.u32 %v2394, 4294901760
      %v4784 = vsub.f32 %v2394, %v4783
      %4785 = vmatmul.mubr.f32.gmra.mrb[0].mxu0 %v4784
      %v4786 = vpop.f32.mrb[0].mxu0
      %v4787 = vadd.f32 %v4148, %v4786
      %v4788 = vpop.f32.mrb[0].mxu0
      %v4789 = vand.u32 %v2587, 4294901760
      %v4790 = vsub.f32 %v2587, %v4789
      %4791 = vmatprep.mubr.f32.mxu0 %v4790
      %v4792 = vand.u32 %v2395, 4294901760
      %v4793 = vsub.f32 %v2395, %v4792
      %4794 = vmatmul.mubr.f32.gmra.mrb[0].mxu0 %v4793
      %v4795 = vpop.f32.mrb[0].mxu0
      %v4796 = vadd.f32 %v4155, %v4795
      %v4797 = vpop.f32.mrb[0].mxu0
      %v4798 = vand.u32 %v2588, 4294901760
      %v4799 = vsub.f32 %v2588, %v4798
      %4800 = vmatprep.mubr.f32.mxu0 %v4799
      %v4801 = vand.u32 %v2396, 4294901760
      %v4802 = vsub.f32 %v2396, %v4801
      %4803 = vmatmul.mubr.f32.gmra.mrb[0].mxu0 %v4802
      %v4804 = vpop.f32.mrb[0].mxu0
      %v4805 = vadd.f32 %v4162, %v4804
      %v4806 = vpop.f32.mrb[0].mxu0
      %v4807 = vand.u32 %v2589, 4294901760
      %v4808 = vsub.f32 %v2589, %v4807
      %4809 = vmatprep.mubr.f32.mxu0 %v4808
      %v4810 = vand.u32 %v2397, 4294901760
      %v4811 = vsub.f32 %v2397, %v4810
      %4812 = vmatmul.mubr.f32.gmra.mrb[0].mxu0 %v4811
      %v4813 = vpop.f32.mrb[0].mxu0
      %v4814 = vadd.f32 %v4169, %v4813
      %v4815 = vpop.f32.mrb[0].mxu0
      %v4816 = vand.u32 %v2590, 4294901760
      %v4817 = vsub.f32 %v2590, %v4816
      %4818 = vmatprep.mubr.f32.mxu0 %v4817
      %v4819 = vand.u32 %v2398, 4294901760
      %v4820 = vsub.f32 %v2398, %v4819
      %4821 = vmatmul.mubr.f32.gmra.mrb[0].mxu0 %v4820
      %v4822 = vpop.f32.mrb[0].mxu0
      %v4823 = vadd.f32 %v4176, %v4822
      %v4824 = vpop.f32.mrb[0].mxu0
      %v4825 = vand.u32 %v2591, 4294901760
      %v4826 = vsub.f32 %v2591, %v4825
      %4827 = vmatprep.mubr.f32.mxu0 %v4826
      %v4828 = vand.u32 %v2399, 4294901760
      %v4829 = vsub.f32 %v2399, %v4828
      %4830 = vmatmul.mubr.f32.gmra.mrb[0].mxu0 %v4829
      %v4831 = vpop.f32.mrb[0].mxu0
      %v4832 = vadd.f32 %v4183, %v4831
      %v4833 = vpop.f32.mrb[0].mxu0
      %v4834 = vand.u32 %v2592, 4294901760
      %v4835 = vsub.f32 %v2592, %v4834
      %4836 = vmatprep.mubr.f32.mxu0 %v4835
      %v4837 = vand.u32 %v2400, 4294901760
      %v4838 = vsub.f32 %v2400, %v4837
      %4839 = vmatmul.mubr.f32.gmra.mrb[0].mxu0 %v4838
      %v4840 = vpop.f32.mrb[0].mxu0
      %v4841 = vadd.f32 %v4190, %v4840
      %v4842 = vpop.f32.mrb[0].mxu0
      %v4843 = vand.u32 %v2593, 4294901760
      %v4844 = vsub.f32 %v2593, %v4843
      %4845 = vmatprep.mubr.f32.mxu0 %v4844
      %v4846 = vand.u32 %v2401, 4294901760
      %v4847 = vsub.f32 %v2401, %v4846
      %4848 = vmatmul.mubr.f32.gmra.mrb[0].mxu0 %v4847
      %v4849 = vpop.f32.mrb[0].mxu0
      %v4850 = vadd.f32 %v4197, %v4849
      %v4851 = vpop.f32.mrb[0].mxu0
      %v4852 = vand.u32 %v2594, 4294901760
      %v4853 = vsub.f32 %v2594, %v4852
      %4854 = vmatprep.mubr.f32.mxu0 %v4853
      %v4855 = vand.u32 %v2402, 4294901760
      %v4856 = vsub.f32 %v2402, %v4855
      %4857 = vmatmul.mubr.f32.gmra.mrb[0].mxu0 %v4856
      %v4858 = vpop.f32.mrb[0].mxu0
      %v4859 = vadd.f32 %v4204, %v4858
      %v4860 = vpop.f32.mrb[0].mxu0
      %v4861 = vand.u32 %v2595, 4294901760
      %v4862 = vsub.f32 %v2595, %v4861
      %4863 = vmatprep.mubr.f32.mxu0 %v4862
      %v4864 = vand.u32 %v2403, 4294901760
      %v4865 = vsub.f32 %v2403, %v4864
      %4866 = vmatmul.mubr.f32.gmra.mrb[0].mxu0 %v4865
      %v4867 = vpop.f32.mrb[0].mxu0
      %v4868 = vadd.f32 %v4211, %v4867
      %v4869 = vpop.f32.mrb[0].mxu0
      %v4870 = vand.u32 %v2596, 4294901760
      %v4871 = vsub.f32 %v2596, %v4870
      %4872 = vmatprep.mubr.f32.mxu0 %v4871
      %v4873 = vand.u32 %v2404, 4294901760
      %v4874 = vsub.f32 %v2404, %v4873
      %4875 = vmatmul.mubr.f32.gmra.mrb[0].mxu0 %v4874
      %v4876 = vpop.f32.mrb[0].mxu0
      %v4877 = vadd.f32 %v4218, %v4876
      %v4878 = vpop.f32.mrb[0].mxu0
      %v4879 = vand.u32 %v2597, 4294901760
      %v4880 = vsub.f32 %v2597, %v4879
      %4881 = vmatprep.mubr.f32.mxu0 %v4880
      %v4882 = vand.u32 %v2405, 4294901760
      %v4883 = vsub.f32 %v2405, %v4882
      %4884 = vmatmul.mubr.f32.gmra.mrb[0].mxu0 %v4883
      %v4885 = vpop.f32.mrb[0].mxu0
      %v4886 = vadd.f32 %v4225, %v4885
      %v4887 = vpop.f32.mrb[0].mxu0
      %v4888 = vand.u32 %v2598, 4294901760
      %v4889 = vsub.f32 %v2598, %v4888
      %4890 = vmatprep.mubr.f32.mxu0 %v4889
      %v4891 = vand.u32 %v2406, 4294901760
      %v4892 = vsub.f32 %v2406, %v4891
      %4893 = vmatmul.mubr.f32.gmra.mrb[0].mxu0 %v4892
      %v4894 = vpop.f32.mrb[0].mxu0
      %v4895 = vadd.f32 %v4232, %v4894
      %v4896 = vpop.f32.mrb[0].mxu0
      %v4897 = vand.u32 %v2599, 4294901760
      %v4898 = vsub.f32 %v2599, %v4897
      %4899 = vmatprep.mubr.f32.mxu0 %v4898
      %v4900 = vand.u32 %v2407, 4294901760
      %v4901 = vsub.f32 %v2407, %v4900
      %4902 = vmatmul.mubr.f32.gmra.mrb[0].mxu0 %v4901
      %v4903 = vpop.f32.mrb[0].mxu0
      %v4904 = vadd.f32 %v4239, %v4903
      %v4905 = vpop.f32.mrb[0].mxu0
      %v4906 = vand.u32 %v2600, 4294901760
      %v4907 = vsub.f32 %v2600, %v4906
      %4908 = vmatprep.mubr.f32.mxu0 %v4907
      %v4909 = vand.u32 %v2408, 4294901760
      %v4910 = vsub.f32 %v2408, %v4909
      %4911 = vmatmul.mubr.f32.gmra.mrb[0].mxu0 %v4910
      %v4912 = vpop.f32.mrb[0].mxu0
      %v4913 = vadd.f32 %v4246, %v4912
      %v4914 = vpop.f32.mrb[0].mxu0
      %v4915 = vand.u32 %v2601, 4294901760
      %v4916 = vsub.f32 %v2601, %v4915
      %4917 = vmatprep.mubr.f32.mxu0 %v4916
      %v4918 = vand.u32 %v2409, 4294901760
      %v4919 = vsub.f32 %v2409, %v4918
      %4920 = vmatmul.mubr.f32.gmra.mrb[0].mxu0 %v4919
      %v4921 = vpop.f32.mrb[0].mxu0
      %v4922 = vadd.f32 %v4253, %v4921
      %v4923 = vpop.f32.mrb[0].mxu0
      %v4924 = vand.u32 %v2602, 4294901760
      %v4925 = vsub.f32 %v2602, %v4924
      %4926 = vmatprep.mubr.f32.mxu0 %v4925
      %v4927 = vand.u32 %v2410, 4294901760
      %v4928 = vsub.f32 %v2410, %v4927
      %4929 = vmatmul.mubr.f32.gmra.mrb[0].mxu0 %v4928
      %v4930 = vpop.f32.mrb[0].mxu0
      %v4931 = vadd.f32 %v4260, %v4930
      %v4932 = vpop.f32.mrb[0].mxu0
      %v4933 = vand.u32 %v2603, 4294901760
      %v4934 = vsub.f32 %v2603, %v4933
      %4935 = vmatprep.mubr.f32.mxu0 %v4934
      %v4936 = vand.u32 %v2411, 4294901760
      %v4937 = vsub.f32 %v2411, %v4936
      %4938 = vmatmul.mubr.f32.gmra.mrb[0].mxu0 %v4937
      %v4939 = vpop.f32.mrb[0].mxu0
      %v4940 = vadd.f32 %v4267, %v4939
      %v4941 = vpop.f32.mrb[0].mxu0
      %v4942 = vand.u32 %v2604, 4294901760
      %v4943 = vsub.f32 %v2604, %v4942
      %4944 = vmatprep.mubr.f32.mxu0 %v4943
      %v4945 = vand.u32 %v2412, 4294901760
      %v4946 = vsub.f32 %v2412, %v4945
      %4947 = vmatmul.mubr.f32.gmra.mrb[0].mxu0 %v4946
      %v4948 = vpop.f32.mrb[0].mxu0
      %v4949 = vadd.f32 %v4274, %v4948
      %v4950 = vpop.f32.mrb[0].mxu0
      %v4951 = vand.u32 %v2605, 4294901760
      %v4952 = vsub.f32 %v2605, %v4951
      %4953 = vmatprep.mubr.f32.mxu0 %v4952
      %v4954 = vand.u32 %v2413, 4294901760
      %v4955 = vsub.f32 %v2413, %v4954
      %4956 = vmatmul.mubr.f32.gmra.mrb[0].mxu0 %v4955
      %v4957 = vpop.f32.mrb[0].mxu0
      %v4958 = vadd.f32 %v4281, %v4957
      %v4959 = vpop.f32.mrb[0].mxu0
      %v4960 = vand.u32 %v2606, 4294901760
      %v4961 = vsub.f32 %v2606, %v4960
      %4962 = vmatprep.mubr.f32.mxu0 %v4961
      %v4963 = vand.u32 %v2414, 4294901760
      %v4964 = vsub.f32 %v2414, %v4963
      %4965 = vmatmul.mubr.f32.gmra.mrb[0].mxu0 %v4964
      %v4966 = vpop.f32.mrb[0].mxu0
      %v4967 = vadd.f32 %v4288, %v4966
      %v4968 = vpop.f32.mrb[0].mxu0
      %v4969 = vand.u32 %v2607, 4294901760
      %v4970 = vsub.f32 %v2607, %v4969
      %4971 = vmatprep.mubr.f32.mxu0 %v4970
      %v4972 = vand.u32 %v2415, 4294901760
      %v4973 = vsub.f32 %v2415, %v4972
      %4974 = vmatmul.mubr.f32.gmra.mrb[0].mxu0 %v4973
      %v4975 = vpop.f32.mrb[0].mxu0
      %v4976 = vadd.f32 %v4295, %v4975
      %v4977 = vpop.f32.mrb[0].mxu0
      %v4978 = vand.u32 %v2608, 4294901760
      %v4979 = vsub.f32 %v2608, %v4978
      %4980 = vmatprep.mubr.f32.mxu0 %v4979
      %v4981 = vand.u32 %v2416, 4294901760
      %v4982 = vsub.f32 %v2416, %v4981
      %4983 = vmatmul.mubr.f32.gmra.mrb[0].mxu0 %v4982
      %v4984 = vpop.f32.mrb[0].mxu0
      %v4985 = vadd.f32 %v4302, %v4984
      %v4986 = vpop.f32.mrb[0].mxu0
      %v4987 = vand.u32 %v2609, 4294901760
      %v4988 = vsub.f32 %v2609, %v4987
      %4989 = vmatprep.mubr.f32.mxu0 %v4988
      %v4990 = vand.u32 %v2417, 4294901760
      %v4991 = vsub.f32 %v2417, %v4990
      %4992 = vmatmul.mubr.f32.gmra.mrb[0].mxu0 %v4991
      %v4993 = vpop.f32.mrb[0].mxu0
      %v4994 = vadd.f32 %v4309, %v4993
      %v4995 = vpop.f32.mrb[0].mxu0
      %v4996 = vand.u32 %v2610, 4294901760
      %v4997 = vsub.f32 %v2610, %v4996
      %4998 = vmatprep.mubr.f32.mxu0 %v4997
      %v4999 = vand.u32 %v2418, 4294901760
      %v5000 = vsub.f32 %v2418, %v4999
      %5001 = vmatmul.mubr.f32.gmra.mrb[0].mxu0 %v5000
      %v5002 = vpop.f32.mrb[0].mxu0
      %v5003 = vadd.f32 %v4316, %v5002
      %v5004 = vpop.f32.mrb[0].mxu0
      %v5005 = vand.u32 %v2611, 4294901760
      %v5006 = vsub.f32 %v2611, %v5005
      %5007 = vmatprep.mubr.f32.mxu0 %v5006
      %v5008 = vand.u32 %v2419, 4294901760
      %v5009 = vsub.f32 %v2419, %v5008
      %5010 = vmatmul.mubr.f32.gmra.mrb[0].mxu0 %v5009
      %v5011 = vpop.f32.mrb[0].mxu0
      %v5012 = vadd.f32 %v4323, %v5011
      %v5013 = vpop.f32.mrb[0].mxu0
      %v5014 = vand.u32 %v2612, 4294901760
      %v5015 = vsub.f32 %v2612, %v5014
      %5016 = vmatprep.mubr.f32.mxu0 %v5015
      %v5017 = vand.u32 %v2420, 4294901760
      %v5018 = vsub.f32 %v2420, %v5017
      %5019 = vmatmul.mubr.f32.gmra.mrb[0].mxu0 %v5018
      %v5020 = vpop.f32.mrb[0].mxu0
      %v5021 = vadd.f32 %v4330, %v5020
      %v5022 = vpop.f32.mrb[0].mxu0
      %v5023 = vand.u32 %v2613, 4294901760
      %v5024 = vsub.f32 %v2613, %v5023
      %5025 = vmatprep.mubr.f32.mxu0 %v5024
      %v5026 = vand.u32 %v2421, 4294901760
      %v5027 = vsub.f32 %v2421, %v5026
      %5028 = vmatmul.mubr.f32.gmra.mrb[0].mxu0 %v5027
      %v5029 = vpop.f32.mrb[0].mxu0
      %v5030 = vadd.f32 %v4337, %v5029
      %v5031 = vpop.f32.mrb[0].mxu0
      %v5032 = vand.u32 %v2614, 4294901760
      %v5033 = vsub.f32 %v2614, %v5032
      %5034 = vmatprep.mubr.f32.mxu0 %v5033
      %v5035 = vand.u32 %v2422, 4294901760
      %v5036 = vsub.f32 %v2422, %v5035
      %5037 = vmatmul.mubr.f32.gmra.mrb[0].mxu0 %v5036
      %v5038 = vpop.f32.mrb[0].mxu0
      %v5039 = vadd.f32 %v4344, %v5038
      %v5040 = vpop.f32.mrb[0].mxu0
      %v5041 = vand.u32 %v2615, 4294901760
      %v5042 = vsub.f32 %v2615, %v5041
      %5043 = vmatprep.mubr.f32.mxu0 %v5042
      %v5044 = vand.u32 %v2423, 4294901760
      %v5045 = vsub.f32 %v2423, %v5044
      %5046 = vmatmul.mubr.f32.gmra.mrb[0].mxu0 %v5045
      %v5047 = vpop.f32.mrb[0].mxu0
      %v5048 = vadd.f32 %v4351, %v5047
      %v5049 = vpop.f32.mrb[0].mxu0
      %v5050 = vand.u32 %v2616, 4294901760
      %v5051 = vsub.f32 %v2616, %v5050
      %5052 = vmatprep.mubr.f32.mxu0 %v5051
      %v5053 = vand.u32 %v2424, 4294901760
      %v5054 = vsub.f32 %v2424, %v5053
      %5055 = vmatmul.mubr.f32.gmra.mrb[0].mxu0 %v5054
      %v5056 = vpop.f32.mrb[0].mxu0
      %v5057 = vadd.f32 %v4358, %v5056
      %v5058 = vpop.f32.mrb[0].mxu0
      %v5059 = vand.u32 %v2617, 4294901760
      %v5060 = vsub.f32 %v2617, %v5059
      %5061 = vmatprep.mubr.f32.mxu0 %v5060
      %v5062 = vand.u32 %v2425, 4294901760
      %v5063 = vsub.f32 %v2425, %v5062
      %5064 = vmatmul.mubr.f32.gmra.mrb[0].mxu0 %v5063
      %v5065 = vpop.f32.mrb[0].mxu0
      %v5066 = vadd.f32 %v4365, %v5065
      %v5067 = vpop.f32.mrb[0].mxu0
      %v5068 = vand.u32 %v2618, 4294901760
      %v5069 = vsub.f32 %v2618, %v5068
      %5070 = vmatprep.mubr.f32.mxu0 %v5069
      %v5071 = vand.u32 %v2426, 4294901760
      %v5072 = vsub.f32 %v2426, %v5071
      %5073 = vmatmul.mubr.f32.gmra.mrb[0].mxu0 %v5072
      %v5074 = vpop.f32.mrb[0].mxu0
      %v5075 = vadd.f32 %v4372, %v5074
      %v5076 = vpop.f32.mrb[0].mxu0
      %v5077 = vand.u32 %v2619, 4294901760
      %v5078 = vsub.f32 %v2619, %v5077
      %5079 = vmatprep.mubr.f32.mxu0 %v5078
      %v5080 = vand.u32 %v2427, 4294901760
      %v5081 = vsub.f32 %v2427, %v5080
      %5082 = vmatmul.mubr.f32.gmra.mrb[0].mxu0 %v5081
      %v5083 = vpop.f32.mrb[0].mxu0
      %v5084 = vadd.f32 %v4379, %v5083
      %v5085 = vpop.f32.mrb[0].mxu0
      %5086 = vdwg.mxu0
      %5087 = vmatprep.subr.mxu0 0.0
      %v5088 = vand.u32 %v2620, 4294901760
      %5089 = vmatpush1.msra.mxu0 %v5088
      %5090 = vmatprep.subr.mxu0 0.0
      %v5091 = vand.u32 %v2621, 4294901760
      %5092 = vmatpush1.msra.mxu0 %v5091
      %5093 = vmatprep.subr.mxu0 0.0
      %v5094 = vand.u32 %v2622, 4294901760
      %5095 = vmatpush1.msra.mxu0 %v5094
      %5096 = vmatprep.subr.mxu0 0.0
      %v5097 = vand.u32 %v2623, 4294901760
      %5098 = vmatpush1.msra.mxu0 %v5097
      %5099 = vmatprep.subr.mxu0 0.0
      %v5100 = vand.u32 %v2624, 4294901760
      %5101 = vmatpush1.msra.mxu0 %v5100
      %5102 = vmatprep.subr.mxu0 0.0
      %v5103 = vand.u32 %v2625, 4294901760
      %5104 = vmatpush1.msra.mxu0 %v5103
      %5105 = vmatprep.subr.mxu0 0.0
      %v5106 = vand.u32 %v2626, 4294901760
      %5107 = vmatpush1.msra.mxu0 %v5106
      %5108 = vmatprep.subr.mxu0 0.0
      %v5109 = vand.u32 %v2627, 4294901760
      %5110 = vmatpush1.msra.mxu0 %v5109
      %5111 = vmatprep.subr.mxu0 0.0
      %v5112 = vand.u32 %v2628, 4294901760
      %5113 = vmatpush1.msra.mxu0 %v5112
      %5114 = vmatprep.subr.mxu0 0.0
      %v5115 = vand.u32 %v2629, 4294901760
      %5116 = vmatpush1.msra.mxu0 %v5115
      %5117 = vmatprep.subr.mxu0 0.0
      %v5118 = vand.u32 %v2630, 4294901760
      %5119 = vmatpush1.msra.mxu0 %v5118
      %5120 = vmatprep.subr.mxu0 0.0
      %v5121 = vand.u32 %v2631, 4294901760
      %5122 = vmatpush1.msra.mxu0 %v5121
      %5123 = vmatprep.subr.mxu0 0.0
      %v5124 = vand.u32 %v2632, 4294901760
      %5125 = vmatpush1.msra.mxu0 %v5124
      %5126 = vmatprep.subr.mxu0 0.0
      %v5127 = vand.u32 %v2633, 4294901760
      %5128 = vmatpush1.msra.mxu0 %v5127
      %5129 = vmatprep.subr.mxu0 0.0
      %v5130 = vand.u32 %v2634, 4294901760
      %5131 = vmatpush1.msra.mxu0 %v5130
      %5132 = vmatprep.subr.mxu0 0.0
      %v5133 = vand.u32 %v2635, 4294901760
      %5134 = vmatpush1.msra.mxu0 %v5133
      %5135 = vmatprep.subr.mxu0 0.0
      %v5136 = vand.u32 %v2636, 4294901760
      %5137 = vmatpush1.msra.mxu0 %v5136
      %5138 = vmatprep.subr.mxu0 0.0
      %v5139 = vand.u32 %v2637, 4294901760
      %5140 = vmatpush1.msra.mxu0 %v5139
      %5141 = vmatprep.subr.mxu0 0.0
      %v5142 = vand.u32 %v2638, 4294901760
      %5143 = vmatpush1.msra.mxu0 %v5142
      %5144 = vmatprep.subr.mxu0 0.0
      %v5145 = vand.u32 %v2639, 4294901760
      %5146 = vmatpush1.msra.mxu0 %v5145
      %5147 = vmatprep.subr.mxu0 0.0
      %v5148 = vand.u32 %v2640, 4294901760
      %5149 = vmatpush1.msra.mxu0 %v5148
      %5150 = vmatprep.subr.mxu0 0.0
      %v5151 = vand.u32 %v2641, 4294901760
      %5152 = vmatpush1.msra.mxu0 %v5151
      %5153 = vmatprep.subr.mxu0 0.0
      %v5154 = vand.u32 %v2642, 4294901760
      %5155 = vmatpush1.msra.mxu0 %v5154
      %5156 = vmatprep.subr.mxu0 0.0
      %v5157 = vand.u32 %v2643, 4294901760
      %5158 = vmatpush1.msra.mxu0 %v5157
      %5159 = vmatprep.subr.mxu0 0.0
      %v5160 = vand.u32 %v2644, 4294901760
      %5161 = vmatpush1.msra.mxu0 %v5160
      %5162 = vmatprep.subr.mxu0 0.0
      %v5163 = vand.u32 %v2645, 4294901760
      %5164 = vmatpush1.msra.mxu0 %v5163
      %5165 = vmatprep.subr.mxu0 0.0
      %v5166 = vand.u32 %v2646, 4294901760
      %5167 = vmatpush1.msra.mxu0 %v5166
      %5168 = vmatprep.subr.mxu0 0.0
      %v5169 = vand.u32 %v2647, 4294901760
      %5170 = vmatpush1.msra.mxu0 %v5169
      %5171 = vmatprep.subr.mxu0 0.0
      %v5172 = vand.u32 %v2648, 4294901760
      %5173 = vmatpush1.msra.mxu0 %v5172
      %5174 = vmatprep.subr.mxu0 0.0
      %v5175 = vand.u32 %v2649, 4294901760
      %5176 = vmatpush1.msra.mxu0 %v5175
      %5177 = vmatprep.subr.mxu0 0.0
      %v5178 = vand.u32 %v2650, 4294901760
      %5179 = vmatpush1.msra.mxu0 %v5178
      %5180 = vmatprep.subr.mxu0 0.0
      %v5181 = vand.u32 %v2651, 4294901760
      %5182 = vmatpush1.msra.mxu0 %v5181
      %v5183 = vand.u32 %v2556, 4294901760
      %v5184 = vsub.f32 %v2556, %v5183
      %v5185 = vand.u32 %v5184, 4294901760
      %5186 = vmatprep.mubr.f32.mxu0 %v5185
      %v5187 = vand.u32 %v2364, 4294901760
      %v5188 = vsub.f32 %v2364, %v5187
      %v5189 = vand.u32 %v5188, 4294901760
      %5190 = vmatmul.mubr.f32.gmra.mrb[0].mxu0 %v5189
      %v5191 = vpop.f32.mrb[0].mxu0
      %v5192 = vadd.f32 %v4517, %v5191
      %v5193 = vpop.f32.mrb[0].mxu0
      %v5194 = vand.u32 %v2557, 4294901760
      %v5195 = vsub.f32 %v2557, %v5194
      %v5196 = vand.u32 %v5195, 4294901760
      %5197 = vmatprep.mubr.f32.mxu0 %v5196
      %v5198 = vand.u32 %v2365, 4294901760
      %v5199 = vsub.f32 %v2365, %v5198
      %v5200 = vand.u32 %v5199, 4294901760
      %5201 = vmatmul.mubr.f32.gmra.mrb[0].mxu0 %v5200
      %v5202 = vpop.f32.mrb[0].mxu0
      %v5203 = vadd.f32 %v4526, %v5202
      %v5204 = vpop.f32.mrb[0].mxu0
      %v5205 = vand.u32 %v2558, 4294901760
      %v5206 = vsub.f32 %v2558, %v5205
      %v5207 = vand.u32 %v5206, 4294901760
      %5208 = vmatprep.mubr.f32.mxu0 %v5207
      %v5209 = vand.u32 %v2366, 4294901760
      %v5210 = vsub.f32 %v2366, %v5209
      %v5211 = vand.u32 %v5210, 4294901760
      %5212 = vmatmul.mubr.f32.gmra.mrb[0].mxu0 %v5211
      %v5213 = vpop.f32.mrb[0].mxu0
      %v5214 = vadd.f32 %v4535, %v5213
      %v5215 = vpop.f32.mrb[0].mxu0
      %v5216 = vand.u32 %v2559, 4294901760
      %v5217 = vsub.f32 %v2559, %v5216
      %v5218 = vand.u32 %v5217, 4294901760
      %5219 = vmatprep.mubr.f32.mxu0 %v5218
      %v5220 = vand.u32 %v2367, 4294901760
      %v5221 = vsub.f32 %v2367, %v5220
      %v5222 = vand.u32 %v5221, 4294901760
      %5223 = vmatmul.mubr.f32.gmra.mrb[0].mxu0 %v5222
      %v5224 = vpop.f32.mrb[0].mxu0
      %v5225 = vadd.f32 %v4544, %v5224
      %v5226 = vpop.f32.mrb[0].mxu0
      %v5227 = vand.u32 %v2560, 4294901760
      %v5228 = vsub.f32 %v2560, %v5227
      %v5229 = vand.u32 %v5228, 4294901760
      %5230 = vmatprep.mubr.f32.mxu0 %v5229
      %v5231 = vand.u32 %v2368, 4294901760
      %v5232 = vsub.f32 %v2368, %v5231
      %v5233 = vand.u32 %v5232, 4294901760
      %5234 = vmatmul.mubr.f32.gmra.mrb[0].mxu0 %v5233
      %v5235 = vpop.f32.mrb[0].mxu0
      %v5236 = vadd.f32 %v4553, %v5235
      %v5237 = vpop.f32.mrb[0].mxu0
      %v5238 = vand.u32 %v2561, 4294901760
      %v5239 = vsub.f32 %v2561, %v5238
      %v5240 = vand.u32 %v5239, 4294901760
      %5241 = vmatprep.mubr.f32.mxu0 %v5240
      %v5242 = vand.u32 %v2369, 4294901760
      %v5243 = vsub.f32 %v2369, %v5242
      %v5244 = vand.u32 %v5243, 4294901760
      %5245 = vmatmul.mubr.f32.gmra.mrb[0].mxu0 %v5244
      %v5246 = vpop.f32.mrb[0].mxu0
      %v5247 = vadd.f32 %v4562, %v5246
      %v5248 = vpop.f32.mrb[0].mxu0
      %v5249 = vand.u32 %v2562, 4294901760
      %v5250 = vsub.f32 %v2562, %v5249
      %v5251 = vand.u32 %v5250, 4294901760
      %5252 = vmatprep.mubr.f32.mxu0 %v5251
      %v5253 = vand.u32 %v2370, 4294901760
      %v5254 = vsub.f32 %v2370, %v5253
      %v5255 = vand.u32 %v5254, 4294901760
      %5256 = vmatmul.mubr.f32.gmra.mrb[0].mxu0 %v5255
      %v5257 = vpop.f32.mrb[0].mxu0
      %v5258 = vadd.f32 %v4571, %v5257
      %v5259 = vpop.f32.mrb[0].mxu0
      %v5260 = vand.u32 %v2563, 4294901760
      %v5261 = vsub.f32 %v2563, %v5260
      %v5262 = vand.u32 %v5261, 4294901760
      %5263 = vmatprep.mubr.f32.mxu0 %v5262
      %v5264 = vand.u32 %v2371, 4294901760
      %v5265 = vsub.f32 %v2371, %v5264
      %v5266 = vand.u32 %v5265, 4294901760
      %5267 = vmatmul.mubr.f32.gmra.mrb[0].mxu0 %v5266
      %v5268 = vpop.f32.mrb[0].mxu0
      %v5269 = vadd.f32 %v4580, %v5268
      %v5270 = vpop.f32.mrb[0].mxu0
      %v5271 = vand.u32 %v2564, 4294901760
      %v5272 = vsub.f32 %v2564, %v5271
      %v5273 = vand.u32 %v5272, 4294901760
      %5274 = vmatprep.mubr.f32.mxu0 %v5273
      %v5275 = vand.u32 %v2372, 4294901760
      %v5276 = vsub.f32 %v2372, %v5275
      %v5277 = vand.u32 %v5276, 4294901760
      %5278 = vmatmul.mubr.f32.gmra.mrb[0].mxu0 %v5277
      %v5279 = vpop.f32.mrb[0].mxu0
      %v5280 = vadd.f32 %v4589, %v5279
      %v5281 = vpop.f32.mrb[0].mxu0
      %v5282 = vand.u32 %v2565, 4294901760
      %v5283 = vsub.f32 %v2565, %v5282
      %v5284 = vand.u32 %v5283, 4294901760
      %5285 = vmatprep.mubr.f32.mxu0 %v5284
      %v5286 = vand.u32 %v2373, 4294901760
      %v5287 = vsub.f32 %v2373, %v5286
      %v5288 = vand.u32 %v5287, 4294901760
      %5289 = vmatmul.mubr.f32.gmra.mrb[0].mxu0 %v5288
      %v5290 = vpop.f32.mrb[0].mxu0
      %v5291 = vadd.f32 %v4598, %v5290
      %v5292 = vpop.f32.mrb[0].mxu0
      %v5293 = vand.u32 %v2566, 4294901760
      %v5294 = vsub.f32 %v2566, %v5293
      %v5295 = vand.u32 %v5294, 4294901760
      %5296 = vmatprep.mubr.f32.mxu0 %v5295
      %v5297 = vand.u32 %v2374, 4294901760
      %v5298 = vsub.f32 %v2374, %v5297
      %v5299 = vand.u32 %v5298, 4294901760
      %5300 = vmatmul.mubr.f32.gmra.mrb[0].mxu0 %v5299
      %v5301 = vpop.f32.mrb[0].mxu0
      %v5302 = vadd.f32 %v4607, %v5301
      %v5303 = vpop.f32.mrb[0].mxu0
      %v5304 = vand.u32 %v2567, 4294901760
      %v5305 = vsub.f32 %v2567, %v5304
      %v5306 = vand.u32 %v5305, 4294901760
      %5307 = vmatprep.mubr.f32.mxu0 %v5306
      %v5308 = vand.u32 %v2375, 4294901760
      %v5309 = vsub.f32 %v2375, %v5308
      %v5310 = vand.u32 %v5309, 4294901760
      %5311 = vmatmul.mubr.f32.gmra.mrb[0].mxu0 %v5310
      %v5312 = vpop.f32.mrb[0].mxu0
      %v5313 = vadd.f32 %v4616, %v5312
      %v5314 = vpop.f32.mrb[0].mxu0
      %v5315 = vand.u32 %v2568, 4294901760
      %v5316 = vsub.f32 %v2568, %v5315
      %v5317 = vand.u32 %v5316, 4294901760
      %5318 = vmatprep.mubr.f32.mxu0 %v5317
      %v5319 = vand.u32 %v2376, 4294901760
      %v5320 = vsub.f32 %v2376, %v5319
      %v5321 = vand.u32 %v5320, 4294901760
      %5322 = vmatmul.mubr.f32.gmra.mrb[0].mxu0 %v5321
      %v5323 = vpop.f32.mrb[0].mxu0
      %v5324 = vadd.f32 %v4625, %v5323
      %v5325 = vpop.f32.mrb[0].mxu0
      %v5326 = vand.u32 %v2569, 4294901760
      %v5327 = vsub.f32 %v2569, %v5326
      %v5328 = vand.u32 %v5327, 4294901760
      %5329 = vmatprep.mubr.f32.mxu0 %v5328
      %v5330 = vand.u32 %v2377, 4294901760
      %v5331 = vsub.f32 %v2377, %v5330
      %v5332 = vand.u32 %v5331, 4294901760
      %5333 = vmatmul.mubr.f32.gmra.mrb[0].mxu0 %v5332
      %v5334 = vpop.f32.mrb[0].mxu0
      %v5335 = vadd.f32 %v4634, %v5334
      %v5336 = vpop.f32.mrb[0].mxu0
      %v5337 = vand.u32 %v2570, 4294901760
      %v5338 = vsub.f32 %v2570, %v5337
      %v5339 = vand.u32 %v5338, 4294901760
      %5340 = vmatprep.mubr.f32.mxu0 %v5339
      %v5341 = vand.u32 %v2378, 4294901760
      %v5342 = vsub.f32 %v2378, %v5341
      %v5343 = vand.u32 %v5342, 4294901760
      %5344 = vmatmul.mubr.f32.gmra.mrb[0].mxu0 %v5343
      %v5345 = vpop.f32.mrb[0].mxu0
      %v5346 = vadd.f32 %v4643, %v5345
      %v5347 = vpop.f32.mrb[0].mxu0
      %v5348 = vand.u32 %v2571, 4294901760
      %v5349 = vsub.f32 %v2571, %v5348
      %v5350 = vand.u32 %v5349, 4294901760
      %5351 = vmatprep.mubr.f32.mxu0 %v5350
      %v5352 = vand.u32 %v2379, 4294901760
      %v5353 = vsub.f32 %v2379, %v5352
      %v5354 = vand.u32 %v5353, 4294901760
      %5355 = vmatmul.mubr.f32.gmra.mrb[0].mxu0 %v5354
      %v5356 = vpop.f32.mrb[0].mxu0
      %v5357 = vadd.f32 %v4652, %v5356
      %v5358 = vpop.f32.mrb[0].mxu0
      %v5359 = vand.u32 %v2572, 4294901760
      %v5360 = vsub.f32 %v2572, %v5359
      %v5361 = vand.u32 %v5360, 4294901760
      %5362 = vmatprep.mubr.f32.mxu0 %v5361
      %v5363 = vand.u32 %v2380, 4294901760
      %v5364 = vsub.f32 %v2380, %v5363
      %v5365 = vand.u32 %v5364, 4294901760
      %5366 = vmatmul.mubr.f32.gmra.mrb[0].mxu0 %v5365
      %v5367 = vpop.f32.mrb[0].mxu0
      %v5368 = vadd.f32 %v4661, %v5367
      %v5369 = vpop.f32.mrb[0].mxu0
      %v5370 = vand.u32 %v2573, 4294901760
      %v5371 = vsub.f32 %v2573, %v5370
      %v5372 = vand.u32 %v5371, 4294901760
      %5373 = vmatprep.mubr.f32.mxu0 %v5372
      %v5374 = vand.u32 %v2381, 4294901760
      %v5375 = vsub.f32 %v2381, %v5374
      %v5376 = vand.u32 %v5375, 4294901760
      %5377 = vmatmul.mubr.f32.gmra.mrb[0].mxu0 %v5376
      %v5378 = vpop.f32.mrb[0].mxu0
      %v5379 = vadd.f32 %v4670, %v5378
      %v5380 = vpop.f32.mrb[0].mxu0
      %v5381 = vand.u32 %v2574, 4294901760
      %v5382 = vsub.f32 %v2574, %v5381
      %v5383 = vand.u32 %v5382, 4294901760
      %5384 = vmatprep.mubr.f32.mxu0 %v5383
      %v5385 = vand.u32 %v2382, 4294901760
      %v5386 = vsub.f32 %v2382, %v5385
      %v5387 = vand.u32 %v5386, 4294901760
      %5388 = vmatmul.mubr.f32.gmra.mrb[0].mxu0 %v5387
      %v5389 = vpop.f32.mrb[0].mxu0
      %v5390 = vadd.f32 %v4679, %v5389
      %v5391 = vpop.f32.mrb[0].mxu0
      %v5392 = vand.u32 %v2575, 4294901760
      %v5393 = vsub.f32 %v2575, %v5392
      %v5394 = vand.u32 %v5393, 4294901760
      %5395 = vmatprep.mubr.f32.mxu0 %v5394
      %v5396 = vand.u32 %v2383, 4294901760
      %v5397 = vsub.f32 %v2383, %v5396
      %v5398 = vand.u32 %v5397, 4294901760
      %5399 = vmatmul.mubr.f32.gmra.mrb[0].mxu0 %v5398
      %v5400 = vpop.f32.mrb[0].mxu0
      %v5401 = vadd.f32 %v4688, %v5400
      %v5402 = vpop.f32.mrb[0].mxu0
      %v5403 = vand.u32 %v2576, 4294901760
      %v5404 = vsub.f32 %v2576, %v5403
      %v5405 = vand.u32 %v5404, 4294901760
      %5406 = vmatprep.mubr.f32.mxu0 %v5405
      %v5407 = vand.u32 %v2384, 4294901760
      %v5408 = vsub.f32 %v2384, %v5407
      %v5409 = vand.u32 %v5408, 4294901760
      %5410 = vmatmul.mubr.f32.gmra.mrb[0].mxu0 %v5409
      %v5411 = vpop.f32.mrb[0].mxu0
      %v5412 = vadd.f32 %v4697, %v5411
      %v5413 = vpop.f32.mrb[0].mxu0
      %v5414 = vand.u32 %v2577, 4294901760
      %v5415 = vsub.f32 %v2577, %v5414
      %v5416 = vand.u32 %v5415, 4294901760
      %5417 = vmatprep.mubr.f32.mxu0 %v5416
      %v5418 = vand.u32 %v2385, 4294901760
      %v5419 = vsub.f32 %v2385, %v5418
      %v5420 = vand.u32 %v5419, 4294901760
      %5421 = vmatmul.mubr.f32.gmra.mrb[0].mxu0 %v5420
      %v5422 = vpop.f32.mrb[0].mxu0
      %v5423 = vadd.f32 %v4706, %v5422
      %v5424 = vpop.f32.mrb[0].mxu0
      %v5425 = vand.u32 %v2578, 4294901760
      %v5426 = vsub.f32 %v2578, %v5425
      %v5427 = vand.u32 %v5426, 4294901760
      %5428 = vmatprep.mubr.f32.mxu0 %v5427
      %v5429 = vand.u32 %v2386, 4294901760
      %v5430 = vsub.f32 %v2386, %v5429
      %v5431 = vand.u32 %v5430, 4294901760
      %5432 = vmatmul.mubr.f32.gmra.mrb[0].mxu0 %v5431
      %v5433 = vpop.f32.mrb[0].mxu0
      %v5434 = vadd.f32 %v4715, %v5433
      %v5435 = vpop.f32.mrb[0].mxu0
      %v5436 = vand.u32 %v2579, 4294901760
      %v5437 = vsub.f32 %v2579, %v5436
      %v5438 = vand.u32 %v5437, 4294901760
      %5439 = vmatprep.mubr.f32.mxu0 %v5438
      %v5440 = vand.u32 %v2387, 4294901760
      %v5441 = vsub.f32 %v2387, %v5440
      %v5442 = vand.u32 %v5441, 4294901760
      %5443 = vmatmul.mubr.f32.gmra.mrb[0].mxu0 %v5442
      %v5444 = vpop.f32.mrb[0].mxu0
      %v5445 = vadd.f32 %v4724, %v5444
      %v5446 = vpop.f32.mrb[0].mxu0
      %v5447 = vand.u32 %v2580, 4294901760
      %v5448 = vsub.f32 %v2580, %v5447
      %v5449 = vand.u32 %v5448, 4294901760
      %5450 = vmatprep.mubr.f32.mxu0 %v5449
      %v5451 = vand.u32 %v2388, 4294901760
      %v5452 = vsub.f32 %v2388, %v5451
      %v5453 = vand.u32 %v5452, 4294901760
      %5454 = vmatmul.mubr.f32.gmra.mrb[0].mxu0 %v5453
      %v5455 = vpop.f32.mrb[0].mxu0
      %v5456 = vadd.f32 %v4733, %v5455
      %v5457 = vpop.f32.mrb[0].mxu0
      %v5458 = vand.u32 %v2581, 4294901760
      %v5459 = vsub.f32 %v2581, %v5458
      %v5460 = vand.u32 %v5459, 4294901760
      %5461 = vmatprep.mubr.f32.mxu0 %v5460
      %v5462 = vand.u32 %v2389, 4294901760
      %v5463 = vsub.f32 %v2389, %v5462
      %v5464 = vand.u32 %v5463, 4294901760
      %5465 = vmatmul.mubr.f32.gmra.mrb[0].mxu0 %v5464
      %v5466 = vpop.f32.mrb[0].mxu0
      %v5467 = vadd.f32 %v4742, %v5466
      %v5468 = vpop.f32.mrb[0].mxu0
      %v5469 = vand.u32 %v2582, 4294901760
      %v5470 = vsub.f32 %v2582, %v5469
      %v5471 = vand.u32 %v5470, 4294901760
      %5472 = vmatprep.mubr.f32.mxu0 %v5471
      %v5473 = vand.u32 %v2390, 4294901760
      %v5474 = vsub.f32 %v2390, %v5473
      %v5475 = vand.u32 %v5474, 4294901760
      %5476 = vmatmul.mubr.f32.gmra.mrb[0].mxu0 %v5475
      %v5477 = vpop.f32.mrb[0].mxu0
      %v5478 = vadd.f32 %v4751, %v5477
      %v5479 = vpop.f32.mrb[0].mxu0
      %v5480 = vand.u32 %v2583, 4294901760
      %v5481 = vsub.f32 %v2583, %v5480
      %v5482 = vand.u32 %v5481, 4294901760
      %5483 = vmatprep.mubr.f32.mxu0 %v5482
      %v5484 = vand.u32 %v2391, 4294901760
      %v5485 = vsub.f32 %v2391, %v5484
      %v5486 = vand.u32 %v5485, 4294901760
      %5487 = vmatmul.mubr.f32.gmra.mrb[0].mxu0 %v5486
      %v5488 = vpop.f32.mrb[0].mxu0
      %v5489 = vadd.f32 %v4760, %v5488
      %v5490 = vpop.f32.mrb[0].mxu0
      %v5491 = vand.u32 %v2584, 4294901760
      %v5492 = vsub.f32 %v2584, %v5491
      %v5493 = vand.u32 %v5492, 4294901760
      %5494 = vmatprep.mubr.f32.mxu0 %v5493
      %v5495 = vand.u32 %v2392, 4294901760
      %v5496 = vsub.f32 %v2392, %v5495
      %v5497 = vand.u32 %v5496, 4294901760
      %5498 = vmatmul.mubr.f32.gmra.mrb[0].mxu0 %v5497
      %v5499 = vpop.f32.mrb[0].mxu0
      %v5500 = vadd.f32 %v4769, %v5499
      %v5501 = vpop.f32.mrb[0].mxu0
      %v5502 = vand.u32 %v2585, 4294901760
      %v5503 = vsub.f32 %v2585, %v5502
      %v5504 = vand.u32 %v5503, 4294901760
      %5505 = vmatprep.mubr.f32.mxu0 %v5504
      %v5506 = vand.u32 %v2393, 4294901760
      %v5507 = vsub.f32 %v2393, %v5506
      %v5508 = vand.u32 %v5507, 4294901760
      %5509 = vmatmul.mubr.f32.gmra.mrb[0].mxu0 %v5508
      %v5510 = vpop.f32.mrb[0].mxu0
      %v5511 = vadd.f32 %v4778, %v5510
      %v5512 = vpop.f32.mrb[0].mxu0
      %v5513 = vand.u32 %v2586, 4294901760
      %v5514 = vsub.f32 %v2586, %v5513
      %v5515 = vand.u32 %v5514, 4294901760
      %5516 = vmatprep.mubr.f32.mxu0 %v5515
      %v5517 = vand.u32 %v2394, 4294901760
      %v5518 = vsub.f32 %v2394, %v5517
      %v5519 = vand.u32 %v5518, 4294901760
      %5520 = vmatmul.mubr.f32.gmra.mrb[0].mxu0 %v5519
      %v5521 = vpop.f32.mrb[0].mxu0
      %v5522 = vadd.f32 %v4787, %v5521
      %v5523 = vpop.f32.mrb[0].mxu0
      %v5524 = vand.u32 %v2587, 4294901760
      %v5525 = vsub.f32 %v2587, %v5524
      %v5526 = vand.u32 %v5525, 4294901760
      %5527 = vmatprep.mubr.f32.mxu0 %v5526
      %v5528 = vand.u32 %v2395, 4294901760
      %v5529 = vsub.f32 %v2395, %v5528
      %v5530 = vand.u32 %v5529, 4294901760
      %5531 = vmatmul.mubr.f32.gmra.mrb[0].mxu0 %v5530
      %v5532 = vpop.f32.mrb[0].mxu0
      %v5533 = vadd.f32 %v4796, %v5532
      %v5534 = vpop.f32.mrb[0].mxu0
      %v5535 = vand.u32 %v2588, 4294901760
      %v5536 = vsub.f32 %v2588, %v5535
      %v5537 = vand.u32 %v5536, 4294901760
      %5538 = vmatprep.mubr.f32.mxu0 %v5537
      %v5539 = vand.u32 %v2396, 4294901760
      %v5540 = vsub.f32 %v2396, %v5539
      %v5541 = vand.u32 %v5540, 4294901760
      %5542 = vmatmul.mubr.f32.gmra.mrb[0].mxu0 %v5541
      %v5543 = vpop.f32.mrb[0].mxu0
      %v5544 = vadd.f32 %v4805, %v5543
      %v5545 = vpop.f32.mrb[0].mxu0
      %v5546 = vand.u32 %v2589, 4294901760
      %v5547 = vsub.f32 %v2589, %v5546
      %v5548 = vand.u32 %v5547, 4294901760
      %5549 = vmatprep.mubr.f32.mxu0 %v5548
      %v5550 = vand.u32 %v2397, 4294901760
      %v5551 = vsub.f32 %v2397, %v5550
      %v5552 = vand.u32 %v5551, 4294901760
      %5553 = vmatmul.mubr.f32.gmra.mrb[0].mxu0 %v5552
      %v5554 = vpop.f32.mrb[0].mxu0
      %v5555 = vadd.f32 %v4814, %v5554
      %v5556 = vpop.f32.mrb[0].mxu0
      %v5557 = vand.u32 %v2590, 4294901760
      %v5558 = vsub.f32 %v2590, %v5557
      %v5559 = vand.u32 %v5558, 4294901760
      %5560 = vmatprep.mubr.f32.mxu0 %v5559
      %v5561 = vand.u32 %v2398, 4294901760
      %v5562 = vsub.f32 %v2398, %v5561
      %v5563 = vand.u32 %v5562, 4294901760
      %5564 = vmatmul.mubr.f32.gmra.mrb[0].mxu0 %v5563
      %v5565 = vpop.f32.mrb[0].mxu0
      %v5566 = vadd.f32 %v4823, %v5565
      %v5567 = vpop.f32.mrb[0].mxu0
      %v5568 = vand.u32 %v2591, 4294901760
      %v5569 = vsub.f32 %v2591, %v5568
      %v5570 = vand.u32 %v5569, 4294901760
      %5571 = vmatprep.mubr.f32.mxu0 %v5570
      %v5572 = vand.u32 %v2399, 4294901760
      %v5573 = vsub.f32 %v2399, %v5572
      %v5574 = vand.u32 %v5573, 4294901760
      %5575 = vmatmul.mubr.f32.gmra.mrb[0].mxu0 %v5574
      %v5576 = vpop.f32.mrb[0].mxu0
      %v5577 = vadd.f32 %v4832, %v5576
      %v5578 = vpop.f32.mrb[0].mxu0
      %v5579 = vand.u32 %v2592, 4294901760
      %v5580 = vsub.f32 %v2592, %v5579
      %v5581 = vand.u32 %v5580, 4294901760
      %5582 = vmatprep.mubr.f32.mxu0 %v5581
      %v5583 = vand.u32 %v2400, 4294901760
      %v5584 = vsub.f32 %v2400, %v5583
      %v5585 = vand.u32 %v5584, 4294901760
      %5586 = vmatmul.mubr.f32.gmra.mrb[0].mxu0 %v5585
      %v5587 = vpop.f32.mrb[0].mxu0
      %v5588 = vadd.f32 %v4841, %v5587
      %v5589 = vpop.f32.mrb[0].mxu0
      %v5590 = vand.u32 %v2593, 4294901760
      %v5591 = vsub.f32 %v2593, %v5590
      %v5592 = vand.u32 %v5591, 4294901760
      %5593 = vmatprep.mubr.f32.mxu0 %v5592
      %v5594 = vand.u32 %v2401, 4294901760
      %v5595 = vsub.f32 %v2401, %v5594
      %v5596 = vand.u32 %v5595, 4294901760
      %5597 = vmatmul.mubr.f32.gmra.mrb[0].mxu0 %v5596
      %v5598 = vpop.f32.mrb[0].mxu0
      %v5599 = vadd.f32 %v4850, %v5598
      %v5600 = vpop.f32.mrb[0].mxu0
      %v5601 = vand.u32 %v2594, 4294901760
      %v5602 = vsub.f32 %v2594, %v5601
      %v5603 = vand.u32 %v5602, 4294901760
      %5604 = vmatprep.mubr.f32.mxu0 %v5603
      %v5605 = vand.u32 %v2402, 4294901760
      %v5606 = vsub.f32 %v2402, %v5605
      %v5607 = vand.u32 %v5606, 4294901760
      %5608 = vmatmul.mubr.f32.gmra.mrb[0].mxu0 %v5607
      %v5609 = vpop.f32.mrb[0].mxu0
      %v5610 = vadd.f32 %v4859, %v5609
      %v5611 = vpop.f32.mrb[0].mxu0
      %v5612 = vand.u32 %v2595, 4294901760
      %v5613 = vsub.f32 %v2595, %v5612
      %v5614 = vand.u32 %v5613, 4294901760
      %5615 = vmatprep.mubr.f32.mxu0 %v5614
      %v5616 = vand.u32 %v2403, 4294901760
      %v5617 = vsub.f32 %v2403, %v5616
      %v5618 = vand.u32 %v5617, 4294901760
      %5619 = vmatmul.mubr.f32.gmra.mrb[0].mxu0 %v5618
      %v5620 = vpop.f32.mrb[0].mxu0
      %v5621 = vadd.f32 %v4868, %v5620
      %v5622 = vpop.f32.mrb[0].mxu0
      %v5623 = vand.u32 %v2596, 4294901760
      %v5624 = vsub.f32 %v2596, %v5623
      %v5625 = vand.u32 %v5624, 4294901760
      %5626 = vmatprep.mubr.f32.mxu0 %v5625
      %v5627 = vand.u32 %v2404, 4294901760
      %v5628 = vsub.f32 %v2404, %v5627
      %v5629 = vand.u32 %v5628, 4294901760
      %5630 = vmatmul.mubr.f32.gmra.mrb[0].mxu0 %v5629
      %v5631 = vpop.f32.mrb[0].mxu0
      %v5632 = vadd.f32 %v4877, %v5631
      %v5633 = vpop.f32.mrb[0].mxu0
      %v5634 = vand.u32 %v2597, 4294901760
      %v5635 = vsub.f32 %v2597, %v5634
      %v5636 = vand.u32 %v5635, 4294901760
      %5637 = vmatprep.mubr.f32.mxu0 %v5636
      %v5638 = vand.u32 %v2405, 4294901760
      %v5639 = vsub.f32 %v2405, %v5638
      %v5640 = vand.u32 %v5639, 4294901760
      %5641 = vmatmul.mubr.f32.gmra.mrb[0].mxu0 %v5640
      %v5642 = vpop.f32.mrb[0].mxu0
      %v5643 = vadd.f32 %v4886, %v5642
      %v5644 = vpop.f32.mrb[0].mxu0
      %v5645 = vand.u32 %v2598, 4294901760
      %v5646 = vsub.f32 %v2598, %v5645
      %v5647 = vand.u32 %v5646, 4294901760
      %5648 = vmatprep.mubr.f32.mxu0 %v5647
      %v5649 = vand.u32 %v2406, 4294901760
      %v5650 = vsub.f32 %v2406, %v5649
      %v5651 = vand.u32 %v5650, 4294901760
      %5652 = vmatmul.mubr.f32.gmra.mrb[0].mxu0 %v5651
      %v5653 = vpop.f32.mrb[0].mxu0
      %v5654 = vadd.f32 %v4895, %v5653
      %v5655 = vpop.f32.mrb[0].mxu0
      %v5656 = vand.u32 %v2599, 4294901760
      %v5657 = vsub.f32 %v2599, %v5656
      %v5658 = vand.u32 %v5657, 4294901760
      %5659 = vmatprep.mubr.f32.mxu0 %v5658
      %v5660 = vand.u32 %v2407, 4294901760
      %v5661 = vsub.f32 %v2407, %v5660
      %v5662 = vand.u32 %v5661, 4294901760
      %5663 = vmatmul.mubr.f32.gmra.mrb[0].mxu0 %v5662
      %v5664 = vpop.f32.mrb[0].mxu0
      %v5665 = vadd.f32 %v4904, %v5664
      %v5666 = vpop.f32.mrb[0].mxu0
      %v5667 = vand.u32 %v2600, 4294901760
      %v5668 = vsub.f32 %v2600, %v5667
      %v5669 = vand.u32 %v5668, 4294901760
      %5670 = vmatprep.mubr.f32.mxu0 %v5669
      %v5671 = vand.u32 %v2408, 4294901760
      %v5672 = vsub.f32 %v2408, %v5671
      %v5673 = vand.u32 %v5672, 4294901760
      %5674 = vmatmul.mubr.f32.gmra.mrb[0].mxu0 %v5673
      %v5675 = vpop.f32.mrb[0].mxu0
      %v5676 = vadd.f32 %v4913, %v5675
      %v5677 = vpop.f32.mrb[0].mxu0
      %v5678 = vand.u32 %v2601, 4294901760
      %v5679 = vsub.f32 %v2601, %v5678
      %v5680 = vand.u32 %v5679, 4294901760
      %5681 = vmatprep.mubr.f32.mxu0 %v5680
      %v5682 = vand.u32 %v2409, 4294901760
      %v5683 = vsub.f32 %v2409, %v5682
      %v5684 = vand.u32 %v5683, 4294901760
      %5685 = vmatmul.mubr.f32.gmra.mrb[0].mxu0 %v5684
      %v5686 = vpop.f32.mrb[0].mxu0
      %v5687 = vadd.f32 %v4922, %v5686
      %v5688 = vpop.f32.mrb[0].mxu0
      %v5689 = vand.u32 %v2602, 4294901760
      %v5690 = vsub.f32 %v2602, %v5689
      %v5691 = vand.u32 %v5690, 4294901760
      %5692 = vmatprep.mubr.f32.mxu0 %v5691
      %v5693 = vand.u32 %v2410, 4294901760
      %v5694 = vsub.f32 %v2410, %v5693
      %v5695 = vand.u32 %v5694, 4294901760
      %5696 = vmatmul.mubr.f32.gmra.mrb[0].mxu0 %v5695
      %v5697 = vpop.f32.mrb[0].mxu0
      %v5698 = vadd.f32 %v4931, %v5697
      %v5699 = vpop.f32.mrb[0].mxu0
      %v5700 = vand.u32 %v2603, 4294901760
      %v5701 = vsub.f32 %v2603, %v5700
      %v5702 = vand.u32 %v5701, 4294901760
      %5703 = vmatprep.mubr.f32.mxu0 %v5702
      %v5704 = vand.u32 %v2411, 4294901760
      %v5705 = vsub.f32 %v2411, %v5704
      %v5706 = vand.u32 %v5705, 4294901760
      %5707 = vmatmul.mubr.f32.gmra.mrb[0].mxu0 %v5706
      %v5708 = vpop.f32.mrb[0].mxu0
      %v5709 = vadd.f32 %v4940, %v5708
      %v5710 = vpop.f32.mrb[0].mxu0
      %v5711 = vand.u32 %v2604, 4294901760
      %v5712 = vsub.f32 %v2604, %v5711
      %v5713 = vand.u32 %v5712, 4294901760
      %5714 = vmatprep.mubr.f32.mxu0 %v5713
      %v5715 = vand.u32 %v2412, 4294901760
      %v5716 = vsub.f32 %v2412, %v5715
      %v5717 = vand.u32 %v5716, 4294901760
      %5718 = vmatmul.mubr.f32.gmra.mrb[0].mxu0 %v5717
      %v5719 = vpop.f32.mrb[0].mxu0
      %v5720 = vadd.f32 %v4949, %v5719
      %v5721 = vpop.f32.mrb[0].mxu0
      %v5722 = vand.u32 %v2605, 4294901760
      %v5723 = vsub.f32 %v2605, %v5722
      %v5724 = vand.u32 %v5723, 4294901760
      %5725 = vmatprep.mubr.f32.mxu0 %v5724
      %v5726 = vand.u32 %v2413, 4294901760
      %v5727 = vsub.f32 %v2413, %v5726
      %v5728 = vand.u32 %v5727, 4294901760
      %5729 = vmatmul.mubr.f32.gmra.mrb[0].mxu0 %v5728
      %v5730 = vpop.f32.mrb[0].mxu0
      %v5731 = vadd.f32 %v4958, %v5730
      %v5732 = vpop.f32.mrb[0].mxu0
      %v5733 = vand.u32 %v2606, 4294901760
      %v5734 = vsub.f32 %v2606, %v5733
      %v5735 = vand.u32 %v5734, 4294901760
      %5736 = vmatprep.mubr.f32.mxu0 %v5735
      %v5737 = vand.u32 %v2414, 4294901760
      %v5738 = vsub.f32 %v2414, %v5737
      %v5739 = vand.u32 %v5738, 4294901760
      %5740 = vmatmul.mubr.f32.gmra.mrb[0].mxu0 %v5739
      %v5741 = vpop.f32.mrb[0].mxu0
      %v5742 = vadd.f32 %v4967, %v5741
      %v5743 = vpop.f32.mrb[0].mxu0
      %v5744 = vand.u32 %v2607, 4294901760
      %v5745 = vsub.f32 %v2607, %v5744
      %v5746 = vand.u32 %v5745, 4294901760
      %5747 = vmatprep.mubr.f32.mxu0 %v5746
      %v5748 = vand.u32 %v2415, 4294901760
      %v5749 = vsub.f32 %v2415, %v5748
      %v5750 = vand.u32 %v5749, 4294901760
      %5751 = vmatmul.mubr.f32.gmra.mrb[0].mxu0 %v5750
      %v5752 = vpop.f32.mrb[0].mxu0
      %v5753 = vadd.f32 %v4976, %v5752
      %v5754 = vpop.f32.mrb[0].mxu0
      %v5755 = vand.u32 %v2608, 4294901760
      %v5756 = vsub.f32 %v2608, %v5755
      %v5757 = vand.u32 %v5756, 4294901760
      %5758 = vmatprep.mubr.f32.mxu0 %v5757
      %v5759 = vand.u32 %v2416, 4294901760
      %v5760 = vsub.f32 %v2416, %v5759
      %v5761 = vand.u32 %v5760, 4294901760
      %5762 = vmatmul.mubr.f32.gmra.mrb[0].mxu0 %v5761
      %v5763 = vpop.f32.mrb[0].mxu0
      %v5764 = vadd.f32 %v4985, %v5763
      %v5765 = vpop.f32.mrb[0].mxu0
      %v5766 = vand.u32 %v2609, 4294901760
      %v5767 = vsub.f32 %v2609, %v5766
      %v5768 = vand.u32 %v5767, 4294901760
      %5769 = vmatprep.mubr.f32.mxu0 %v5768
      %v5770 = vand.u32 %v2417, 4294901760
      %v5771 = vsub.f32 %v2417, %v5770
      %v5772 = vand.u32 %v5771, 4294901760
      %5773 = vmatmul.mubr.f32.gmra.mrb[0].mxu0 %v5772
      %v5774 = vpop.f32.mrb[0].mxu0
      %v5775 = vadd.f32 %v4994, %v5774
      %v5776 = vpop.f32.mrb[0].mxu0
      %v5777 = vand.u32 %v2610, 4294901760
      %v5778 = vsub.f32 %v2610, %v5777
      %v5779 = vand.u32 %v5778, 4294901760
      %5780 = vmatprep.mubr.f32.mxu0 %v5779
      %v5781 = vand.u32 %v2418, 4294901760
      %v5782 = vsub.f32 %v2418, %v5781
      %v5783 = vand.u32 %v5782, 4294901760
      %5784 = vmatmul.mubr.f32.gmra.mrb[0].mxu0 %v5783
      %v5785 = vpop.f32.mrb[0].mxu0
      %v5786 = vadd.f32 %v5003, %v5785
      %v5787 = vpop.f32.mrb[0].mxu0
      %v5788 = vand.u32 %v2611, 4294901760
      %v5789 = vsub.f32 %v2611, %v5788
      %v5790 = vand.u32 %v5789, 4294901760
      %5791 = vmatprep.mubr.f32.mxu0 %v5790
      %v5792 = vand.u32 %v2419, 4294901760
      %v5793 = vsub.f32 %v2419, %v5792
      %v5794 = vand.u32 %v5793, 4294901760
      %5795 = vmatmul.mubr.f32.gmra.mrb[0].mxu0 %v5794
      %v5796 = vpop.f32.mrb[0].mxu0
      %v5797 = vadd.f32 %v5012, %v5796
      %v5798 = vpop.f32.mrb[0].mxu0
      %v5799 = vand.u32 %v2612, 4294901760
      %v5800 = vsub.f32 %v2612, %v5799
      %v5801 = vand.u32 %v5800, 4294901760
      %5802 = vmatprep.mubr.f32.mxu0 %v5801
      %v5803 = vand.u32 %v2420, 4294901760
      %v5804 = vsub.f32 %v2420, %v5803
      %v5805 = vand.u32 %v5804, 4294901760
      %5806 = vmatmul.mubr.f32.gmra.mrb[0].mxu0 %v5805
      %v5807 = vpop.f32.mrb[0].mxu0
      %v5808 = vadd.f32 %v5021, %v5807
      %v5809 = vpop.f32.mrb[0].mxu0
      %v5810 = vand.u32 %v2613, 4294901760
      %v5811 = vsub.f32 %v2613, %v5810
      %v5812 = vand.u32 %v5811, 4294901760
      %5813 = vmatprep.mubr.f32.mxu0 %v5812
      %v5814 = vand.u32 %v2421, 4294901760
      %v5815 = vsub.f32 %v2421, %v5814
      %v5816 = vand.u32 %v5815, 4294901760
      %5817 = vmatmul.mubr.f32.gmra.mrb[0].mxu0 %v5816
      %v5818 = vpop.f32.mrb[0].mxu0
      %v5819 = vadd.f32 %v5030, %v5818
      %v5820 = vpop.f32.mrb[0].mxu0
      %v5821 = vand.u32 %v2614, 4294901760
      %v5822 = vsub.f32 %v2614, %v5821
      %v5823 = vand.u32 %v5822, 4294901760
      %5824 = vmatprep.mubr.f32.mxu0 %v5823
      %v5825 = vand.u32 %v2422, 4294901760
      %v5826 = vsub.f32 %v2422, %v5825
      %v5827 = vand.u32 %v5826, 4294901760
      %5828 = vmatmul.mubr.f32.gmra.mrb[0].mxu0 %v5827
      %v5829 = vpop.f32.mrb[0].mxu0
      %v5830 = vadd.f32 %v5039, %v5829
      %v5831 = vpop.f32.mrb[0].mxu0
      %v5832 = vand.u32 %v2615, 4294901760
      %v5833 = vsub.f32 %v2615, %v5832
      %v5834 = vand.u32 %v5833, 4294901760
      %5835 = vmatprep.mubr.f32.mxu0 %v5834
      %v5836 = vand.u32 %v2423, 4294901760
      %v5837 = vsub.f32 %v2423, %v5836
      %v5838 = vand.u32 %v5837, 4294901760
      %5839 = vmatmul.mubr.f32.gmra.mrb[0].mxu0 %v5838
      %v5840 = vpop.f32.mrb[0].mxu0
      %v5841 = vadd.f32 %v5048, %v5840
      %v5842 = vpop.f32.mrb[0].mxu0
      %v5843 = vand.u32 %v2616, 4294901760
      %v5844 = vsub.f32 %v2616, %v5843
      %v5845 = vand.u32 %v5844, 4294901760
      %5846 = vmatprep.mubr.f32.mxu0 %v5845
      %v5847 = vand.u32 %v2424, 4294901760
      %v5848 = vsub.f32 %v2424, %v5847
      %v5849 = vand.u32 %v5848, 4294901760
      %5850 = vmatmul.mubr.f32.gmra.mrb[0].mxu0 %v5849
      %v5851 = vpop.f32.mrb[0].mxu0
      %v5852 = vadd.f32 %v5057, %v5851
      %v5853 = vpop.f32.mrb[0].mxu0
      %v5854 = vand.u32 %v2617, 4294901760
      %v5855 = vsub.f32 %v2617, %v5854
      %v5856 = vand.u32 %v5855, 4294901760
      %5857 = vmatprep.mubr.f32.mxu0 %v5856
      %v5858 = vand.u32 %v2425, 4294901760
      %v5859 = vsub.f32 %v2425, %v5858
      %v5860 = vand.u32 %v5859, 4294901760
      %5861 = vmatmul.mubr.f32.gmra.mrb[0].mxu0 %v5860
      %v5862 = vpop.f32.mrb[0].mxu0
      %v5863 = vadd.f32 %v5066, %v5862
      %v5864 = vpop.f32.mrb[0].mxu0
      %v5865 = vand.u32 %v2618, 4294901760
      %v5866 = vsub.f32 %v2618, %v5865
      %v5867 = vand.u32 %v5866, 4294901760
      %5868 = vmatprep.mubr.f32.mxu0 %v5867
      %v5869 = vand.u32 %v2426, 4294901760
      %v5870 = vsub.f32 %v2426, %v5869
      %v5871 = vand.u32 %v5870, 4294901760
      %5872 = vmatmul.mubr.f32.gmra.mrb[0].mxu0 %v5871
      %v5873 = vpop.f32.mrb[0].mxu0
      %v5874 = vadd.f32 %v5075, %v5873
      %v5875 = vpop.f32.mrb[0].mxu0
      %v5876 = vand.u32 %v2619, 4294901760
      %v5877 = vsub.f32 %v2619, %v5876
      %v5878 = vand.u32 %v5877, 4294901760
      %5879 = vmatprep.mubr.f32.mxu0 %v5878
      %v5880 = vand.u32 %v2427, 4294901760
      %v5881 = vsub.f32 %v2427, %v5880
      %v5882 = vand.u32 %v5881, 4294901760
      %5883 = vmatmul.mubr.f32.gmra.mrb[0].mxu0 %v5882
      %v5884 = vpop.f32.mrb[0].mxu0
      %v5885 = vadd.f32 %v5084, %v5884
      %v5886 = vpop.f32.mrb[0].mxu0
      %5887 = vdwg.mxu0
      %5888 = vmatprep.subr.mxu0 0.0
      %v5889 = vand.u32 %v2620, 4294901760
      %v5890 = vsub.f32 %v2620, %v5889
      %v5891 = vand.u32 %v5890, 4294901760
      %5892 = vmatpush1.msra.mxu0 %v5891
      %5893 = vmatprep.subr.mxu0 0.0
      %v5894 = vand.u32 %v2621, 4294901760
      %v5895 = vsub.f32 %v2621, %v5894
      %v5896 = vand.u32 %v5895, 4294901760
      %5897 = vmatpush1.msra.mxu0 %v5896
      %5898 = vmatprep.subr.mxu0 0.0
      %v5899 = vand.u32 %v2622, 4294901760
      %v5900 = vsub.f32 %v2622, %v5899
      %v5901 = vand.u32 %v5900, 4294901760
      %5902 = vmatpush1.msra.mxu0 %v5901
      %5903 = vmatprep.subr.mxu0 0.0
      %v5904 = vand.u32 %v2623, 4294901760
      %v5905 = vsub.f32 %v2623, %v5904
      %v5906 = vand.u32 %v5905, 4294901760
      %5907 = vmatpush1.msra.mxu0 %v5906
      %5908 = vmatprep.subr.mxu0 0.0
      %v5909 = vand.u32 %v2624, 4294901760
      %v5910 = vsub.f32 %v2624, %v5909
      %v5911 = vand.u32 %v5910, 4294901760
      %5912 = vmatpush1.msra.mxu0 %v5911
      %5913 = vmatprep.subr.mxu0 0.0
      %v5914 = vand.u32 %v2625, 4294901760
      %v5915 = vsub.f32 %v2625, %v5914
      %v5916 = vand.u32 %v5915, 4294901760
      %5917 = vmatpush1.msra.mxu0 %v5916
      %5918 = vmatprep.subr.mxu0 0.0
      %v5919 = vand.u32 %v2626, 4294901760
      %v5920 = vsub.f32 %v2626, %v5919
      %v5921 = vand.u32 %v5920, 4294901760
      %5922 = vmatpush1.msra.mxu0 %v5921
      %5923 = vmatprep.subr.mxu0 0.0
      %v5924 = vand.u32 %v2627, 4294901760
      %v5925 = vsub.f32 %v2627, %v5924
      %v5926 = vand.u32 %v5925, 4294901760
      %5927 = vmatpush1.msra.mxu0 %v5926
      %5928 = vmatprep.subr.mxu0 0.0
      %v5929 = vand.u32 %v2628, 4294901760
      %v5930 = vsub.f32 %v2628, %v5929
      %v5931 = vand.u32 %v5930, 4294901760
      %5932 = vmatpush1.msra.mxu0 %v5931
      %5933 = vmatprep.subr.mxu0 0.0
      %v5934 = vand.u32 %v2629, 4294901760
      %v5935 = vsub.f32 %v2629, %v5934
      %v5936 = vand.u32 %v5935, 4294901760
      %5937 = vmatpush1.msra.mxu0 %v5936
      %5938 = vmatprep.subr.mxu0 0.0
      %v5939 = vand.u32 %v2630, 4294901760
      %v5940 = vsub.f32 %v2630, %v5939
      %v5941 = vand.u32 %v5940, 4294901760
      %5942 = vmatpush1.msra.mxu0 %v5941
      %5943 = vmatprep.subr.mxu0 0.0
      %v5944 = vand.u32 %v2631, 4294901760
      %v5945 = vsub.f32 %v2631, %v5944
      %v5946 = vand.u32 %v5945, 4294901760
      %5947 = vmatpush1.msra.mxu0 %v5946
      %5948 = vmatprep.subr.mxu0 0.0
      %v5949 = vand.u32 %v2632, 4294901760
      %v5950 = vsub.f32 %v2632, %v5949
      %v5951 = vand.u32 %v5950, 4294901760
      %5952 = vmatpush1.msra.mxu0 %v5951
      %5953 = vmatprep.subr.mxu0 0.0
      %v5954 = vand.u32 %v2633, 4294901760
      %v5955 = vsub.f32 %v2633, %v5954
      %v5956 = vand.u32 %v5955, 4294901760
      %5957 = vmatpush1.msra.mxu0 %v5956
      %5958 = vmatprep.subr.mxu0 0.0
      %v5959 = vand.u32 %v2634, 4294901760
      %v5960 = vsub.f32 %v2634, %v5959
      %v5961 = vand.u32 %v5960, 4294901760
      %5962 = vmatpush1.msra.mxu0 %v5961
      %5963 = vmatprep.subr.mxu0 0.0
      %v5964 = vand.u32 %v2635, 4294901760
      %v5965 = vsub.f32 %v2635, %v5964
      %v5966 = vand.u32 %v5965, 4294901760
      %5967 = vmatpush1.msra.mxu0 %v5966
      %5968 = vmatprep.subr.mxu0 0.0
      %v5969 = vand.u32 %v2636, 4294901760
      %v5970 = vsub.f32 %v2636, %v5969
      %v5971 = vand.u32 %v5970, 4294901760
      %5972 = vmatpush1.msra.mxu0 %v5971
      %5973 = vmatprep.subr.mxu0 0.0
      %v5974 = vand.u32 %v2637, 4294901760
      %v5975 = vsub.f32 %v2637, %v5974
      %v5976 = vand.u32 %v5975, 4294901760
      %5977 = vmatpush1.msra.mxu0 %v5976
      %5978 = vmatprep.subr.mxu0 0.0
      %v5979 = vand.u32 %v2638, 4294901760
      %v5980 = vsub.f32 %v2638, %v5979
      %v5981 = vand.u32 %v5980, 4294901760
      %5982 = vmatpush1.msra.mxu0 %v5981
      %5983 = vmatprep.subr.mxu0 0.0
      %v5984 = vand.u32 %v2639, 4294901760
      %v5985 = vsub.f32 %v2639, %v5984
      %v5986 = vand.u32 %v5985, 4294901760
      %5987 = vmatpush1.msra.mxu0 %v5986
      %5988 = vmatprep.subr.mxu0 0.0
      %v5989 = vand.u32 %v2640, 4294901760
      %v5990 = vsub.f32 %v2640, %v5989
      %v5991 = vand.u32 %v5990, 4294901760
      %5992 = vmatpush1.msra.mxu0 %v5991
      %5993 = vmatprep.subr.mxu0 0.0
      %v5994 = vand.u32 %v2641, 4294901760
      %v5995 = vsub.f32 %v2641, %v5994
      %v5996 = vand.u32 %v5995, 4294901760
      %5997 = vmatpush1.msra.mxu0 %v5996
      %5998 = vmatprep.subr.mxu0 0.0
      %v5999 = vand.u32 %v2642, 4294901760
      %v6000 = vsub.f32 %v2642, %v5999
      %v6001 = vand.u32 %v6000, 4294901760
      %6002 = vmatpush1.msra.mxu0 %v6001
      %6003 = vmatprep.subr.mxu0 0.0
      %v6004 = vand.u32 %v2643, 4294901760
      %v6005 = vsub.f32 %v2643, %v6004
      %v6006 = vand.u32 %v6005, 4294901760
      %6007 = vmatpush1.msra.mxu0 %v6006
      %6008 = vmatprep.subr.mxu0 0.0
      %v6009 = vand.u32 %v2644, 4294901760
      %v6010 = vsub.f32 %v2644, %v6009
      %v6011 = vand.u32 %v6010, 4294901760
      %6012 = vmatpush1.msra.mxu0 %v6011
      %6013 = vmatprep.subr.mxu0 0.0
      %v6014 = vand.u32 %v2645, 4294901760
      %v6015 = vsub.f32 %v2645, %v6014
      %v6016 = vand.u32 %v6015, 4294901760
      %6017 = vmatpush1.msra.mxu0 %v6016
      %6018 = vmatprep.subr.mxu0 0.0
      %v6019 = vand.u32 %v2646, 4294901760
      %v6020 = vsub.f32 %v2646, %v6019
      %v6021 = vand.u32 %v6020, 4294901760
      %6022 = vmatpush1.msra.mxu0 %v6021
      %6023 = vmatprep.subr.mxu0 0.0
      %v6024 = vand.u32 %v2647, 4294901760
      %v6025 = vsub.f32 %v2647, %v6024
      %v6026 = vand.u32 %v6025, 4294901760
      %6027 = vmatpush1.msra.mxu0 %v6026
      %6028 = vmatprep.subr.mxu0 0.0
      %v6029 = vand.u32 %v2648, 4294901760
      %v6030 = vsub.f32 %v2648, %v6029
      %v6031 = vand.u32 %v6030, 4294901760
      %6032 = vmatpush1.msra.mxu0 %v6031
      %6033 = vmatprep.subr.mxu0 0.0
      %v6034 = vand.u32 %v2649, 4294901760
      %v6035 = vsub.f32 %v2649, %v6034
      %v6036 = vand.u32 %v6035, 4294901760
      %6037 = vmatpush1.msra.mxu0 %v6036
      %6038 = vmatprep.subr.mxu0 0.0
      %v6039 = vand.u32 %v2650, 4294901760
      %v6040 = vsub.f32 %v2650, %v6039
      %v6041 = vand.u32 %v6040, 4294901760
      %6042 = vmatpush1.msra.mxu0 %v6041
      %6043 = vmatprep.subr.mxu0 0.0
      %v6044 = vand.u32 %v2651, 4294901760
      %v6045 = vsub.f32 %v2651, %v6044
      %v6046 = vand.u32 %v6045, 4294901760
      %6047 = vmatpush1.msra.mxu0 %v6046
      %v6048 = vand.u32 %v2556, 4294901760
      %6049 = vmatprep.mubr.f32.mxu0 %v6048
      %v6050 = vand.u32 %v2364, 4294901760
      %6051 = vmatmul.mubr.f32.gmra.mrb[0].mxu0 %v6050
      %v6052 = vpop.f32.mrb[0].mxu0
      %v6053 = vadd.f32 %v5192, %v6052
      %v6054 = vpop.f32.mrb[0].mxu0
      %v6055 = vand.u32 %v2557, 4294901760
      %6056 = vmatprep.mubr.f32.mxu0 %v6055
      %v6057 = vand.u32 %v2365, 4294901760
      %6058 = vmatmul.mubr.f32.gmra.mrb[0].mxu0 %v6057
      %v6059 = vpop.f32.mrb[0].mxu0
      %v6060 = vadd.f32 %v5203, %v6059
      %v6061 = vpop.f32.mrb[0].mxu0
      %v6062 = vand.u32 %v2558, 4294901760
      %6063 = vmatprep.mubr.f32.mxu0 %v6062
      %v6064 = vand.u32 %v2366, 4294901760
      %6065 = vmatmul.mubr.f32.gmra.mrb[0].mxu0 %v6064
      %v6066 = vpop.f32.mrb[0].mxu0
      %v6067 = vadd.f32 %v5214, %v6066
      %v6068 = vpop.f32.mrb[0].mxu0
      %v6069 = vand.u32 %v2559, 4294901760
      %6070 = vmatprep.mubr.f32.mxu0 %v6069
      %v6071 = vand.u32 %v2367, 4294901760
      %6072 = vmatmul.mubr.f32.gmra.mrb[0].mxu0 %v6071
      %v6073 = vpop.f32.mrb[0].mxu0
      %v6074 = vadd.f32 %v5225, %v6073
      %v6075 = vpop.f32.mrb[0].mxu0
      %v6076 = vand.u32 %v2560, 4294901760
      %6077 = vmatprep.mubr.f32.mxu0 %v6076
      %v6078 = vand.u32 %v2368, 4294901760
      %6079 = vmatmul.mubr.f32.gmra.mrb[0].mxu0 %v6078
      %v6080 = vpop.f32.mrb[0].mxu0
      %v6081 = vadd.f32 %v5236, %v6080
      %v6082 = vpop.f32.mrb[0].mxu0
      %v6083 = vand.u32 %v2561, 4294901760
      %6084 = vmatprep.mubr.f32.mxu0 %v6083
      %v6085 = vand.u32 %v2369, 4294901760
      %6086 = vmatmul.mubr.f32.gmra.mrb[0].mxu0 %v6085
      %v6087 = vpop.f32.mrb[0].mxu0
      %v6088 = vadd.f32 %v5247, %v6087
      %v6089 = vpop.f32.mrb[0].mxu0
      %v6090 = vand.u32 %v2562, 4294901760
      %6091 = vmatprep.mubr.f32.mxu0 %v6090
      %v6092 = vand.u32 %v2370, 4294901760
      %6093 = vmatmul.mubr.f32.gmra.mrb[0].mxu0 %v6092
      %v6094 = vpop.f32.mrb[0].mxu0
      %v6095 = vadd.f32 %v5258, %v6094
      %v6096 = vpop.f32.mrb[0].mxu0
      %v6097 = vand.u32 %v2563, 4294901760
      %6098 = vmatprep.mubr.f32.mxu0 %v6097
      %v6099 = vand.u32 %v2371, 4294901760
      %6100 = vmatmul.mubr.f32.gmra.mrb[0].mxu0 %v6099
      %v6101 = vpop.f32.mrb[0].mxu0
      %v6102 = vadd.f32 %v5269, %v6101
      %v6103 = vpop.f32.mrb[0].mxu0
      %v6104 = vand.u32 %v2564, 4294901760
      %6105 = vmatprep.mubr.f32.mxu0 %v6104
      %v6106 = vand.u32 %v2372, 4294901760
      %6107 = vmatmul.mubr.f32.gmra.mrb[0].mxu0 %v6106
      %v6108 = vpop.f32.mrb[0].mxu0
      %v6109 = vadd.f32 %v5280, %v6108
      %v6110 = vpop.f32.mrb[0].mxu0
      %v6111 = vand.u32 %v2565, 4294901760
      %6112 = vmatprep.mubr.f32.mxu0 %v6111
      %v6113 = vand.u32 %v2373, 4294901760
      %6114 = vmatmul.mubr.f32.gmra.mrb[0].mxu0 %v6113
      %v6115 = vpop.f32.mrb[0].mxu0
      %v6116 = vadd.f32 %v5291, %v6115
      %v6117 = vpop.f32.mrb[0].mxu0
      %v6118 = vand.u32 %v2566, 4294901760
      %6119 = vmatprep.mubr.f32.mxu0 %v6118
      %v6120 = vand.u32 %v2374, 4294901760
      %6121 = vmatmul.mubr.f32.gmra.mrb[0].mxu0 %v6120
      %v6122 = vpop.f32.mrb[0].mxu0
      %v6123 = vadd.f32 %v5302, %v6122
      %v6124 = vpop.f32.mrb[0].mxu0
      %v6125 = vand.u32 %v2567, 4294901760
      %6126 = vmatprep.mubr.f32.mxu0 %v6125
      %v6127 = vand.u32 %v2375, 4294901760
      %6128 = vmatmul.mubr.f32.gmra.mrb[0].mxu0 %v6127
      %v6129 = vpop.f32.mrb[0].mxu0
      %v6130 = vadd.f32 %v5313, %v6129
      %v6131 = vpop.f32.mrb[0].mxu0
      %v6132 = vand.u32 %v2568, 4294901760
      %6133 = vmatprep.mubr.f32.mxu0 %v6132
      %v6134 = vand.u32 %v2376, 4294901760
      %6135 = vmatmul.mubr.f32.gmra.mrb[0].mxu0 %v6134
      %v6136 = vpop.f32.mrb[0].mxu0
      %v6137 = vadd.f32 %v5324, %v6136
      %v6138 = vpop.f32.mrb[0].mxu0
      %v6139 = vand.u32 %v2569, 4294901760
      %6140 = vmatprep.mubr.f32.mxu0 %v6139
      %v6141 = vand.u32 %v2377, 4294901760
      %6142 = vmatmul.mubr.f32.gmra.mrb[0].mxu0 %v6141
      %v6143 = vpop.f32.mrb[0].mxu0
      %v6144 = vadd.f32 %v5335, %v6143
      %v6145 = vpop.f32.mrb[0].mxu0
      %v6146 = vand.u32 %v2570, 4294901760
      %6147 = vmatprep.mubr.f32.mxu0 %v6146
      %v6148 = vand.u32 %v2378, 4294901760
      %6149 = vmatmul.mubr.f32.gmra.mrb[0].mxu0 %v6148
      %v6150 = vpop.f32.mrb[0].mxu0
      %v6151 = vadd.f32 %v5346, %v6150
      %v6152 = vpop.f32.mrb[0].mxu0
      %v6153 = vand.u32 %v2571, 4294901760
      %6154 = vmatprep.mubr.f32.mxu0 %v6153
      %v6155 = vand.u32 %v2379, 4294901760
      %6156 = vmatmul.mubr.f32.gmra.mrb[0].mxu0 %v6155
      %v6157 = vpop.f32.mrb[0].mxu0
      %v6158 = vadd.f32 %v5357, %v6157
      %v6159 = vpop.f32.mrb[0].mxu0
      %v6160 = vand.u32 %v2572, 4294901760
      %6161 = vmatprep.mubr.f32.mxu0 %v6160
      %v6162 = vand.u32 %v2380, 4294901760
      %6163 = vmatmul.mubr.f32.gmra.mrb[0].mxu0 %v6162
      %v6164 = vpop.f32.mrb[0].mxu0
      %v6165 = vadd.f32 %v5368, %v6164
      %v6166 = vpop.f32.mrb[0].mxu0
      %v6167 = vand.u32 %v2573, 4294901760
      %6168 = vmatprep.mubr.f32.mxu0 %v6167
      %v6169 = vand.u32 %v2381, 4294901760
      %6170 = vmatmul.mubr.f32.gmra.mrb[0].mxu0 %v6169
      %v6171 = vpop.f32.mrb[0].mxu0
      %v6172 = vadd.f32 %v5379, %v6171
      %v6173 = vpop.f32.mrb[0].mxu0
      %v6174 = vand.u32 %v2574, 4294901760
      %6175 = vmatprep.mubr.f32.mxu0 %v6174
      %v6176 = vand.u32 %v2382, 4294901760
      %6177 = vmatmul.mubr.f32.gmra.mrb[0].mxu0 %v6176
      %v6178 = vpop.f32.mrb[0].mxu0
      %v6179 = vadd.f32 %v5390, %v6178
      %v6180 = vpop.f32.mrb[0].mxu0
      %v6181 = vand.u32 %v2575, 4294901760
      %6182 = vmatprep.mubr.f32.mxu0 %v6181
      %v6183 = vand.u32 %v2383, 4294901760
      %6184 = vmatmul.mubr.f32.gmra.mrb[0].mxu0 %v6183
      %v6185 = vpop.f32.mrb[0].mxu0
      %v6186 = vadd.f32 %v5401, %v6185
      %v6187 = vpop.f32.mrb[0].mxu0
      %v6188 = vand.u32 %v2576, 4294901760
      %6189 = vmatprep.mubr.f32.mxu0 %v6188
      %v6190 = vand.u32 %v2384, 4294901760
      %6191 = vmatmul.mubr.f32.gmra.mrb[0].mxu0 %v6190
      %v6192 = vpop.f32.mrb[0].mxu0
      %v6193 = vadd.f32 %v5412, %v6192
      %v6194 = vpop.f32.mrb[0].mxu0
      %v6195 = vand.u32 %v2577, 4294901760
      %6196 = vmatprep.mubr.f32.mxu0 %v6195
      %v6197 = vand.u32 %v2385, 4294901760
      %6198 = vmatmul.mubr.f32.gmra.mrb[0].mxu0 %v6197
      %v6199 = vpop.f32.mrb[0].mxu0
      %v6200 = vadd.f32 %v5423, %v6199
      %v6201 = vpop.f32.mrb[0].mxu0
      %v6202 = vand.u32 %v2578, 4294901760
      %6203 = vmatprep.mubr.f32.mxu0 %v6202
      %v6204 = vand.u32 %v2386, 4294901760
      %6205 = vmatmul.mubr.f32.gmra.mrb[0].mxu0 %v6204
      %v6206 = vpop.f32.mrb[0].mxu0
      %v6207 = vadd.f32 %v5434, %v6206
      %v6208 = vpop.f32.mrb[0].mxu0
      %v6209 = vand.u32 %v2579, 4294901760
      %6210 = vmatprep.mubr.f32.mxu0 %v6209
      %v6211 = vand.u32 %v2387, 4294901760
      %6212 = vmatmul.mubr.f32.gmra.mrb[0].mxu0 %v6211
      %v6213 = vpop.f32.mrb[0].mxu0
      %v6214 = vadd.f32 %v5445, %v6213
      %v6215 = vpop.f32.mrb[0].mxu0
      %v6216 = vand.u32 %v2580, 4294901760
      %6217 = vmatprep.mubr.f32.mxu0 %v6216
      %v6218 = vand.u32 %v2388, 4294901760
      %6219 = vmatmul.mubr.f32.gmra.mrb[0].mxu0 %v6218
      %v6220 = vpop.f32.mrb[0].mxu0
      %v6221 = vadd.f32 %v5456, %v6220
      %v6222 = vpop.f32.mrb[0].mxu0
      %v6223 = vand.u32 %v2581, 4294901760
      %6224 = vmatprep.mubr.f32.mxu0 %v6223
      %v6225 = vand.u32 %v2389, 4294901760
      %6226 = vmatmul.mubr.f32.gmra.mrb[0].mxu0 %v6225
      %v6227 = vpop.f32.mrb[0].mxu0
      %v6228 = vadd.f32 %v5467, %v6227
      %v6229 = vpop.f32.mrb[0].mxu0
      %v6230 = vand.u32 %v2582, 4294901760
      %6231 = vmatprep.mubr.f32.mxu0 %v6230
      %v6232 = vand.u32 %v2390, 4294901760
      %6233 = vmatmul.mubr.f32.gmra.mrb[0].mxu0 %v6232
      %v6234 = vpop.f32.mrb[0].mxu0
      %v6235 = vadd.f32 %v5478, %v6234
      %v6236 = vpop.f32.mrb[0].mxu0
      %v6237 = vand.u32 %v2583, 4294901760
      %6238 = vmatprep.mubr.f32.mxu0 %v6237
      %v6239 = vand.u32 %v2391, 4294901760
      %6240 = vmatmul.mubr.f32.gmra.mrb[0].mxu0 %v6239
      %v6241 = vpop.f32.mrb[0].mxu0
      %v6242 = vadd.f32 %v5489, %v6241
      %v6243 = vpop.f32.mrb[0].mxu0
      %v6244 = vand.u32 %v2584, 4294901760
      %6245 = vmatprep.mubr.f32.mxu0 %v6244
      %v6246 = vand.u32 %v2392, 4294901760
      %6247 = vmatmul.mubr.f32.gmra.mrb[0].mxu0 %v6246
      %v6248 = vpop.f32.mrb[0].mxu0
      %v6249 = vadd.f32 %v5500, %v6248
      %v6250 = vpop.f32.mrb[0].mxu0
      %v6251 = vand.u32 %v2585, 4294901760
      %6252 = vmatprep.mubr.f32.mxu0 %v6251
      %v6253 = vand.u32 %v2393, 4294901760
      %6254 = vmatmul.mubr.f32.gmra.mrb[0].mxu0 %v6253
      %v6255 = vpop.f32.mrb[0].mxu0
      %v6256 = vadd.f32 %v5511, %v6255
      %v6257 = vpop.f32.mrb[0].mxu0
      %v6258 = vand.u32 %v2586, 4294901760
      %6259 = vmatprep.mubr.f32.mxu0 %v6258
      %v6260 = vand.u32 %v2394, 4294901760
      %6261 = vmatmul.mubr.f32.gmra.mrb[0].mxu0 %v6260
      %v6262 = vpop.f32.mrb[0].mxu0
      %v6263 = vadd.f32 %v5522, %v6262
      %v6264 = vpop.f32.mrb[0].mxu0
      %v6265 = vand.u32 %v2587, 4294901760
      %6266 = vmatprep.mubr.f32.mxu0 %v6265
      %v6267 = vand.u32 %v2395, 4294901760
      %6268 = vmatmul.mubr.f32.gmra.mrb[0].mxu0 %v6267
      %v6269 = vpop.f32.mrb[0].mxu0
      %v6270 = vadd.f32 %v5533, %v6269
      %v6271 = vpop.f32.mrb[0].mxu0
      %v6272 = vand.u32 %v2588, 4294901760
      %6273 = vmatprep.mubr.f32.mxu0 %v6272
      %v6274 = vand.u32 %v2396, 4294901760
      %6275 = vmatmul.mubr.f32.gmra.mrb[0].mxu0 %v6274
      %v6276 = vpop.f32.mrb[0].mxu0
      %v6277 = vadd.f32 %v5544, %v6276
      %v6278 = vpop.f32.mrb[0].mxu0
      %v6279 = vand.u32 %v2589, 4294901760
      %6280 = vmatprep.mubr.f32.mxu0 %v6279
      %v6281 = vand.u32 %v2397, 4294901760
      %6282 = vmatmul.mubr.f32.gmra.mrb[0].mxu0 %v6281
      %v6283 = vpop.f32.mrb[0].mxu0
      %v6284 = vadd.f32 %v5555, %v6283
      %v6285 = vpop.f32.mrb[0].mxu0
      %v6286 = vand.u32 %v2590, 4294901760
      %6287 = vmatprep.mubr.f32.mxu0 %v6286
      %v6288 = vand.u32 %v2398, 4294901760
      %6289 = vmatmul.mubr.f32.gmra.mrb[0].mxu0 %v6288
      %v6290 = vpop.f32.mrb[0].mxu0
      %v6291 = vadd.f32 %v5566, %v6290
      %v6292 = vpop.f32.mrb[0].mxu0
      %v6293 = vand.u32 %v2591, 4294901760
      %6294 = vmatprep.mubr.f32.mxu0 %v6293
      %v6295 = vand.u32 %v2399, 4294901760
      %6296 = vmatmul.mubr.f32.gmra.mrb[0].mxu0 %v6295
      %v6297 = vpop.f32.mrb[0].mxu0
      %v6298 = vadd.f32 %v5577, %v6297
      %v6299 = vpop.f32.mrb[0].mxu0
      %v6300 = vand.u32 %v2592, 4294901760
      %6301 = vmatprep.mubr.f32.mxu0 %v6300
      %v6302 = vand.u32 %v2400, 4294901760
      %6303 = vmatmul.mubr.f32.gmra.mrb[0].mxu0 %v6302
      %v6304 = vpop.f32.mrb[0].mxu0
      %v6305 = vadd.f32 %v5588, %v6304
      %v6306 = vpop.f32.mrb[0].mxu0
      %v6307 = vand.u32 %v2593, 4294901760
      %6308 = vmatprep.mubr.f32.mxu0 %v6307
      %v6309 = vand.u32 %v2401, 4294901760
      %6310 = vmatmul.mubr.f32.gmra.mrb[0].mxu0 %v6309
      %v6311 = vpop.f32.mrb[0].mxu0
      %v6312 = vadd.f32 %v5599, %v6311
      %v6313 = vpop.f32.mrb[0].mxu0
      %v6314 = vand.u32 %v2594, 4294901760
      %6315 = vmatprep.mubr.f32.mxu0 %v6314
      %v6316 = vand.u32 %v2402, 4294901760
      %6317 = vmatmul.mubr.f32.gmra.mrb[0].mxu0 %v6316
      %v6318 = vpop.f32.mrb[0].mxu0
      %v6319 = vadd.f32 %v5610, %v6318
      %v6320 = vpop.f32.mrb[0].mxu0
      %v6321 = vand.u32 %v2595, 4294901760
      %6322 = vmatprep.mubr.f32.mxu0 %v6321
      %v6323 = vand.u32 %v2403, 4294901760
      %6324 = vmatmul.mubr.f32.gmra.mrb[0].mxu0 %v6323
      %v6325 = vpop.f32.mrb[0].mxu0
      %v6326 = vadd.f32 %v5621, %v6325
      %v6327 = vpop.f32.mrb[0].mxu0
      %v6328 = vand.u32 %v2596, 4294901760
      %6329 = vmatprep.mubr.f32.mxu0 %v6328
      %v6330 = vand.u32 %v2404, 4294901760
      %6331 = vmatmul.mubr.f32.gmra.mrb[0].mxu0 %v6330
      %v6332 = vpop.f32.mrb[0].mxu0
      %v6333 = vadd.f32 %v5632, %v6332
      %v6334 = vpop.f32.mrb[0].mxu0
      %v6335 = vand.u32 %v2597, 4294901760
      %6336 = vmatprep.mubr.f32.mxu0 %v6335
      %v6337 = vand.u32 %v2405, 4294901760
      %6338 = vmatmul.mubr.f32.gmra.mrb[0].mxu0 %v6337
      %v6339 = vpop.f32.mrb[0].mxu0
      %v6340 = vadd.f32 %v5643, %v6339
      %v6341 = vpop.f32.mrb[0].mxu0
      %v6342 = vand.u32 %v2598, 4294901760
      %6343 = vmatprep.mubr.f32.mxu0 %v6342
      %v6344 = vand.u32 %v2406, 4294901760
      %6345 = vmatmul.mubr.f32.gmra.mrb[0].mxu0 %v6344
      %v6346 = vpop.f32.mrb[0].mxu0
      %v6347 = vadd.f32 %v5654, %v6346
      %v6348 = vpop.f32.mrb[0].mxu0
      %v6349 = vand.u32 %v2599, 4294901760
      %6350 = vmatprep.mubr.f32.mxu0 %v6349
      %v6351 = vand.u32 %v2407, 4294901760
      %6352 = vmatmul.mubr.f32.gmra.mrb[0].mxu0 %v6351
      %v6353 = vpop.f32.mrb[0].mxu0
      %v6354 = vadd.f32 %v5665, %v6353
      %v6355 = vpop.f32.mrb[0].mxu0
      %v6356 = vand.u32 %v2600, 4294901760
      %6357 = vmatprep.mubr.f32.mxu0 %v6356
      %v6358 = vand.u32 %v2408, 4294901760
      %6359 = vmatmul.mubr.f32.gmra.mrb[0].mxu0 %v6358
      %v6360 = vpop.f32.mrb[0].mxu0
      %v6361 = vadd.f32 %v5676, %v6360
      %v6362 = vpop.f32.mrb[0].mxu0
      %v6363 = vand.u32 %v2601, 4294901760
      %6364 = vmatprep.mubr.f32.mxu0 %v6363
      %v6365 = vand.u32 %v2409, 4294901760
      %6366 = vmatmul.mubr.f32.gmra.mrb[0].mxu0 %v6365
      %v6367 = vpop.f32.mrb[0].mxu0
      %v6368 = vadd.f32 %v5687, %v6367
      %v6369 = vpop.f32.mrb[0].mxu0
      %v6370 = vand.u32 %v2602, 4294901760
      %6371 = vmatprep.mubr.f32.mxu0 %v6370
      %v6372 = vand.u32 %v2410, 4294901760
      %6373 = vmatmul.mubr.f32.gmra.mrb[0].mxu0 %v6372
      %v6374 = vpop.f32.mrb[0].mxu0
      %v6375 = vadd.f32 %v5698, %v6374
      %v6376 = vpop.f32.mrb[0].mxu0
      %v6377 = vand.u32 %v2603, 4294901760
      %6378 = vmatprep.mubr.f32.mxu0 %v6377
      %v6379 = vand.u32 %v2411, 4294901760
      %6380 = vmatmul.mubr.f32.gmra.mrb[0].mxu0 %v6379
      %v6381 = vpop.f32.mrb[0].mxu0
      %v6382 = vadd.f32 %v5709, %v6381
      %v6383 = vpop.f32.mrb[0].mxu0
      %v6384 = vand.u32 %v2604, 4294901760
      %6385 = vmatprep.mubr.f32.mxu0 %v6384
      %v6386 = vand.u32 %v2412, 4294901760
      %6387 = vmatmul.mubr.f32.gmra.mrb[0].mxu0 %v6386
      %v6388 = vpop.f32.mrb[0].mxu0
      %v6389 = vadd.f32 %v5720, %v6388
      %v6390 = vpop.f32.mrb[0].mxu0
      %v6391 = vand.u32 %v2605, 4294901760
      %6392 = vmatprep.mubr.f32.mxu0 %v6391
      %v6393 = vand.u32 %v2413, 4294901760
      %6394 = vmatmul.mubr.f32.gmra.mrb[0].mxu0 %v6393
      %v6395 = vpop.f32.mrb[0].mxu0
      %v6396 = vadd.f32 %v5731, %v6395
      %v6397 = vpop.f32.mrb[0].mxu0
      %v6398 = vand.u32 %v2606, 4294901760
      %6399 = vmatprep.mubr.f32.mxu0 %v6398
      %v6400 = vand.u32 %v2414, 4294901760
      %6401 = vmatmul.mubr.f32.gmra.mrb[0].mxu0 %v6400
      %v6402 = vpop.f32.mrb[0].mxu0
      %v6403 = vadd.f32 %v5742, %v6402
      %v6404 = vpop.f32.mrb[0].mxu0
      %v6405 = vand.u32 %v2607, 4294901760
      %6406 = vmatprep.mubr.f32.mxu0 %v6405
      %v6407 = vand.u32 %v2415, 4294901760
      %6408 = vmatmul.mubr.f32.gmra.mrb[0].mxu0 %v6407
      %v6409 = vpop.f32.mrb[0].mxu0
      %v6410 = vadd.f32 %v5753, %v6409
      %v6411 = vpop.f32.mrb[0].mxu0
      %v6412 = vand.u32 %v2608, 4294901760
      %6413 = vmatprep.mubr.f32.mxu0 %v6412
      %v6414 = vand.u32 %v2416, 4294901760
      %6415 = vmatmul.mubr.f32.gmra.mrb[0].mxu0 %v6414
      %v6416 = vpop.f32.mrb[0].mxu0
      %v6417 = vadd.f32 %v5764, %v6416
      %v6418 = vpop.f32.mrb[0].mxu0
      %v6419 = vand.u32 %v2609, 4294901760
      %6420 = vmatprep.mubr.f32.mxu0 %v6419
      %v6421 = vand.u32 %v2417, 4294901760
      %6422 = vmatmul.mubr.f32.gmra.mrb[0].mxu0 %v6421
      %v6423 = vpop.f32.mrb[0].mxu0
      %v6424 = vadd.f32 %v5775, %v6423
      %v6425 = vpop.f32.mrb[0].mxu0
      %v6426 = vand.u32 %v2610, 4294901760
      %6427 = vmatprep.mubr.f32.mxu0 %v6426
      %v6428 = vand.u32 %v2418, 4294901760
      %6429 = vmatmul.mubr.f32.gmra.mrb[0].mxu0 %v6428
      %v6430 = vpop.f32.mrb[0].mxu0
      %v6431 = vadd.f32 %v5786, %v6430
      %v6432 = vpop.f32.mrb[0].mxu0
      %v6433 = vand.u32 %v2611, 4294901760
      %6434 = vmatprep.mubr.f32.mxu0 %v6433
      %v6435 = vand.u32 %v2419, 4294901760
      %6436 = vmatmul.mubr.f32.gmra.mrb[0].mxu0 %v6435
      %v6437 = vpop.f32.mrb[0].mxu0
      %v6438 = vadd.f32 %v5797, %v6437
      %v6439 = vpop.f32.mrb[0].mxu0
      %v6440 = vand.u32 %v2612, 4294901760
      %6441 = vmatprep.mubr.f32.mxu0 %v6440
      %v6442 = vand.u32 %v2420, 4294901760
      %6443 = vmatmul.mubr.f32.gmra.mrb[0].mxu0 %v6442
      %v6444 = vpop.f32.mrb[0].mxu0
      %v6445 = vadd.f32 %v5808, %v6444
      %v6446 = vpop.f32.mrb[0].mxu0
      %v6447 = vand.u32 %v2613, 4294901760
      %6448 = vmatprep.mubr.f32.mxu0 %v6447
      %v6449 = vand.u32 %v2421, 4294901760
      %6450 = vmatmul.mubr.f32.gmra.mrb[0].mxu0 %v6449
      %v6451 = vpop.f32.mrb[0].mxu0
      %v6452 = vadd.f32 %v5819, %v6451
      %v6453 = vpop.f32.mrb[0].mxu0
      %v6454 = vand.u32 %v2614, 4294901760
      %6455 = vmatprep.mubr.f32.mxu0 %v6454
      %v6456 = vand.u32 %v2422, 4294901760
      %6457 = vmatmul.mubr.f32.gmra.mrb[0].mxu0 %v6456
      %v6458 = vpop.f32.mrb[0].mxu0
      %v6459 = vadd.f32 %v5830, %v6458
      %v6460 = vpop.f32.mrb[0].mxu0
      %v6461 = vand.u32 %v2615, 4294901760
      %6462 = vmatprep.mubr.f32.mxu0 %v6461
      %v6463 = vand.u32 %v2423, 4294901760
      %6464 = vmatmul.mubr.f32.gmra.mrb[0].mxu0 %v6463
      %v6465 = vpop.f32.mrb[0].mxu0
      %v6466 = vadd.f32 %v5841, %v6465
      %v6467 = vpop.f32.mrb[0].mxu0
      %v6468 = vand.u32 %v2616, 4294901760
      %6469 = vmatprep.mubr.f32.mxu0 %v6468
      %v6470 = vand.u32 %v2424, 4294901760
      %6471 = vmatmul.mubr.f32.gmra.mrb[0].mxu0 %v6470
      %v6472 = vpop.f32.mrb[0].mxu0
      %v6473 = vadd.f32 %v5852, %v6472
      %v6474 = vpop.f32.mrb[0].mxu0
      %v6475 = vand.u32 %v2617, 4294901760
      %6476 = vmatprep.mubr.f32.mxu0 %v6475
      %v6477 = vand.u32 %v2425, 4294901760
      %6478 = vmatmul.mubr.f32.gmra.mrb[0].mxu0 %v6477
      %v6479 = vpop.f32.mrb[0].mxu0
      %v6480 = vadd.f32 %v5863, %v6479
      %v6481 = vpop.f32.mrb[0].mxu0
      %v6482 = vand.u32 %v2618, 4294901760
      %6483 = vmatprep.mubr.f32.mxu0 %v6482
      %v6484 = vand.u32 %v2426, 4294901760
      %6485 = vmatmul.mubr.f32.gmra.mrb[0].mxu0 %v6484
      %v6486 = vpop.f32.mrb[0].mxu0
      %v6487 = vadd.f32 %v5874, %v6486
      %v6488 = vpop.f32.mrb[0].mxu0
      %v6489 = vand.u32 %v2619, 4294901760
      %6490 = vmatprep.mubr.f32.mxu0 %v6489
      %v6491 = vand.u32 %v2427, 4294901760
      %6492 = vmatmul.mubr.f32.gmra.mrb[0].mxu0 %v6491
      %v6493 = vpop.f32.mrb[0].mxu0
      %v6494 = vadd.f32 %v5885, %v6493
      %v6495 = vpop.f32.mrb[0].mxu0
      %6496 = vdwg.mxu0
      %6497 = vmatprep.subr.mxu0 0.0
      %v6498 = vand.u32 %v2620, 4294901760
      %6499 = vmatpush1.msra.mxu0 %v6498
      %6500 = vmatprep.subr.mxu0 0.0
      %v6501 = vand.u32 %v2621, 4294901760
      %6502 = vmatpush1.msra.mxu0 %v6501
      %6503 = vmatprep.subr.mxu0 0.0
      %v6504 = vand.u32 %v2622, 4294901760
      %6505 = vmatpush1.msra.mxu0 %v6504
      %6506 = vmatprep.subr.mxu0 0.0
      %v6507 = vand.u32 %v2623, 4294901760
      %6508 = vmatpush1.msra.mxu0 %v6507
      %6509 = vmatprep.subr.mxu0 0.0
      %v6510 = vand.u32 %v2624, 4294901760
      %6511 = vmatpush1.msra.mxu0 %v6510
      %6512 = vmatprep.subr.mxu0 0.0
      %v6513 = vand.u32 %v2625, 4294901760
      %6514 = vmatpush1.msra.mxu0 %v6513
      %6515 = vmatprep.subr.mxu0 0.0
      %v6516 = vand.u32 %v2626, 4294901760
      %6517 = vmatpush1.msra.mxu0 %v6516
      %6518 = vmatprep.subr.mxu0 0.0
      %v6519 = vand.u32 %v2627, 4294901760
      %6520 = vmatpush1.msra.mxu0 %v6519
      %6521 = vmatprep.subr.mxu0 0.0
      %v6522 = vand.u32 %v2628, 4294901760
      %6523 = vmatpush1.msra.mxu0 %v6522
      %6524 = vmatprep.subr.mxu0 0.0
      %v6525 = vand.u32 %v2629, 4294901760
      %6526 = vmatpush1.msra.mxu0 %v6525
      %6527 = vmatprep.subr.mxu0 0.0
      %v6528 = vand.u32 %v2630, 4294901760
      %6529 = vmatpush1.msra.mxu0 %v6528
      %6530 = vmatprep.subr.mxu0 0.0
      %v6531 = vand.u32 %v2631, 4294901760
      %6532 = vmatpush1.msra.mxu0 %v6531
      %6533 = vmatprep.subr.mxu0 0.0
      %v6534 = vand.u32 %v2632, 4294901760
      %6535 = vmatpush1.msra.mxu0 %v6534
      %6536 = vmatprep.subr.mxu0 0.0
      %v6537 = vand.u32 %v2633, 4294901760
      %6538 = vmatpush1.msra.mxu0 %v6537
      %6539 = vmatprep.subr.mxu0 0.0
      %v6540 = vand.u32 %v2634, 4294901760
      %6541 = vmatpush1.msra.mxu0 %v6540
      %6542 = vmatprep.subr.mxu0 0.0
      %v6543 = vand.u32 %v2635, 4294901760
      %6544 = vmatpush1.msra.mxu0 %v6543
      %6545 = vmatprep.subr.mxu0 0.0
      %v6546 = vand.u32 %v2636, 4294901760
      %6547 = vmatpush1.msra.mxu0 %v6546
      %6548 = vmatprep.subr.mxu0 0.0
      %v6549 = vand.u32 %v2637, 4294901760
      %6550 = vmatpush1.msra.mxu0 %v6549
      %6551 = vmatprep.subr.mxu0 0.0
      %v6552 = vand.u32 %v2638, 4294901760
      %6553 = vmatpush1.msra.mxu0 %v6552
      %6554 = vmatprep.subr.mxu0 0.0
      %v6555 = vand.u32 %v2639, 4294901760
      %6556 = vmatpush1.msra.mxu0 %v6555
      %6557 = vmatprep.subr.mxu0 0.0
      %v6558 = vand.u32 %v2640, 4294901760
      %6559 = vmatpush1.msra.mxu0 %v6558
      %6560 = vmatprep.subr.mxu0 0.0
      %v6561 = vand.u32 %v2641, 4294901760
      %6562 = vmatpush1.msra.mxu0 %v6561
      %6563 = vmatprep.subr.mxu0 0.0
      %v6564 = vand.u32 %v2642, 4294901760
      %6565 = vmatpush1.msra.mxu0 %v6564
      %6566 = vmatprep.subr.mxu0 0.0
      %v6567 = vand.u32 %v2643, 4294901760
      %6568 = vmatpush1.msra.mxu0 %v6567
      %6569 = vmatprep.subr.mxu0 0.0
      %v6570 = vand.u32 %v2644, 4294901760
      %6571 = vmatpush1.msra.mxu0 %v6570
      %6572 = vmatprep.subr.mxu0 0.0
      %v6573 = vand.u32 %v2645, 4294901760
      %6574 = vmatpush1.msra.mxu0 %v6573
      %6575 = vmatprep.subr.mxu0 0.0
      %v6576 = vand.u32 %v2646, 4294901760
      %6577 = vmatpush1.msra.mxu0 %v6576
      %6578 = vmatprep.subr.mxu0 0.0
      %v6579 = vand.u32 %v2647, 4294901760
      %6580 = vmatpush1.msra.mxu0 %v6579
      %6581 = vmatprep.subr.mxu0 0.0
      %v6582 = vand.u32 %v2648, 4294901760
      %6583 = vmatpush1.msra.mxu0 %v6582
      %6584 = vmatprep.subr.mxu0 0.0
      %v6585 = vand.u32 %v2649, 4294901760
      %6586 = vmatpush1.msra.mxu0 %v6585
      %6587 = vmatprep.subr.mxu0 0.0
      %v6588 = vand.u32 %v2650, 4294901760
      %6589 = vmatpush1.msra.mxu0 %v6588
      %6590 = vmatprep.subr.mxu0 0.0
      %v6591 = vand.u32 %v2651, 4294901760
      %6592 = vmatpush1.msra.mxu0 %v6591
      %v6593 = vand.u32 %v2556, 4294901760
      %6594 = vmatprep.mubr.f32.mxu0 %v6593
      %v6595 = vand.u32 %v2364, 4294901760
      %6596 = vmatmul.mubr.f32.gmra.mrb[0].mxu0 %v6595
      %v6597 = vpop.f32.mrb[0].mxu0
      %v6598 = vadd.f32 %v6053, %v6597
      %v6599 = vpop.f32.mrb[0].mxu0
      %v6600 = vand.u32 %v2557, 4294901760
      %6601 = vmatprep.mubr.f32.mxu0 %v6600
      %v6602 = vand.u32 %v2365, 4294901760
      %6603 = vmatmul.mubr.f32.gmra.mrb[0].mxu0 %v6602
      %v6604 = vpop.f32.mrb[0].mxu0
      %v6605 = vadd.f32 %v6060, %v6604
      %v6606 = vpop.f32.mrb[0].mxu0
      %v6607 = vand.u32 %v2558, 4294901760
      %6608 = vmatprep.mubr.f32.mxu0 %v6607
      %v6609 = vand.u32 %v2366, 4294901760
      %6610 = vmatmul.mubr.f32.gmra.mrb[0].mxu0 %v6609
      %v6611 = vpop.f32.mrb[0].mxu0
      %v6612 = vadd.f32 %v6067, %v6611
      %v6613 = vpop.f32.mrb[0].mxu0
      %v6614 = vand.u32 %v2559, 4294901760
      %6615 = vmatprep.mubr.f32.mxu0 %v6614
      %v6616 = vand.u32 %v2367, 4294901760
      %6617 = vmatmul.mubr.f32.gmra.mrb[0].mxu0 %v6616
      %v6618 = vpop.f32.mrb[0].mxu0
      %v6619 = vadd.f32 %v6074, %v6618
      %v6620 = vpop.f32.mrb[0].mxu0
      %v6621 = vand.u32 %v2560, 4294901760
      %6622 = vmatprep.mubr.f32.mxu0 %v6621
      %v6623 = vand.u32 %v2368, 4294901760
      %6624 = vmatmul.mubr.f32.gmra.mrb[0].mxu0 %v6623
      %v6625 = vpop.f32.mrb[0].mxu0
      %v6626 = vadd.f32 %v6081, %v6625
      %v6627 = vpop.f32.mrb[0].mxu0
      %v6628 = vand.u32 %v2561, 4294901760
      %6629 = vmatprep.mubr.f32.mxu0 %v6628
      %v6630 = vand.u32 %v2369, 4294901760
      %6631 = vmatmul.mubr.f32.gmra.mrb[0].mxu0 %v6630
      %v6632 = vpop.f32.mrb[0].mxu0
      %v6633 = vadd.f32 %v6088, %v6632
      %v6634 = vpop.f32.mrb[0].mxu0
      %v6635 = vand.u32 %v2562, 4294901760
      %6636 = vmatprep.mubr.f32.mxu0 %v6635
      %v6637 = vand.u32 %v2370, 4294901760
      %6638 = vmatmul.mubr.f32.gmra.mrb[0].mxu0 %v6637
      %v6639 = vpop.f32.mrb[0].mxu0
      %v6640 = vadd.f32 %v6095, %v6639
      %v6641 = vpop.f32.mrb[0].mxu0
      %v6642 = vand.u32 %v2563, 4294901760
      %6643 = vmatprep.mubr.f32.mxu0 %v6642
      %v6644 = vand.u32 %v2371, 4294901760
      %6645 = vmatmul.mubr.f32.gmra.mrb[0].mxu0 %v6644
      %v6646 = vpop.f32.mrb[0].mxu0
      %v6647 = vadd.f32 %v6102, %v6646
      %v6648 = vpop.f32.mrb[0].mxu0
      %v6649 = vand.u32 %v2564, 4294901760
      %6650 = vmatprep.mubr.f32.mxu0 %v6649
      %v6651 = vand.u32 %v2372, 4294901760
      %6652 = vmatmul.mubr.f32.gmra.mrb[0].mxu0 %v6651
      %v6653 = vpop.f32.mrb[0].mxu0
      %v6654 = vadd.f32 %v6109, %v6653
      %v6655 = vpop.f32.mrb[0].mxu0
      %v6656 = vand.u32 %v2565, 4294901760
      %6657 = vmatprep.mubr.f32.mxu0 %v6656
      %v6658 = vand.u32 %v2373, 4294901760
      %6659 = vmatmul.mubr.f32.gmra.mrb[0].mxu0 %v6658
      %v6660 = vpop.f32.mrb[0].mxu0
      %v6661 = vadd.f32 %v6116, %v6660
      %v6662 = vpop.f32.mrb[0].mxu0
      %v6663 = vand.u32 %v2566, 4294901760
      %6664 = vmatprep.mubr.f32.mxu0 %v6663
      %v6665 = vand.u32 %v2374, 4294901760
      %6666 = vmatmul.mubr.f32.gmra.mrb[0].mxu0 %v6665
      %v6667 = vpop.f32.mrb[0].mxu0
      %v6668 = vadd.f32 %v6123, %v6667
      %v6669 = vpop.f32.mrb[0].mxu0
      %v6670 = vand.u32 %v2567, 4294901760
      %6671 = vmatprep.mubr.f32.mxu0 %v6670
      %v6672 = vand.u32 %v2375, 4294901760
      %6673 = vmatmul.mubr.f32.gmra.mrb[0].mxu0 %v6672
      %v6674 = vpop.f32.mrb[0].mxu0
      %v6675 = vadd.f32 %v6130, %v6674
      %v6676 = vpop.f32.mrb[0].mxu0
      %v6677 = vand.u32 %v2568, 4294901760
      %6678 = vmatprep.mubr.f32.mxu0 %v6677
      %v6679 = vand.u32 %v2376, 4294901760
      %6680 = vmatmul.mubr.f32.gmra.mrb[0].mxu0 %v6679
      %v6681 = vpop.f32.mrb[0].mxu0
      %v6682 = vadd.f32 %v6137, %v6681
      %v6683 = vpop.f32.mrb[0].mxu0
      %v6684 = vand.u32 %v2569, 4294901760
      %6685 = vmatprep.mubr.f32.mxu0 %v6684
      %v6686 = vand.u32 %v2377, 4294901760
      %6687 = vmatmul.mubr.f32.gmra.mrb[0].mxu0 %v6686
      %v6688 = vpop.f32.mrb[0].mxu0
      %v6689 = vadd.f32 %v6144, %v6688
      %v6690 = vpop.f32.mrb[0].mxu0
      %v6691 = vand.u32 %v2570, 4294901760
      %6692 = vmatprep.mubr.f32.mxu0 %v6691
      %v6693 = vand.u32 %v2378, 4294901760
      %6694 = vmatmul.mubr.f32.gmra.mrb[0].mxu0 %v6693
      %v6695 = vpop.f32.mrb[0].mxu0
      %v6696 = vadd.f32 %v6151, %v6695
      %v6697 = vpop.f32.mrb[0].mxu0
      %v6698 = vand.u32 %v2571, 4294901760
      %6699 = vmatprep.mubr.f32.mxu0 %v6698
      %v6700 = vand.u32 %v2379, 4294901760
      %6701 = vmatmul.mubr.f32.gmra.mrb[0].mxu0 %v6700
      %v6702 = vpop.f32.mrb[0].mxu0
      %v6703 = vadd.f32 %v6158, %v6702
      %v6704 = vpop.f32.mrb[0].mxu0
      %v6705 = vand.u32 %v2572, 4294901760
      %6706 = vmatprep.mubr.f32.mxu0 %v6705
      %v6707 = vand.u32 %v2380, 4294901760
      %6708 = vmatmul.mubr.f32.gmra.mrb[0].mxu0 %v6707
      %v6709 = vpop.f32.mrb[0].mxu0
      %v6710 = vadd.f32 %v6165, %v6709
      %v6711 = vpop.f32.mrb[0].mxu0
      %v6712 = vand.u32 %v2573, 4294901760
      %6713 = vmatprep.mubr.f32.mxu0 %v6712
      %v6714 = vand.u32 %v2381, 4294901760
      %6715 = vmatmul.mubr.f32.gmra.mrb[0].mxu0 %v6714
      %v6716 = vpop.f32.mrb[0].mxu0
      %v6717 = vadd.f32 %v6172, %v6716
      %v6718 = vpop.f32.mrb[0].mxu0
      %v6719 = vand.u32 %v2574, 4294901760
      %6720 = vmatprep.mubr.f32.mxu0 %v6719
      %v6721 = vand.u32 %v2382, 4294901760
      %6722 = vmatmul.mubr.f32.gmra.mrb[0].mxu0 %v6721
      %v6723 = vpop.f32.mrb[0].mxu0
      %v6724 = vadd.f32 %v6179, %v6723
      %v6725 = vpop.f32.mrb[0].mxu0
      %v6726 = vand.u32 %v2575, 4294901760
      %6727 = vmatprep.mubr.f32.mxu0 %v6726
      %v6728 = vand.u32 %v2383, 4294901760
      %6729 = vmatmul.mubr.f32.gmra.mrb[0].mxu0 %v6728
      %v6730 = vpop.f32.mrb[0].mxu0
      %v6731 = vadd.f32 %v6186, %v6730
      %v6732 = vpop.f32.mrb[0].mxu0
      %v6733 = vand.u32 %v2576, 4294901760
      %6734 = vmatprep.mubr.f32.mxu0 %v6733
      %v6735 = vand.u32 %v2384, 4294901760
      %6736 = vmatmul.mubr.f32.gmra.mrb[0].mxu0 %v6735
      %v6737 = vpop.f32.mrb[0].mxu0
      %v6738 = vadd.f32 %v6193, %v6737
      %v6739 = vpop.f32.mrb[0].mxu0
      %v6740 = vand.u32 %v2577, 4294901760
      %6741 = vmatprep.mubr.f32.mxu0 %v6740
      %v6742 = vand.u32 %v2385, 4294901760
      %6743 = vmatmul.mubr.f32.gmra.mrb[0].mxu0 %v6742
      %v6744 = vpop.f32.mrb[0].mxu0
      %v6745 = vadd.f32 %v6200, %v6744
      %v6746 = vpop.f32.mrb[0].mxu0
      %v6747 = vand.u32 %v2578, 4294901760
      %6748 = vmatprep.mubr.f32.mxu0 %v6747
      %v6749 = vand.u32 %v2386, 4294901760
      %6750 = vmatmul.mubr.f32.gmra.mrb[0].mxu0 %v6749
      %v6751 = vpop.f32.mrb[0].mxu0
      %v6752 = vadd.f32 %v6207, %v6751
      %v6753 = vpop.f32.mrb[0].mxu0
      %v6754 = vand.u32 %v2579, 4294901760
      %6755 = vmatprep.mubr.f32.mxu0 %v6754
      %v6756 = vand.u32 %v2387, 4294901760
      %6757 = vmatmul.mubr.f32.gmra.mrb[0].mxu0 %v6756
      %v6758 = vpop.f32.mrb[0].mxu0
      %v6759 = vadd.f32 %v6214, %v6758
      %v6760 = vpop.f32.mrb[0].mxu0
      %v6761 = vand.u32 %v2580, 4294901760
      %6762 = vmatprep.mubr.f32.mxu0 %v6761
      %v6763 = vand.u32 %v2388, 4294901760
      %6764 = vmatmul.mubr.f32.gmra.mrb[0].mxu0 %v6763
      %v6765 = vpop.f32.mrb[0].mxu0
      %v6766 = vadd.f32 %v6221, %v6765
      %v6767 = vpop.f32.mrb[0].mxu0
      %v6768 = vand.u32 %v2581, 4294901760
      %6769 = vmatprep.mubr.f32.mxu0 %v6768
      %v6770 = vand.u32 %v2389, 4294901760
      %6771 = vmatmul.mubr.f32.gmra.mrb[0].mxu0 %v6770
      %v6772 = vpop.f32.mrb[0].mxu0
      %v6773 = vadd.f32 %v6228, %v6772
      %v6774 = vpop.f32.mrb[0].mxu0
      %v6775 = vand.u32 %v2582, 4294901760
      %6776 = vmatprep.mubr.f32.mxu0 %v6775
      %v6777 = vand.u32 %v2390, 4294901760
      %6778 = vmatmul.mubr.f32.gmra.mrb[0].mxu0 %v6777
      %v6779 = vpop.f32.mrb[0].mxu0
      %v6780 = vadd.f32 %v6235, %v6779
      %v6781 = vpop.f32.mrb[0].mxu0
      %v6782 = vand.u32 %v2583, 4294901760
      %6783 = vmatprep.mubr.f32.mxu0 %v6782
      %v6784 = vand.u32 %v2391, 4294901760
      %6785 = vmatmul.mubr.f32.gmra.mrb[0].mxu0 %v6784
      %v6786 = vpop.f32.mrb[0].mxu0
      %v6787 = vadd.f32 %v6242, %v6786
      %v6788 = vpop.f32.mrb[0].mxu0
      %v6789 = vand.u32 %v2584, 4294901760
      %6790 = vmatprep.mubr.f32.mxu0 %v6789
      %v6791 = vand.u32 %v2392, 4294901760
      %6792 = vmatmul.mubr.f32.gmra.mrb[0].mxu0 %v6791
      %v6793 = vpop.f32.mrb[0].mxu0
      %v6794 = vadd.f32 %v6249, %v6793
      %v6795 = vpop.f32.mrb[0].mxu0
      %v6796 = vand.u32 %v2585, 4294901760
      %6797 = vmatprep.mubr.f32.mxu0 %v6796
      %v6798 = vand.u32 %v2393, 4294901760
      %6799 = vmatmul.mubr.f32.gmra.mrb[0].mxu0 %v6798
      %v6800 = vpop.f32.mrb[0].mxu0
      %v6801 = vadd.f32 %v6256, %v6800
      %v6802 = vpop.f32.mrb[0].mxu0
      %v6803 = vand.u32 %v2586, 4294901760
      %6804 = vmatprep.mubr.f32.mxu0 %v6803
      %v6805 = vand.u32 %v2394, 4294901760
      %6806 = vmatmul.mubr.f32.gmra.mrb[0].mxu0 %v6805
      %v6807 = vpop.f32.mrb[0].mxu0
      %v6808 = vadd.f32 %v6263, %v6807
      %v6809 = vpop.f32.mrb[0].mxu0
      %v6810 = vand.u32 %v2587, 4294901760
      %6811 = vmatprep.mubr.f32.mxu0 %v6810
      %v6812 = vand.u32 %v2395, 4294901760
      %6813 = vmatmul.mubr.f32.gmra.mrb[0].mxu0 %v6812
      %v6814 = vpop.f32.mrb[0].mxu0
      %v6815 = vadd.f32 %v6270, %v6814
      %v6816 = vpop.f32.mrb[0].mxu0
      %v6817 = vand.u32 %v2588, 4294901760
      %6818 = vmatprep.mubr.f32.mxu0 %v6817
      %v6819 = vand.u32 %v2396, 4294901760
      %6820 = vmatmul.mubr.f32.gmra.mrb[0].mxu0 %v6819
      %v6821 = vpop.f32.mrb[0].mxu0
      %v6822 = vadd.f32 %v6277, %v6821
      %v6823 = vpop.f32.mrb[0].mxu0
      %v6824 = vand.u32 %v2589, 4294901760
      %6825 = vmatprep.mubr.f32.mxu0 %v6824
      %v6826 = vand.u32 %v2397, 4294901760
      %6827 = vmatmul.mubr.f32.gmra.mrb[0].mxu0 %v6826
      %v6828 = vpop.f32.mrb[0].mxu0
      %v6829 = vadd.f32 %v6284, %v6828
      %v6830 = vpop.f32.mrb[0].mxu0
      %v6831 = vand.u32 %v2590, 4294901760
      %6832 = vmatprep.mubr.f32.mxu0 %v6831
      %v6833 = vand.u32 %v2398, 4294901760
      %6834 = vmatmul.mubr.f32.gmra.mrb[0].mxu0 %v6833
      %v6835 = vpop.f32.mrb[0].mxu0
      %v6836 = vadd.f32 %v6291, %v6835
      %v6837 = vpop.f32.mrb[0].mxu0
      %v6838 = vand.u32 %v2591, 4294901760
      %6839 = vmatprep.mubr.f32.mxu0 %v6838
      %v6840 = vand.u32 %v2399, 4294901760
      %6841 = vmatmul.mubr.f32.gmra.mrb[0].mxu0 %v6840
      %v6842 = vpop.f32.mrb[0].mxu0
      %v6843 = vadd.f32 %v6298, %v6842
      %v6844 = vpop.f32.mrb[0].mxu0
      %v6845 = vand.u32 %v2592, 4294901760
      %6846 = vmatprep.mubr.f32.mxu0 %v6845
      %v6847 = vand.u32 %v2400, 4294901760
      %6848 = vmatmul.mubr.f32.gmra.mrb[0].mxu0 %v6847
      %v6849 = vpop.f32.mrb[0].mxu0
      %v6850 = vadd.f32 %v6305, %v6849
      %v6851 = vpop.f32.mrb[0].mxu0
      %v6852 = vand.u32 %v2593, 4294901760
      %6853 = vmatprep.mubr.f32.mxu0 %v6852
      %v6854 = vand.u32 %v2401, 4294901760
      %6855 = vmatmul.mubr.f32.gmra.mrb[0].mxu0 %v6854
      %v6856 = vpop.f32.mrb[0].mxu0
      %v6857 = vadd.f32 %v6312, %v6856
      %v6858 = vpop.f32.mrb[0].mxu0
      %v6859 = vand.u32 %v2594, 4294901760
      %6860 = vmatprep.mubr.f32.mxu0 %v6859
      %v6861 = vand.u32 %v2402, 4294901760
      %6862 = vmatmul.mubr.f32.gmra.mrb[0].mxu0 %v6861
      %v6863 = vpop.f32.mrb[0].mxu0
      %v6864 = vadd.f32 %v6319, %v6863
      %v6865 = vpop.f32.mrb[0].mxu0
      %v6866 = vand.u32 %v2595, 4294901760
      %6867 = vmatprep.mubr.f32.mxu0 %v6866
      %v6868 = vand.u32 %v2403, 4294901760
      %6869 = vmatmul.mubr.f32.gmra.mrb[0].mxu0 %v6868
      %v6870 = vpop.f32.mrb[0].mxu0
      %v6871 = vadd.f32 %v6326, %v6870
      %v6872 = vpop.f32.mrb[0].mxu0
      %v6873 = vand.u32 %v2596, 4294901760
      %6874 = vmatprep.mubr.f32.mxu0 %v6873
      %v6875 = vand.u32 %v2404, 4294901760
      %6876 = vmatmul.mubr.f32.gmra.mrb[0].mxu0 %v6875
      %v6877 = vpop.f32.mrb[0].mxu0
      %v6878 = vadd.f32 %v6333, %v6877
      %v6879 = vpop.f32.mrb[0].mxu0
      %v6880 = vand.u32 %v2597, 4294901760
      %6881 = vmatprep.mubr.f32.mxu0 %v6880
      %v6882 = vand.u32 %v2405, 4294901760
      %6883 = vmatmul.mubr.f32.gmra.mrb[0].mxu0 %v6882
      %v6884 = vpop.f32.mrb[0].mxu0
      %v6885 = vadd.f32 %v6340, %v6884
      %v6886 = vpop.f32.mrb[0].mxu0
      %v6887 = vand.u32 %v2598, 4294901760
      %6888 = vmatprep.mubr.f32.mxu0 %v6887
      %v6889 = vand.u32 %v2406, 4294901760
      %6890 = vmatmul.mubr.f32.gmra.mrb[0].mxu0 %v6889
      %v6891 = vpop.f32.mrb[0].mxu0
      %v6892 = vadd.f32 %v6347, %v6891
      %v6893 = vpop.f32.mrb[0].mxu0
      %v6894 = vand.u32 %v2599, 4294901760
      %6895 = vmatprep.mubr.f32.mxu0 %v6894
      %v6896 = vand.u32 %v2407, 4294901760
      %6897 = vmatmul.mubr.f32.gmra.mrb[0].mxu0 %v6896
      %v6898 = vpop.f32.mrb[0].mxu0
      %v6899 = vadd.f32 %v6354, %v6898
      %v6900 = vpop.f32.mrb[0].mxu0
      %v6901 = vand.u32 %v2600, 4294901760
      %6902 = vmatprep.mubr.f32.mxu0 %v6901
      %v6903 = vand.u32 %v2408, 4294901760
      %6904 = vmatmul.mubr.f32.gmra.mrb[0].mxu0 %v6903
      %v6905 = vpop.f32.mrb[0].mxu0
      %v6906 = vadd.f32 %v6361, %v6905
      %v6907 = vpop.f32.mrb[0].mxu0
      %v6908 = vand.u32 %v2601, 4294901760
      %6909 = vmatprep.mubr.f32.mxu0 %v6908
      %v6910 = vand.u32 %v2409, 4294901760
      %6911 = vmatmul.mubr.f32.gmra.mrb[0].mxu0 %v6910
      %v6912 = vpop.f32.mrb[0].mxu0
      %v6913 = vadd.f32 %v6368, %v6912
      %v6914 = vpop.f32.mrb[0].mxu0
      %v6915 = vand.u32 %v2602, 4294901760
      %6916 = vmatprep.mubr.f32.mxu0 %v6915
      %v6917 = vand.u32 %v2410, 4294901760
      %6918 = vmatmul.mubr.f32.gmra.mrb[0].mxu0 %v6917
      %v6919 = vpop.f32.mrb[0].mxu0
      %v6920 = vadd.f32 %v6375, %v6919
      %v6921 = vpop.f32.mrb[0].mxu0
      %v6922 = vand.u32 %v2603, 4294901760
      %6923 = vmatprep.mubr.f32.mxu0 %v6922
      %v6924 = vand.u32 %v2411, 4294901760
      %6925 = vmatmul.mubr.f32.gmra.mrb[0].mxu0 %v6924
      %v6926 = vpop.f32.mrb[0].mxu0
      %v6927 = vadd.f32 %v6382, %v6926
      %v6928 = vpop.f32.mrb[0].mxu0
      %v6929 = vand.u32 %v2604, 4294901760
      %6930 = vmatprep.mubr.f32.mxu0 %v6929
      %v6931 = vand.u32 %v2412, 4294901760
      %6932 = vmatmul.mubr.f32.gmra.mrb[0].mxu0 %v6931
      %v6933 = vpop.f32.mrb[0].mxu0
      %v6934 = vadd.f32 %v6389, %v6933
      %v6935 = vpop.f32.mrb[0].mxu0
      %v6936 = vand.u32 %v2605, 4294901760
      %6937 = vmatprep.mubr.f32.mxu0 %v6936
      %v6938 = vand.u32 %v2413, 4294901760
      %6939 = vmatmul.mubr.f32.gmra.mrb[0].mxu0 %v6938
      %v6940 = vpop.f32.mrb[0].mxu0
      %v6941 = vadd.f32 %v6396, %v6940
      %v6942 = vpop.f32.mrb[0].mxu0
      %v6943 = vand.u32 %v2606, 4294901760
      %6944 = vmatprep.mubr.f32.mxu0 %v6943
      %v6945 = vand.u32 %v2414, 4294901760
      %6946 = vmatmul.mubr.f32.gmra.mrb[0].mxu0 %v6945
      %v6947 = vpop.f32.mrb[0].mxu0
      %v6948 = vadd.f32 %v6403, %v6947
      %v6949 = vpop.f32.mrb[0].mxu0
      %v6950 = vand.u32 %v2607, 4294901760
      %6951 = vmatprep.mubr.f32.mxu0 %v6950
      %v6952 = vand.u32 %v2415, 4294901760
      %6953 = vmatmul.mubr.f32.gmra.mrb[0].mxu0 %v6952
      %v6954 = vpop.f32.mrb[0].mxu0
      %v6955 = vadd.f32 %v6410, %v6954
      %v6956 = vpop.f32.mrb[0].mxu0
      %v6957 = vand.u32 %v2608, 4294901760
      %6958 = vmatprep.mubr.f32.mxu0 %v6957
      %v6959 = vand.u32 %v2416, 4294901760
      %6960 = vmatmul.mubr.f32.gmra.mrb[0].mxu0 %v6959
      %v6961 = vpop.f32.mrb[0].mxu0
      %v6962 = vadd.f32 %v6417, %v6961
      %v6963 = vpop.f32.mrb[0].mxu0
      %v6964 = vand.u32 %v2609, 4294901760
      %6965 = vmatprep.mubr.f32.mxu0 %v6964
      %v6966 = vand.u32 %v2417, 4294901760
      %6967 = vmatmul.mubr.f32.gmra.mrb[0].mxu0 %v6966
      %v6968 = vpop.f32.mrb[0].mxu0
      %v6969 = vadd.f32 %v6424, %v6968
      %v6970 = vpop.f32.mrb[0].mxu0
      %v6971 = vand.u32 %v2610, 4294901760
      %6972 = vmatprep.mubr.f32.mxu0 %v6971
      %v6973 = vand.u32 %v2418, 4294901760
      %6974 = vmatmul.mubr.f32.gmra.mrb[0].mxu0 %v6973
      %v6975 = vpop.f32.mrb[0].mxu0
      %v6976 = vadd.f32 %v6431, %v6975
      %v6977 = vpop.f32.mrb[0].mxu0
      %v6978 = vand.u32 %v2611, 4294901760
      %6979 = vmatprep.mubr.f32.mxu0 %v6978
      %v6980 = vand.u32 %v2419, 4294901760
      %6981 = vmatmul.mubr.f32.gmra.mrb[0].mxu0 %v6980
      %v6982 = vpop.f32.mrb[0].mxu0
      %v6983 = vadd.f32 %v6438, %v6982
      %v6984 = vpop.f32.mrb[0].mxu0
      %v6985 = vand.u32 %v2612, 4294901760
      %6986 = vmatprep.mubr.f32.mxu0 %v6985
      %v6987 = vand.u32 %v2420, 4294901760
      %6988 = vmatmul.mubr.f32.gmra.mrb[0].mxu0 %v6987
      %v6989 = vpop.f32.mrb[0].mxu0
      %v6990 = vadd.f32 %v6445, %v6989
      %v6991 = vpop.f32.mrb[0].mxu0
      %v6992 = vand.u32 %v2613, 4294901760
      %6993 = vmatprep.mubr.f32.mxu0 %v6992
      %v6994 = vand.u32 %v2421, 4294901760
      %6995 = vmatmul.mubr.f32.gmra.mrb[0].mxu0 %v6994
      %v6996 = vpop.f32.mrb[0].mxu0
      %v6997 = vadd.f32 %v6452, %v6996
      %v6998 = vpop.f32.mrb[0].mxu0
      %v6999 = vand.u32 %v2614, 4294901760
      %7000 = vmatprep.mubr.f32.mxu0 %v6999
      %v7001 = vand.u32 %v2422, 4294901760
      %7002 = vmatmul.mubr.f32.gmra.mrb[0].mxu0 %v7001
      %v7003 = vpop.f32.mrb[0].mxu0
      %v7004 = vadd.f32 %v6459, %v7003
      %v7005 = vpop.f32.mrb[0].mxu0
      %v7006 = vand.u32 %v2615, 4294901760
      %7007 = vmatprep.mubr.f32.mxu0 %v7006
      %v7008 = vand.u32 %v2423, 4294901760
      %7009 = vmatmul.mubr.f32.gmra.mrb[0].mxu0 %v7008
      %v7010 = vpop.f32.mrb[0].mxu0
      %v7011 = vadd.f32 %v6466, %v7010
      %v7012 = vpop.f32.mrb[0].mxu0
      %v7013 = vand.u32 %v2616, 4294901760
      %7014 = vmatprep.mubr.f32.mxu0 %v7013
      %v7015 = vand.u32 %v2424, 4294901760
      %7016 = vmatmul.mubr.f32.gmra.mrb[0].mxu0 %v7015
      %v7017 = vpop.f32.mrb[0].mxu0
      %v7018 = vadd.f32 %v6473, %v7017
      %v7019 = vpop.f32.mrb[0].mxu0
      %v7020 = vand.u32 %v2617, 4294901760
      %7021 = vmatprep.mubr.f32.mxu0 %v7020
      %v7022 = vand.u32 %v2425, 4294901760
      %7023 = vmatmul.mubr.f32.gmra.mrb[0].mxu0 %v7022
      %v7024 = vpop.f32.mrb[0].mxu0
      %v7025 = vadd.f32 %v6480, %v7024
      %v7026 = vpop.f32.mrb[0].mxu0
      %v7027 = vand.u32 %v2618, 4294901760
      %7028 = vmatprep.mubr.f32.mxu0 %v7027
      %v7029 = vand.u32 %v2426, 4294901760
      %7030 = vmatmul.mubr.f32.gmra.mrb[0].mxu0 %v7029
      %v7031 = vpop.f32.mrb[0].mxu0
      %v7032 = vadd.f32 %v6487, %v7031
      %v7033 = vpop.f32.mrb[0].mxu0
      %v7034 = vand.u32 %v2619, 4294901760
      %7035 = vmatprep.mubr.f32.mxu0 %v7034
      %v7036 = vand.u32 %v2427, 4294901760
      %7037 = vmatmul.mubr.f32.gmra.mrb[0].mxu0 %v7036
      %v7038 = vpop.f32.mrb[0].mxu0
      %v7039 = vadd.f32 %v6494, %v7038
      %v7040 = vpop.f32.mrb[0].mxu0
      %7041 = vdwg.mxu0
      %7042 = vxpose.xlu0.b32.start [1/16] %v6598, 128
      %7043 = vxpose.xlu0.b32.cont [2/16] %v6605, 128
      %7044 = vxpose.xlu0.b32.cont [3/16] %v6612, 128
      %7045 = vxpose.xlu0.b32.cont [4/16] %v6619, 128
      %7046 = vxpose.xlu0.b32.cont [5/16] %v6626, 128
      %7047 = vxpose.xlu0.b32.cont [6/16] %v6633, 128
      %7048 = vxpose.xlu0.b32.cont [7/16] %v6640, 128
      %7049 = vxpose.xlu0.b32.cont [8/16] %v6647, 128
      %7050 = vxpose.xlu0.b32.cont [9/16] %v6654, 128
      %7051 = vxpose.xlu0.b32.cont [10/16] %v6661, 128
      %7052 = vxpose.xlu0.b32.cont [11/16] %v6668, 128
      %7053 = vxpose.xlu0.b32.cont [12/16] %v6675, 128
      %7054 = vxpose.xlu0.b32.cont [13/16] %v6682, 128
      %7055 = vxpose.xlu0.b32.cont [14/16] %v6689, 128
      %7056 = vxpose.xlu0.b32.cont [15/16] %v6696, 128
      %7057 = vxpose.xlu0.b32.end [16/16] %v6703, 128
      %v7058 = vpop.trf.xlu0
      %v7059 = vpop.trf.xlu0
      %v7060 = vpop.trf.xlu0
      %v7061 = vpop.trf.xlu0
      %v7062 = vpop.trf.xlu0
      %v7063 = vpop.trf.xlu0
      %v7064 = vpop.trf.xlu0
      %v7065 = vpop.trf.xlu0
      %v7066 = vpop.trf.xlu0
      %v7067 = vpop.trf.xlu0
      %v7068 = vpop.trf.xlu0
      %v7069 = vpop.trf.xlu0
      %v7070 = vpop.trf.xlu0
      %v7071 = vpop.trf.xlu0
      %v7072 = vpop.trf.xlu0
      %v7073 = vpop.trf.xlu0
      %7074 = vxpose.xlu0.b32.start [1/16] %v6710, 128
      %7075 = vxpose.xlu0.b32.cont [2/16] %v6717, 128
      %7076 = vxpose.xlu0.b32.cont [3/16] %v6724, 128
      %7077 = vxpose.xlu0.b32.cont [4/16] %v6731, 128
      %7078 = vxpose.xlu0.b32.cont [5/16] %v6738, 128
      %7079 = vxpose.xlu0.b32.cont [6/16] %v6745, 128
      %7080 = vxpose.xlu0.b32.cont [7/16] %v6752, 128
      %7081 = vxpose.xlu0.b32.cont [8/16] %v6759, 128
      %7082 = vxpose.xlu0.b32.cont [9/16] %v6766, 128
      %7083 = vxpose.xlu0.b32.cont [10/16] %v6773, 128
      %7084 = vxpose.xlu0.b32.cont [11/16] %v6780, 128
      %7085 = vxpose.xlu0.b32.cont [12/16] %v6787, 128
      %7086 = vxpose.xlu0.b32.cont [13/16] %v6794, 128
      %7087 = vxpose.xlu0.b32.cont [14/16] %v6801, 128
      %7088 = vxpose.xlu0.b32.cont [15/16] %v6808, 128
      %7089 = vxpose.xlu0.b32.end [16/16] %v6815, 128
      %v7090 = vpop.trf.xlu0
      %v7091 = vpop.trf.xlu0
      %v7092 = vpop.trf.xlu0
      %v7093 = vpop.trf.xlu0
      %v7094 = vpop.trf.xlu0
      %v7095 = vpop.trf.xlu0
      %v7096 = vpop.trf.xlu0
      %v7097 = vpop.trf.xlu0
      %v7098 = vpop.trf.xlu0
      %v7099 = vpop.trf.xlu0
      %v7100 = vpop.trf.xlu0
      %v7101 = vpop.trf.xlu0
      %v7102 = vpop.trf.xlu0
      %v7103 = vpop.trf.xlu0
      %v7104 = vpop.trf.xlu0
      %v7105 = vpop.trf.xlu0
      %7106 = vxpose.xlu0.b32.start [1/16] %v6822, 128
      %7107 = vxpose.xlu0.b32.cont [2/16] %v6829, 128
      %7108 = vxpose.xlu0.b32.cont [3/16] %v6836, 128
      %7109 = vxpose.xlu0.b32.cont [4/16] %v6843, 128
      %7110 = vxpose.xlu0.b32.cont [5/16] %v6850, 128
      %7111 = vxpose.xlu0.b32.cont [6/16] %v6857, 128
      %7112 = vxpose.xlu0.b32.cont [7/16] %v6864, 128
      %7113 = vxpose.xlu0.b32.cont [8/16] %v6871, 128
      %7114 = vxpose.xlu0.b32.cont [9/16] %v6878, 128
      %7115 = vxpose.xlu0.b32.cont [10/16] %v6885, 128
      %7116 = vxpose.xlu0.b32.cont [11/16] %v6892, 128
      %7117 = vxpose.xlu0.b32.cont [12/16] %v6899, 128
      %7118 = vxpose.xlu0.b32.cont [13/16] %v6906, 128
      %7119 = vxpose.xlu0.b32.cont [14/16] %v6913, 128
      %7120 = vxpose.xlu0.b32.cont [15/16] %v6920, 128
      %7121 = vxpose.xlu0.b32.end [16/16] %v6927, 128
      %v7122 = vpop.trf.xlu0
      %v7123 = vpop.trf.xlu0
      %v7124 = vpop.trf.xlu0
      %v7125 = vpop.trf.xlu0
      %v7126 = vpop.trf.xlu0
      %v7127 = vpop.trf.xlu0
      %v7128 = vpop.trf.xlu0
      %v7129 = vpop.trf.xlu0
      %v7130 = vpop.trf.xlu0
      %v7131 = vpop.trf.xlu0
      %v7132 = vpop.trf.xlu0
      %v7133 = vpop.trf.xlu0
      %v7134 = vpop.trf.xlu0
      %v7135 = vpop.trf.xlu0
      %v7136 = vpop.trf.xlu0
      %v7137 = vpop.trf.xlu0
      %7138 = vxpose.xlu0.b32.start [1/16] %v6934, 128
      %7139 = vxpose.xlu0.b32.cont [2/16] %v6941, 128
      %7140 = vxpose.xlu0.b32.cont [3/16] %v6948, 128
      %7141 = vxpose.xlu0.b32.cont [4/16] %v6955, 128
      %7142 = vxpose.xlu0.b32.cont [5/16] %v6962, 128
      %7143 = vxpose.xlu0.b32.cont [6/16] %v6969, 128
      %7144 = vxpose.xlu0.b32.cont [7/16] %v6976, 128
      %7145 = vxpose.xlu0.b32.cont [8/16] %v6983, 128
      %7146 = vxpose.xlu0.b32.cont [9/16] %v6990, 128
      %7147 = vxpose.xlu0.b32.cont [10/16] %v6997, 128
      %7148 = vxpose.xlu0.b32.cont [11/16] %v7004, 128
      %7149 = vxpose.xlu0.b32.cont [12/16] %v7011, 128
      %7150 = vxpose.xlu0.b32.cont [13/16] %v7018, 128
      %7151 = vxpose.xlu0.b32.cont [14/16] %v7025, 128
      %7152 = vxpose.xlu0.b32.cont [15/16] %v7032, 128
      %7153 = vxpose.xlu0.b32.end [16/16] %v7039, 128
      %v7154 = vpop.trf.xlu0
      %v7155 = vpop.trf.xlu0
      %v7156 = vpop.trf.xlu0
      %v7157 = vpop.trf.xlu0
      %v7158 = vpop.trf.xlu0
      %v7159 = vpop.trf.xlu0
      %v7160 = vpop.trf.xlu0
      %v7161 = vpop.trf.xlu0
      %v7162 = vpop.trf.xlu0
      %v7163 = vpop.trf.xlu0
      %v7164 = vpop.trf.xlu0
      %v7165 = vpop.trf.xlu0
      %v7166 = vpop.trf.xlu0
      %v7167 = vpop.trf.xlu0
      %v7168 = vpop.trf.xlu0
      %v7169 = vpop.trf.xlu0
      %7170 = vst [vmem:[%s177] sm:$0xff] %v7058
      %7171 = vst [vmem:[%s177 + $0x8] sm:$0xff] %v7090
      %7172 = vst [vmem:[%s177 + $0x10] sm:$0xff] %v7122
      %7173 = vst [vmem:[%s177 + $0x18] sm:$0xff] %v7154
      %v7174 = vadd.f32 %v7058, %v7090
      %v7175 = vadd.f32 %v7174, %v7122
      %v7176 = vadd.f32 %v7175, %v7154
      %7177 = vadd.xlane.f32.xlu0 %v7176
      %v7178 = vpop.xlane.xlu0 %7177
      %v7179 = vmul.f32 %v7178, 0.001953125
      %v7180 = vsub.f32 %v7058, %v7179
      %v7181 = vsub.f32 %v7090, %v7179
      %v7182 = vsub.f32 %v7122, %v7179
      %v7183 = vsub.f32 %v7154, %v7179
      %v7184 = vmul.f32 %v7180, %v7180
      %v7185 = vmul.f32 %v7181, %v7181
      %v7186 = vmul.f32 %v7182, %v7182
      %v7187 = vmul.f32 %v7183, %v7183
      %v7188 = vadd.f32 %v7184, %v7185
      %v7189 = vadd.f32 %v7188, %v7186
      %v7190 = vadd.f32 %v7189, %v7187
      %7191 = vadd.xlane.f32.xlu0 %v7190
      %v7192 = vpop.xlane.xlu0 %7191
      %vm7193 = vcmask 7168
      %v7194 = vsel %vm7193, %v7179, %v7192
      %vm7195 = vcmask 15360
      %7196 = vst.msk [vmem:[%s181] sm:$0xff] %vm7195, %v7194
      %p7197 = scmp.lt.s32.totalorder %s15, 1
      %s7198 = scalar_select %p7197, %s15, 1
      %s7199 = smul.addr %s7198, 4
      %s7200 = smul.addr %s7199, 8
      %s7201 = scalar_lea.vmem %s2, %s7200
      %p7202 = scmp.lt.s32.totalorder %s15, 1
      %s7203 = scalar_select %p7202, %s15, 1
      %s7204 = smul.addr %s7203, 8
      %s7205 = scalar_lea.vmem %s3, %s7204
      // Predicated region
      $region29: #{block2_forward.2} parent=27 // pred_check
        %p7206 = pneg %p80
      $region30: #{block2_forward.2} parent=27 // pred_check_branch
        %7208 = sbr.rel (%p7206) target = $region32
      $region31: #{block2_forward.2} parent=27 // pred_region
        _
      $region32: #{block2_forward.2} parent=27 // pred_fallthru
        _
      // Predicated region
      $region33: #{block2_forward.2} parent=27 // pred_check
        %p7209 = pneg %p106
      $region34: #{block2_forward.2} parent=27 // pred_check_branch
        %7211 = sbr.rel (%p7209) target = $region36
      $region35: #{block2_forward.2} parent=27 // pred_region
        _
      $region36: #{block2_forward.2} parent=27 // pred_fallthru
        _
    $region28: #{block2_forward.2} parent=5 // pred_fallthru
      _
    %p7212 = scmp.le.s32.totalorder 2, %s10
    // Predicated region
    $region37: #{block2_forward.2} parent=5 // pred_check
      %p7213 = pneg %p7212
    $region38: #{block2_forward.2} parent=5 // pred_check_branch
      %7215 = sbr.rel (%p7213) target = $region40
    $region39: #{block2_forward.2} parent=5 // pred_region
      %s7216 = ssub.s32 %s10, 2
      // Predicated region
      $region41: #{block2_forward.2} parent=39 // pred_check
        %p7217 = pneg %p86
      $region42: #{block2_forward.2} parent=39 // pred_check_branch
        %7219 = sbr.rel (%p7217) target = $region44
      $region43: #{block2_forward.2} parent=39 // pred_region
        %p7220 = scmp.lt.s32.totalorder %s16, 1
        %s7221 = scalar_select %p7220, %s16, 1
        %s7222 = smul.addr %s7221, 4
        %s7223 = smul.addr %s7222, 8
        %s7224 = scalar_lea.vmem %s2, %s7223
      $region44: #{block2_forward.2} parent=39 // pred_fallthru
        _
      // Predicated region
      $region45: #{block2_forward.2} parent=39 // pred_check
        %p7225 = pneg %p112
      $region46: #{block2_forward.2} parent=39 // pred_check_branch
        %7227 = sbr.rel (%p7225) target = $region48
      $region47: #{block2_forward.2} parent=39 // pred_region
        %p7228 = scmp.lt.s32.totalorder %s16, 1
        %s7229 = scalar_select %p7228, %s16, 1
        %s7230 = smul.addr %s7229, 8
        %s7231 = scalar_lea.vmem %s3, %s7230
      $region48: #{block2_forward.2} parent=39 // pred_fallthru
        _
    $region40: #{block2_forward.2} parent=5 // pred_fallthru
      _
  $region6: #{block2_forward.2} parent=0 // loop_footer
    %s14 = sadd.s32 1, %s10
  $region7: #{block2_forward.2} parent=0 // loop_footer_branch
    %9 = sbr.rel target = $region3
  $region8: #{block2_forward.2} parent=0 // loop_exit
    _

</llo_original>
